<compile_context>
chip_gen: v6e
topology: v6e:2x2x1
jax: 0.10.0
libtpu: 0.0.40
codegen_flags: <defaults>
</compile_context>

<pallas_src>
import functools

import jax
import jax.numpy as jnp
from jax.experimental import pallas as pl
from jax.experimental.pallas import tpu as pltpu

TILE_R = 256                   # max row tile for all kernels
_NUM_ATOM_TYPES = 9
_DEFAULT_E_DIM = (32, 1)
_DEFAULT_V_DIM = (100, 16)
NUM_RBF = 16
EPS_NORM = 1e-8                # gvp._norm_no_nan clamp
EPS_LN = 1e-5                  # torch.nn.LayerNorm default eps

_COMPILER_PARAMS = pltpu.CompilerParams(dimension_semantics=("parallel",))


# ----------------------------------------------------------------------------
# small helpers (wrapper side)
# ----------------------------------------------------------------------------
def _tiling(n):
    """Row tile (multiple of 8, capped at TILE_R) and padded row count."""
    tile = TILE_R if n >= TILE_R else -(-n // 8) * 8
    npad = -(-n // tile) * tile
    return tile, npad


def _pad_rows(x, npad):
    x = x.astype(jnp.float32)
    if x.shape[0] == npad:
        return x
    pad = [(0, npad - x.shape[0])] + [(0, 0)] * (x.ndim - 1)
    return jnp.pad(x, pad)


def _row_spec(tile, width):
    return pl.BlockSpec((tile, width), lambda i: (i, 0))


def _full_spec(shape):
    return pl.BlockSpec(shape, lambda i: (0, 0))


def _bdiag3(w):
    """[a,b] -> [3a,3b] block-diagonal (component-major 3-vector matmul)."""
    a, b = w.shape
    z = jnp.zeros((a, b), w.dtype)
    return jnp.concatenate(
        [jnp.concatenate([w, z, z], axis=1),
         jnp.concatenate([z, w, z], axis=1),
         jnp.concatenate([z, z, w], axis=1)], axis=0)


# ----------------------------------------------------------------------------
# in-kernel building blocks (operate on values, not refs)
# ----------------------------------------------------------------------------
def _ln_scalar(s, g, b):
    mu = jnp.mean(s, axis=-1, keepdims=True)
    var = jnp.mean(jnp.square(s - mu), axis=-1, keepdims=True)
    return (s - mu) * jax.lax.rsqrt(var + EPS_LN) * g + b


def _ln_vector(v):
    """GVP LayerNorm on component-major flat vectors [R, 3*nv]."""
    nv = v.shape[-1] // 3
    sq = v * v
    ssum = jnp.maximum(sq[:, 0:nv] + sq[:, nv:2 * nv] + sq[:, 2 * nv:3 * nv],
                       EPS_NORM)
    vn = jnp.sqrt(jnp.mean(ssum, axis=-1, keepdims=True))
    return v / vn


def _gvp_apply(s, v, whD, ws_s, ws_vn, ws_b, wvD, wg_w, wg_b, *, relu):
    """One GVP (vi>0, vector_gate=True, vector_act=None).
    s: [R, si]; v: [R, 3*vi] component-major; whD/wvD are block-diagonal."""
    h = whD.shape[1] // 3
    vh = jnp.dot(v, whD, preferred_element_type=jnp.float32)        # [R, 3h]
    vn = jnp.sqrt(jnp.maximum(
        jnp.square(vh[:, 0:h]) + jnp.square(vh[:, h:2 * h])
        + jnp.square(vh[:, 2 * h:3 * h]), EPS_NORM))                 # [R, h]
    s_pre = (jnp.dot(s, ws_s, preferred_element_type=jnp.float32)
             + jnp.dot(vn, ws_vn, preferred_element_type=jnp.float32)
             + ws_b)
    s_out = jnp.maximum(s_pre, 0.0) if relu else s_pre
    if wvD is None:                                                  # vo == 0
        return s_out, None
    # gate computed from pre-activation scalars (vector_act is None)
    gate = jax.nn.sigmoid(
        jnp.dot(s_pre, wg_w, preferred_element_type=jnp.float32) + wg_b)
    v_out = jnp.dot(vh, wvD, preferred_element_type=jnp.float32)     # [R, 3vo]
    gate3 = jnp.concatenate([gate, gate, gate], axis=-1)
    return s_out, v_out * gate3


# ----------------------------------------------------------------------------
# fused kernels
# ----------------------------------------------------------------------------
def _chain_kernel(*refs, has_ln, cfg):
    """Optional LayerNorm(s,v) followed by a chain of GVPs, fully fused."""
    it = iter(refs)
    s = next(it)[...]
    v = next(it)[...]
    if has_ln:
        g = next(it)[...]
        b = next(it)[...]
        s = _ln_scalar(s, g, b)
        v = _ln_vector(v)
    for has_vec, relu in cfg:
        whD = next(it)[...]
        ws_s = next(it)[...]
        ws_vn = next(it)[...]
        ws_b = next(it)[...]
        if has_vec:
            wvD = next(it)[...]
            wg_w = next(it)[...]
            wg_b = next(it)[...]
        else:
            wvD = wg_w = wg_b = None
        s, v = _gvp_apply(s, v, whD, ws_s, ws_vn, ws_b, wvD, wg_w, wg_b,
                          relu=relu)
    next(it)[...] = s            # scalar output (lane-dense single store)
    if cfg[-1][0]:
        next(it)[...] = v        # vector output (single [R, 3*vo] store)


def _res_ln_kernel(s_ref, ds_ref, v_ref, dv_ref, g_ref, b_ref, so_ref, vo_ref):
    """Fused residual add + GVP LayerNorm (scalar + vector)."""
    s = s_ref[...] + ds_ref[...]
    v = v_ref[...] + dv_ref[...]
    so_ref[...] = _ln_scalar(s, g_ref[...], b_ref[...])
    vo_ref[...] = _ln_vector(v)


def _ln_linear_kernel(s_ref, g_ref, b_ref, w_ref, wb_ref, o_ref):
    """Fused scalar LayerNorm + Linear (the W_v path: vi = 0 GVP)."""
    s = _ln_scalar(s_ref[...], g_ref[...], b_ref[...])
    o_ref[...] = (jnp.dot(s, w_ref[...], preferred_element_type=jnp.float32)
                  + wb_ref[...])


def _linear_kernel(x_ref, w_ref, b_ref, o_ref, *, relu):
    y = (jnp.dot(x_ref[...], w_ref[...], preferred_element_type=jnp.float32)
         + b_ref[...])
    o_ref[...] = jnp.maximum(y, 0.0) if relu else y


# ----------------------------------------------------------------------------
# wrappers
# ----------------------------------------------------------------------------
def gvp_chain(s, v, chain, relus, *, ln=None):
    """Optional LayerNorm then a fused chain of GVPs in ONE pallas_call.
    s: [R, si]; v: [R, 3, vi] component-major."""
    n, si = s.shape
    nv_in = v.shape[2]
    tile, npad = _tiling(n)
    sp = _pad_rows(s, npad)
    vp = _pad_rows(v.reshape(n, 3 * nv_in), npad)

    args = [sp, vp]
    in_specs = [_row_spec(tile, si), _row_spec(tile, 3 * nv_in)]
    if ln is not None:
        g, b = ln
        args += [g.reshape(1, si).astype(jnp.float32),
                 b.reshape(1, si).astype(jnp.float32)]
        in_specs += [_full_spec((1, si)), _full_spec((1, si))]

    cfg = []
    for p, relu in zip(chain, relus):
        has_vec = 'wvD' in p
        cfg.append((has_vec, relu))
        so = p['ws_s'].shape[1]
        args += [p['whD'], p['ws_s'], p['ws_vn'], p['ws_b'].reshape(1, so)]
        in_specs += [_full_spec(p['whD'].shape), _full_spec(p['ws_s'].shape),
                     _full_spec(p['ws_vn'].shape), _full_spec((1, so))]
        if has_vec:
            vo = p['wvD'].shape[1] // 3
            args += [p['wvD'], p['wg_w'], p['wg_b'].reshape(1, vo)]
            in_specs += [_full_spec(p['wvD'].shape), _full_spec(p['wg_w'].shape),
                         _full_spec((1, vo))]

    so_last = chain[-1]['ws_s'].shape[1]
    out_vec = cfg[-1][0]
    if out_vec:
        vo_last = chain[-1]['wvD'].shape[1] // 3
        out_shape = (jax.ShapeDtypeStruct((npad, so_last), jnp.float32),
                     jax.ShapeDtypeStruct((npad, 3 * vo_last), jnp.float32))
        out_specs = (_row_spec(tile, so_last), _row_spec(tile, 3 * vo_last))
    else:
        out_shape = jax.ShapeDtypeStruct((npad, so_last), jnp.float32)
        out_specs = _row_spec(tile, so_last)

    res = pl.pallas_call(
        functools.partial(_chain_kernel, has_ln=ln is not None, cfg=tuple(cfg)),
        out_shape=out_shape,
        grid=(npad // tile,),
        in_specs=in_specs,
        out_specs=out_specs,
        compiler_params=_COMPILER_PARAMS,
    )(*args)
    if out_vec:
        s_out, v_out = res
        return s_out[:n], v_out[:n].reshape(n, 3, vo_last)
    return res[:n]


def residual_layernorm(h_s, d_s, h_v, d_v, g, b):
    """x <- LayerNorm(x + dx), fused (Dropout is eval-mode identity)."""
    n, si = h_s.shape
    nv = h_v.shape[2]
    tile, npad = _tiling(n)
    sp = _pad_rows(h_s, npad)
    dsp = _pad_rows(d_s, npad)
    vp = _pad_rows(h_v.reshape(n, 3 * nv), npad)
    dvp = _pad_rows(d_v.reshape(n, 3 * nv), npad)
    s_out, v_out = pl.pallas_call(
        _res_ln_kernel,
        out_shape=(jax.ShapeDtypeStruct((npad, si), jnp.float32),
                   jax.ShapeDtypeStruct((npad, 3 * nv), jnp.float32)),
        grid=(npad // tile,),
        in_specs=[_row_spec(tile, si), _row_spec(tile, si),
                  _row_spec(tile, 3 * nv), _row_spec(tile, 3 * nv),
                  _full_spec((1, si)), _full_spec((1, si))],
        out_specs=(_row_spec(tile, si), _row_spec(tile, 3 * nv)),
        compiler_params=_COMPILER_PARAMS,
    )(sp, dsp, vp, dvp,
      g.reshape(1, si).astype(jnp.float32), b.reshape(1, si).astype(jnp.float32))
    return s_out[:n], v_out[:n].reshape(n, 3, nv)


def ln_linear(x, g, b, w, wb):
    """Fused LayerNorm(si) + Linear(si -> so)  (the W_v path)."""
    n, k = x.shape
    m = w.shape[1]
    tile, npad = _tiling(n)
    xp = _pad_rows(x, npad)
    out = pl.pallas_call(
        _ln_linear_kernel,
        out_shape=jax.ShapeDtypeStruct((npad, m), jnp.float32),
        grid=(npad // tile,),
        in_specs=[_row_spec(tile, k), _full_spec((1, k)), _full_spec((1, k)),
                  _full_spec((k, m)), _full_spec((1, m))],
        out_specs=_row_spec(tile, m),
        compiler_params=_COMPILER_PARAMS,
    )(xp, g.reshape(1, k).astype(jnp.float32), b.reshape(1, k).astype(jnp.float32),
      w.astype(jnp.float32), wb.reshape(1, m).astype(jnp.float32))
    return out[:n]


def linear(x, w, b, relu=False):
    """y = act(x @ w + b); row-tiled Pallas matmul (dense head)."""
    n, k = x.shape
    m = w.shape[1]
    tile, npad = _tiling(n)
    xp = _pad_rows(x, npad)
    out = pl.pallas_call(
        functools.partial(_linear_kernel, relu=relu),
        out_shape=jax.ShapeDtypeStruct((npad, m), jnp.float32),
        grid=(npad // tile,),
        in_specs=[_row_spec(tile, k), _full_spec((k, m)), _full_spec((1, m))],
        out_specs=_row_spec(tile, m),
        compiler_params=_COMPILER_PARAMS,
    )(xp, w.astype(jnp.float32), b.reshape(1, m).astype(jnp.float32))
    return out[:n]


# ----------------------------------------------------------------------------
# Deterministic parameter initialization (shapes follow the PyTorch __init__)
# ----------------------------------------------------------------------------
class KeyGen:
    def __init__(self, key):
        self._key = key
        self._i = 0

    def nrm(self, shape, scale=0.1):
        self._i += 1
        k = jax.random.fold_in(self._key, self._i)
        return scale * jax.random.normal(k, shape, jnp.float32)


def init_gvp(kg, si, vi, so, vo):
    """GVP params (vi > 0, vector_gate=True); wh/wv stored block-diagonal,
    ws split into the part multiplying s and the part multiplying |wh v|."""
    h = max(vi, vo)
    p = {'whD': _bdiag3(kg.nrm((vi, h))),     # Linear(vi, h, bias=False)
         'ws_s': kg.nrm((si, so)),            # Linear(si+h, so): s columns
         'ws_vn': kg.nrm((h, so)),            #                  vn columns
         'ws_b': kg.nrm((so,))}
    if vo:
        p['wvD'] = _bdiag3(kg.nrm((h, vo)))   # Linear(h, vo, bias=False)
        p['wg_w'] = kg.nrm((so, vo))          # Linear(so, vo)  (vector gate)
        p['wg_b'] = kg.nrm((vo,))
    return p


def init_params(key):
    kg = KeyGen(key)
    ns, nv = _DEFAULT_V_DIM
    es, ev = _DEFAULT_E_DIM
    P = {}
    P['embed'] = kg.nrm((_NUM_ATOM_TYPES, _NUM_ATOM_TYPES), scale=1.0)
    # W_v = LayerNorm((9,0)) + GVP((9,0)->(100,16)): vi=0 -> plain Linear, zero vecs
    P['Wv_ln_g'] = jnp.ones((_NUM_ATOM_TYPES,), jnp.float32)
    P['Wv_ln_b'] = jnp.zeros((_NUM_ATOM_TYPES,), jnp.float32)
    P['Wv_w'] = kg.nrm((_NUM_ATOM_TYPES, ns))
    P['Wv_b'] = kg.nrm((ns,))
    # W_e = LayerNorm((16,1)) + GVP((16,1)->(32,1))
    P['We_ln_g'] = jnp.ones((NUM_RBF,), jnp.float32)
    P['We_ln_b'] = jnp.zeros((NUM_RBF,), jnp.float32)
    P['We'] = init_gvp(kg, NUM_RBF, 1, es, ev)
    # 5 x GVPConvLayer((100,16), (32,1), n_message=3, n_feedforward=2)
    layers = []
    for _ in range(5):
        layers.append({
            'msg0': init_gvp(kg, 2 * ns + es, 2 * nv + ev, ns, nv),   # (232,33)->(100,16)
            'msg1': init_gvp(kg, ns, nv, ns, nv),
            'msg2': init_gvp(kg, ns, nv, ns, nv),
            'ln0_g': jnp.ones((ns,), jnp.float32),
            'ln0_b': jnp.zeros((ns,), jnp.float32),
            'ff0': init_gvp(kg, ns, nv, 4 * ns, 2 * nv),              # (100,16)->(400,32)
            'ff1': init_gvp(kg, 4 * ns, 2 * nv, ns, nv),
            'ln1_g': jnp.ones((ns,), jnp.float32),
            'ln1_b': jnp.zeros((ns,), jnp.float32),
        })
    P['layers'] = layers
    # W_out = LayerNorm((100,16)) + GVP((100,16)->(100,0), relu)
    P['Wout_ln_g'] = jnp.ones((ns,), jnp.float32)
    P['Wout_ln_b'] = jnp.zeros((ns,), jnp.float32)
    P['Wout'] = init_gvp(kg, ns, nv, ns, 0)
    # dense head: Linear(100,200) + ReLU + Dropout + Linear(200,1)
    P['dense1_w'] = kg.nrm((ns, 2 * ns))
    P['dense1_b'] = kg.nrm((2 * ns,))
    P['dense2_w'] = kg.nrm((2 * ns, 1))
    P['dense2_b'] = kg.nrm((1,))
    return P


# ----------------------------------------------------------------------------
# BaseModel forward
# ----------------------------------------------------------------------------
def base_model_forward(params, atoms, edge_s, edge_v, edge_index, batch_id,
                       *, num_graphs):
    ns, nv = _DEFAULT_V_DIM
    n_nodes = atoms.shape[0]
    n_edges = edge_s.shape[0]
    src = edge_index[0]     # _j (source)
    dst = edge_index[1]     # _i (target, aggregation index)

    # --- embedding (gather; glue) ---
    h0 = jnp.take(params['embed'], atoms, axis=0)                       # [N, 9]

    # --- W_v: fused LayerNorm(9) + Linear(9->100); vector output is zeros ---
    h_s = ln_linear(h0, params['Wv_ln_g'], params['Wv_ln_b'],
                    params['Wv_w'], params['Wv_b'])                     # [N, 100]
    h_v = jnp.zeros((n_nodes, 3, nv), jnp.float32)

    # --- W_e: fused LayerNorm((16,1)) + GVP((16,1)->(32,1)) ---
    e_s, e_v = gvp_chain(edge_s, edge_v, [params['We']], [False],
                         ln=(params['We_ln_g'], params['We_ln_b']))     # [E,32],[E,3,1]

    for lyr in params['layers']:
        # GVPConv messages: cat((s_j,v_j), edge_attr, (s_i,v_i)) (gather+concat glue)
        m_s = jnp.concatenate([h_s[src], e_s, h_s[dst]], axis=-1)       # [E, 232]
        m_v = jnp.concatenate([h_v[src], e_v, h_v[dst]], axis=-1)       # [E, 3, 33]
        # 3 message GVPs fused into one pallas_call over edge tiles
        m_s, m_v = gvp_chain(m_s, m_v,
                             [lyr['msg0'], lyr['msg1'], lyr['msg2']],
                             [True, True, False])                       # [E,100],[E,3,16]

        # --- mean aggregation over target nodes: O(E) scatter-add glue ---
        deg = jnp.zeros((n_nodes,), jnp.float32).at[dst].add(1.0)
        inv = 1.0 / jnp.maximum(deg, 1.0)                               # isolated nodes -> 0
        agg_s = jnp.zeros((n_nodes, ns), jnp.float32).at[dst].add(m_s) * inv[:, None]
        agg_v = (jnp.zeros((n_nodes, 3 * nv), jnp.float32)
                 .at[dst].add(m_v.reshape(n_edges, 3 * nv)) * inv[:, None]
                 ).reshape(n_nodes, 3, nv)

        # residual + LayerNorm (fused).
        # TODO(synk): Dropout treated as identity (eval-mode forward).
        h_s, h_v = residual_layernorm(h_s, agg_s, h_v, agg_v,
                                      lyr['ln0_g'], lyr['ln0_b'])
        # feed-forward: 2 GVPs fused
        f_s, f_v = gvp_chain(h_s, h_v, [lyr['ff0'], lyr['ff1']], [True, False])
        h_s, h_v = residual_layernorm(h_s, f_s, h_v, f_v,
                                      lyr['ln1_g'], lyr['ln1_b'])

    # --- W_out: fused LayerNorm + GVP((100,16)->(100,0), relu) ---
    out = gvp_chain(h_s, h_v, [params['Wout']], [True],
                    ln=(params['Wout_ln_g'], params['Wout_ln_b']))      # [N, 100]

    # --- scatter_mean over graphs (O(N) scatter-add glue) ---
    cnt = jnp.zeros((num_graphs,), jnp.float32).at[batch_id].add(1.0)
    pooled = (jnp.zeros((num_graphs, ns), jnp.float32).at[batch_id].add(out)
              / jnp.maximum(cnt, 1.0)[:, None])                         # [B, 100]

    # --- dense head ---
    y = linear(pooled, params['dense1_w'], params['dense1_b'], relu=True)
    y = linear(y, params['dense2_w'], params['dense2_b'])               # [B, 1]
    return y[:, 0]                                                      # squeeze(-1)


# ----------------------------------------------------------------------------
if __name__ == "__main__":
    key = jax.random.PRNGKey(0)
    params = init_params(jax.random.fold_in(key, 1))

    n_nodes, n_edges, num_graphs = 8, 16, 2
    k1, k2, k3, k4 = jax.random.split(jax.random.fold_in(key, 2), 4)
    atoms = jax.random.randint(k1, (n_nodes,), 0, _NUM_ATOM_TYPES, dtype=jnp.int32)
    edge_s = jax.random.normal(k2, (n_edges, NUM_RBF), jnp.float32)
    edge_v = jax.random.normal(k3, (n_edges, 3, 1), jnp.float32)   # [E, 3, C] layout
    edge_index = jax.random.randint(k4, (2, n_edges), 0, n_nodes, dtype=jnp.int32)
    batch_id = jnp.array([0, 0, 0, 0, 1, 1, 1, 1], jnp.int32)

    fwd = jax.jit(functools.partial(base_model_forward, num_graphs=num_graphs))
    out = jax.block_until_ready(fwd(params, atoms, edge_s, edge_v, edge_index, batch_id))
    assert out.shape == (num_graphs,)
    assert bool(jnp.all(jnp.isfinite(out)))
    print("KERNEL_OK")
</pallas_src>

<mosaic_0001>
module attributes {stable_mosaic.version = 11 : i64} {
  func.func private @main(%arg0: i32) attributes {dimension_semantics = [#tpu.dimension_semantics<core_parallel>], iteration_bounds = array<i64: 2>, tpu.core_type = #tpu.core_type<sc_scalar_subcore>, window_params = []} {
    return
  }
}

module attributes {stable_mosaic.version = 11 : i64} {
  func.func private @main(%arg0: i32) attributes {dimension_semantics = [#tpu.dimension_semantics<core_parallel>], iteration_bounds = array<i64: 2>, tpu.core_type = #tpu.core_type<sc_scalar_subcore>, window_params = []} {
    return
  }
}

module attributes {stable_mosaic.version = 11 : i64} {
  func.func @_ln_linear_kernel(%arg0: i32, %arg1: memref<8x9xf32, #tpu.memory_space<vmem>>, %arg2: memref<1x9xf32, #tpu.memory_space<vmem>>, %arg3: memref<1x9xf32, #tpu.memory_space<vmem>>, %arg4: memref<9x100xf32, #tpu.memory_space<vmem>>, %arg5: memref<1x100xf32, #tpu.memory_space<vmem>>, %arg6: memref<8x100xf32, #tpu.memory_space<vmem>>) attributes {dimension_semantics = [#tpu.dimension_semantics<parallel>], iteration_bounds = array<i64: 1>, scalar_prefetch = 0 : i64, scratch_operands = 0 : i64, tpu.core_type = #tpu.core_type<tc>, window_params = [{transform_indices = @transform_0, window_bounds = array<i64: 8, 9>}, {pipeline_mode = #tpu.pipeline_mode<synchronous>, transform_indices = @transform_1, window_bounds = array<i64: 1, 9>}, {pipeline_mode = #tpu.pipeline_mode<synchronous>, transform_indices = @transform_2, window_bounds = array<i64: 1, 9>}, {pipeline_mode = #tpu.pipeline_mode<synchronous>, transform_indices = @transform_3, window_bounds = array<i64: 9, 100>}, {pipeline_mode = #tpu.pipeline_mode<synchronous>, transform_indices = @transform_4, window_bounds = array<i64: 1, 100>}, {transform_indices = @transform_5, window_bounds = array<i64: 8, 100>}]} {
    %c0 = arith.constant 0 : index
    %c0_0 = arith.constant 0 : index
    %0 = vector.load %arg1[%c0, %c0_0] : memref<8x9xf32, #tpu.memory_space<vmem>>, vector<8x9xf32>
    %c0_1 = arith.constant 0 : index
    %c0_2 = arith.constant 0 : index
    %1 = vector.load %arg2[%c0_1, %c0_2] : memref<1x9xf32, #tpu.memory_space<vmem>>, vector<1x9xf32>
    %c0_3 = arith.constant 0 : index
    %c0_4 = arith.constant 0 : index
    %2 = vector.load %arg3[%c0_3, %c0_4] : memref<1x9xf32, #tpu.memory_space<vmem>>, vector<1x9xf32>
    %cst = arith.constant dense<0.000000e+00> : vector<8xf32>
    %3 = vector.multi_reduction <add>, %0, %cst [1] : vector<8x9xf32> to vector<8xf32>
    %4 = vector.shape_cast %3 : vector<8xf32> to vector<8x1xf32>
    %cst_5 = arith.constant 9.000000e+00 : f32
    %5 = vector.broadcast %cst_5 : f32 to vector<8x1xf32>
    %6 = arith.divf %4, %5 : vector<8x1xf32>
    %7 = vector.broadcast %6 : vector<8x1xf32> to vector<8x9xf32>
    %8 = arith.subf %0, %7 : vector<8x9xf32>
    %9 = arith.mulf %8, %8 : vector<8x9xf32>
    %cst_6 = arith.constant dense<0.000000e+00> : vector<8xf32>
    %10 = vector.multi_reduction <add>, %9, %cst_6 [1] : vector<8x9xf32> to vector<8xf32>
    %11 = vector.shape_cast %10 : vector<8xf32> to vector<8x1xf32>
    %cst_7 = arith.constant 9.000000e+00 : f32
    %12 = vector.broadcast %cst_7 : f32 to vector<8x1xf32>
    %13 = arith.divf %11, %12 : vector<8x1xf32>
    %14 = vector.broadcast %6 : vector<8x1xf32> to vector<8x9xf32>
    %15 = arith.subf %0, %14 : vector<8x9xf32>
    %cst_8 = arith.constant 9.99999974E-6 : f32
    %16 = vector.broadcast %cst_8 : f32 to vector<8x1xf32>
    %17 = arith.addf %13, %16 : vector<8x1xf32>
    %18 = math.rsqrt %17 : vector<8x1xf32>
    %19 = vector.broadcast %18 : vector<8x1xf32> to vector<8x9xf32>
    %20 = arith.mulf %15, %19 : vector<8x9xf32>
    %21 = vector.broadcast %1 : vector<1x9xf32> to vector<8x9xf32>
    %22 = arith.mulf %20, %21 : vector<8x9xf32>
    %23 = vector.broadcast %2 : vector<1x9xf32> to vector<8x9xf32>
    %24 = arith.addf %22, %23 : vector<8x9xf32>
    %c0_9 = arith.constant 0 : index
    %c0_10 = arith.constant 0 : index
    %25 = vector.load %arg4[%c0_9, %c0_10] : memref<9x100xf32, #tpu.memory_space<vmem>>, vector<9x100xf32>
    %cst_11 = arith.constant dense<0.000000e+00> : vector<8x100xf32>
    %26 = tpu.matmul %24, %25, %cst_11 {dimension_numbers = #tpu.dot_dimension_numbers<[1], [0], [0], [1], [0, 0, 1, 1], [], []>} : vector<8x9xf32>, vector<9x100xf32>, vector<8x100xf32> -> vector<8x100xf32>
    %c0_12 = arith.constant 0 : index
    %c0_13 = arith.constant 0 : index
    %27 = vector.load %arg5[%c0_12, %c0_13] : memref<1x100xf32, #tpu.memory_space<vmem>>, vector<1x100xf32>
    %28 = vector.broadcast %27 : vector<1x100xf32> to vector<8x100xf32>
    %29 = arith.addf %26, %28 : vector<8x100xf32>
    %c0_14 = arith.constant 0 : index
    %c0_15 = arith.constant 0 : index
    %30 = vector.load %arg6[%c0_14, %c0_15] : memref<8x100xf32, #tpu.memory_space<vmem>>, vector<8x100xf32>
    tpu.vector_store %arg6[%c0_14, %c0_15], %29 {strides = array<i32>} : memref<8x100xf32, #tpu.memory_space<vmem>>, vector<8x100xf32>,
    return
  }
  func.func @transform_0(%arg0: i32) -> (i32, i32) {
    %c0_i32 = arith.constant 0 : i32
    %c0_i32_0 = arith.constant 0 : i32
    return %arg0, %c0_i32 : i32, i32
  }
  func.func @transform_1(%arg0: i32) -> (i32, i32) {
    %c0_i32 = arith.constant 0 : i32
    %c0_i32_0 = arith.constant 0 : i32
    %c0_i32_1 = arith.constant 0 : i32
    return %c0_i32, %c0_i32_0 : i32, i32
  }
  func.func @transform_2(%arg0: i32) -> (i32, i32) {
    %c0_i32 = arith.constant 0 : i32
    %c0_i32_0 = arith.constant 0 : i32
    %c0_i32_1 = arith.constant 0 : i32
    return %c0_i32, %c0_i32_0 : i32, i32
  }
  func.func @transform_3(%arg0: i32) -> (i32, i32) {
    %c0_i32 = arith.constant 0 : i32
    %c0_i32_0 = arith.constant 0 : i32
    %c0_i32_1 = arith.constant 0 : i32
    return %c0_i32, %c0_i32_0 : i32, i32
  }
  func.func @transform_4(%arg0: i32) -> (i32, i32) {
    %c0_i32 = arith.constant 0 : i32
    %c0_i32_0 = arith.constant 0 : i32
    %c0_i32_1 = arith.constant 0 : i32
    return %c0_i32, %c0_i32_0 : i32, i32
  }
  func.func @transform_5(%arg0: i32) -> (i32, i32) {
    %c0_i32 = arith.constant 0 : i32
    %c0_i32_0 = arith.constant 0 : i32
    return %arg0, %c0_i32 : i32, i32
  }
}

module attributes {stable_mosaic.version = 11 : i64} {
  func.func @_chain_kernel(%arg0: i32, %arg1: memref<16x16xf32, #tpu.memory_space<vmem>>, %arg2: memref<16x3xf32, #tpu.memory_space<vmem>>, %arg3: memref<1x16xf32, #tpu.memory_space<vmem>>, %arg4: memref<1x16xf32, #tpu.memory_space<vmem>>, %arg5: memref<3x3xf32, #tpu.memory_space<vmem>>, %arg6: memref<16x32xf32, #tpu.memory_space<vmem>>, %arg7: memref<1x32xf32, #tpu.memory_space<vmem>>, %arg8: memref<1x32xf32, #tpu.memory_space<vmem>>, %arg9: memref<3x3xf32, #tpu.memory_space<vmem>>, %arg10: memref<32x1xf32, #tpu.memory_space<vmem>>, %arg11: memref<1x1xf32, #tpu.memory_space<vmem>>, %arg12: memref<16x32xf32, #tpu.memory_space<vmem>>, %arg13: memref<16x3xf32, #tpu.memory_space<vmem>>) attributes {dimension_semantics = [#tpu.dimension_semantics<parallel>], iteration_bounds = array<i64: 1>, scalar_prefetch = 0 : i64, scratch_operands = 0 : i64, tpu.core_type = #tpu.core_type<tc>, window_params = [{transform_indices = @transform_0, window_bounds = array<i64: 16, 16>}, {transform_indices = @transform_1, window_bounds = array<i64: 16, 3>}, {pipeline_mode = #tpu.pipeline_mode<synchronous>, transform_indices = @transform_2, window_bounds = array<i64: 1, 16>}, {pipeline_mode = #tpu.pipeline_mode<synchronous>, transform_indices = @transform_3, window_bounds = array<i64: 1, 16>}, {pipeline_mode = #tpu.pipeline_mode<synchronous>, transform_indices = @transform_4, window_bounds = array<i64: 3, 3>}, {pipeline_mode = #tpu.pipeline_mode<synchronous>, transform_indices = @transform_5, window_bounds = array<i64: 16, 32>}, {pipeline_mode = #tpu.pipeline_mode<synchronous>, transform_indices = @transform_6, window_bounds = array<i64: 1, 32>}, {pipeline_mode = #tpu.pipeline_mode<synchronous>, transform_indices = @transform_7, window_bounds = array<i64: 1, 32>}, {pipeline_mode = #tpu.pipeline_mode<synchronous>, transform_indices = @transform_8, window_bounds = array<i64: 3, 3>}, {pipeline_mode = #tpu.pipeline_mode<synchronous>, transform_indices = @transform_9, window_bounds = array<i64: 32, 1>}, {pipeline_mode = #tpu.pipeline_mode<synchronous>, transform_indices = @transform_10, window_bounds = array<i64: 1, 1>}, {transform_indices = @transform_11, window_bounds = array<i64: 16, 32>}, {transform_indices = @transform_12, window_bounds = array<i64: 16, 3>}]} {
    %c0 = arith.constant 0 : index
    %c0_0 = arith.constant 0 : index
    %0 = vector.load %arg1[%c0, %c0_0] : memref<16x16xf32, #tpu.memory_space<vmem>>, vector<16x16xf32>
    %c0_1 = arith.constant 0 : index
    %c0_2 = arith.constant 0 : index
    %1 = vector.load %arg2[%c0_1, %c0_2] : memref<16x3xf32, #tpu.memory_space<vmem>>, vector<16x3xf32>
    %c0_3 = arith.constant 0 : index
    %c0_4 = arith.constant 0 : index
    %2 = vector.load %arg3[%c0_3, %c0_4] : memref<1x16xf32, #tpu.memory_space<vmem>>, vector<1x16xf32>
    %c0_5 = arith.constant 0 : index
    %c0_6 = arith.constant 0 : index
    %3 = vector.load %arg4[%c0_5, %c0_6] : memref<1x16xf32, #tpu.memory_space<vmem>>, vector<1x16xf32>
    %cst = arith.constant dense<0.000000e+00> : vector<16xf32>
    %4 = vector.multi_reduction <add>, %0, %cst [1] : vector<16x16xf32> to vector<16xf32>
    %5 = vector.shape_cast %4 : vector<16xf32> to vector<16x1xf32>
    %cst_7 = arith.constant 1.600000e+01 : f32
    %6 = vector.broadcast %cst_7 : f32 to vector<16x1xf32>
    %7 = arith.divf %5, %6 : vector<16x1xf32>
    %8 = vector.broadcast %7 : vector<16x1xf32> to vector<16x16xf32>
    %9 = arith.subf %0, %8 : vector<16x16xf32>
    %10 = arith.mulf %9, %9 : vector<16x16xf32>
    %cst_8 = arith.constant dense<0.000000e+00> : vector<16xf32>
    %11 = vector.multi_reduction <add>, %10, %cst_8 [1] : vector<16x16xf32> to vector<16xf32>
    %12 = vector.shape_cast %11 : vector<16xf32> to vector<16x1xf32>
    %cst_9 = arith.constant 1.600000e+01 : f32
    %13 = vector.broadcast %cst_9 : f32 to vector<16x1xf32>
    %14 = arith.divf %12, %13 : vector<16x1xf32>
    %15 = vector.broadcast %7 : vector<16x1xf32> to vector<16x16xf32>
    %16 = arith.subf %0, %15 : vector<16x16xf32>
    %cst_10 = arith.constant 9.99999974E-6 : f32
    %17 = vector.broadcast %cst_10 : f32 to vector<16x1xf32>
    %18 = arith.addf %14, %17 : vector<16x1xf32>
    %19 = math.rsqrt %18 : vector<16x1xf32>
    %20 = vector.broadcast %19 : vector<16x1xf32> to vector<16x16xf32>
    %21 = arith.mulf %16, %20 : vector<16x16xf32>
    %22 = vector.broadcast %2 : vector<1x16xf32> to vector<16x16xf32>
    %23 = arith.mulf %21, %22 : vector<16x16xf32>
    %24 = vector.broadcast %3 : vector<1x16xf32> to vector<16x16xf32>
    %25 = arith.addf %23, %24 : vector<16x16xf32>
    %26 = arith.mulf %1, %1 : vector<16x3xf32>
    %27 = vector.extract_strided_slice %26 {offsets = [0, 0], sizes = [16, 1], strides = [1, 1]} : vector<16x3xf32> to vector<16x1xf32>
    %28 = vector.extract_strided_slice %26 {offsets = [0, 1], sizes = [16, 1], strides = [1, 1]} : vector<16x3xf32> to vector<16x1xf32>
    %29 = arith.addf %27, %28 : vector<16x1xf32>
    %30 = vector.extract_strided_slice %26 {offsets = [0, 2], sizes = [16, 1], strides = [1, 1]} : vector<16x3xf32> to vector<16x1xf32>
    %31 = arith.addf %29, %30 : vector<16x1xf32>
    %cst_11 = arith.constant 9.99999993E-9 : f32
    %32 = vector.broadcast %cst_11 : f32 to vector<16x1xf32>
    %33 = arith.maximumf %31, %32 : vector<16x1xf32>
    %cst_12 = arith.constant dense<0.000000e+00> : vector<16xf32>
    %34 = vector.multi_reduction <add>, %33, %cst_12 [1] : vector<16x1xf32> to vector<16xf32>
    %35 = vector.shape_cast %34 : vector<16xf32> to vector<16x1xf32>
    %cst_13 = arith.constant 1.000000e+00 : f32
    %36 = vector.broadcast %cst_13 : f32 to vector<16x1xf32>
    %37 = arith.divf %35, %36 : vector<16x1xf32>
    %38 = math.sqrt %37 : vector<16x1xf32>
    %39 = vector.broadcast %38 : vector<16x1xf32> to vector<16x3xf32>
    %40 = arith.divf %1, %39 : vector<16x3xf32>
    %c0_14 = arith.constant 0 : index
    %c0_15 = arith.constant 0 : index
    %41 = vector.load %arg5[%c0_14, %c0_15] : memref<3x3xf32, #tpu.memory_space<vmem>>, vector<3x3xf32>
    %c0_16 = arith.constant 0 : index
    %c0_17 = arith.constant 0 : index
    %42 = vector.load %arg6[%c0_16, %c0_17] : memref<16x32xf32, #tpu.memory_space<vmem>>, vector<16x32xf32>
    %c0_18 = arith.constant 0 : index
    %c0_19 = arith.constant 0 : index
    %43 = vector.load %arg7[%c0_18, %c0_19] : memref<1x32xf32, #tpu.memory_space<vmem>>, vector<1x32xf32>
    %c0_20 = arith.constant 0 : index
    %c0_21 = arith.constant 0 : index
    %44 = vector.load %arg8[%c0_20, %c0_21] : memref<1x32xf32, #tpu.memory_space<vmem>>, vector<1x32xf32>
    %c0_22 = arith.constant 0 : index
    %c0_23 = arith.constant 0 : index
    %45 = vector.load %arg9[%c0_22, %c0_23] : memref<3x3xf32, #tpu.memory_space<vmem>>, vector<3x3xf32>
    %c0_24 = arith.constant 0 : index
    %c0_25 = arith.constant 0 : index
    %46 = vector.load %arg10[%c0_24, %c0_25] : memref<32x1xf32, #tpu.memory_space<vmem>>, vector<32x1xf32>
    %c0_26 = arith.constant 0 : index
    %c0_27 = arith.constant 0 : index
    %47 = vector.load %arg11[%c0_26, %c0_27] : memref<1x1xf32, #tpu.memory_space<vmem>>, vector<1x1xf32>
    %cst_28 = arith.constant dense<0.000000e+00> : vector<16x3xf32>
    %48 = tpu.matmul %40, %41, %cst_28 {dimension_numbers = #tpu.dot_dimension_numbers<[1], [0], [0], [1], [0, 0, 1, 1], [], []>} : vector<16x3xf32>, vector<3x3xf32>, vector<16x3xf32> -> vector<16x3xf32>
    %49 = vector.extract_strided_slice %48 {offsets = [0, 0], sizes = [16, 1], strides = [1, 1]} : vector<16x3xf32> to vector<16x1xf32>
    %50 = arith.mulf %49, %49 : vector<16x1xf32>
    %51 = vector.extract_strided_slice %48 {offsets = [0, 1], sizes = [16, 1], strides = [1, 1]} : vector<16x3xf32> to vector<16x1xf32>
    %52 = arith.mulf %51, %51 : vector<16x1xf32>
    %53 = arith.addf %50, %52 : vector<16x1xf32>
    %54 = vector.extract_strided_slice %48 {offsets = [0, 2], sizes = [16, 1], strides = [1, 1]} : vector<16x3xf32> to vector<16x1xf32>
    %55 = arith.mulf %54, %54 : vector<16x1xf32>
    %56 = arith.addf %53, %55 : vector<16x1xf32>
    %cst_29 = arith.constant 9.99999993E-9 : f32
    %57 = vector.broadcast %cst_29 : f32 to vector<16x1xf32>
    %58 = arith.maximumf %56, %57 : vector<16x1xf32>
    %59 = math.sqrt %58 : vector<16x1xf32>
    %cst_30 = arith.constant dense<0.000000e+00> : vector<16x32xf32>
    %60 = tpu.matmul %25, %42, %cst_30 {dimension_numbers = #tpu.dot_dimension_numbers<[1], [0], [0], [1], [0, 0, 1, 1], [], []>} : vector<16x16xf32>, vector<16x32xf32>, vector<16x32xf32> -> vector<16x32xf32>
    %cst_31 = arith.constant dense<0.000000e+00> : vector<16x32xf32>
    %61 = tpu.matmul %59, %43, %cst_31 {dimension_numbers = #tpu.dot_dimension_numbers<[1], [0], [0], [1], [0, 0, 1, 1], [], []>} : vector<16x1xf32>, vector<1x32xf32>, vector<16x32xf32> -> vector<16x32xf32>
    %62 = arith.addf %60, %61 : vector<16x32xf32>
    %63 = vector.broadcast %44 : vector<1x32xf32> to vector<16x32xf32>
    %64 = arith.addf %62, %63 : vector<16x32xf32>
    %cst_32 = arith.constant dense<0.000000e+00> : vector<16x1xf32>
    %65 = tpu.matmul %64, %46, %cst_32 {dimension_numbers = #tpu.dot_dimension_numbers<[1], [0], [0], [1], [0, 0, 1, 1], [], []>} : vector<16x32xf32>, vector<32x1xf32>, vector<16x1xf32> -> vector<16x1xf32>
    %66 = vector.broadcast %47 : vector<1x1xf32> to vector<16x1xf32>
    %67 = arith.addf %65, %66 : vector<16x1xf32>
    %68 = arith.negf %67 : vector<16x1xf32>
    %69 = math.exp %68 : vector<16x1xf32>
    %cst_33 = arith.constant 1.000000e+00 : f32
    %70 = vector.broadcast %cst_33 : f32 to vector<16x1xf32>
    %71 = arith.addf %70, %69 : vector<16x1xf32>
    %72 = arith.divf %70, %71 : vector<16x1xf32>
    %cst_34 = arith.constant dense<0.000000e+00> : vector<16x3xf32>
    %73 = tpu.matmul %48, %45, %cst_34 {dimension_numbers = #tpu.dot_dimension_numbers<[1], [0], [0], [1], [0, 0, 1, 1], [], []>} : vector<16x3xf32>, vector<3x3xf32>, vector<16x3xf32> -> vector<16x3xf32>
    %74 = tpu.concatenate %72, %72, %72 in 1 : vector<16x1xf32>, vector<16x1xf32>, vector<16x1xf32> -> vector<16x3xf32>
    %75 = arith.mulf %73, %74 : vector<16x3xf32>
    %c0_35 = arith.constant 0 : index
    %c0_36 = arith.constant 0 : index
    %76 = vector.load %arg12[%c0_35, %c0_36] : memref<16x32xf32, #tpu.memory_space<vmem>>, vector<16x32xf32>
    tpu.vector_store %arg12[%c0_35, %c0_36], %64 {strides = array<i32>} : memref<16x32xf32, #tpu.memory_space<vmem>>, vector<16x32xf32>,
    %c0_37 = arith.constant 0 : index
    %c0_38 = arith.constant 0 : index
    %77 = vector.load %arg13[%c0_37, %c0_38] : memref<16x3xf32, #tpu.memory_space<vmem>>, vector<16x3xf32>
    tpu.vector_store %arg13[%c0_37, %c0_38], %75 {strides = array<i32>} : memref<16x3xf32, #tpu.memory_space<vmem>>, vector<16x3xf32>,
    return
  }
  func.func @transform_0(%arg0: i32) -> (i32, i32) {
    %c0_i32 = arith.constant 0 : i32
    %c0_i32_0 = arith.constant 0 : i32
    return %arg0, %c0_i32 : i32, i32
  }
  func.func @transform_1(%arg0: i32) -> (i32, i32) {
    %c0_i32 = arith.constant 0 : i32
    %c0_i32_0 = arith.constant 0 : i32
    return %arg0, %c0_i32 : i32, i32
  }
  func.func @transform_2(%arg0: i32) -> (i32, i32) {
    %c0_i32 = arith.constant 0 : i32
    %c0_i32_0 = arith.constant 0 : i32
    %c0_i32_1 = arith.constant 0 : i32
    return %c0_i32, %c0_i32_0 : i32, i32
  }
  func.func @transform_3(%arg0: i32) -> (i32, i32) {
    %c0_i32 = arith.constant 0 : i32
    %c0_i32_0 = arith.constant 0 : i32
    %c0_i32_1 = arith.constant 0 : i32
    return %c0_i32, %c0_i32_0 : i32, i32
  }
  func.func @transform_4(%arg0: i32) -> (i32, i32) {
    %c0_i32 = arith.constant 0 : i32
    %c0_i32_0 = arith.constant 0 : i32
    %c0_i32_1 = arith.constant 0 : i32
    return %c0_i32, %c0_i32_0 : i32, i32
  }
  func.func @transform_5(%arg0: i32) -> (i32, i32) {
    %c0_i32 = arith.constant 0 : i32
    %c0_i32_0 = arith.constant 0 : i32
    %c0_i32_1 = arith.constant 0 : i32
    return %c0_i32, %c0_i32_0 : i32, i32
  }
  func.func @transform_6(%arg0: i32) -> (i32, i32) {
    %c0_i32 = arith.constant 0 : i32
    %c0_i32_0 = arith.constant 0 : i32
    %c0_i32_1 = arith.constant 0 : i32
    return %c0_i32, %c0_i32_0 : i32, i32
  }
  func.func @transform_7(%arg0: i32) -> (i32, i32) {
    %c0_i32 = arith.constant 0 : i32
    %c0_i32_0 = arith.constant 0 : i32
    %c0_i32_1 = arith.constant 0 : i32
    return %c0_i32, %c0_i32_0 : i32, i32
  }
  func.func @transform_8(%arg0: i32) -> (i32, i32) {
    %c0_i32 = arith.constant 0 : i32
    %c0_i32_0 = arith.constant 0 : i32
    %c0_i32_1 = arith.constant 0 : i32
    return %c0_i32, %c0_i32_0 : i32, i32
  }
  func.func @transform_9(%arg0: i32) -> (i32, i32) {
    %c0_i32 = arith.constant 0 : i32
    %c0_i32_0 = arith.constant 0 : i32
    %c0_i32_1 = arith.constant 0 : i32
    return %c0_i32, %c0_i32_0 : i32, i32
  }
  func.func @transform_10(%arg0: i32) -> (i32, i32) {
    %c0_i32 = arith.constant 0 : i32
    %c0_i32_0 = arith.constant 0 : i32
    %c0_i32_1 = arith.constant 0 : i32
    return %c0_i32, %c0_i32_0 : i32, i32
  }
  func.func @transform_11(%arg0: i32) -> (i32, i32) {
    %c0_i32 = arith.constant 0 : i32
    %c0_i32_0 = arith.constant 0 : i32
    return %arg0, %c0_i32 : i32, i32
  }
  func.func @transform_12(%arg0: i32) -> (i32, i32) {
    %c0_i32 = arith.constant 0 : i32
    %c0_i32_0 = arith.constant 0 : i32
    return %arg0, %c0_i32 : i32, i32
  }
}

module attributes {stable_mosaic.version = 11 : i64} {
  func.func @_chain_kernel(%arg0: i32, %arg1: memref<16x232xf32, #tpu.memory_space<vmem>>, %arg2: memref<16x99xf32, #tpu.memory_space<vmem>>, %arg3: memref<99x99xf32, #tpu.memory_space<vmem>>, %arg4: memref<232x100xf32, #tpu.memory_space<vmem>>, %arg5: memref<33x100xf32, #tpu.memory_space<vmem>>, %arg6: memref<1x100xf32, #tpu.memory_space<vmem>>, %arg7: memref<99x48xf32, #tpu.memory_space<vmem>>, %arg8: memref<100x16xf32, #tpu.memory_space<vmem>>, %arg9: memref<1x16xf32, #tpu.memory_space<vmem>>, %arg10: memref<48x48xf32, #tpu.memory_space<vmem>>, %arg11: memref<100x100xf32, #tpu.memory_space<vmem>>, %arg12: memref<16x100xf32, #tpu.memory_space<vmem>>, %arg13: memref<1x100xf32, #tpu.memory_space<vmem>>, %arg14: memref<48x48xf32, #tpu.memory_space<vmem>>, %arg15: memref<100x16xf32, #tpu.memory_space<vmem>>, %arg16: memref<1x16xf32, #tpu.memory_space<vmem>>, %arg17: memref<48x48xf32, #tpu.memory_space<vmem>>, %arg18: memref<100x100xf32, #tpu.memory_space<vmem>>, %arg19: memref<16x100xf32, #tpu.memory_space<vmem>>, %arg20: memref<1x100xf32, #tpu.memory_space<vmem>>, %arg21: memref<48x48xf32, #tpu.memory_space<vmem>>, %arg22: memref<100x16xf32, #tpu.memory_space<vmem>>, %arg23: memref<1x16xf32, #tpu.memory_space<vmem>>, %arg24: memref<16x100xf32, #tpu.memory_space<vmem>>, %arg25: memref<16x48xf32, #tpu.memory_space<vmem>>) attributes {dimension_semantics = [#tpu.dimension_semantics<parallel>], iteration_bounds = array<i64: 1>, scalar_prefetch = 0 : i64, scratch_operands = 0 : i64, tpu.core_type = #tpu.core_type<tc>, window_params = [{transform_indices = @transform_0, window_bounds = array<i64: 16, 232>}, {transform_indices = @transform_1, window_bounds = array<i64: 16, 99>}, {pipeline_mode = #tpu.pipeline_mode<synchronous>, transform_indices = @transform_2, window_bounds = array<i64: 99, 99>}, {pipeline_mode = #tpu.pipeline_mode<synchronous>, transform_indices = @transform_3, window_bounds = array<i64: 232, 100>}, {pipeline_mode = #tpu.pipeline_mode<synchronous>, transform_indices = @transform_4, window_bounds = array<i64: 33, 100>}, {pipeline_mode = #tpu.pipeline_mode<synchronous>, transform_indices = @transform_5, window_bounds = array<i64: 1, 100>}, {pipeline_mode = #tpu.pipeline_mode<synchronous>, transform_indices = @transform_6, window_bounds = array<i64: 99, 48>}, {pipeline_mode = #tpu.pipeline_mode<synchronous>, transform_indices = @transform_7, window_bounds = array<i64: 100, 16>}, {pipeline_mode = #tpu.pipeline_mode<synchronous>, transform_indices = @transform_8, window_bounds = array<i64: 1, 16>}, {pipeline_mode = #tpu.pipeline_mode<synchronous>, transform_indices = @transform_9, window_bounds = array<i64: 48, 48>}, {pipeline_mode = #tpu.pipeline_mode<synchronous>, transform_indices = @transform_10, window_bounds = array<i64: 100, 100>}, {pipeline_mode = #tpu.pipeline_mode<synchronous>, transform_indices = @transform_11, window_bounds = array<i64: 16, 100>}, {pipeline_mode = #tpu.pipeline_mode<synchronous>, transform_indices = @transform_12, window_bounds = array<i64: 1, 100>}, {pipeline_mode = #tpu.pipeline_mode<synchronous>, transform_indices = @transform_13, window_bounds = array<i64: 48, 48>}, {pipeline_mode = #tpu.pipeline_mode<synchronous>, transform_indices = @transform_14, window_bounds = array<i64: 100, 16>}, {pipeline_mode = #tpu.pipeline_mode<synchronous>, transform_indices = @transform_15, window_bounds = array<i64: 1, 16>}, {pipeline_mode = #tpu.pipeline_mode<synchronous>, transform_indices = @transform_16, window_bounds = array<i64: 48, 48>}, {pipeline_mode = #tpu.pipeline_mode<synchronous>, transform_indices = @transform_17, window_bounds = array<i64: 100, 100>}, {pipeline_mode = #tpu.pipeline_mode<synchronous>, transform_indices = @transform_18, window_bounds = array<i64: 16, 100>}, {pipeline_mode = #tpu.pipeline_mode<synchronous>, transform_indices = @transform_19, window_bounds = array<i64: 1, 100>}, {pipeline_mode = #tpu.pipeline_mode<synchronous>, transform_indices = @transform_20, window_bounds = array<i64: 48, 48>}, {pipeline_mode = #tpu.pipeline_mode<synchronous>, transform_indices = @transform_21, window_bounds = array<i64: 100, 16>}, {pipeline_mode = #tpu.pipeline_mode<synchronous>, transform_indices = @transform_22, window_bounds = array<i64: 1, 16>}, {transform_indices = @transform_23, window_bounds = array<i64: 16, 100>}, {transform_indices = @transform_24, window_bounds = array<i64: 16, 48>}]} {
    %c0 = arith.constant 0 : index
    %c0_0 = arith.constant 0 : index
    %0 = vector.load %arg1[%c0, %c0_0] : memref<16x232xf32, #tpu.memory_space<vmem>>, vector<16x232xf32>
    %c0_1 = arith.constant 0 : index
    %c0_2 = arith.constant 0 : index
    %1 = vector.load %arg2[%c0_1, %c0_2] : memref<16x99xf32, #tpu.memory_space<vmem>>, vector<16x99xf32>
    %c0_3 = arith.constant 0 : index
    %c0_4 = arith.constant 0 : index
    %2 = vector.load %arg3[%c0_3, %c0_4] : memref<99x99xf32, #tpu.memory_space<vmem>>, vector<99x99xf32>
    %c0_5 = arith.constant 0 : index
    %c0_6 = arith.constant 0 : index
    %3 = vector.load %arg4[%c0_5, %c0_6] : memref<232x100xf32, #tpu.memory_space<vmem>>, vector<232x100xf32>
    %c0_7 = arith.constant 0 : index
    %c0_8 = arith.constant 0 : index
    %4 = vector.load %arg5[%c0_7, %c0_8] : memref<33x100xf32, #tpu.memory_space<vmem>>, vector<33x100xf32>
    %c0_9 = arith.constant 0 : index
    %c0_10 = arith.constant 0 : index
    %5 = vector.load %arg6[%c0_9, %c0_10] : memref<1x100xf32, #tpu.memory_space<vmem>>, vector<1x100xf32>
    %c0_11 = arith.constant 0 : index
    %c0_12 = arith.constant 0 : index
    %6 = vector.load %arg7[%c0_11, %c0_12] : memref<99x48xf32, #tpu.memory_space<vmem>>, vector<99x48xf32>
    %c0_13 = arith.constant 0 : index
    %c0_14 = arith.constant 0 : index
    %7 = vector.load %arg8[%c0_13, %c0_14] : memref<100x16xf32, #tpu.memory_space<vmem>>, vector<100x16xf32>
    %c0_15 = arith.constant 0 : index
    %c0_16 = arith.constant 0 : index
    %8 = vector.load %arg9[%c0_15, %c0_16] : memref<1x16xf32, #tpu.memory_space<vmem>>, vector<1x16xf32>
    %cst = arith.constant dense<0.000000e+00> : vector<16x99xf32>
    %9 = tpu.matmul %1, %2, %cst {dimension_numbers = #tpu.dot_dimension_numbers<[1], [0], [0], [1], [0, 0, 1, 1], [], []>} : vector<16x99xf32>, vector<99x99xf32>, vector<16x99xf32> -> vector<16x99xf32>
    %10 = vector.extract_strided_slice %9 {offsets = [0, 0], sizes = [16, 33], strides = [1, 1]} : vector<16x99xf32> to vector<16x33xf32>
    %11 = arith.mulf %10, %10 : vector<16x33xf32>
    %12 = vector.extract_strided_slice %9 {offsets = [0, 33], sizes = [16, 33], strides = [1, 1]} : vector<16x99xf32> to vector<16x33xf32>
    %13 = arith.mulf %12, %12 : vector<16x33xf32>
    %14 = arith.addf %11, %13 : vector<16x33xf32>
    %15 = vector.extract_strided_slice %9 {offsets = [0, 66], sizes = [16, 33], strides = [1, 1]} : vector<16x99xf32> to vector<16x33xf32>
    %16 = arith.mulf %15, %15 : vector<16x33xf32>
    %17 = arith.addf %14, %16 : vector<16x33xf32>
    %cst_17 = arith.constant 9.99999993E-9 : f32
    %18 = vector.broadcast %cst_17 : f32 to vector<16x33xf32>
    %19 = arith.maximumf %17, %18 : vector<16x33xf32>
    %20 = math.sqrt %19 : vector<16x33xf32>
    %cst_18 = arith.constant dense<0.000000e+00> : vector<16x100xf32>
    %21 = tpu.matmul %0, %3, %cst_18 {dimension_numbers = #tpu.dot_dimension_numbers<[1], [0], [0], [1], [0, 0, 1, 1], [], []>} : vector<16x232xf32>, vector<232x100xf32>, vector<16x100xf32> -> vector<16x100xf32>
    %cst_19 = arith.constant dense<0.000000e+00> : vector<16x100xf32>
    %22 = tpu.matmul %20, %4, %cst_19 {dimension_numbers = #tpu.dot_dimension_numbers<[1], [0], [0], [1], [0, 0, 1, 1], [], []>} : vector<16x33xf32>, vector<33x100xf32>, vector<16x100xf32> -> vector<16x100xf32>
    %23 = arith.addf %21, %22 : vector<16x100xf32>
    %24 = vector.broadcast %5 : vector<1x100xf32> to vector<16x100xf32>
    %25 = arith.addf %23, %24 : vector<16x100xf32>
    %cst_20 = arith.constant 0.000000e+00 : f32
    %26 = vector.broadcast %cst_20 : f32 to vector<16x100xf32>
    %27 = arith.maximumf %25, %26 : vector<16x100xf32>
    %cst_21 = arith.constant dense<0.000000e+00> : vector<16x16xf32>
    %28 = tpu.matmul %25, %7, %cst_21 {dimension_numbers = #tpu.dot_dimension_numbers<[1], [0], [0], [1], [0, 0, 1, 1], [], []>} : vector<16x100xf32>, vector<100x16xf32>, vector<16x16xf32> -> vector<16x16xf32>
    %29 = vector.broadcast %8 : vector<1x16xf32> to vector<16x16xf32>
    %30 = arith.addf %28, %29 : vector<16x16xf32>
    %31 = arith.negf %30 : vector<16x16xf32>
    %32 = math.exp %31 : vector<16x16xf32>
    %cst_22 = arith.constant 1.000000e+00 : f32
    %33 = vector.broadcast %cst_22 : f32 to vector<16x16xf32>
    %34 = arith.addf %33, %32 : vector<16x16xf32>
    %35 = arith.divf %33, %34 : vector<16x16xf32>
    %cst_23 = arith.constant dense<0.000000e+00> : vector<16x48xf32>
    %36 = tpu.matmul %9, %6, %cst_23 {dimension_numbers = #tpu.dot_dimension_numbers<[1], [0], [0], [1], [0, 0, 1, 1], [], []>} : vector<16x99xf32>, vector<99x48xf32>, vector<16x48xf32> -> vector<16x48xf32>
    %37 = tpu.concatenate %35, %35, %35 in 1 : vector<16x16xf32>, vector<16x16xf32>, vector<16x16xf32> -> vector<16x48xf32>
    %38 = arith.mulf %36, %37 : vector<16x48xf32>
    %c0_24 = arith.constant 0 : index
    %c0_25 = arith.constant 0 : index
    %39 = vector.load %arg10[%c0_24, %c0_25] : memref<48x48xf32, #tpu.memory_space<vmem>>, vector<48x48xf32>
    %c0_26 = arith.constant 0 : index
    %c0_27 = arith.constant 0 : index
    %40 = vector.load %arg11[%c0_26, %c0_27] : memref<100x100xf32, #tpu.memory_space<vmem>>, vector<100x100xf32>
    %c0_28 = arith.constant 0 : index
    %c0_29 = arith.constant 0 : index
    %41 = vector.load %arg12[%c0_28, %c0_29] : memref<16x100xf32, #tpu.memory_space<vmem>>, vector<16x100xf32>
    %c0_30 = arith.constant 0 : index
    %c0_31 = arith.constant 0 : index
    %42 = vector.load %arg13[%c0_30, %c0_31] : memref<1x100xf32, #tpu.memory_space<vmem>>, vector<1x100xf32>
    %c0_32 = arith.constant 0 : index
    %c0_33 = arith.constant 0 : index
    %43 = vector.load %arg14[%c0_32, %c0_33] : memref<48x48xf32, #tpu.memory_space<vmem>>, vector<48x48xf32>
    %c0_34 = arith.constant 0 : index
    %c0_35 = arith.constant 0 : index
    %44 = vector.load %arg15[%c0_34, %c0_35] : memref<100x16xf32, #tpu.memory_space<vmem>>, vector<100x16xf32>
    %c0_36 = arith.constant 0 : index
    %c0_37 = arith.constant 0 : index
    %45 = vector.load %arg16[%c0_36, %c0_37] : memref<1x16xf32, #tpu.memory_space<vmem>>, vector<1x16xf32>
    %cst_38 = arith.constant dense<0.000000e+00> : vector<16x48xf32>
    %46 = tpu.matmul %38, %39, %cst_38 {dimension_numbers = #tpu.dot_dimension_numbers<[1], [0], [0], [1], [0, 0, 1, 1], [], []>} : vector<16x48xf32>, vector<48x48xf32>, vector<16x48xf32> -> vector<16x48xf32>
    %47 = vector.extract_strided_slice %46 {offsets = [0, 0], sizes = [16, 16], strides = [1, 1]} : vector<16x48xf32> to vector<16x16xf32>
    %48 = arith.mulf %47, %47 : vector<16x16xf32>
    %49 = vector.extract_strided_slice %46 {offsets = [0, 16], sizes = [16, 16], strides = [1, 1]} : vector<16x48xf32> to vector<16x16xf32>
    %50 = arith.mulf %49, %49 : vector<16x16xf32>
    %51 = arith.addf %48, %50 : vector<16x16xf32>
    %52 = vector.extract_strided_slice %46 {offsets = [0, 32], sizes = [16, 16], strides = [1, 1]} : vector<16x48xf32> to vector<16x16xf32>
    %53 = arith.mulf %52, %52 : vector<16x16xf32>
    %54 = arith.addf %51, %53 : vector<16x16xf32>
    %cst_39 = arith.constant 9.99999993E-9 : f32
    %55 = vector.broadcast %cst_39 : f32 to vector<16x16xf32>
    %56 = arith.maximumf %54, %55 : vector<16x16xf32>
    %57 = math.sqrt %56 : vector<16x16xf32>
    %cst_40 = arith.constant dense<0.000000e+00> : vector<16x100xf32>
    %58 = tpu.matmul %27, %40, %cst_40 {dimension_numbers = #tpu.dot_dimension_numbers<[1], [0], [0], [1], [0, 0, 1, 1], [], []>} : vector<16x100xf32>, vector<100x100xf32>, vector<16x100xf32> -> vector<16x100xf32>
    %cst_41 = arith.constant dense<0.000000e+00> : vector<16x100xf32>
    %59 = tpu.matmul %57, %41, %cst_41 {dimension_numbers = #tpu.dot_dimension_numbers<[1], [0], [0], [1], [0, 0, 1, 1], [], []>} : vector<16x16xf32>, vector<16x100xf32>, vector<16x100xf32> -> vector<16x100xf32>
    %60 = arith.addf %58, %59 : vector<16x100xf32>
    %61 = vector.broadcast %42 : vector<1x100xf32> to vector<16x100xf32>
    %62 = arith.addf %60, %61 : vector<16x100xf32>
    %cst_42 = arith.constant 0.000000e+00 : f32
    %63 = vector.broadcast %cst_42 : f32 to vector<16x100xf32>
    %64 = arith.maximumf %62, %63 : vector<16x100xf32>
    %cst_43 = arith.constant dense<0.000000e+00> : vector<16x16xf32>
    %65 = tpu.matmul %62, %44, %cst_43 {dimension_numbers = #tpu.dot_dimension_numbers<[1], [0], [0], [1], [0, 0, 1, 1], [], []>} : vector<16x100xf32>, vector<100x16xf32>, vector<16x16xf32> -> vector<16x16xf32>
    %66 = vector.broadcast %45 : vector<1x16xf32> to vector<16x16xf32>
    %67 = arith.addf %65, %66 : vector<16x16xf32>
    %68 = arith.negf %67 : vector<16x16xf32>
    %69 = math.exp %68 : vector<16x16xf32>
    %cst_44 = arith.constant 1.000000e+00 : f32
    %70 = vector.broadcast %cst_44 : f32 to vector<16x16xf32>
    %71 = arith.addf %70, %69 : vector<16x16xf32>
    %72 = arith.divf %70, %71 : vector<16x16xf32>
    %cst_45 = arith.constant dense<0.000000e+00> : vector<16x48xf32>
    %73 = tpu.matmul %46, %43, %cst_45 {dimension_numbers = #tpu.dot_dimension_numbers<[1], [0], [0], [1], [0, 0, 1, 1], [], []>} : vector<16x48xf32>, vector<48x48xf32>, vector<16x48xf32> -> vector<16x48xf32>
    %74 = tpu.concatenate %72, %72, %72 in 1 : vector<16x16xf32>, vector<16x16xf32>, vector<16x16xf32> -> vector<16x48xf32>
    %75 = arith.mulf %73, %74 : vector<16x48xf32>
    %c0_46 = arith.constant 0 : index
    %c0_47 = arith.constant 0 : index
    %76 = vector.load %arg17[%c0_46, %c0_47] : memref<48x48xf32, #tpu.memory_space<vmem>>, vector<48x48xf32>
    %c0_48 = arith.constant 0 : index
    %c0_49 = arith.constant 0 : index
    %77 = vector.load %arg18[%c0_48, %c0_49] : memref<100x100xf32, #tpu.memory_space<vmem>>, vector<100x100xf32>
    %c0_50 = arith.constant 0 : index
    %c0_51 = arith.constant 0 : index
    %78 = vector.load %arg19[%c0_50, %c0_51] : memref<16x100xf32, #tpu.memory_space<vmem>>, vector<16x100xf32>
    %c0_52 = arith.constant 0 : index
    %c0_53 = arith.constant 0 : index
    %79 = vector.load %arg20[%c0_52, %c0_53] : memref<1x100xf32, #tpu.memory_space<vmem>>, vector<1x100xf32>
    %c0_54 = arith.constant 0 : index
    %c0_55 = arith.constant 0 : index
    %80 = vector.load %arg21[%c0_54, %c0_55] : memref<48x48xf32, #tpu.memory_space<vmem>>, vector<48x48xf32>
    %c0_56 = arith.constant 0 : index
    %c0_57 = arith.constant 0 : index
    %81 = vector.load %arg22[%c0_56, %c0_57] : memref<100x16xf32, #tpu.memory_space<vmem>>, vector<100x16xf32>
    %c0_58 = arith.constant 0 : index
    %c0_59 = arith.constant 0 : index
    %82 = vector.load %arg23[%c0_58, %c0_59] : memref<1x16xf32, #tpu.memory_space<vmem>>, vector<1x16xf32>
    %cst_60 = arith.constant dense<0.000000e+00> : vector<16x48xf32>
    %83 = tpu.matmul %75, %76, %cst_60 {dimension_numbers = #tpu.dot_dimension_numbers<[1], [0], [0], [1], [0, 0, 1, 1], [], []>} : vector<16x48xf32>, vector<48x48xf32>, vector<16x48xf32> -> vector<16x48xf32>
    %84 = vector.extract_strided_slice %83 {offsets = [0, 0], sizes = [16, 16], strides = [1, 1]} : vector<16x48xf32> to vector<16x16xf32>
    %85 = arith.mulf %84, %84 : vector<16x16xf32>
    %86 = vector.extract_strided_slice %83 {offsets = [0, 16], sizes = [16, 16], strides = [1, 1]} : vector<16x48xf32> to vector<16x16xf32>
    %87 = arith.mulf %86, %86 : vector<16x16xf32>
    %88 = arith.addf %85, %87 : vector<16x16xf32>
    %89 = vector.extract_strided_slice %83 {offsets = [0, 32], sizes = [16, 16], strides = [1, 1]} : vector<16x48xf32> to vector<16x16xf32>
    %90 = arith.mulf %89, %89 : vector<16x16xf32>
    %91 = arith.addf %88, %90 : vector<16x16xf32>
    %cst_61 = arith.constant 9.99999993E-9 : f32
    %92 = vector.broadcast %cst_61 : f32 to vector<16x16xf32>
    %93 = arith.maximumf %91, %92 : vector<16x16xf32>
    %94 = math.sqrt %93 : vector<16x16xf32>
    %cst_62 = arith.constant dense<0.000000e+00> : vector<16x100xf32>
    %95 = tpu.matmul %64, %77, %cst_62 {dimension_numbers = #tpu.dot_dimension_numbers<[1], [0], [0], [1], [0, 0, 1, 1], [], []>} : vector<16x100xf32>, vector<100x100xf32>, vector<16x100xf32> -> vector<16x100xf32>
    %cst_63 = arith.constant dense<0.000000e+00> : vector<16x100xf32>
    %96 = tpu.matmul %94, %78, %cst_63 {dimension_numbers = #tpu.dot_dimension_numbers<[1], [0], [0], [1], [0, 0, 1, 1], [], []>} : vector<16x16xf32>, vector<16x100xf32>, vector<16x100xf32> -> vector<16x100xf32>
    %97 = arith.addf %95, %96 : vector<16x100xf32>
    %98 = vector.broadcast %79 : vector<1x100xf32> to vector<16x100xf32>
    %99 = arith.addf %97, %98 : vector<16x100xf32>
    %cst_64 = arith.constant dense<0.000000e+00> : vector<16x16xf32>
    %100 = tpu.matmul %99, %81, %cst_64 {dimension_numbers = #tpu.dot_dimension_numbers<[1], [0], [0], [1], [0, 0, 1, 1], [], []>} : vector<16x100xf32>, vector<100x16xf32>, vector<16x16xf32> -> vector<16x16xf32>
    %101 = vector.broadcast %82 : vector<1x16xf32> to vector<16x16xf32>
    %102 = arith.addf %100, %101 : vector<16x16xf32>
    %103 = arith.negf %102 : vector<16x16xf32>
    %104 = math.exp %103 : vector<16x16xf32>
    %cst_65 = arith.constant 1.000000e+00 : f32
    %105 = vector.broadcast %cst_65 : f32 to vector<16x16xf32>
    %106 = arith.addf %105, %104 : vector<16x16xf32>
    %107 = arith.divf %105, %106 : vector<16x16xf32>
    %cst_66 = arith.constant dense<0.000000e+00> : vector<16x48xf32>
    %108 = tpu.matmul %83, %80, %cst_66 {dimension_numbers = #tpu.dot_dimension_numbers<[1], [0], [0], [1], [0, 0, 1, 1], [], []>} : vector<16x48xf32>, vector<48x48xf32>, vector<16x48xf32> -> vector<16x48xf32>
    %109 = tpu.concatenate %107, %107, %107 in 1 : vector<16x16xf32>, vector<16x16xf32>, vector<16x16xf32> -> vector<16x48xf32>
    %110 = arith.mulf %108, %109 : vector<16x48xf32>
    %c0_67 = arith.constant 0 : index
    %c0_68 = arith.constant 0 : index
    %111 = vector.load %arg24[%c0_67, %c0_68] : memref<16x100xf32, #tpu.memory_space<vmem>>, vector<16x100xf32>
    tpu.vector_store %arg24[%c0_67, %c0_68], %99 {strides = array<i32>} : memref<16x100xf32, #tpu.memory_space<vmem>>, vector<16x100xf32>,
    %c0_69 = arith.constant 0 : index
    %c0_70 = arith.constant 0 : index
    %112 = vector.load %arg25[%c0_69, %c0_70] : memref<16x48xf32, #tpu.memory_space<vmem>>, vector<16x48xf32>
    tpu.vector_store %arg25[%c0_69, %c0_70], %110 {strides = array<i32>} : memref<16x48xf32, #tpu.memory_space<vmem>>, vector<16x48xf32>,
    return
  }
  func.func @transform_0(%arg0: i32) -> (i32, i32) {
    %c0_i32 = arith.constant 0 : i32
    %c0_i32_0 = arith.constant 0 : i32
    return %arg0, %c0_i32 : i32, i32
  }
  func.func @transform_1(%arg0: i32) -> (i32, i32) {
    %c0_i32 = arith.constant 0 : i32
    %c0_i32_0 = arith.constant 0 : i32
    return %arg0, %c0_i32 : i32, i32
  }
  func.func @transform_2(%arg0: i32) -> (i32, i32) {
    %c0_i32 = arith.constant 0 : i32
    %c0_i32_0 = arith.constant 0 : i32
    %c0_i32_1 = arith.constant 0 : i32
    return %c0_i32, %c0_i32_0 : i32, i32
  }
  func.func @transform_3(%arg0: i32) -> (i32, i32) {
    %c0_i32 = arith.constant 0 : i32
    %c0_i32_0 = arith.constant 0 : i32
    %c0_i32_1 = arith.constant 0 : i32
    return %c0_i32, %c0_i32_0 : i32, i32
  }
  func.func @transform_4(%arg0: i32) -> (i32, i32) {
    %c0_i32 = arith.constant 0 : i32
    %c0_i32_0 = arith.constant 0 : i32
    %c0_i32_1 = arith.constant 0 : i32
    return %c0_i32, %c0_i32_0 : i32, i32
  }
  func.func @transform_5(%arg0: i32) -> (i32, i32) {
    %c0_i32 = arith.constant 0 : i32
    %c0_i32_0 = arith.constant 0 : i32
    %c0_i32_1 = arith.constant 0 : i32
    return %c0_i32, %c0_i32_0 : i32, i32
  }
  func.func @transform_6(%arg0: i32) -> (i32, i32) {
    %c0_i32 = arith.constant 0 : i32
    %c0_i32_0 = arith.constant 0 : i32
    %c0_i32_1 = arith.constant 0 : i32
    return %c0_i32, %c0_i32_0 : i32, i32
  }
  func.func @transform_7(%arg0: i32) -> (i32, i32) {
    %c0_i32 = arith.constant 0 : i32
    %c0_i32_0 = arith.constant 0 : i32
    %c0_i32_1 = arith.constant 0 : i32
    return %c0_i32, %c0_i32_0 : i32, i32
  }
  func.func @transform_8(%arg0: i32) -> (i32, i32) {
    %c0_i32 = arith.constant 0 : i32
    %c0_i32_0 = arith.constant 0 : i32
    %c0_i32_1 = arith.constant 0 : i32
    return %c0_i32, %c0_i32_0 : i32, i32
  }
  func.func @transform_9(%arg0: i32) -> (i32, i32) {
    %c0_i32 = arith.constant 0 : i32
    %c0_i32_0 = arith.constant 0 : i32
    %c0_i32_1 = arith.constant 0 : i32
    return %c0_i32, %c0_i32_0 : i32, i32
  }
  func.func @transform_10(%arg0: i32) -> (i32, i32) {
    %c0_i32 = arith.constant 0 : i32
    %c0_i32_0 = arith.constant 0 : i32
    %c0_i32_1 = arith.constant 0 : i32
    return %c0_i32, %c0_i32_0 : i32, i32
  }
  func.func @transform_11(%arg0: i32) -> (i32, i32) {
    %c0_i32 = arith.constant 0 : i32
    %c0_i32_0 = arith.constant 0 : i32
    %c0_i32_1 = arith.constant 0 : i32
    return %c0_i32, %c0_i32_0 : i32, i32
  }
  func.func @transform_12(%arg0: i32) -> (i32, i32) {
    %c0_i32 = arith.constant 0 : i32
    %c0_i32_0 = arith.constant 0 : i32
    %c0_i32_1 = arith.constant 0 : i32
    return %c0_i32, %c0_i32_0 : i32, i32
  }
  func.func @transform_13(%arg0: i32) -> (i32, i32) {
    %c0_i32 = arith.constant 0 : i32
    %c0_i32_0 = arith.constant 0 : i32
    %c0_i32_1 = arith.constant 0 : i32
    return %c0_i32, %c0_i32_0 : i32, i32
  }
  func.func @transform_14(%arg0: i32) -> (i32, i32) {
    %c0_i32 = arith.constant 0 : i32
    %c0_i32_0 = arith.constant 0 : i32
    %c0_i32_1 = arith.constant 0 : i32
    return %c0_i32, %c0_i32_0 : i32, i32
  }
  func.func @transform_15(%arg0: i32) -> (i32, i32) {
    %c0_i32 = arith.constant 0 : i32
    %c0_i32_0 = arith.constant 0 : i32
    %c0_i32_1 = arith.constant 0 : i32
    return %c0_i32, %c0_i32_0 : i32, i32
  }
  func.func @transform_16(%arg0: i32) -> (i32, i32) {
    %c0_i32 = arith.constant 0 : i32
    %c0_i32_0 = arith.constant 0 : i32
    %c0_i32_1 = arith.constant 0 : i32
    return %c0_i32, %c0_i32_0 : i32, i32
  }
  func.func @transform_17(%arg0: i32) -> (i32, i32) {
    %c0_i32 = arith.constant 0 : i32
    %c0_i32_0 = arith.constant 0 : i32
    %c0_i32_1 = arith.constant 0 : i32
    return %c0_i32, %c0_i32_0 : i32, i32
  }
  func.func @transform_18(%arg0: i32) -> (i32, i32) {
    %c0_i32 = arith.constant 0 : i32
    %c0_i32_0 = arith.constant 0 : i32
    %c0_i32_1 = arith.constant 0 : i32
    return %c0_i32, %c0_i32_0 : i32, i32
  }
  func.func @transform_19(%arg0: i32) -> (i32, i32) {
    %c0_i32 = arith.constant 0 : i32
    %c0_i32_0 = arith.constant 0 : i32
    %c0_i32_1 = arith.constant 0 : i32
    return %c0_i32, %c0_i32_0 : i32, i32
  }
  func.func @transform_20(%arg0: i32) -> (i32, i32) {
    %c0_i32 = arith.constant 0 : i32
    %c0_i32_0 = arith.constant 0 : i32
    %c0_i32_1 = arith.constant 0 : i32
    return %c0_i32, %c0_i32_0 : i32, i32
  }
  func.func @transform_21(%arg0: i32) -> (i32, i32) {
    %c0_i32 = arith.constant 0 : i32
    %c0_i32_0 = arith.constant 0 : i32
    %c0_i32_1 = arith.constant 0 : i32
    return %c0_i32, %c0_i32_0 : i32, i32
  }
  func.func @transform_22(%arg0: i32) -> (i32, i32) {
    %c0_i32 = arith.constant 0 : i32
    %c0_i32_0 = arith.constant 0 : i32
    %c0_i32_1 = arith.constant 0 : i32
    return %c0_i32, %c0_i32_0 : i32, i32
  }
  func.func @transform_23(%arg0: i32) -> (i32, i32) {
    %c0_i32 = arith.constant 0 : i32
    %c0_i32_0 = arith.constant 0 : i32
    return %arg0, %c0_i32 : i32, i32
  }
  func.func @transform_24(%arg0: i32) -> (i32, i32) {
    %c0_i32 = arith.constant 0 : i32
    %c0_i32_0 = arith.constant 0 : i32
    return %arg0, %c0_i32 : i32, i32
  }
}

module attributes {stable_mosaic.version = 11 : i64} {
  func.func @_chain_kernel(%arg0: i32, %arg1: memref<8x100xf32, #tpu.memory_space<vmem>>, %arg2: memref<8x48xf32, #tpu.memory_space<vmem>>, %arg3: memref<1x100xf32, #tpu.memory_space<vmem>>, %arg4: memref<1x100xf32, #tpu.memory_space<vmem>>, %arg5: memref<48x48xf32, #tpu.memory_space<vmem>>, %arg6: memref<100x100xf32, #tpu.memory_space<vmem>>, %arg7: memref<16x100xf32, #tpu.memory_space<vmem>>, %arg8: memref<1x100xf32, #tpu.memory_space<vmem>>, %arg9: memref<8x100xf32, #tpu.memory_space<vmem>>) attributes {dimension_semantics = [#tpu.dimension_semantics<parallel>], iteration_bounds = array<i64: 1>, scalar_prefetch = 0 : i64, scratch_operands = 0 : i64, tpu.core_type = #tpu.core_type<tc>, window_params = [{transform_indices = @transform_0, window_bounds = array<i64: 8, 100>}, {transform_indices = @transform_1, window_bounds = array<i64: 8, 48>}, {pipeline_mode = #tpu.pipeline_mode<synchronous>, transform_indices = @transform_2, window_bounds = array<i64: 1, 100>}, {pipeline_mode = #tpu.pipeline_mode<synchronous>, transform_indices = @transform_3, window_bounds = array<i64: 1, 100>}, {pipeline_mode = #tpu.pipeline_mode<synchronous>, transform_indices = @transform_4, window_bounds = array<i64: 48, 48>}, {pipeline_mode = #tpu.pipeline_mode<synchronous>, transform_indices = @transform_5, window_bounds = array<i64: 100, 100>}, {pipeline_mode = #tpu.pipeline_mode<synchronous>, transform_indices = @transform_6, window_bounds = array<i64: 16, 100>}, {pipeline_mode = #tpu.pipeline_mode<synchronous>, transform_indices = @transform_7, window_bounds = array<i64: 1, 100>}, {transform_indices = @transform_8, window_bounds = array<i64: 8, 100>}]} {
    %c0 = arith.constant 0 : index
    %c0_0 = arith.constant 0 : index
    %0 = vector.load %arg1[%c0, %c0_0] : memref<8x100xf32, #tpu.memory_space<vmem>>, vector<8x100xf32>
    %c0_1 = arith.constant 0 : index
    %c0_2 = arith.constant 0 : index
    %1 = vector.load %arg2[%c0_1, %c0_2] : memref<8x48xf32, #tpu.memory_space<vmem>>, vector<8x48xf32>
    %c0_3 = arith.constant 0 : index
    %c0_4 = arith.constant 0 : index
    %2 = vector.load %arg3[%c0_3, %c0_4] : memref<1x100xf32, #tpu.memory_space<vmem>>, vector<1x100xf32>
    %c0_5 = arith.constant 0 : index
    %c0_6 = arith.constant 0 : index
    %3 = vector.load %arg4[%c0_5, %c0_6] : memref<1x100xf32, #tpu.memory_space<vmem>>, vector<1x100xf32>
    %cst = arith.constant dense<0.000000e+00> : vector<8xf32>
    %4 = vector.multi_reduction <add>, %0, %cst [1] : vector<8x100xf32> to vector<8xf32>
    %5 = vector.shape_cast %4 : vector<8xf32> to vector<8x1xf32>
    %cst_7 = arith.constant 1.000000e+02 : f32
    %6 = vector.broadcast %cst_7 : f32 to vector<8x1xf32>
    %7 = arith.divf %5, %6 : vector<8x1xf32>
    %8 = vector.broadcast %7 : vector<8x1xf32> to vector<8x100xf32>
    %9 = arith.subf %0, %8 : vector<8x100xf32>
    %10 = arith.mulf %9, %9 : vector<8x100xf32>
    %cst_8 = arith.constant dense<0.000000e+00> : vector<8xf32>
    %11 = vector.multi_reduction <add>, %10, %cst_8 [1] : vector<8x100xf32> to vector<8xf32>
    %12 = vector.shape_cast %11 : vector<8xf32> to vector<8x1xf32>
    %cst_9 = arith.constant 1.000000e+02 : f32
    %13 = vector.broadcast %cst_9 : f32 to vector<8x1xf32>
    %14 = arith.divf %12, %13 : vector<8x1xf32>
    %15 = vector.broadcast %7 : vector<8x1xf32> to vector<8x100xf32>
    %16 = arith.subf %0, %15 : vector<8x100xf32>
    %cst_10 = arith.constant 9.99999974E-6 : f32
    %17 = vector.broadcast %cst_10 : f32 to vector<8x1xf32>
    %18 = arith.addf %14, %17 : vector<8x1xf32>
    %19 = math.rsqrt %18 : vector<8x1xf32>
    %20 = vector.broadcast %19 : vector<8x1xf32> to vector<8x100xf32>
    %21 = arith.mulf %16, %20 : vector<8x100xf32>
    %22 = vector.broadcast %2 : vector<1x100xf32> to vector<8x100xf32>
    %23 = arith.mulf %21, %22 : vector<8x100xf32>
    %24 = vector.broadcast %3 : vector<1x100xf32> to vector<8x100xf32>
    %25 = arith.addf %23, %24 : vector<8x100xf32>
    %26 = arith.mulf %1, %1 : vector<8x48xf32>
    %27 = vector.extract_strided_slice %26 {offsets = [0, 0], sizes = [8, 16], strides = [1, 1]} : vector<8x48xf32> to vector<8x16xf32>
    %28 = vector.extract_strided_slice %26 {offsets = [0, 16], sizes = [8, 16], strides = [1, 1]} : vector<8x48xf32> to vector<8x16xf32>
    %29 = arith.addf %27, %28 : vector<8x16xf32>
    %30 = vector.extract_strided_slice %26 {offsets = [0, 32], sizes = [8, 16], strides = [1, 1]} : vector<8x48xf32> to vector<8x16xf32>
    %31 = arith.addf %29, %30 : vector<8x16xf32>
    %cst_11 = arith.constant 9.99999993E-9 : f32
    %32 = vector.broadcast %cst_11 : f32 to vector<8x16xf32>
    %33 = arith.maximumf %31, %32 : vector<8x16xf32>
    %cst_12 = arith.constant dense<0.000000e+00> : vector<8xf32>
    %34 = vector.multi_reduction <add>, %33, %cst_12 [1] : vector<8x16xf32> to vector<8xf32>
    %35 = vector.shape_cast %34 : vector<8xf32> to vector<8x1xf32>
    %cst_13 = arith.constant 1.600000e+01 : f32
    %36 = vector.broadcast %cst_13 : f32 to vector<8x1xf32>
    %37 = arith.divf %35, %36 : vector<8x1xf32>
    %38 = math.sqrt %37 : vector<8x1xf32>
    %39 = vector.broadcast %38 : vector<8x1xf32> to vector<8x48xf32>
    %40 = arith.divf %1, %39 : vector<8x48xf32>
    %c0_14 = arith.constant 0 : index
    %c0_15 = arith.constant 0 : index
    %41 = vector.load %arg5[%c0_14, %c0_15] : memref<48x48xf32, #tpu.memory_space<vmem>>, vector<48x48xf32>
    %c0_16 = arith.constant 0 : index
    %c0_17 = arith.constant 0 : index
    %42 = vector.load %arg6[%c0_16, %c0_17] : memref<100x100xf32, #tpu.memory_space<vmem>>, vector<100x100xf32>
    %c0_18 = arith.constant 0 : index
    %c0_19 = arith.constant 0 : index
    %43 = vector.load %arg7[%c0_18, %c0_19] : memref<16x100xf32, #tpu.memory_space<vmem>>, vector<16x100xf32>
    %c0_20 = arith.constant 0 : index
    %c0_21 = arith.constant 0 : index
    %44 = vector.load %arg8[%c0_20, %c0_21] : memref<1x100xf32, #tpu.memory_space<vmem>>, vector<1x100xf32>
    %cst_22 = arith.constant dense<0.000000e+00> : vector<8x48xf32>
    %45 = tpu.matmul %40, %41, %cst_22 {dimension_numbers = #tpu.dot_dimension_numbers<[1], [0], [0], [1], [0, 0, 1, 1], [], []>} : vector<8x48xf32>, vector<48x48xf32>, vector<8x48xf32> -> vector<8x48xf32>
    %46 = vector.extract_strided_slice %45 {offsets = [0, 0], sizes = [8, 16], strides = [1, 1]} : vector<8x48xf32> to vector<8x16xf32>
    %47 = arith.mulf %46, %46 : vector<8x16xf32>
    %48 = vector.extract_strided_slice %45 {offsets = [0, 16], sizes = [8, 16], strides = [1, 1]} : vector<8x48xf32> to vector<8x16xf32>
    %49 = arith.mulf %48, %48 : vector<8x16xf32>
    %50 = arith.addf %47, %49 : vector<8x16xf32>
    %51 = vector.extract_strided_slice %45 {offsets = [0, 32], sizes = [8, 16], strides = [1, 1]} : vector<8x48xf32> to vector<8x16xf32>
    %52 = arith.mulf %51, %51 : vector<8x16xf32>
    %53 = arith.addf %50, %52 : vector<8x16xf32>
    %cst_23 = arith.constant 9.99999993E-9 : f32
    %54 = vector.broadcast %cst_23 : f32 to vector<8x16xf32>
    %55 = arith.maximumf %53, %54 : vector<8x16xf32>
    %56 = math.sqrt %55 : vector<8x16xf32>
    %cst_24 = arith.constant dense<0.000000e+00> : vector<8x100xf32>
    %57 = tpu.matmul %25, %42, %cst_24 {dimension_numbers = #tpu.dot_dimension_numbers<[1], [0], [0], [1], [0, 0, 1, 1], [], []>} : vector<8x100xf32>, vector<100x100xf32>, vector<8x100xf32> -> vector<8x100xf32>
    %cst_25 = arith.constant dense<0.000000e+00> : vector<8x100xf32>
    %58 = tpu.matmul %56, %43, %cst_25 {dimension_numbers = #tpu.dot_dimension_numbers<[1], [0], [0], [1], [0, 0, 1, 1], [], []>} : vector<8x16xf32>, vector<16x100xf32>, vector<8x100xf32> -> vector<8x100xf32>
    %59 = arith.addf %57, %58 : vector<8x100xf32>
    %60 = vector.broadcast %44 : vector<1x100xf32> to vector<8x100xf32>
    %61 = arith.addf %59, %60 : vector<8x100xf32>
    %cst_26 = arith.constant 0.000000e+00 : f32
    %62 = vector.broadcast %cst_26 : f32 to vector<8x100xf32>
    %63 = arith.maximumf %61, %62 : vector<8x100xf32>
    %c0_27 = arith.constant 0 : index
    %c0_28 = arith.constant 0 : index
    %64 = vector.load %arg9[%c0_27, %c0_28] : memref<8x100xf32, #tpu.memory_space<vmem>>, vector<8x100xf32>
    tpu.vector_store %arg9[%c0_27, %c0_28], %63 {strides = array<i32>} : memref<8x100xf32, #tpu.memory_space<vmem>>, vector<8x100xf32>,
    return
  }
  func.func @transform_0(%arg0: i32) -> (i32, i32) {
    %c0_i32 = arith.constant 0 : i32
    %c0_i32_0 = arith.constant 0 : i32
    return %arg0, %c0_i32 : i32, i32
  }
  func.func @transform_1(%arg0: i32) -> (i32, i32) {
    %c0_i32 = arith.constant 0 : i32
    %c0_i32_0 = arith.constant 0 : i32
    return %arg0, %c0_i32 : i32, i32
  }
  func.func @transform_2(%arg0: i32) -> (i32, i32) {
    %c0_i32 = arith.constant 0 : i32
    %c0_i32_0 = arith.constant 0 : i32
    %c0_i32_1 = arith.constant 0 : i32
    return %c0_i32, %c0_i32_0 : i32, i32
  }
  func.func @transform_3(%arg0: i32) -> (i32, i32) {
    %c0_i32 = arith.constant 0 : i32
    %c0_i32_0 = arith.constant 0 : i32
    %c0_i32_1 = arith.constant 0 : i32
    return %c0_i32, %c0_i32_0 : i32, i32
  }
  func.func @transform_4(%arg0: i32) -> (i32, i32) {
    %c0_i32 = arith.constant 0 : i32
    %c0_i32_0 = arith.constant 0 : i32
    %c0_i32_1 = arith.constant 0 : i32
    return %c0_i32, %c0_i32_0 : i32, i32
  }
  func.func @transform_5(%arg0: i32) -> (i32, i32) {
    %c0_i32 = arith.constant 0 : i32
    %c0_i32_0 = arith.constant 0 : i32
    %c0_i32_1 = arith.constant 0 : i32
    return %c0_i32, %c0_i32_0 : i32, i32
  }
  func.func @transform_6(%arg0: i32) -> (i32, i32) {
    %c0_i32 = arith.constant 0 : i32
    %c0_i32_0 = arith.constant 0 : i32
    %c0_i32_1 = arith.constant 0 : i32
    return %c0_i32, %c0_i32_0 : i32, i32
  }
  func.func @transform_7(%arg0: i32) -> (i32, i32) {
    %c0_i32 = arith.constant 0 : i32
    %c0_i32_0 = arith.constant 0 : i32
    %c0_i32_1 = arith.constant 0 : i32
    return %c0_i32, %c0_i32_0 : i32, i32
  }
  func.func @transform_8(%arg0: i32) -> (i32, i32) {
    %c0_i32 = arith.constant 0 : i32
    %c0_i32_0 = arith.constant 0 : i32
    return %arg0, %c0_i32 : i32, i32
  }
}

module attributes {stable_mosaic.version = 11 : i64} {
  func.func @_res_ln_kernel(%arg0: i32, %arg1: memref<8x100xf32, #tpu.memory_space<vmem>>, %arg2: memref<8x100xf32, #tpu.memory_space<vmem>>, %arg3: memref<8x48xf32, #tpu.memory_space<vmem>>, %arg4: memref<8x48xf32, #tpu.memory_space<vmem>>, %arg5: memref<1x100xf32, #tpu.memory_space<vmem>>, %arg6: memref<1x100xf32, #tpu.memory_space<vmem>>, %arg7: memref<8x100xf32, #tpu.memory_space<vmem>>, %arg8: memref<8x48xf32, #tpu.memory_space<vmem>>) attributes {dimension_semantics = [#tpu.dimension_semantics<parallel>], iteration_bounds = array<i64: 1>, scalar_prefetch = 0 : i64, scratch_operands = 0 : i64, tpu.core_type = #tpu.core_type<tc>, window_params = [{transform_indices = @transform_0, window_bounds = array<i64: 8, 100>}, {transform_indices = @transform_1, window_bounds = array<i64: 8, 100>}, {transform_indices = @transform_2, window_bounds = array<i64: 8, 48>}, {transform_indices = @transform_3, window_bounds = array<i64: 8, 48>}, {pipeline_mode = #tpu.pipeline_mode<synchronous>, transform_indices = @transform_4, window_bounds = array<i64: 1, 100>}, {pipeline_mode = #tpu.pipeline_mode<synchronous>, transform_indices = @transform_5, window_bounds = array<i64: 1, 100>}, {transform_indices = @transform_6, window_bounds = array<i64: 8, 100>}, {transform_indices = @transform_7, window_bounds = array<i64: 8, 48>}]} {
    %c0 = arith.constant 0 : index
    %c0_0 = arith.constant 0 : index
    %0 = vector.load %arg1[%c0, %c0_0] : memref<8x100xf32, #tpu.memory_space<vmem>>, vector<8x100xf32>
    %c0_1 = arith.constant 0 : index
    %c0_2 = arith.constant 0 : index
    %1 = vector.load %arg2[%c0_1, %c0_2] : memref<8x100xf32, #tpu.memory_space<vmem>>, vector<8x100xf32>
    %2 = arith.addf %0, %1 : vector<8x100xf32>
    %c0_3 = arith.constant 0 : index
    %c0_4 = arith.constant 0 : index
    %3 = vector.load %arg3[%c0_3, %c0_4] : memref<8x48xf32, #tpu.memory_space<vmem>>, vector<8x48xf32>
    %c0_5 = arith.constant 0 : index
    %c0_6 = arith.constant 0 : index
    %4 = vector.load %arg4[%c0_5, %c0_6] : memref<8x48xf32, #tpu.memory_space<vmem>>, vector<8x48xf32>
    %5 = arith.addf %3, %4 : vector<8x48xf32>
    %c0_7 = arith.constant 0 : index
    %c0_8 = arith.constant 0 : index
    %6 = vector.load %arg5[%c0_7, %c0_8] : memref<1x100xf32, #tpu.memory_space<vmem>>, vector<1x100xf32>
    %c0_9 = arith.constant 0 : index
    %c0_10 = arith.constant 0 : index
    %7 = vector.load %arg6[%c0_9, %c0_10] : memref<1x100xf32, #tpu.memory_space<vmem>>, vector<1x100xf32>
    %cst = arith.constant dense<0.000000e+00> : vector<8xf32>
    %8 = vector.multi_reduction <add>, %2, %cst [1] : vector<8x100xf32> to vector<8xf32>
    %9 = vector.shape_cast %8 : vector<8xf32> to vector<8x1xf32>
    %cst_11 = arith.constant 1.000000e+02 : f32
    %10 = vector.broadcast %cst_11 : f32 to vector<8x1xf32>
    %11 = arith.divf %9, %10 : vector<8x1xf32>
    %12 = vector.broadcast %11 : vector<8x1xf32> to vector<8x100xf32>
    %13 = arith.subf %2, %12 : vector<8x100xf32>
    %14 = arith.mulf %13, %13 : vector<8x100xf32>
    %cst_12 = arith.constant dense<0.000000e+00> : vector<8xf32>
    %15 = vector.multi_reduction <add>, %14, %cst_12 [1] : vector<8x100xf32> to vector<8xf32>
    %16 = vector.shape_cast %15 : vector<8xf32> to vector<8x1xf32>
    %cst_13 = arith.constant 1.000000e+02 : f32
    %17 = vector.broadcast %cst_13 : f32 to vector<8x1xf32>
    %18 = arith.divf %16, %17 : vector<8x1xf32>
    %19 = vector.broadcast %11 : vector<8x1xf32> to vector<8x100xf32>
    %20 = arith.subf %2, %19 : vector<8x100xf32>
    %cst_14 = arith.constant 9.99999974E-6 : f32
    %21 = vector.broadcast %cst_14 : f32 to vector<8x1xf32>
    %22 = arith.addf %18, %21 : vector<8x1xf32>
    %23 = math.rsqrt %22 : vector<8x1xf32>
    %24 = vector.broadcast %23 : vector<8x1xf32> to vector<8x100xf32>
    %25 = arith.mulf %20, %24 : vector<8x100xf32>
    %26 = vector.broadcast %6 : vector<1x100xf32> to vector<8x100xf32>
    %27 = arith.mulf %25, %26 : vector<8x100xf32>
    %28 = vector.broadcast %7 : vector<1x100xf32> to vector<8x100xf32>
    %29 = arith.addf %27, %28 : vector<8x100xf32>
    %c0_15 = arith.constant 0 : index
    %c0_16 = arith.constant 0 : index
    %30 = vector.load %arg7[%c0_15, %c0_16] : memref<8x100xf32, #tpu.memory_space<vmem>>, vector<8x100xf32>
    tpu.vector_store %arg7[%c0_15, %c0_16], %29 {strides = array<i32>} : memref<8x100xf32, #tpu.memory_space<vmem>>, vector<8x100xf32>,
    %31 = arith.mulf %5, %5 : vector<8x48xf32>
    %32 = vector.extract_strided_slice %31 {offsets = [0, 0], sizes = [8, 16], strides = [1, 1]} : vector<8x48xf32> to vector<8x16xf32>
    %33 = vector.extract_strided_slice %31 {offsets = [0, 16], sizes = [8, 16], strides = [1, 1]} : vector<8x48xf32> to vector<8x16xf32>
    %34 = arith.addf %32, %33 : vector<8x16xf32>
    %35 = vector.extract_strided_slice %31 {offsets = [0, 32], sizes = [8, 16], strides = [1, 1]} : vector<8x48xf32> to vector<8x16xf32>
    %36 = arith.addf %34, %35 : vector<8x16xf32>
    %cst_17 = arith.constant 9.99999993E-9 : f32
    %37 = vector.broadcast %cst_17 : f32 to vector<8x16xf32>
    %38 = arith.maximumf %36, %37 : vector<8x16xf32>
    %cst_18 = arith.constant dense<0.000000e+00> : vector<8xf32>
    %39 = vector.multi_reduction <add>, %38, %cst_18 [1] : vector<8x16xf32> to vector<8xf32>
    %40 = vector.shape_cast %39 : vector<8xf32> to vector<8x1xf32>
    %cst_19 = arith.constant 1.600000e+01 : f32
    %41 = vector.broadcast %cst_19 : f32 to vector<8x1xf32>
    %42 = arith.divf %40, %41 : vector<8x1xf32>
    %43 = math.sqrt %42 : vector<8x1xf32>
    %44 = vector.broadcast %43 : vector<8x1xf32> to vector<8x48xf32>
    %45 = arith.divf %5, %44 : vector<8x48xf32>
    %c0_20 = arith.constant 0 : index
    %c0_21 = arith.constant 0 : index
    %46 = vector.load %arg8[%c0_20, %c0_21] : memref<8x48xf32, #tpu.memory_space<vmem>>, vector<8x48xf32>
    tpu.vector_store %arg8[%c0_20, %c0_21], %45 {strides = array<i32>} : memref<8x48xf32, #tpu.memory_space<vmem>>, vector<8x48xf32>,
    return
  }
  func.func @transform_0(%arg0: i32) -> (i32, i32) {
    %c0_i32 = arith.constant 0 : i32
    %c0_i32_0 = arith.constant 0 : i32
    return %arg0, %c0_i32 : i32, i32
  }
  func.func @transform_1(%arg0: i32) -> (i32, i32) {
    %c0_i32 = arith.constant 0 : i32
    %c0_i32_0 = arith.constant 0 : i32
    return %arg0, %c0_i32 : i32, i32
  }
  func.func @transform_2(%arg0: i32) -> (i32, i32) {
    %c0_i32 = arith.constant 0 : i32
    %c0_i32_0 = arith.constant 0 : i32
    return %arg0, %c0_i32 : i32, i32
  }
  func.func @transform_3(%arg0: i32) -> (i32, i32) {
    %c0_i32 = arith.constant 0 : i32
    %c0_i32_0 = arith.constant 0 : i32
    return %arg0, %c0_i32 : i32, i32
  }
  func.func @transform_4(%arg0: i32) -> (i32, i32) {
    %c0_i32 = arith.constant 0 : i32
    %c0_i32_0 = arith.constant 0 : i32
    %c0_i32_1 = arith.constant 0 : i32
    return %c0_i32, %c0_i32_0 : i32, i32
  }
  func.func @transform_5(%arg0: i32) -> (i32, i32) {
    %c0_i32 = arith.constant 0 : i32
    %c0_i32_0 = arith.constant 0 : i32
    %c0_i32_1 = arith.constant 0 : i32
    return %c0_i32, %c0_i32_0 : i32, i32
  }
  func.func @transform_6(%arg0: i32) -> (i32, i32) {
    %c0_i32 = arith.constant 0 : i32
    %c0_i32_0 = arith.constant 0 : i32
    return %arg0, %c0_i32 : i32, i32
  }
  func.func @transform_7(%arg0: i32) -> (i32, i32) {
    %c0_i32 = arith.constant 0 : i32
    %c0_i32_0 = arith.constant 0 : i32
    return %arg0, %c0_i32 : i32, i32
  }
}

module attributes {stable_mosaic.version = 11 : i64} {
  func.func @_chain_kernel(%arg0: i32, %arg1: memref<8x100xf32, #tpu.memory_space<vmem>>, %arg2: memref<8x48xf32, #tpu.memory_space<vmem>>, %arg3: memref<48x96xf32, #tpu.memory_space<vmem>>, %arg4: memref<100x400xf32, #tpu.memory_space<vmem>>, %arg5: memref<32x400xf32, #tpu.memory_space<vmem>>, %arg6: memref<1x400xf32, #tpu.memory_space<vmem>>, %arg7: memref<96x96xf32, #tpu.memory_space<vmem>>, %arg8: memref<400x32xf32, #tpu.memory_space<vmem>>, %arg9: memref<1x32xf32, #tpu.memory_space<vmem>>, %arg10: memref<96x96xf32, #tpu.memory_space<vmem>>, %arg11: memref<400x100xf32, #tpu.memory_space<vmem>>, %arg12: memref<32x100xf32, #tpu.memory_space<vmem>>, %arg13: memref<1x100xf32, #tpu.memory_space<vmem>>, %arg14: memref<96x48xf32, #tpu.memory_space<vmem>>, %arg15: memref<100x16xf32, #tpu.memory_space<vmem>>, %arg16: memref<1x16xf32, #tpu.memory_space<vmem>>, %arg17: memref<8x100xf32, #tpu.memory_space<vmem>>, %arg18: memref<8x48xf32, #tpu.memory_space<vmem>>) attributes {dimension_semantics = [#tpu.dimension_semantics<parallel>], iteration_bounds = array<i64: 1>, scalar_prefetch = 0 : i64, scratch_operands = 0 : i64, tpu.core_type = #tpu.core_type<tc>, window_params = [{transform_indices = @transform_0, window_bounds = array<i64: 8, 100>}, {transform_indices = @transform_1, window_bounds = array<i64: 8, 48>}, {pipeline_mode = #tpu.pipeline_mode<synchronous>, transform_indices = @transform_2, window_bounds = array<i64: 48, 96>}, {pipeline_mode = #tpu.pipeline_mode<synchronous>, transform_indices = @transform_3, window_bounds = array<i64: 100, 400>}, {pipeline_mode = #tpu.pipeline_mode<synchronous>, transform_indices = @transform_4, window_bounds = array<i64: 32, 400>}, {pipeline_mode = #tpu.pipeline_mode<synchronous>, transform_indices = @transform_5, window_bounds = array<i64: 1, 400>}, {pipeline_mode = #tpu.pipeline_mode<synchronous>, transform_indices = @transform_6, window_bounds = array<i64: 96, 96>}, {pipeline_mode = #tpu.pipeline_mode<synchronous>, transform_indices = @transform_7, window_bounds = array<i64: 400, 32>}, {pipeline_mode = #tpu.pipeline_mode<synchronous>, transform_indices = @transform_8, window_bounds = array<i64: 1, 32>}, {pipeline_mode = #tpu.pipeline_mode<synchronous>, transform_indices = @transform_9, window_bounds = array<i64: 96, 96>}, {pipeline_mode = #tpu.pipeline_mode<synchronous>, transform_indices = @transform_10, window_bounds = array<i64: 400, 100>}, {pipeline_mode = #tpu.pipeline_mode<synchronous>, transform_indices = @transform_11, window_bounds = array<i64: 32, 100>}, {pipeline_mode = #tpu.pipeline_mode<synchronous>, transform_indices = @transform_12, window_bounds = array<i64: 1, 100>}, {pipeline_mode = #tpu.pipeline_mode<synchronous>, transform_indices = @transform_13, window_bounds = array<i64: 96, 48>}, {pipeline_mode = #tpu.pipeline_mode<synchronous>, transform_indices = @transform_14, window_bounds = array<i64: 100, 16>}, {pipeline_mode = #tpu.pipeline_mode<synchronous>, transform_indices = @transform_15, window_bounds = array<i64: 1, 16>}, {transform_indices = @transform_16, window_bounds = array<i64: 8, 100>}, {transform_indices = @transform_17, window_bounds = array<i64: 8, 48>}]} {
    %c0 = arith.constant 0 : index
    %c0_0 = arith.constant 0 : index
    %0 = vector.load %arg1[%c0, %c0_0] : memref<8x100xf32, #tpu.memory_space<vmem>>, vector<8x100xf32>
    %c0_1 = arith.constant 0 : index
    %c0_2 = arith.constant 0 : index
    %1 = vector.load %arg2[%c0_1, %c0_2] : memref<8x48xf32, #tpu.memory_space<vmem>>, vector<8x48xf32>
    %c0_3 = arith.constant 0 : index
    %c0_4 = arith.constant 0 : index
    %2 = vector.load %arg3[%c0_3, %c0_4] : memref<48x96xf32, #tpu.memory_space<vmem>>, vector<48x96xf32>
    %c0_5 = arith.constant 0 : index
    %c0_6 = arith.constant 0 : index
    %3 = vector.load %arg4[%c0_5, %c0_6] : memref<100x400xf32, #tpu.memory_space<vmem>>, vector<100x400xf32>
    %c0_7 = arith.constant 0 : index
    %c0_8 = arith.constant 0 : index
    %4 = vector.load %arg5[%c0_7, %c0_8] : memref<32x400xf32, #tpu.memory_space<vmem>>, vector<32x400xf32>
    %c0_9 = arith.constant 0 : index
    %c0_10 = arith.constant 0 : index
    %5 = vector.load %arg6[%c0_9, %c0_10] : memref<1x400xf32, #tpu.memory_space<vmem>>, vector<1x400xf32>
    %c0_11 = arith.constant 0 : index
    %c0_12 = arith.constant 0 : index
    %6 = vector.load %arg7[%c0_11, %c0_12] : memref<96x96xf32, #tpu.memory_space<vmem>>, vector<96x96xf32>
    %c0_13 = arith.constant 0 : index
    %c0_14 = arith.constant 0 : index
    %7 = vector.load %arg8[%c0_13, %c0_14] : memref<400x32xf32, #tpu.memory_space<vmem>>, vector<400x32xf32>
    %c0_15 = arith.constant 0 : index
    %c0_16 = arith.constant 0 : index
    %8 = vector.load %arg9[%c0_15, %c0_16] : memref<1x32xf32, #tpu.memory_space<vmem>>, vector<1x32xf32>
    %cst = arith.constant dense<0.000000e+00> : vector<8x96xf32>
    %9 = tpu.matmul %1, %2, %cst {dimension_numbers = #tpu.dot_dimension_numbers<[1], [0], [0], [1], [0, 0, 1, 1], [], []>} : vector<8x48xf32>, vector<48x96xf32>, vector<8x96xf32> -> vector<8x96xf32>
    %10 = vector.extract_strided_slice %9 {offsets = [0, 0], sizes = [8, 32], strides = [1, 1]} : vector<8x96xf32> to vector<8x32xf32>
    %11 = arith.mulf %10, %10 : vector<8x32xf32>
    %12 = vector.extract_strided_slice %9 {offsets = [0, 32], sizes = [8, 32], strides = [1, 1]} : vector<8x96xf32> to vector<8x32xf32>
    %13 = arith.mulf %12, %12 : vector<8x32xf32>
    %14 = arith.addf %11, %13 : vector<8x32xf32>
    %15 = vector.extract_strided_slice %9 {offsets = [0, 64], sizes = [8, 32], strides = [1, 1]} : vector<8x96xf32> to vector<8x32xf32>
    %16 = arith.mulf %15, %15 : vector<8x32xf32>
    %17 = arith.addf %14, %16 : vector<8x32xf32>
    %cst_17 = arith.constant 9.99999993E-9 : f32
    %18 = vector.broadcast %cst_17 : f32 to vector<8x32xf32>
    %19 = arith.maximumf %17, %18 : vector<8x32xf32>
    %20 = math.sqrt %19 : vector<8x32xf32>
    %cst_18 = arith.constant dense<0.000000e+00> : vector<8x400xf32>
    %21 = tpu.matmul %0, %3, %cst_18 {dimension_numbers = #tpu.dot_dimension_numbers<[1], [0], [0], [1], [0, 0, 1, 1], [], []>} : vector<8x100xf32>, vector<100x400xf32>, vector<8x400xf32> -> vector<8x400xf32>
    %cst_19 = arith.constant dense<0.000000e+00> : vector<8x400xf32>
    %22 = tpu.matmul %20, %4, %cst_19 {dimension_numbers = #tpu.dot_dimension_numbers<[1], [0], [0], [1], [0, 0, 1, 1], [], []>} : vector<8x32xf32>, vector<32x400xf32>, vector<8x400xf32> -> vector<8x400xf32>
    %23 = arith.addf %21, %22 : vector<8x400xf32>
    %24 = vector.broadcast %5 : vector<1x400xf32> to vector<8x400xf32>
    %25 = arith.addf %23, %24 : vector<8x400xf32>
    %cst_20 = arith.constant 0.000000e+00 : f32
    %26 = vector.broadcast %cst_20 : f32 to vector<8x400xf32>
    %27 = arith.maximumf %25, %26 : vector<8x400xf32>
    %cst_21 = arith.constant dense<0.000000e+00> : vector<8x32xf32>
    %28 = tpu.matmul %25, %7, %cst_21 {dimension_numbers = #tpu.dot_dimension_numbers<[1], [0], [0], [1], [0, 0, 1, 1], [], []>} : vector<8x400xf32>, vector<400x32xf32>, vector<8x32xf32> -> vector<8x32xf32>
    %29 = vector.broadcast %8 : vector<1x32xf32> to vector<8x32xf32>
    %30 = arith.addf %28, %29 : vector<8x32xf32>
    %31 = arith.negf %30 : vector<8x32xf32>
    %32 = math.exp %31 : vector<8x32xf32>
    %cst_22 = arith.constant 1.000000e+00 : f32
    %33 = vector.broadcast %cst_22 : f32 to vector<8x32xf32>
    %34 = arith.addf %33, %32 : vector<8x32xf32>
    %35 = arith.divf %33, %34 : vector<8x32xf32>
    %cst_23 = arith.constant dense<0.000000e+00> : vector<8x96xf32>
    %36 = tpu.matmul %9, %6, %cst_23 {dimension_numbers = #tpu.dot_dimension_numbers<[1], [0], [0], [1], [0, 0, 1, 1], [], []>} : vector<8x96xf32>, vector<96x96xf32>, vector<8x96xf32> -> vector<8x96xf32>
    %37 = tpu.concatenate %35, %35, %35 in 1 : vector<8x32xf32>, vector<8x32xf32>, vector<8x32xf32> -> vector<8x96xf32>
    %38 = arith.mulf %36, %37 : vector<8x96xf32>
    %c0_24 = arith.constant 0 : index
    %c0_25 = arith.constant 0 : index
    %39 = vector.load %arg10[%c0_24, %c0_25] : memref<96x96xf32, #tpu.memory_space<vmem>>, vector<96x96xf32>
    %c0_26 = arith.constant 0 : index
    %c0_27 = arith.constant 0 : index
    %40 = vector.load %arg11[%c0_26, %c0_27] : memref<400x100xf32, #tpu.memory_space<vmem>>, vector<400x100xf32>
    %c0_28 = arith.constant 0 : index
    %c0_29 = arith.constant 0 : index
    %41 = vector.load %arg12[%c0_28, %c0_29] : memref<32x100xf32, #tpu.memory_space<vmem>>, vector<32x100xf32>
    %c0_30 = arith.constant 0 : index
    %c0_31 = arith.constant 0 : index
    %42 = vector.load %arg13[%c0_30, %c0_31] : memref<1x100xf32, #tpu.memory_space<vmem>>, vector<1x100xf32>
    %c0_32 = arith.constant 0 : index
    %c0_33 = arith.constant 0 : index
    %43 = vector.load %arg14[%c0_32, %c0_33] : memref<96x48xf32, #tpu.memory_space<vmem>>, vector<96x48xf32>
    %c0_34 = arith.constant 0 : index
    %c0_35 = arith.constant 0 : index
    %44 = vector.load %arg15[%c0_34, %c0_35] : memref<100x16xf32, #tpu.memory_space<vmem>>, vector<100x16xf32>
    %c0_36 = arith.constant 0 : index
    %c0_37 = arith.constant 0 : index
    %45 = vector.load %arg16[%c0_36, %c0_37] : memref<1x16xf32, #tpu.memory_space<vmem>>, vector<1x16xf32>
    %cst_38 = arith.constant dense<0.000000e+00> : vector<8x96xf32>
    %46 = tpu.matmul %38, %39, %cst_38 {dimension_numbers = #tpu.dot_dimension_numbers<[1], [0], [0], [1], [0, 0, 1, 1], [], []>} : vector<8x96xf32>, vector<96x96xf32>, vector<8x96xf32> -> vector<8x96xf32>
    %47 = vector.extract_strided_slice %46 {offsets = [0, 0], sizes = [8, 32], strides = [1, 1]} : vector<8x96xf32> to vector<8x32xf32>
    %48 = arith.mulf %47, %47 : vector<8x32xf32>
    %49 = vector.extract_strided_slice %46 {offsets = [0, 32], sizes = [8, 32], strides = [1, 1]} : vector<8x96xf32> to vector<8x32xf32>
    %50 = arith.mulf %49, %49 : vector<8x32xf32>
    %51 = arith.addf %48, %50 : vector<8x32xf32>
    %52 = vector.extract_strided_slice %46 {offsets = [0, 64], sizes = [8, 32], strides = [1, 1]} : vector<8x96xf32> to vector<8x32xf32>
    %53 = arith.mulf %52, %52 : vector<8x32xf32>
    %54 = arith.addf %51, %53 : vector<8x32xf32>
    %cst_39 = arith.constant 9.99999993E-9 : f32
    %55 = vector.broadcast %cst_39 : f32 to vector<8x32xf32>
    %56 = arith.maximumf %54, %55 : vector<8x32xf32>
    %57 = math.sqrt %56 : vector<8x32xf32>
    %cst_40 = arith.constant dense<0.000000e+00> : vector<8x100xf32>
    %58 = tpu.matmul %27, %40, %cst_40 {dimension_numbers = #tpu.dot_dimension_numbers<[1], [0], [0], [1], [0, 0, 1, 1], [], []>} : vector<8x400xf32>, vector<400x100xf32>, vector<8x100xf32> -> vector<8x100xf32>
    %cst_41 = arith.constant dense<0.000000e+00> : vector<8x100xf32>
    %59 = tpu.matmul %57, %41, %cst_41 {dimension_numbers = #tpu.dot_dimension_numbers<[1], [0], [0], [1], [0, 0, 1, 1], [], []>} : vector<8x32xf32>, vector<32x100xf32>, vector<8x100xf32> -> vector<8x100xf32>
    %60 = arith.addf %58, %59 : vector<8x100xf32>
    %61 = vector.broadcast %42 : vector<1x100xf32> to vector<8x100xf32>
    %62 = arith.addf %60, %61 : vector<8x100xf32>
    %cst_42 = arith.constant dense<0.000000e+00> : vector<8x16xf32>
    %63 = tpu.matmul %62, %44, %cst_42 {dimension_numbers = #tpu.dot_dimension_numbers<[1], [0], [0], [1], [0, 0, 1, 1], [], []>} : vector<8x100xf32>, vector<100x16xf32>, vector<8x16xf32> -> vector<8x16xf32>
    %64 = vector.broadcast %45 : vector<1x16xf32> to vector<8x16xf32>
    %65 = arith.addf %63, %64 : vector<8x16xf32>
    %66 = arith.negf %65 : vector<8x16xf32>
    %67 = math.exp %66 : vector<8x16xf32>
    %cst_43 = arith.constant 1.000000e+00 : f32
    %68 = vector.broadcast %cst_43 : f32 to vector<8x16xf32>
    %69 = arith.addf %68, %67 : vector<8x16xf32>
    %70 = arith.divf %68, %69 : vector<8x16xf32>
    %cst_44 = arith.constant dense<0.000000e+00> : vector<8x48xf32>
    %71 = tpu.matmul %46, %43, %cst_44 {dimension_numbers = #tpu.dot_dimension_numbers<[1], [0], [0], [1], [0, 0, 1, 1], [], []>} : vector<8x96xf32>, vector<96x48xf32>, vector<8x48xf32> -> vector<8x48xf32>
    %72 = tpu.concatenate %70, %70, %70 in 1 : vector<8x16xf32>, vector<8x16xf32>, vector<8x16xf32> -> vector<8x48xf32>
    %73 = arith.mulf %71, %72 : vector<8x48xf32>
    %c0_45 = arith.constant 0 : index
    %c0_46 = arith.constant 0 : index
    %74 = vector.load %arg17[%c0_45, %c0_46] : memref<8x100xf32, #tpu.memory_space<vmem>>, vector<8x100xf32>
    tpu.vector_store %arg17[%c0_45, %c0_46], %62 {strides = array<i32>} : memref<8x100xf32, #tpu.memory_space<vmem>>, vector<8x100xf32>,
    %c0_47 = arith.constant 0 : index
    %c0_48 = arith.constant 0 : index
    %75 = vector.load %arg18[%c0_47, %c0_48] : memref<8x48xf32, #tpu.memory_space<vmem>>, vector<8x48xf32>
    tpu.vector_store %arg18[%c0_47, %c0_48], %73 {strides = array<i32>} : memref<8x48xf32, #tpu.memory_space<vmem>>, vector<8x48xf32>,
    return
  }
  func.func @transform_0(%arg0: i32) -> (i32, i32) {
    %c0_i32 = arith.constant 0 : i32
    %c0_i32_0 = arith.constant 0 : i32
    return %arg0, %c0_i32 : i32, i32
  }
  func.func @transform_1(%arg0: i32) -> (i32, i32) {
    %c0_i32 = arith.constant 0 : i32
    %c0_i32_0 = arith.constant 0 : i32
    return %arg0, %c0_i32 : i32, i32
  }
  func.func @transform_2(%arg0: i32) -> (i32, i32) {
    %c0_i32 = arith.constant 0 : i32
    %c0_i32_0 = arith.constant 0 : i32
    %c0_i32_1 = arith.constant 0 : i32
    return %c0_i32, %c0_i32_0 : i32, i32
  }
  func.func @transform_3(%arg0: i32) -> (i32, i32) {
    %c0_i32 = arith.constant 0 : i32
    %c0_i32_0 = arith.constant 0 : i32
    %c0_i32_1 = arith.constant 0 : i32
    return %c0_i32, %c0_i32_0 : i32, i32
  }
  func.func @transform_4(%arg0: i32) -> (i32, i32) {
    %c0_i32 = arith.constant 0 : i32
    %c0_i32_0 = arith.constant 0 : i32
    %c0_i32_1 = arith.constant 0 : i32
    return %c0_i32, %c0_i32_0 : i32, i32
  }
  func.func @transform_5(%arg0: i32) -> (i32, i32) {
    %c0_i32 = arith.constant 0 : i32
    %c0_i32_0 = arith.constant 0 : i32
    %c0_i32_1 = arith.constant 0 : i32
    return %c0_i32, %c0_i32_0 : i32, i32
  }
  func.func @transform_6(%arg0: i32) -> (i32, i32) {
    %c0_i32 = arith.constant 0 : i32
    %c0_i32_0 = arith.constant 0 : i32
    %c0_i32_1 = arith.constant 0 : i32
    return %c0_i32, %c0_i32_0 : i32, i32
  }
  func.func @transform_7(%arg0: i32) -> (i32, i32) {
    %c0_i32 = arith.constant 0 : i32
    %c0_i32_0 = arith.constant 0 : i32
    %c0_i32_1 = arith.constant 0 : i32
    return %c0_i32, %c0_i32_0 : i32, i32
  }
  func.func @transform_8(%arg0: i32) -> (i32, i32) {
    %c0_i32 = arith.constant 0 : i32
    %c0_i32_0 = arith.constant 0 : i32
    %c0_i32_1 = arith.constant 0 : i32
    return %c0_i32, %c0_i32_0 : i32, i32
  }
  func.func @transform_9(%arg0: i32) -> (i32, i32) {
    %c0_i32 = arith.constant 0 : i32
    %c0_i32_0 = arith.constant 0 : i32
    %c0_i32_1 = arith.constant 0 : i32
    return %c0_i32, %c0_i32_0 : i32, i32
  }
  func.func @transform_10(%arg0: i32) -> (i32, i32) {
    %c0_i32 = arith.constant 0 : i32
    %c0_i32_0 = arith.constant 0 : i32
    %c0_i32_1 = arith.constant 0 : i32
    return %c0_i32, %c0_i32_0 : i32, i32
  }
  func.func @transform_11(%arg0: i32) -> (i32, i32) {
    %c0_i32 = arith.constant 0 : i32
    %c0_i32_0 = arith.constant 0 : i32
    %c0_i32_1 = arith.constant 0 : i32
    return %c0_i32, %c0_i32_0 : i32, i32
  }
  func.func @transform_12(%arg0: i32) -> (i32, i32) {
    %c0_i32 = arith.constant 0 : i32
    %c0_i32_0 = arith.constant 0 : i32
    %c0_i32_1 = arith.constant 0 : i32
    return %c0_i32, %c0_i32_0 : i32, i32
  }
  func.func @transform_13(%arg0: i32) -> (i32, i32) {
    %c0_i32 = arith.constant 0 : i32
    %c0_i32_0 = arith.constant 0 : i32
    %c0_i32_1 = arith.constant 0 : i32
    return %c0_i32, %c0_i32_0 : i32, i32
  }
  func.func @transform_14(%arg0: i32) -> (i32, i32) {
    %c0_i32 = arith.constant 0 : i32
    %c0_i32_0 = arith.constant 0 : i32
    %c0_i32_1 = arith.constant 0 : i32
    return %c0_i32, %c0_i32_0 : i32, i32
  }
  func.func @transform_15(%arg0: i32) -> (i32, i32) {
    %c0_i32 = arith.constant 0 : i32
    %c0_i32_0 = arith.constant 0 : i32
    %c0_i32_1 = arith.constant 0 : i32
    return %c0_i32, %c0_i32_0 : i32, i32
  }
  func.func @transform_16(%arg0: i32) -> (i32, i32) {
    %c0_i32 = arith.constant 0 : i32
    %c0_i32_0 = arith.constant 0 : i32
    return %arg0, %c0_i32 : i32, i32
  }
  func.func @transform_17(%arg0: i32) -> (i32, i32) {
    %c0_i32 = arith.constant 0 : i32
    %c0_i32_0 = arith.constant 0 : i32
    return %arg0, %c0_i32 : i32, i32
  }
}

module attributes {stable_mosaic.version = 11 : i64} {
  func.func @_linear_kernel(%arg0: i32, %arg1: memref<8x200xf32, #tpu.memory_space<vmem>>, %arg2: memref<200x1xf32, #tpu.memory_space<vmem>>, %arg3: memref<1x1xf32, #tpu.memory_space<vmem>>, %arg4: memref<8x1xf32, #tpu.memory_space<vmem>>) attributes {dimension_semantics = [#tpu.dimension_semantics<parallel>], iteration_bounds = array<i64: 1>, scalar_prefetch = 0 : i64, scratch_operands = 0 : i64, tpu.core_type = #tpu.core_type<tc>, window_params = [{transform_indices = @transform_0, window_bounds = array<i64: 8, 200>}, {pipeline_mode = #tpu.pipeline_mode<synchronous>, transform_indices = @transform_1, window_bounds = array<i64: 200, 1>}, {pipeline_mode = #tpu.pipeline_mode<synchronous>, transform_indices = @transform_2, window_bounds = array<i64: 1, 1>}, {transform_indices = @transform_3, window_bounds = array<i64: 8, 1>}]} {
    %c0 = arith.constant 0 : index
    %c0_0 = arith.constant 0 : index
    %0 = vector.load %arg1[%c0, %c0_0] : memref<8x200xf32, #tpu.memory_space<vmem>>, vector<8x200xf32>
    %c0_1 = arith.constant 0 : index
    %c0_2 = arith.constant 0 : index
    %1 = vector.load %arg2[%c0_1, %c0_2] : memref<200x1xf32, #tpu.memory_space<vmem>>, vector<200x1xf32>
    %cst = arith.constant dense<0.000000e+00> : vector<8x1xf32>
    %2 = tpu.matmul %0, %1, %cst {dimension_numbers = #tpu.dot_dimension_numbers<[1], [0], [0], [1], [0, 0, 1, 1], [], []>} : vector<8x200xf32>, vector<200x1xf32>, vector<8x1xf32> -> vector<8x1xf32>
    %c0_3 = arith.constant 0 : index
    %c0_4 = arith.constant 0 : index
    %3 = vector.load %arg3[%c0_3, %c0_4] : memref<1x1xf32, #tpu.memory_space<vmem>>, vector<1x1xf32>
    %4 = vector.broadcast %3 : vector<1x1xf32> to vector<8x1xf32>
    %5 = arith.addf %2, %4 : vector<8x1xf32>
    %c0_5 = arith.constant 0 : index
    %c0_6 = arith.constant 0 : index
    %6 = vector.load %arg4[%c0_5, %c0_6] : memref<8x1xf32, #tpu.memory_space<vmem>>, vector<8x1xf32>
    tpu.vector_store %arg4[%c0_5, %c0_6], %5 {strides = array<i32>} : memref<8x1xf32, #tpu.memory_space<vmem>>, vector<8x1xf32>,
    return
  }
  func.func @transform_0(%arg0: i32) -> (i32, i32) {
    %c0_i32 = arith.constant 0 : i32
    %c0_i32_0 = arith.constant 0 : i32
    return %arg0, %c0_i32 : i32, i32
  }
  func.func @transform_1(%arg0: i32) -> (i32, i32) {
    %c0_i32 = arith.constant 0 : i32
    %c0_i32_0 = arith.constant 0 : i32
    %c0_i32_1 = arith.constant 0 : i32
    return %c0_i32, %c0_i32_0 : i32, i32
  }
  func.func @transform_2(%arg0: i32) -> (i32, i32) {
    %c0_i32 = arith.constant 0 : i32
    %c0_i32_0 = arith.constant 0 : i32
    %c0_i32_1 = arith.constant 0 : i32
    return %c0_i32, %c0_i32_0 : i32, i32
  }
  func.func @transform_3(%arg0: i32) -> (i32, i32) {
    %c0_i32 = arith.constant 0 : i32
    %c0_i32_0 = arith.constant 0 : i32
    return %arg0, %c0_i32 : i32, i32
  }
}

module attributes {stable_mosaic.version = 11 : i64} {
  func.func @_linear_kernel(%arg0: i32, %arg1: memref<8x100xf32, #tpu.memory_space<vmem>>, %arg2: memref<100x200xf32, #tpu.memory_space<vmem>>, %arg3: memref<1x200xf32, #tpu.memory_space<vmem>>, %arg4: memref<8x200xf32, #tpu.memory_space<vmem>>) attributes {dimension_semantics = [#tpu.dimension_semantics<parallel>], iteration_bounds = array<i64: 1>, scalar_prefetch = 0 : i64, scratch_operands = 0 : i64, tpu.core_type = #tpu.core_type<tc>, window_params = [{transform_indices = @transform_0, window_bounds = array<i64: 8, 100>}, {pipeline_mode = #tpu.pipeline_mode<synchronous>, transform_indices = @transform_1, window_bounds = array<i64: 100, 200>}, {pipeline_mode = #tpu.pipeline_mode<synchronous>, transform_indices = @transform_2, window_bounds = array<i64: 1, 200>}, {transform_indices = @transform_3, window_bounds = array<i64: 8, 200>}]} {
    %c0 = arith.constant 0 : index
    %c0_0 = arith.constant 0 : index
    %0 = vector.load %arg1[%c0, %c0_0] : memref<8x100xf32, #tpu.memory_space<vmem>>, vector<8x100xf32>
    %c0_1 = arith.constant 0 : index
    %c0_2 = arith.constant 0 : index
    %1 = vector.load %arg2[%c0_1, %c0_2] : memref<100x200xf32, #tpu.memory_space<vmem>>, vector<100x200xf32>
    %cst = arith.constant dense<0.000000e+00> : vector<8x200xf32>
    %2 = tpu.matmul %0, %1, %cst {dimension_numbers = #tpu.dot_dimension_numbers<[1], [0], [0], [1], [0, 0, 1, 1], [], []>} : vector<8x100xf32>, vector<100x200xf32>, vector<8x200xf32> -> vector<8x200xf32>
    %c0_3 = arith.constant 0 : index
    %c0_4 = arith.constant 0 : index
    %3 = vector.load %arg3[%c0_3, %c0_4] : memref<1x200xf32, #tpu.memory_space<vmem>>, vector<1x200xf32>
    %4 = vector.broadcast %3 : vector<1x200xf32> to vector<8x200xf32>
    %5 = arith.addf %2, %4 : vector<8x200xf32>
    %cst_5 = arith.constant 0.000000e+00 : f32
    %6 = vector.broadcast %cst_5 : f32 to vector<8x200xf32>
    %7 = arith.maximumf %5, %6 : vector<8x200xf32>
    %c0_6 = arith.constant 0 : index
    %c0_7 = arith.constant 0 : index
    %8 = vector.load %arg4[%c0_6, %c0_7] : memref<8x200xf32, #tpu.memory_space<vmem>>, vector<8x200xf32>
    tpu.vector_store %arg4[%c0_6, %c0_7], %7 {strides = array<i32>} : memref<8x200xf32, #tpu.memory_space<vmem>>, vector<8x200xf32>,
    return
  }
  func.func @transform_0(%arg0: i32) -> (i32, i32) {
    %c0_i32 = arith.constant 0 : i32
    %c0_i32_0 = arith.constant 0 : i32
    return %arg0, %c0_i32 : i32, i32
  }
  func.func @transform_1(%arg0: i32) -> (i32, i32) {
    %c0_i32 = arith.constant 0 : i32
    %c0_i32_0 = arith.constant 0 : i32
    %c0_i32_1 = arith.constant 0 : i32
    return %c0_i32, %c0_i32_0 : i32, i32
  }
  func.func @transform_2(%arg0: i32) -> (i32, i32) {
    %c0_i32 = arith.constant 0 : i32
    %c0_i32_0 = arith.constant 0 : i32
    %c0_i32_1 = arith.constant 0 : i32
    return %c0_i32, %c0_i32_0 : i32, i32
  }
  func.func @transform_3(%arg0: i32) -> (i32, i32) {
    %c0_i32 = arith.constant 0 : i32
    %c0_i32_0 = arith.constant 0 : i32
    return %arg0, %c0_i32 : i32, i32
  }
}

</mosaic_0001>

<llo_original>
// kernel: base_model_forward.25
$region0: #{base_model_forward.25}
  #allocation0 [shape = 'u32[]', space=smem, size = 0x4, offset = 0x4, fixed_abs, tag = 'smem constant byte address 0x4 - core index']
  #allocation1 [shape = 'u32[144,128]{1,0:T(1,128)}', space=vmem, size = 0x12000, scoped, tag = 'internal scratch']
  %s0 = inlined_call_operand.vmem [shape: f32[8,9], index: 0, kind: input, shape index: {}]
  %s1 = inlined_call_operand.vmem [shape: f32[1,9], index: 1, kind: input, shape index: {}]
  %s2 = inlined_call_operand.vmem [shape: f32[1,9], index: 2, kind: input, shape index: {}]
  %s3 = inlined_call_operand.vmem [shape: f32[9,100], index: 3, kind: input, shape index: {}]
  %s4 = inlined_call_operand.vmem [shape: f32[1,100], index: 4, kind: input, shape index: {}]
  %s5 = inlined_call_operand.vmem [shape: f32[8,100], index: 5, kind: output, shape index: {}]
  %s6 = sld [smem:[#allocation0]]
  $region30: #{base_model_forward.25} parent=0
    _
  %s8 = ssub.s32 1, %s6
  %s9 = scalar_select 0, %s8, %s6
  // Predicated region
  $region2: #{base_model_forward.25} parent=0 // pred_check
    _
  $region3: #{base_model_forward.25} parent=0 // pred_check_branch
    %11 = sbr.rel (0) target = $region5
  $region4: #{base_model_forward.25} parent=0 // pred_region
    _
  $region5: #{base_model_forward.25} parent=0 // pred_fallthru
    _
  // Predicated region
  $region6: #{base_model_forward.25} parent=0 // pred_check
    _
  $region7: #{base_model_forward.25} parent=0 // pred_check_branch
    %13 = sbr.rel (0) target = $region9
  $region8: #{base_model_forward.25} parent=0 // pred_region
    _
  $region9: #{base_model_forward.25} parent=0 // pred_fallthru
    _
  // Predicated region
  $region10: #{base_model_forward.25} parent=0 // pred_check
    _
  $region11: #{base_model_forward.25} parent=0 // pred_check_branch
    %15 = sbr.rel (0) target = $region13
  $region12: #{base_model_forward.25} parent=0 // pred_region
    _
  $region13: #{base_model_forward.25} parent=0 // pred_fallthru
    _
  // Predicated region
  $region14: #{base_model_forward.25} parent=0 // pred_check
    _
  $region15: #{base_model_forward.25} parent=0 // pred_check_branch
    %17 = sbr.rel (0) target = $region17
  $region16: #{base_model_forward.25} parent=0 // pred_region
    _
  $region17: #{base_model_forward.25} parent=0 // pred_fallthru
    _
  // Predicated region
  $region18: #{base_model_forward.25} parent=0 // pred_check
    _
  $region19: #{base_model_forward.25} parent=0 // pred_check_branch
    %19 = sbr.rel (0) target = $region21
  $region20: #{base_model_forward.25} parent=0 // pred_region
    _
  $region21: #{base_model_forward.25} parent=0 // pred_fallthru
    _
  %v20 = vld [vmem:[%s0] sm:$0xff]
  %v21 = vld [vmem:[%s1] sm:$0x1]
  %v22 = vld [vmem:[%s2] sm:$0x1]
  %vm23 = vcmask 72704
  %v24 = vsel %vm23, %v20, 0.0
  %25 = vadd.xlane.f32.xlu0 %v24
  %v26 = vpop.xlane.xlu0 %25
  %v27 = vrcp.pop 9.0
  %v28 = vmul.f32 %v26, %v27
  %v29 = vsub.f32 %v20, %v28
  %v30 = vmul.f32 %v29, %v29
  %v31 = vsel %vm23, %v30, 0.0
  %32 = vadd.xlane.f32.xlu0 %v31
  %v33 = vpop.xlane.xlu0 %32
  %v34 = vmul.f32 %v33, %v27
  %v35 = vadd.f32 %v34, 1e-05
  %v36 = vrsqrt.pop %v35
  %v37 = vmul.f32 %v29, %v36
  %v39 = vlaneseq
  %v40 = vshrl.u32 %v39, 7
  %v41 = vsub.s32 0, %v40
  %v42 = vrot.slane %v21, %v41
  %v44 = vmul.f32 %v37, %v42
  %v46 = vlaneseq
  %v47 = vshrl.u32 %v46, 7
  %v48 = vsub.s32 0, %v47
  %v49 = vrot.slane %v22, %v48
  %v51 = vadd.f32 %v44, %v49
  %v52 = vld [vmem:[%s3] sm:$0xff]
  %v53 = vld [vmem:[%s3 + $0x8] sm:$0x1]
  %v54 = vld [vmem:[%s4] sm:$0x1]
  %v56 = vlaneseq
  %v57 = vshrl.u32 %v56, 7
  %v58 = vsub.s32 0, %v57
  %v59 = vrot.slane %v54, %v58
  %v62 = vsel %vm23, %v51, 0
  %vm64 = vcmask 1040384
  %v66 = vsel %vm64, %v53, 0
  %68 = vmatprep.subr.mxu0 0.0
  %69 = vmatpush1.msra.mxu0 0.0
  %70 = vmatprep.subr.mxu0 0.0
  %71 = vmatpush1.msra.mxu0 0.0
  %72 = vmatprep.subr.mxu0 0.0
  %73 = vmatpush1.msra.mxu0 0.0
  %74 = vmatprep.subr.mxu0 0.0
  %75 = vmatpush1.msra.mxu0 0.0
  %76 = vmatprep.subr.mxu0 0.0
  %77 = vmatpush1.msra.mxu0 0.0
  %78 = vmatprep.subr.mxu0 0.0
  %79 = vmatpush1.msra.mxu0 0.0
  %80 = vmatprep.subr.mxu0 0.0
  %81 = vmatpush1.msra.mxu0 0.0
  %82 = vmatprep.subr.mxu0 0.0
  %83 = vmatpush1.msra.mxu0 0.0
  %84 = vmatprep.subr.mxu0 0.0
  %85 = vmatpush1.msra.mxu0 0.0
  %86 = vmatprep.subr.mxu0 0.0
  %87 = vmatpush1.msra.mxu0 0.0
  %88 = vmatprep.subr.mxu0 0.0
  %89 = vmatpush1.msra.mxu0 0.0
  %90 = vmatprep.subr.mxu0 0.0
  %91 = vmatpush1.msra.mxu0 0.0
  %92 = vmatprep.subr.mxu0 0.0
  %93 = vmatpush1.msra.mxu0 0.0
  %94 = vmatprep.subr.mxu0 0.0
  %95 = vmatpush1.msra.mxu0 0.0
  %96 = vmatprep.subr.mxu0 0.0
  %97 = vmatpush1.msra.mxu0 %v66
  %98 = vmatprep.subr.mxu0 0.0
  %99 = vmatpush1.msra.mxu0 %v52
  %100 = vmatprep.subr.mxu0 0.0
  %101 = vmatpush2.msra.mxu0 0.0
  %102 = vmatprep.subr.mxu0 0.0
  %103 = vmatpush2.msra.mxu0 0.0
  %104 = vmatprep.subr.mxu0 0.0
  %105 = vmatpush2.msra.mxu0 0.0
  %106 = vmatprep.subr.mxu0 0.0
  %107 = vmatpush2.msra.mxu0 0.0
  %108 = vmatprep.subr.mxu0 0.0
  %109 = vmatpush2.msra.mxu0 0.0
  %110 = vmatprep.subr.mxu0 0.0
  %111 = vmatpush2.msra.mxu0 0.0
  %112 = vmatprep.subr.mxu0 0.0
  %113 = vmatpush2.msra.mxu0 0.0
  %114 = vmatprep.subr.mxu0 0.0
  %115 = vmatpush2.msra.mxu0 0.0
  %116 = vmatprep.subr.mxu0 0.0
  %117 = vmatpush2.msra.mxu0 0.0
  %118 = vmatprep.subr.mxu0 0.0
  %119 = vmatpush2.msra.mxu0 0.0
  %120 = vmatprep.subr.mxu0 0.0
  %121 = vmatpush2.msra.mxu0 0.0
  %122 = vmatprep.subr.mxu0 0.0
  %123 = vmatpush2.msra.mxu0 0.0
  %124 = vmatprep.subr.mxu0 0.0
  %125 = vmatpush2.msra.mxu0 0.0
  %126 = vmatprep.subr.mxu0 0.0
  %127 = vmatpush2.msra.mxu0 0.0
  %128 = vmatprep.subr.mxu0 0.0
  %129 = vmatpush2.msra.mxu0 0.0
  %130 = vmatprep.subr.mxu0 0.0
  %131 = vmatpush2.msra.mxu0 0.0
  %132 = vmatprep.mubr.f32.mxu0 0.0
  %133 = vmatmul.mubr.f32.gmra.mxu0 %v62
  %v134 = vpop.f32.mrf.mxu0
  %v135 = vadd.f32 %v59, %v134
  %v136 = vpop.f32.mrf.mxu0
  %137 = vdwg.mxu0
  %vm138 = vcmask 818176
  %139 = vst.msk [vmem:[%s5] sm:$0xff] %vm138, %v135
  // Predicated region
  $region22: #{base_model_forward.25} parent=0 // pred_check
    _
  $region23: #{base_model_forward.25} parent=0 // pred_check_branch
    %141 = sbr.rel (0) target = $region25
  $region24: #{base_model_forward.25} parent=0 // pred_region
    _
  $region25: #{base_model_forward.25} parent=0 // pred_fallthru
    _
  // Predicated region
  $region26: #{base_model_forward.25} parent=0 // pred_check
    _
  $region27: #{base_model_forward.25} parent=0 // pred_check_branch
    %143 = sbr.rel (0) target = $region29
  $region28: #{base_model_forward.25} parent=0 // pred_region
    _
  $region29: #{base_model_forward.25} parent=0 // pred_fallthru
    _

// kernel: base_model_forward.26
$region0: #{base_model_forward.26}
  #allocation0 [shape = 'u32[]', space=smem, size = 0x4, offset = 0x4, fixed_abs, tag = 'smem constant byte address 0x4 - core index']
  #allocation1 [shape = 'u32[144,128]{1,0:T(1,128)}', space=vmem, size = 0x12000, scoped, tag = 'internal scratch']
  #allocation2 [shape = 'f32[1,1]{1,0:T(1,128)S(1)}', space=vmem, size = 0x200, scoped, tag = 'scoped memory for base_model_forward.26']
  %s0 = inlined_call_operand.vmem [shape: f32[16,16], index: 0, kind: input, shape index: {}]
  %s1 = inlined_call_operand.vmem [shape: f32[16,3], index: 1, kind: input, shape index: {}]
  %s2 = inlined_call_operand.vmem [shape: f32[1,16], index: 2, kind: input, shape index: {}]
  %s3 = inlined_call_operand.vmem [shape: f32[1,16], index: 3, kind: input, shape index: {}]
  %s4 = inlined_call_operand.vmem [shape: f32[3,3], index: 4, kind: input, shape index: {}]
  %s5 = inlined_call_operand.vmem [shape: f32[16,32], index: 5, kind: input, shape index: {}]
  %s6 = inlined_call_operand.vmem [shape: f32[1,32], index: 6, kind: input, shape index: {}]
  %s7 = inlined_call_operand.vmem [shape: f32[1,32], index: 7, kind: input, shape index: {}]
  %s8 = inlined_call_operand.vmem [shape: f32[3,3], index: 8, kind: input, shape index: {}]
  %s9 = inlined_call_operand.vmem [shape: f32[32,1], index: 9, kind: input, shape index: {}]
  %s10 = inlined_call_operand.<no memory space> [shape: f32[1,1], index: 10, kind: input, shape index: {}]
  %s11 = inlined_call_operand.vmem [shape: f32[16,32], index: 11, kind: output, shape index: {0}]
  %s12 = inlined_call_operand.vmem [shape: f32[16,3], index: 12, kind: output, shape index: {1}]
  %13 = xla_tuple %s11, %s12
  %s14 = sld [smem:[#allocation0]]
  $region62: #{base_model_forward.26} parent=0
    _
  %s16 = ssub.s32 1, %s14
  %s17 = scalar_select 0, %s16, %s14
  %v18 = vstv %s10
  %19 = vst [vmem:[#allocation2] sm:$0x1] %v18
  // Predicated region
  $region2: #{base_model_forward.26} parent=0 // pred_check
    _
  $region3: #{base_model_forward.26} parent=0 // pred_check_branch
    %21 = sbr.rel (0) target = $region5
  $region4: #{base_model_forward.26} parent=0 // pred_region
    _
  $region5: #{base_model_forward.26} parent=0 // pred_fallthru
    _
  // Predicated region
  $region6: #{base_model_forward.26} parent=0 // pred_check
    _
  $region7: #{base_model_forward.26} parent=0 // pred_check_branch
    %23 = sbr.rel (0) target = $region9
  $region8: #{base_model_forward.26} parent=0 // pred_region
    _
  $region9: #{base_model_forward.26} parent=0 // pred_fallthru
    _
  // Predicated region
  $region10: #{base_model_forward.26} parent=0 // pred_check
    _
  $region11: #{base_model_forward.26} parent=0 // pred_check_branch
    %25 = sbr.rel (0) target = $region13
  $region12: #{base_model_forward.26} parent=0 // pred_region
    _
  $region13: #{base_model_forward.26} parent=0 // pred_fallthru
    _
  // Predicated region
  $region14: #{base_model_forward.26} parent=0 // pred_check
    _
  $region15: #{base_model_forward.26} parent=0 // pred_check_branch
    %27 = sbr.rel (0) target = $region17
  $region16: #{base_model_forward.26} parent=0 // pred_region
    _
  $region17: #{base_model_forward.26} parent=0 // pred_fallthru
    _
  // Predicated region
  $region18: #{base_model_forward.26} parent=0 // pred_check
    _
  $region19: #{base_model_forward.26} parent=0 // pred_check_branch
    %29 = sbr.rel (0) target = $region21
  $region20: #{base_model_forward.26} parent=0 // pred_region
    _
  $region21: #{base_model_forward.26} parent=0 // pred_fallthru
    _
  // Predicated region
  $region22: #{base_model_forward.26} parent=0 // pred_check
    _
  $region23: #{base_model_forward.26} parent=0 // pred_check_branch
    %31 = sbr.rel (0) target = $region25
  $region24: #{base_model_forward.26} parent=0 // pred_region
    _
  $region25: #{base_model_forward.26} parent=0 // pred_fallthru
    _
  // Predicated region
  $region26: #{base_model_forward.26} parent=0 // pred_check
    _
  $region27: #{base_model_forward.26} parent=0 // pred_check_branch
    %33 = sbr.rel (0) target = $region29
  $region28: #{base_model_forward.26} parent=0 // pred_region
    _
  $region29: #{base_model_forward.26} parent=0 // pred_fallthru
    _
  // Predicated region
  $region30: #{base_model_forward.26} parent=0 // pred_check
    _
  $region31: #{base_model_forward.26} parent=0 // pred_check_branch
    %35 = sbr.rel (0) target = $region33
  $region32: #{base_model_forward.26} parent=0 // pred_region
    _
  $region33: #{base_model_forward.26} parent=0 // pred_fallthru
    _
  // Predicated region
  $region34: #{base_model_forward.26} parent=0 // pred_check
    _
  $region35: #{base_model_forward.26} parent=0 // pred_check_branch
    %37 = sbr.rel (0) target = $region37
  $region36: #{base_model_forward.26} parent=0 // pred_region
    _
  $region37: #{base_model_forward.26} parent=0 // pred_fallthru
    _
  // Predicated region
  $region38: #{base_model_forward.26} parent=0 // pred_check
    _
  $region39: #{base_model_forward.26} parent=0 // pred_check_branch
    %39 = sbr.rel (0) target = $region41
  $region40: #{base_model_forward.26} parent=0 // pred_region
    _
  $region41: #{base_model_forward.26} parent=0 // pred_fallthru
    _
  // Predicated region
  $region42: #{base_model_forward.26} parent=0 // pred_check
    _
  $region43: #{base_model_forward.26} parent=0 // pred_check_branch
    %41 = sbr.rel (0) target = $region45
  $region44: #{base_model_forward.26} parent=0 // pred_region
    _
  $region45: #{base_model_forward.26} parent=0 // pred_fallthru
    _
  %v42 = vld [vmem:[%s0] sm:$0xff]
  %v43 = vld [vmem:[%s0 + $0x8] sm:$0xff]
  %v44 = vld [vmem:[%s1] sm:$0xff]
  %v45 = vld [vmem:[%s1 + $0x8] sm:$0xff]
  %v46 = vld [vmem:[%s2] sm:$0x1]
  %v47 = vld [vmem:[%s3] sm:$0x1]
  %vm48 = vcmask 130048
  %v49 = vsel %vm48, %v42, 0.0
  %50 = vadd.xlane.f32.xlu0 %v49
  %v51 = vpop.xlane.xlu0 %50
  %v52 = vsel %vm48, %v43, 0.0
  %53 = vadd.xlane.f32.xlu0 %v52
  %v54 = vpop.xlane.xlu0 %53
  %v55 = vrcp.pop 16.0
  %v56 = vmul.f32 %v51, %v55
  %v57 = vmul.f32 %v54, %v55
  %v58 = vsub.f32 %v42, %v56
  %v59 = vsub.f32 %v43, %v57
  %v60 = vmul.f32 %v58, %v58
  %v61 = vmul.f32 %v59, %v59
  %v62 = vsel %vm48, %v60, 0.0
  %63 = vadd.xlane.f32.xlu0 %v62
  %v64 = vpop.xlane.xlu0 %63
  %v65 = vsel %vm48, %v61, 0.0
  %66 = vadd.xlane.f32.xlu0 %v65
  %v67 = vpop.xlane.xlu0 %66
  %v68 = vmul.f32 %v64, %v55
  %v69 = vmul.f32 %v67, %v55
  %v70 = vadd.f32 %v68, 1e-05
  %v71 = vadd.f32 %v69, 1e-05
  %v72 = vrsqrt.pop %v70
  %v73 = vrsqrt.pop %v71
  %v74 = vmul.f32 %v58, %v72
  %v75 = vmul.f32 %v59, %v73
  %v77 = vlaneseq
  %v78 = vshrl.u32 %v77, 7
  %v79 = vsub.s32 0, %v78
  %v80 = vrot.slane %v46, %v79
  %v82 = vmul.f32 %v74, %v80
  %v83 = vmul.f32 %v75, %v80
  %v85 = vlaneseq
  %v86 = vshrl.u32 %v85, 7
  %v87 = vsub.s32 0, %v86
  %v88 = vrot.slane %v47, %v87
  %v90 = vadd.f32 %v82, %v88
  %v91 = vadd.f32 %v83, %v88
  %v92 = vmul.f32 %v44, %v44
  %v93 = vmul.f32 %v45, %v45
  %96 = vrot.lane.b32.xlu0 %v92, 127
  %v97 = vpop.permute.xlu0 %96
  %98 = vrot.lane.b32.xlu0 %v93, 127
  %v99 = vpop.permute.xlu0 %98
  %v102 = vadd.f32 %v92, %v97
  %v103 = vadd.f32 %v93, %v99
  %104 = vrot.lane.b32.xlu0 %v92, 126
  %v105 = vpop.permute.xlu0 %104
  %106 = vrot.lane.b32.xlu0 %v93, 126
  %v107 = vpop.permute.xlu0 %106
  %v110 = vadd.f32 %v102, %v105
  %v111 = vadd.f32 %v103, %v107
  %v112 = vmax.f32 %v110, 1e-08
  %v113 = vmax.f32 %v111, 1e-08
  %v114 = vadd.f32 %v112, 0.0
  %v115 = vadd.f32 %v113, 0.0
  %v116 = vrsqrt.pop %v114
  %v117 = vmul.f32 %v114, %v116
  %vm118 = vcmp.eq.f32.partialorder %v114, inf
  %v119 = vsel %vm118, %v114, %v117
  %vm120 = vcmp.eq.f32.partialorder %v114, 0.0
  %v121 = vand.u32 %v114, 2147483648
  %v122 = vsel %vm120, %v121, %v119
  %v123 = vrsqrt.pop %v115
  %v124 = vmul.f32 %v115, %v123
  %vm125 = vcmp.eq.f32.partialorder %v115, inf
  %v126 = vsel %vm125, %v115, %v124
  %vm127 = vcmp.eq.f32.partialorder %v115, 0.0
  %v128 = vand.u32 %v115, 2147483648
  %v129 = vsel %vm127, %v128, %v126
  %131 = vset.pattern.permute.xlu0 0
  %132 = vperm.xlu0 %131, %v122
  %v133 = vpop.permute.xlu0 %132
  %136 = vset.pattern.permute.xlu0 0
  %137 = vperm.xlu0 %136, %v129
  %v138 = vpop.permute.xlu0 %137
  %v140 = vrcp.pop %v133
  %v141 = vmul.f32 %v44, %v140
  %v142 = vrcp.pop %v138
  %v143 = vmul.f32 %v45, %v142
  %v144 = vld [vmem:[%s4] sm:$0x7]
  %v145 = vld [vmem:[%s5] sm:$0xff]
  %v146 = vld [vmem:[%s5 + $0x8] sm:$0xff]
  %v147 = vld [vmem:[%s6] sm:$0x1]
  %v148 = vld [vmem:[%s7] sm:$0x1]
  %v149 = vld [vmem:[%s8] sm:$0x7]
  %v150 = vld [vmem:[%s9] sm:$0xff]
  %v151 = vld [vmem:[%s9 + $0x8] sm:$0xff]
  %v152 = vld [vmem:[%s9 + $0x10] sm:$0xff]
  %v153 = vld [vmem:[%s9 + $0x18] sm:$0xff]
  %v154 = vld [vmem:[#allocation2] sm:$0x1]
  %vm155 = vcmask 23552
  %v157 = vsel %vm155, %v141, 0
  %v160 = vsel %vm155, %v143, 0
  %vm162 = vcmask 1042432
  %v164 = vsel %vm162, %v144, 0
  %166 = vmatprep.subr.mxu0 0.0
  %167 = vmatpush1.msra.mxu0 0.0
  %168 = vmatprep.subr.mxu0 0.0
  %169 = vmatpush1.msra.mxu0 0.0
  %170 = vmatprep.subr.mxu0 0.0
  %171 = vmatpush1.msra.mxu0 0.0
  %172 = vmatprep.subr.mxu0 0.0
  %173 = vmatpush1.msra.mxu0 0.0
  %174 = vmatprep.subr.mxu0 0.0
  %175 = vmatpush1.msra.mxu0 0.0
  %176 = vmatprep.subr.mxu0 0.0
  %177 = vmatpush1.msra.mxu0 0.0
  %178 = vmatprep.subr.mxu0 0.0
  %179 = vmatpush1.msra.mxu0 0.0
  %180 = vmatprep.subr.mxu0 0.0
  %181 = vmatpush1.msra.mxu0 0.0
  %182 = vmatprep.subr.mxu0 0.0
  %183 = vmatpush1.msra.mxu0 0.0
  %184 = vmatprep.subr.mxu0 0.0
  %185 = vmatpush1.msra.mxu0 0.0
  %186 = vmatprep.subr.mxu0 0.0
  %187 = vmatpush1.msra.mxu0 0.0
  %188 = vmatprep.subr.mxu0 0.0
  %189 = vmatpush1.msra.mxu0 0.0
  %190 = vmatprep.subr.mxu0 0.0
  %191 = vmatpush1.msra.mxu0 0.0
  %192 = vmatprep.subr.mxu0 0.0
  %193 = vmatpush1.msra.mxu0 0.0
  %194 = vmatprep.subr.mxu0 0.0
  %195 = vmatpush1.msra.mxu0 0.0
  %196 = vmatprep.subr.mxu0 0.0
  %197 = vmatpush1.msra.mxu0 %v164
  %198 = vmatprep.subr.mxu0 0.0
  %199 = vmatpush2.msra.mxu0 0.0
  %200 = vmatprep.subr.mxu0 0.0
  %201 = vmatpush2.msra.mxu0 0.0
  %202 = vmatprep.subr.mxu0 0.0
  %203 = vmatpush2.msra.mxu0 0.0
  %204 = vmatprep.subr.mxu0 0.0
  %205 = vmatpush2.msra.mxu0 0.0
  %206 = vmatprep.subr.mxu0 0.0
  %207 = vmatpush2.msra.mxu0 0.0
  %208 = vmatprep.subr.mxu0 0.0
  %209 = vmatpush2.msra.mxu0 0.0
  %210 = vmatprep.subr.mxu0 0.0
  %211 = vmatpush2.msra.mxu0 0.0
  %212 = vmatprep.subr.mxu0 0.0
  %213 = vmatpush2.msra.mxu0 0.0
  %214 = vmatprep.subr.mxu0 0.0
  %215 = vmatpush2.msra.mxu0 0.0
  %216 = vmatprep.subr.mxu0 0.0
  %217 = vmatpush2.msra.mxu0 0.0
  %218 = vmatprep.subr.mxu0 0.0
  %219 = vmatpush2.msra.mxu0 0.0
  %220 = vmatprep.subr.mxu0 0.0
  %221 = vmatpush2.msra.mxu0 0.0
  %222 = vmatprep.subr.mxu0 0.0
  %223 = vmatpush2.msra.mxu0 0.0
  %224 = vmatprep.subr.mxu0 0.0
  %225 = vmatpush2.msra.mxu0 0.0
  %226 = vmatprep.subr.mxu0 0.0
  %227 = vmatpush2.msra.mxu0 0.0
  %228 = vmatprep.subr.mxu0 0.0
  %229 = vmatpush2.msra.mxu0 0.0
  %230 = vmatprep.mubr.f32.mxu0 0.0
  %231 = vmatmul.mubr.f32.gmra.mxu0 %v157
  %v232 = vpop.f32.mrf.mxu0
  %v233 = vadd.f32 0.0, %v232
  %v234 = vpop.f32.mrf.mxu0
  %235 = vmatprep.mubr.f32.mxu0 0.0
  %236 = vmatmul.mubr.f32.gmra.mxu0 %v160
  %v237 = vpop.f32.mrf.mxu0
  %v238 = vadd.f32 0.0, %v237
  %v239 = vpop.f32.mrf.mxu0
  %240 = vdwg.mxu0
  %v241 = vmul.f32 %v233, %v233
  %v242 = vmul.f32 %v238, %v238
  %245 = vrot.lane.b32.xlu0 %v241, 127
  %v246 = vpop.permute.xlu0 %245
  %247 = vrot.lane.b32.xlu0 %v242, 127
  %v248 = vpop.permute.xlu0 %247
  %v251 = vadd.f32 %v241, %v246
  %v252 = vadd.f32 %v242, %v248
  %253 = vrot.lane.b32.xlu0 %v241, 126
  %v254 = vpop.permute.xlu0 %253
  %255 = vrot.lane.b32.xlu0 %v242, 126
  %v256 = vpop.permute.xlu0 %255
  %v259 = vadd.f32 %v251, %v254
  %v260 = vadd.f32 %v252, %v256
  %v261 = vmax.f32 %v259, 1e-08
  %v262 = vmax.f32 %v260, 1e-08
  %v263 = vrsqrt.pop %v261
  %v264 = vmul.f32 %v261, %v263
  %vm265 = vcmp.eq.f32.partialorder %v261, inf
  %v266 = vsel %vm265, %v261, %v264
  %vm267 = vcmp.eq.f32.partialorder %v261, 0.0
  %v268 = vand.u32 %v261, 2147483648
  %v269 = vsel %vm267, %v268, %v266
  %v270 = vrsqrt.pop %v262
  %v271 = vmul.f32 %v262, %v270
  %vm272 = vcmp.eq.f32.partialorder %v262, inf
  %v273 = vsel %vm272, %v262, %v271
  %vm274 = vcmp.eq.f32.partialorder %v262, 0.0
  %v275 = vand.u32 %v262, 2147483648
  %v276 = vsel %vm274, %v275, %v273
  %vm277 = vcmask 7168
  %v279 = vsel %vm277, %v269, 0
  %v282 = vsel %vm277, %v276, 0
  %vm284 = vcmask 1040384
  %v286 = vsel %vm284, %v147, 0
  %288 = vmatprep.subr.mxu0 0.0
  %289 = vmatpush1.msra.mxu0 0.0
  %290 = vmatprep.subr.mxu0 0.0
  %291 = vmatpush1.msra.mxu0 0.0
  %292 = vmatprep.subr.mxu0 0.0
  %293 = vmatpush1.msra.mxu0 0.0
  %294 = vmatprep.subr.mxu0 0.0
  %295 = vmatpush1.msra.mxu0 0.0
  %296 = vmatprep.subr.mxu0 0.0
  %297 = vmatpush1.msra.mxu0 0.0
  %298 = vmatprep.subr.mxu0 0.0
  %299 = vmatpush1.msra.mxu0 0.0
  %300 = vmatprep.subr.mxu0 0.0
  %301 = vmatpush1.msra.mxu0 0.0
  %302 = vmatprep.subr.mxu0 0.0
  %303 = vmatpush1.msra.mxu0 0.0
  %304 = vmatprep.subr.mxu0 0.0
  %305 = vmatpush1.msra.mxu0 0.0
  %306 = vmatprep.subr.mxu0 0.0
  %307 = vmatpush1.msra.mxu0 0.0
  %308 = vmatprep.subr.mxu0 0.0
  %309 = vmatpush1.msra.mxu0 0.0
  %310 = vmatprep.subr.mxu0 0.0
  %311 = vmatpush1.msra.mxu0 0.0
  %312 = vmatprep.subr.mxu0 0.0
  %313 = vmatpush1.msra.mxu0 0.0
  %314 = vmatprep.subr.mxu0 0.0
  %315 = vmatpush1.msra.mxu0 0.0
  %316 = vmatprep.subr.mxu0 0.0
  %317 = vmatpush1.msra.mxu0 0.0
  %318 = vmatprep.subr.mxu0 0.0
  %319 = vmatpush1.msra.mxu0 %v286
  %320 = vmatprep.subr.mxu0 0.0
  %321 = vmatpush2.msra.mxu0 0.0
  %322 = vmatprep.subr.mxu0 0.0
  %323 = vmatpush2.msra.mxu0 0.0
  %324 = vmatprep.subr.mxu0 0.0
  %325 = vmatpush2.msra.mxu0 0.0
  %326 = vmatprep.subr.mxu0 0.0
  %327 = vmatpush2.msra.mxu0 0.0
  %328 = vmatprep.subr.mxu0 0.0
  %329 = vmatpush2.msra.mxu0 0.0
  %330 = vmatprep.subr.mxu0 0.0
  %331 = vmatpush2.msra.mxu0 0.0
  %332 = vmatprep.subr.mxu0 0.0
  %333 = vmatpush2.msra.mxu0 0.0
  %334 = vmatprep.subr.mxu0 0.0
  %335 = vmatpush2.msra.mxu0 0.0
  %336 = vmatprep.subr.mxu0 0.0
  %337 = vmatpush2.msra.mxu0 0.0
  %338 = vmatprep.subr.mxu0 0.0
  %339 = vmatpush2.msra.mxu0 0.0
  %340 = vmatprep.subr.mxu0 0.0
  %341 = vmatpush2.msra.mxu0 0.0
  %342 = vmatprep.subr.mxu0 0.0
  %343 = vmatpush2.msra.mxu0 0.0
  %344 = vmatprep.subr.mxu0 0.0
  %345 = vmatpush2.msra.mxu0 0.0
  %346 = vmatprep.subr.mxu0 0.0
  %347 = vmatpush2.msra.mxu0 0.0
  %348 = vmatprep.subr.mxu0 0.0
  %349 = vmatpush2.msra.mxu0 0.0
  %350 = vmatprep.subr.mxu0 0.0
  %351 = vmatpush2.msra.mxu0 0.0
  %352 = vmatprep.mubr.f32.mxu0 0.0
  %353 = vmatmul.mubr.f32.gmra.mxu0 %v279
  %v354 = vpop.f32.mrf.mxu0
  %v355 = vadd.f32 0.0, %v354
  %v356 = vpop.f32.mrf.mxu0
  %357 = vmatprep.mubr.f32.mxu0 0.0
  %358 = vmatmul.mubr.f32.gmra.mxu0 %v282
  %v359 = vpop.f32.mrf.mxu0
  %v360 = vadd.f32 0.0, %v359
  %v361 = vpop.f32.mrf.mxu0
  %362 = vdwg.mxu0
  %v364 = vsel %vm48, %v90, 0
  %v367 = vsel %vm48, %v91, 0
  %369 = vmatprep.subr.mxu0 0.0
  %370 = vmatpush1.msra.mxu0 0.0
  %371 = vmatprep.subr.mxu0 0.0
  %372 = vmatpush1.msra.mxu0 0.0
  %373 = vmatprep.subr.mxu0 0.0
  %374 = vmatpush1.msra.mxu0 0.0
  %375 = vmatprep.subr.mxu0 0.0
  %376 = vmatpush1.msra.mxu0 0.0
  %377 = vmatprep.subr.mxu0 0.0
  %378 = vmatpush1.msra.mxu0 0.0
  %379 = vmatprep.subr.mxu0 0.0
  %380 = vmatpush1.msra.mxu0 0.0
  %381 = vmatprep.subr.mxu0 0.0
  %382 = vmatpush1.msra.mxu0 0.0
  %383 = vmatprep.subr.mxu0 0.0
  %384 = vmatpush1.msra.mxu0 0.0
  %385 = vmatprep.subr.mxu0 0.0
  %386 = vmatpush1.msra.mxu0 0.0
  %387 = vmatprep.subr.mxu0 0.0
  %388 = vmatpush1.msra.mxu0 0.0
  %389 = vmatprep.subr.mxu0 0.0
  %390 = vmatpush1.msra.mxu0 0.0
  %391 = vmatprep.subr.mxu0 0.0
  %392 = vmatpush1.msra.mxu0 0.0
  %393 = vmatprep.subr.mxu0 0.0
  %394 = vmatpush1.msra.mxu0 0.0
  %395 = vmatprep.subr.mxu0 0.0
  %396 = vmatpush1.msra.mxu0 0.0
  %397 = vmatprep.subr.mxu0 0.0
  %398 = vmatpush1.msra.mxu0 %v146
  %399 = vmatprep.subr.mxu0 0.0
  %400 = vmatpush1.msra.mxu0 %v145
  %401 = vmatprep.subr.mxu0 0.0
  %402 = vmatpush2.msra.mxu0 0.0
  %403 = vmatprep.subr.mxu0 0.0
  %404 = vmatpush2.msra.mxu0 0.0
  %405 = vmatprep.subr.mxu0 0.0
  %406 = vmatpush2.msra.mxu0 0.0
  %407 = vmatprep.subr.mxu0 0.0
  %408 = vmatpush2.msra.mxu0 0.0
  %409 = vmatprep.subr.mxu0 0.0
  %410 = vmatpush2.msra.mxu0 0.0
  %411 = vmatprep.subr.mxu0 0.0
  %412 = vmatpush2.msra.mxu0 0.0
  %413 = vmatprep.subr.mxu0 0.0
  %414 = vmatpush2.msra.mxu0 0.0
  %415 = vmatprep.subr.mxu0 0.0
  %416 = vmatpush2.msra.mxu0 0.0
  %417 = vmatprep.subr.mxu0 0.0
  %418 = vmatpush2.msra.mxu0 0.0
  %419 = vmatprep.subr.mxu0 0.0
  %420 = vmatpush2.msra.mxu0 0.0
  %421 = vmatprep.subr.mxu0 0.0
  %422 = vmatpush2.msra.mxu0 0.0
  %423 = vmatprep.subr.mxu0 0.0
  %424 = vmatpush2.msra.mxu0 0.0
  %425 = vmatprep.subr.mxu0 0.0
  %426 = vmatpush2.msra.mxu0 0.0
  %427 = vmatprep.subr.mxu0 0.0
  %428 = vmatpush2.msra.mxu0 0.0
  %429 = vmatprep.subr.mxu0 0.0
  %430 = vmatpush2.msra.mxu0 0.0
  %431 = vmatprep.subr.mxu0 0.0
  %432 = vmatpush2.msra.mxu0 0.0
  %433 = vmatprep.mubr.f32.mxu0 0.0
  %434 = vmatmul.mubr.f32.gmra.mxu0 %v364
  %v435 = vpop.f32.mrf.mxu0
  %v436 = vadd.f32 %v355, %v435
  %v437 = vpop.f32.mrf.mxu0
  %438 = vmatprep.mubr.f32.mxu0 0.0
  %439 = vmatmul.mubr.f32.gmra.mxu0 %v367
  %v440 = vpop.f32.mrf.mxu0
  %v441 = vadd.f32 %v360, %v440
  %v442 = vpop.f32.mrf.mxu0
  %443 = vdwg.mxu0
  %v445 = vlaneseq
  %v446 = vshrl.u32 %v445, 7
  %v447 = vsub.s32 0, %v446
  %v448 = vrot.slane %v148, %v447
  %v450 = vadd.f32 %v436, %v448
  %v451 = vadd.f32 %v441, %v448
  %v453 = vlaneseq
  %v454 = vshrl.u32 %v453, 7
  %v455 = vsub.s32 0, %v454
  %v456 = vrot.slane %v154, %v455
  %vm458 = vcmask 261120
  %v460 = vsel %vm458, %v450, 0
  %v463 = vsel %vm458, %v451, 0
  %465 = vmatprep.subr.mxu0 0.0
  %466 = vmatpush1.msra.mxu0 0.0
  %467 = vmatprep.subr.mxu0 0.0
  %468 = vmatpush1.msra.mxu0 0.0
  %469 = vmatprep.subr.mxu0 0.0
  %470 = vmatpush1.msra.mxu0 0.0
  %471 = vmatprep.subr.mxu0 0.0
  %472 = vmatpush1.msra.mxu0 0.0
  %473 = vmatprep.subr.mxu0 0.0
  %474 = vmatpush1.msra.mxu0 0.0
  %475 = vmatprep.subr.mxu0 0.0
  %476 = vmatpush1.msra.mxu0 0.0
  %477 = vmatprep.subr.mxu0 0.0
  %478 = vmatpush1.msra.mxu0 0.0
  %479 = vmatprep.subr.mxu0 0.0
  %480 = vmatpush1.msra.mxu0 0.0
  %481 = vmatprep.subr.mxu0 0.0
  %482 = vmatpush1.msra.mxu0 0.0
  %483 = vmatprep.subr.mxu0 0.0
  %484 = vmatpush1.msra.mxu0 0.0
  %485 = vmatprep.subr.mxu0 0.0
  %486 = vmatpush1.msra.mxu0 0.0
  %487 = vmatprep.subr.mxu0 0.0
  %488 = vmatpush1.msra.mxu0 0.0
  %489 = vmatprep.subr.mxu0 0.0
  %490 = vmatpush1.msra.mxu0 %v153
  %491 = vmatprep.subr.mxu0 0.0
  %492 = vmatpush1.msra.mxu0 %v152
  %493 = vmatprep.subr.mxu0 0.0
  %494 = vmatpush1.msra.mxu0 %v151
  %495 = vmatprep.subr.mxu0 0.0
  %496 = vmatpush1.msra.mxu0 %v150
  %497 = vmatprep.subr.mxu0 0.0
  %498 = vmatpush2.msra.mxu0 0.0
  %499 = vmatprep.subr.mxu0 0.0
  %500 = vmatpush2.msra.mxu0 0.0
  %501 = vmatprep.subr.mxu0 0.0
  %502 = vmatpush2.msra.mxu0 0.0
  %503 = vmatprep.subr.mxu0 0.0
  %504 = vmatpush2.msra.mxu0 0.0
  %505 = vmatprep.subr.mxu0 0.0
  %506 = vmatpush2.msra.mxu0 0.0
  %507 = vmatprep.subr.mxu0 0.0
  %508 = vmatpush2.msra.mxu0 0.0
  %509 = vmatprep.subr.mxu0 0.0
  %510 = vmatpush2.msra.mxu0 0.0
  %511 = vmatprep.subr.mxu0 0.0
  %512 = vmatpush2.msra.mxu0 0.0
  %513 = vmatprep.subr.mxu0 0.0
  %514 = vmatpush2.msra.mxu0 0.0
  %515 = vmatprep.subr.mxu0 0.0
  %516 = vmatpush2.msra.mxu0 0.0
  %517 = vmatprep.subr.mxu0 0.0
  %518 = vmatpush2.msra.mxu0 0.0
  %519 = vmatprep.subr.mxu0 0.0
  %520 = vmatpush2.msra.mxu0 0.0
  %521 = vmatprep.subr.mxu0 0.0
  %522 = vmatpush2.msra.mxu0 0.0
  %523 = vmatprep.subr.mxu0 0.0
  %524 = vmatpush2.msra.mxu0 0.0
  %525 = vmatprep.subr.mxu0 0.0
  %526 = vmatpush2.msra.mxu0 0.0
  %527 = vmatprep.subr.mxu0 0.0
  %528 = vmatpush2.msra.mxu0 0.0
  %529 = vmatprep.mubr.f32.mxu0 0.0
  %530 = vmatmul.mubr.f32.gmra.mxu0 %v460
  %v531 = vpop.f32.mrf.mxu0
  %v532 = vadd.f32 %v456, %v531
  %v533 = vpop.f32.mrf.mxu0
  %534 = vmatprep.mubr.f32.mxu0 0.0
  %535 = vmatmul.mubr.f32.gmra.mxu0 %v463
  %v536 = vpop.f32.mrf.mxu0
  %v537 = vadd.f32 %v456, %v536
  %v538 = vpop.f32.mrf.mxu0
  %539 = vdwg.mxu0
  %v540 = vxor.u32 %v532, 2147483648
  %v541 = vxor.u32 %v537, 2147483648
  %v542 = vmul.f32 %v540, 1.442695
  %v543 = vpow.pop %v542
  %v544 = vmul.f32 %v541, 1.442695
  %v545 = vpow.pop %v544
  %v546 = vadd.f32 %v543, 1.0
  %v547 = vadd.f32 %v545, 1.0
  %v548 = vrcp.pop %v546
  %v549 = vmul.f32 1.0, %v548
  %v550 = vrcp.pop %v547
  %v551 = vmul.f32 1.0, %v550
  %v553 = vsel %vm155, %v233, 0
  %v556 = vsel %vm155, %v238, 0
  %v559 = vsel %vm162, %v149, 0
  %561 = vmatprep.subr.mxu0 0.0
  %562 = vmatpush1.msra.mxu0 0.0
  %563 = vmatprep.subr.mxu0 0.0
  %564 = vmatpush1.msra.mxu0 0.0
  %565 = vmatprep.subr.mxu0 0.0
  %566 = vmatpush1.msra.mxu0 0.0
  %567 = vmatprep.subr.mxu0 0.0
  %568 = vmatpush1.msra.mxu0 0.0
  %569 = vmatprep.subr.mxu0 0.0
  %570 = vmatpush1.msra.mxu0 0.0
  %571 = vmatprep.subr.mxu0 0.0
  %572 = vmatpush1.msra.mxu0 0.0
  %573 = vmatprep.subr.mxu0 0.0
  %574 = vmatpush1.msra.mxu0 0.0
  %575 = vmatprep.subr.mxu0 0.0
  %576 = vmatpush1.msra.mxu0 0.0
  %577 = vmatprep.subr.mxu0 0.0
  %578 = vmatpush1.msra.mxu0 0.0
  %579 = vmatprep.subr.mxu0 0.0
  %580 = vmatpush1.msra.mxu0 0.0
  %581 = vmatprep.subr.mxu0 0.0
  %582 = vmatpush1.msra.mxu0 0.0
  %583 = vmatprep.subr.mxu0 0.0
  %584 = vmatpush1.msra.mxu0 0.0
  %585 = vmatprep.subr.mxu0 0.0
  %586 = vmatpush1.msra.mxu0 0.0
  %587 = vmatprep.subr.mxu0 0.0
  %588 = vmatpush1.msra.mxu0 0.0
  %589 = vmatprep.subr.mxu0 0.0
  %590 = vmatpush1.msra.mxu0 0.0
  %591 = vmatprep.subr.mxu0 0.0
  %592 = vmatpush1.msra.mxu0 %v559
  %593 = vmatprep.subr.mxu0 0.0
  %594 = vmatpush2.msra.mxu0 0.0
  %595 = vmatprep.subr.mxu0 0.0
  %596 = vmatpush2.msra.mxu0 0.0
  %597 = vmatprep.subr.mxu0 0.0
  %598 = vmatpush2.msra.mxu0 0.0
  %599 = vmatprep.subr.mxu0 0.0
  %600 = vmatpush2.msra.mxu0 0.0
  %601 = vmatprep.subr.mxu0 0.0
  %602 = vmatpush2.msra.mxu0 0.0
  %603 = vmatprep.subr.mxu0 0.0
  %604 = vmatpush2.msra.mxu0 0.0
  %605 = vmatprep.subr.mxu0 0.0
  %606 = vmatpush2.msra.mxu0 0.0
  %607 = vmatprep.subr.mxu0 0.0
  %608 = vmatpush2.msra.mxu0 0.0
  %609 = vmatprep.subr.mxu0 0.0
  %610 = vmatpush2.msra.mxu0 0.0
  %611 = vmatprep.subr.mxu0 0.0
  %612 = vmatpush2.msra.mxu0 0.0
  %613 = vmatprep.subr.mxu0 0.0
  %614 = vmatpush2.msra.mxu0 0.0
  %615 = vmatprep.subr.mxu0 0.0
  %616 = vmatpush2.msra.mxu0 0.0
  %617 = vmatprep.subr.mxu0 0.0
  %618 = vmatpush2.msra.mxu0 0.0
  %619 = vmatprep.subr.mxu0 0.0
  %620 = vmatpush2.msra.mxu0 0.0
  %621 = vmatprep.subr.mxu0 0.0
  %622 = vmatpush2.msra.mxu0 0.0
  %623 = vmatprep.subr.mxu0 0.0
  %624 = vmatpush2.msra.mxu0 0.0
  %625 = vmatprep.mubr.f32.mxu0 0.0
  %626 = vmatmul.mubr.f32.gmra.mxu0 %v553
  %v627 = vpop.f32.mrf.mxu0
  %v628 = vadd.f32 0.0, %v627
  %v629 = vpop.f32.mrf.mxu0
  %630 = vmatprep.mubr.f32.mxu0 0.0
  %631 = vmatmul.mubr.f32.gmra.mxu0 %v556
  %v632 = vpop.f32.mrf.mxu0
  %v633 = vadd.f32 0.0, %v632
  %v634 = vpop.f32.mrf.mxu0
  %635 = vdwg.mxu0
  %638 = vrot.lane.b32.xlu0 %v549, 1
  %v639 = vpop.permute.xlu0 %638
  %640 = vrot.lane.b32.xlu0 %v551, 1
  %v641 = vpop.permute.xlu0 %640
  %644 = vrot.lane.b32.xlu0 %v549, 2
  %v645 = vpop.permute.xlu0 %644
  %646 = vrot.lane.b32.xlu0 %v551, 2
  %v647 = vpop.permute.xlu0 %646
  %v650 = vsel %vm277, %v549, %v639
  %v651 = vsel %vm277, %v551, %v641
  %vm652 = vcmask 15360
  %v653 = vsel %vm652, %v650, %v645
  %v654 = vsel %vm652, %v651, %v647
  %v655 = vmul.f32 %v628, %v653
  %v656 = vmul.f32 %v633, %v654
  %657 = vst.msk [vmem:[%s11] sm:$0xff] %vm458, %v450
  %658 = vst.msk [vmem:[%s11 + $0x8] sm:$0xff] %vm458, %v451
  %659 = vst.msk [vmem:[%s12] sm:$0xff] %vm155, %v655
  %660 = vst.msk [vmem:[%s12 + $0x8] sm:$0xff] %vm155, %v656
  // Predicated region
  $region46: #{base_model_forward.26} parent=0 // pred_check
    _
  $region47: #{base_model_forward.26} parent=0 // pred_check_branch
    %662 = sbr.rel (0) target = $region49
  $region48: #{base_model_forward.26} parent=0 // pred_region
    _
  $region49: #{base_model_forward.26} parent=0 // pred_fallthru
    _
  // Predicated region
  $region50: #{base_model_forward.26} parent=0 // pred_check
    _
  $region51: #{base_model_forward.26} parent=0 // pred_check_branch
    %664 = sbr.rel (0) target = $region53
  $region52: #{base_model_forward.26} parent=0 // pred_region
    _
  $region53: #{base_model_forward.26} parent=0 // pred_fallthru
    _
  // Predicated region
  $region54: #{base_model_forward.26} parent=0 // pred_check
    _
  $region55: #{base_model_forward.26} parent=0 // pred_check_branch
    %666 = sbr.rel (0) target = $region57
  $region56: #{base_model_forward.26} parent=0 // pred_region
    _
  $region57: #{base_model_forward.26} parent=0 // pred_fallthru
    _
  // Predicated region
  $region58: #{base_model_forward.26} parent=0 // pred_check
    _
  $region59: #{base_model_forward.26} parent=0 // pred_check_branch
    %668 = sbr.rel (0) target = $region61
  $region60: #{base_model_forward.26} parent=0 // pred_region
    _
  $region61: #{base_model_forward.26} parent=0 // pred_fallthru
    _

// kernel: base_model_forward.27
$region0: #{base_model_forward.27}
  #allocation0 [shape = 'u32[]', space=smem, size = 0x4, offset = 0x4, fixed_abs, tag = 'smem constant byte address 0x4 - core index']
  #allocation1 [shape = 'u32[144,128]{1,0:T(1,128)}', space=vmem, size = 0x12000, scoped, tag = 'internal scratch']
  %s0 = inlined_call_operand.vmem [shape: f32[16,232], index: 0, kind: input, shape index: {}]
  %s1 = inlined_call_operand.vmem [shape: f32[16,99], index: 1, kind: input, shape index: {}]
  %s2 = inlined_call_operand.vmem [shape: f32[99,99], index: 2, kind: input, shape index: {}]
  %s3 = inlined_call_operand.vmem [shape: f32[232,100], index: 3, kind: input, shape index: {}]
  %s4 = inlined_call_operand.vmem [shape: f32[33,100], index: 4, kind: input, shape index: {}]
  %s5 = inlined_call_operand.vmem [shape: f32[1,100], index: 5, kind: input, shape index: {}]
  %s6 = inlined_call_operand.vmem [shape: f32[99,48], index: 6, kind: input, shape index: {}]
  %s7 = inlined_call_operand.vmem [shape: f32[100,16], index: 7, kind: input, shape index: {}]
  %s8 = inlined_call_operand.vmem [shape: f32[1,16], index: 8, kind: input, shape index: {}]
  %s9 = inlined_call_operand.vmem [shape: f32[48,48], index: 9, kind: input, shape index: {}]
  %s10 = inlined_call_operand.vmem [shape: f32[100,100], index: 10, kind: input, shape index: {}]
  %s11 = inlined_call_operand.vmem [shape: f32[16,100], index: 11, kind: input, shape index: {}]
  %s12 = inlined_call_operand.vmem [shape: f32[1,100], index: 12, kind: input, shape index: {}]
  %s13 = inlined_call_operand.vmem [shape: f32[48,48], index: 13, kind: input, shape index: {}]
  %s14 = inlined_call_operand.vmem [shape: f32[100,16], index: 14, kind: input, shape index: {}]
  %s15 = inlined_call_operand.vmem [shape: f32[1,16], index: 15, kind: input, shape index: {}]
  %s16 = inlined_call_operand.vmem [shape: f32[48,48], index: 16, kind: input, shape index: {}]
  %s17 = inlined_call_operand.vmem [shape: f32[100,100], index: 17, kind: input, shape index: {}]
  %s18 = inlined_call_operand.vmem [shape: f32[16,100], index: 18, kind: input, shape index: {}]
  %s19 = inlined_call_operand.vmem [shape: f32[1,100], index: 19, kind: input, shape index: {}]
  %s20 = inlined_call_operand.vmem [shape: f32[48,48], index: 20, kind: input, shape index: {}]
  %s21 = inlined_call_operand.vmem [shape: f32[100,16], index: 21, kind: input, shape index: {}]
  %s22 = inlined_call_operand.vmem [shape: f32[1,16], index: 22, kind: input, shape index: {}]
  %s23 = inlined_call_operand.vmem [shape: f32[16,100], index: 23, kind: output, shape index: {0}]
  %s24 = inlined_call_operand.vmem [shape: f32[16,48], index: 24, kind: output, shape index: {1}]
  %25 = xla_tuple %s23, %s24
  %s26 = sld [smem:[#allocation0]]
  $region110: #{base_model_forward.27} parent=0
    _
  %s28 = ssub.s32 1, %s26
  %s29 = scalar_select 0, %s28, %s26
  // Predicated region
  $region2: #{base_model_forward.27} parent=0 // pred_check
    _
  $region3: #{base_model_forward.27} parent=0 // pred_check_branch
    %31 = sbr.rel (0) target = $region5
  $region4: #{base_model_forward.27} parent=0 // pred_region
    _
  $region5: #{base_model_forward.27} parent=0 // pred_fallthru
    _
  // Predicated region
  $region6: #{base_model_forward.27} parent=0 // pred_check
    _
  $region7: #{base_model_forward.27} parent=0 // pred_check_branch
    %33 = sbr.rel (0) target = $region9
  $region8: #{base_model_forward.27} parent=0 // pred_region
    _
  $region9: #{base_model_forward.27} parent=0 // pred_fallthru
    _
  // Predicated region
  $region10: #{base_model_forward.27} parent=0 // pred_check
    _
  $region11: #{base_model_forward.27} parent=0 // pred_check_branch
    %35 = sbr.rel (0) target = $region13
  $region12: #{base_model_forward.27} parent=0 // pred_region
    _
  $region13: #{base_model_forward.27} parent=0 // pred_fallthru
    _
  // Predicated region
  $region14: #{base_model_forward.27} parent=0 // pred_check
    _
  $region15: #{base_model_forward.27} parent=0 // pred_check_branch
    %37 = sbr.rel (0) target = $region17
  $region16: #{base_model_forward.27} parent=0 // pred_region
    _
  $region17: #{base_model_forward.27} parent=0 // pred_fallthru
    _
  // Predicated region
  $region18: #{base_model_forward.27} parent=0 // pred_check
    _
  $region19: #{base_model_forward.27} parent=0 // pred_check_branch
    %39 = sbr.rel (0) target = $region21
  $region20: #{base_model_forward.27} parent=0 // pred_region
    _
  $region21: #{base_model_forward.27} parent=0 // pred_fallthru
    _
  // Predicated region
  $region22: #{base_model_forward.27} parent=0 // pred_check
    _
  $region23: #{base_model_forward.27} parent=0 // pred_check_branch
    %41 = sbr.rel (0) target = $region25
  $region24: #{base_model_forward.27} parent=0 // pred_region
    _
  $region25: #{base_model_forward.27} parent=0 // pred_fallthru
    _
  // Predicated region
  $region26: #{base_model_forward.27} parent=0 // pred_check
    _
  $region27: #{base_model_forward.27} parent=0 // pred_check_branch
    %43 = sbr.rel (0) target = $region29
  $region28: #{base_model_forward.27} parent=0 // pred_region
    _
  $region29: #{base_model_forward.27} parent=0 // pred_fallthru
    _
  // Predicated region
  $region30: #{base_model_forward.27} parent=0 // pred_check
    _
  $region31: #{base_model_forward.27} parent=0 // pred_check_branch
    %45 = sbr.rel (0) target = $region33
  $region32: #{base_model_forward.27} parent=0 // pred_region
    _
  $region33: #{base_model_forward.27} parent=0 // pred_fallthru
    _
  // Predicated region
  $region34: #{base_model_forward.27} parent=0 // pred_check
    _
  $region35: #{base_model_forward.27} parent=0 // pred_check_branch
    %47 = sbr.rel (0) target = $region37
  $region36: #{base_model_forward.27} parent=0 // pred_region
    _
  $region37: #{base_model_forward.27} parent=0 // pred_fallthru
    _
  // Predicated region
  $region38: #{base_model_forward.27} parent=0 // pred_check
    _
  $region39: #{base_model_forward.27} parent=0 // pred_check_branch
    %49 = sbr.rel (0) target = $region41
  $region40: #{base_model_forward.27} parent=0 // pred_region
    _
  $region41: #{base_model_forward.27} parent=0 // pred_fallthru
    _
  // Predicated region
  $region42: #{base_model_forward.27} parent=0 // pred_check
    _
  $region43: #{base_model_forward.27} parent=0 // pred_check_branch
    %51 = sbr.rel (0) target = $region45
  $region44: #{base_model_forward.27} parent=0 // pred_region
    _
  $region45: #{base_model_forward.27} parent=0 // pred_fallthru
    _
  // Predicated region
  $region46: #{base_model_forward.27} parent=0 // pred_check
    _
  $region47: #{base_model_forward.27} parent=0 // pred_check_branch
    %53 = sbr.rel (0) target = $region49
  $region48: #{base_model_forward.27} parent=0 // pred_region
    _
  $region49: #{base_model_forward.27} parent=0 // pred_fallthru
    _
  // Predicated region
  $region50: #{base_model_forward.27} parent=0 // pred_check
    _
  $region51: #{base_model_forward.27} parent=0 // pred_check_branch
    %55 = sbr.rel (0) target = $region53
  $region52: #{base_model_forward.27} parent=0 // pred_region
    _
  $region53: #{base_model_forward.27} parent=0 // pred_fallthru
    _
  // Predicated region
  $region54: #{base_model_forward.27} parent=0 // pred_check
    _
  $region55: #{base_model_forward.27} parent=0 // pred_check_branch
    %57 = sbr.rel (0) target = $region57
  $region56: #{base_model_forward.27} parent=0 // pred_region
    _
  $region57: #{base_model_forward.27} parent=0 // pred_fallthru
    _
  // Predicated region
  $region58: #{base_model_forward.27} parent=0 // pred_check
    _
  $region59: #{base_model_forward.27} parent=0 // pred_check_branch
    %59 = sbr.rel (0) target = $region61
  $region60: #{base_model_forward.27} parent=0 // pred_region
    _
  $region61: #{base_model_forward.27} parent=0 // pred_fallthru
    _
  // Predicated region
  $region62: #{base_model_forward.27} parent=0 // pred_check
    _
  $region63: #{base_model_forward.27} parent=0 // pred_check_branch
    %61 = sbr.rel (0) target = $region65
  $region64: #{base_model_forward.27} parent=0 // pred_region
    _
  $region65: #{base_model_forward.27} parent=0 // pred_fallthru
    _
  // Predicated region
  $region66: #{base_model_forward.27} parent=0 // pred_check
    _
  $region67: #{base_model_forward.27} parent=0 // pred_check_branch
    %63 = sbr.rel (0) target = $region69
  $region68: #{base_model_forward.27} parent=0 // pred_region
    _
  $region69: #{base_model_forward.27} parent=0 // pred_fallthru
    _
  // Predicated region
  $region70: #{base_model_forward.27} parent=0 // pred_check
    _
  $region71: #{base_model_forward.27} parent=0 // pred_check_branch
    %65 = sbr.rel (0) target = $region73
  $region72: #{base_model_forward.27} parent=0 // pred_region
    _
  $region73: #{base_model_forward.27} parent=0 // pred_fallthru
    _
  // Predicated region
  $region74: #{base_model_forward.27} parent=0 // pred_check
    _
  $region75: #{base_model_forward.27} parent=0 // pred_check_branch
    %67 = sbr.rel (0) target = $region77
  $region76: #{base_model_forward.27} parent=0 // pred_region
    _
  $region77: #{base_model_forward.27} parent=0 // pred_fallthru
    _
  // Predicated region
  $region78: #{base_model_forward.27} parent=0 // pred_check
    _
  $region79: #{base_model_forward.27} parent=0 // pred_check_branch
    %69 = sbr.rel (0) target = $region81
  $region80: #{base_model_forward.27} parent=0 // pred_region
    _
  $region81: #{base_model_forward.27} parent=0 // pred_fallthru
    _
  // Predicated region
  $region82: #{base_model_forward.27} parent=0 // pred_check
    _
  $region83: #{base_model_forward.27} parent=0 // pred_check_branch
    %71 = sbr.rel (0) target = $region85
  $region84: #{base_model_forward.27} parent=0 // pred_region
    _
  $region85: #{base_model_forward.27} parent=0 // pred_fallthru
    _
  // Predicated region
  $region86: #{base_model_forward.27} parent=0 // pred_check
    _
  $region87: #{base_model_forward.27} parent=0 // pred_check_branch
    %73 = sbr.rel (0) target = $region89
  $region88: #{base_model_forward.27} parent=0 // pred_region
    _
  $region89: #{base_model_forward.27} parent=0 // pred_fallthru
    _
  // Predicated region
  $region90: #{base_model_forward.27} parent=0 // pred_check
    _
  $region91: #{base_model_forward.27} parent=0 // pred_check_branch
    %75 = sbr.rel (0) target = $region93
  $region92: #{base_model_forward.27} parent=0 // pred_region
    _
  $region93: #{base_model_forward.27} parent=0 // pred_fallthru
    _
  %v76 = vld [vmem:[%s0] sm:$0xff]
  %v77 = vld [vmem:[%s0 + $0x8] sm:$0xff]
  %v78 = vld [vmem:[%s0 + $0x10] sm:$0xff]
  %v79 = vld [vmem:[%s0 + $0x18] sm:$0xff]
  %v80 = vld [vmem:[%s1] sm:$0xff]
  %v81 = vld [vmem:[%s1 + $0x8] sm:$0xff]
  %v82 = vld [vmem:[%s2] sm:$0xff]
  %v83 = vld [vmem:[%s2 + $0x8] sm:$0xff]
  %v84 = vld [vmem:[%s2 + $0x10] sm:$0xff]
  %v85 = vld [vmem:[%s2 + $0x18] sm:$0xff]
  %v86 = vld [vmem:[%s2 + $0x20] sm:$0xff]
  %v87 = vld [vmem:[%s2 + $0x28] sm:$0xff]
  %v88 = vld [vmem:[%s2 + $0x30] sm:$0xff]
  %v89 = vld [vmem:[%s2 + $0x38] sm:$0xff]
  %v90 = vld [vmem:[%s2 + $0x40] sm:$0xff]
  %v91 = vld [vmem:[%s2 + $0x48] sm:$0xff]
  %v92 = vld [vmem:[%s2 + $0x50] sm:$0xff]
  %v93 = vld [vmem:[%s2 + $0x58] sm:$0xff]
  %v94 = vld [vmem:[%s2 + $0x60] sm:$0x7]
  %v95 = vld [vmem:[%s3] sm:$0xff]
  %v96 = vld [vmem:[%s3 + $0x8] sm:$0xff]
  %v97 = vld [vmem:[%s3 + $0x10] sm:$0xff]
  %v98 = vld [vmem:[%s3 + $0x18] sm:$0xff]
  %v99 = vld [vmem:[%s3 + $0x20] sm:$0xff]
  %v100 = vld [vmem:[%s3 + $0x28] sm:$0xff]
  %v101 = vld [vmem:[%s3 + $0x30] sm:$0xff]
  %v102 = vld [vmem:[%s3 + $0x38] sm:$0xff]
  %v103 = vld [vmem:[%s3 + $0x40] sm:$0xff]
  %v104 = vld [vmem:[%s3 + $0x48] sm:$0xff]
  %v105 = vld [vmem:[%s3 + $0x50] sm:$0xff]
  %v106 = vld [vmem:[%s3 + $0x58] sm:$0xff]
  %v107 = vld [vmem:[%s3 + $0x60] sm:$0xff]
  %v108 = vld [vmem:[%s3 + $0x68] sm:$0xff]
  %v109 = vld [vmem:[%s3 + $0x70] sm:$0xff]
  %v110 = vld [vmem:[%s3 + $0x78] sm:$0xff]
  %v111 = vld [vmem:[%s3 + $0x80] sm:$0xff]
  %v112 = vld [vmem:[%s3 + $0x88] sm:$0xff]
  %v113 = vld [vmem:[%s3 + $0x90] sm:$0xff]
  %v114 = vld [vmem:[%s3 + $0x98] sm:$0xff]
  %v115 = vld [vmem:[%s3 + $0xa0] sm:$0xff]
  %v116 = vld [vmem:[%s3 + $0xa8] sm:$0xff]
  %v117 = vld [vmem:[%s3 + $0xb0] sm:$0xff]
  %v118 = vld [vmem:[%s3 + $0xb8] sm:$0xff]
  %v119 = vld [vmem:[%s3 + $0xc0] sm:$0xff]
  %v120 = vld [vmem:[%s3 + $0xc8] sm:$0xff]
  %v121 = vld [vmem:[%s3 + $0xd0] sm:$0xff]
  %v122 = vld [vmem:[%s3 + $0xd8] sm:$0xff]
  %v123 = vld [vmem:[%s3 + $0xe0] sm:$0xff]
  %v124 = vld [vmem:[%s4] sm:$0xff]
  %v125 = vld [vmem:[%s4 + $0x8] sm:$0xff]
  %v126 = vld [vmem:[%s4 + $0x10] sm:$0xff]
  %v127 = vld [vmem:[%s4 + $0x18] sm:$0xff]
  %v128 = vld [vmem:[%s4 + $0x20] sm:$0x1]
  %v129 = vld [vmem:[%s5] sm:$0x1]
  %v130 = vld [vmem:[%s6] sm:$0xff]
  %v131 = vld [vmem:[%s6 + $0x8] sm:$0xff]
  %v132 = vld [vmem:[%s6 + $0x10] sm:$0xff]
  %v133 = vld [vmem:[%s6 + $0x18] sm:$0xff]
  %v134 = vld [vmem:[%s6 + $0x20] sm:$0xff]
  %v135 = vld [vmem:[%s6 + $0x28] sm:$0xff]
  %v136 = vld [vmem:[%s6 + $0x30] sm:$0xff]
  %v137 = vld [vmem:[%s6 + $0x38] sm:$0xff]
  %v138 = vld [vmem:[%s6 + $0x40] sm:$0xff]
  %v139 = vld [vmem:[%s6 + $0x48] sm:$0xff]
  %v140 = vld [vmem:[%s6 + $0x50] sm:$0xff]
  %v141 = vld [vmem:[%s6 + $0x58] sm:$0xff]
  %v142 = vld [vmem:[%s6 + $0x60] sm:$0x7]
  %v143 = vld [vmem:[%s7] sm:$0xff]
  %v144 = vld [vmem:[%s7 + $0x8] sm:$0xff]
  %v145 = vld [vmem:[%s7 + $0x10] sm:$0xff]
  %v146 = vld [vmem:[%s7 + $0x18] sm:$0xff]
  %v147 = vld [vmem:[%s7 + $0x20] sm:$0xff]
  %v148 = vld [vmem:[%s7 + $0x28] sm:$0xff]
  %v149 = vld [vmem:[%s7 + $0x30] sm:$0xff]
  %v150 = vld [vmem:[%s7 + $0x38] sm:$0xff]
  %v151 = vld [vmem:[%s7 + $0x40] sm:$0xff]
  %v152 = vld [vmem:[%s7 + $0x48] sm:$0xff]
  %v153 = vld [vmem:[%s7 + $0x50] sm:$0xff]
  %v154 = vld [vmem:[%s7 + $0x58] sm:$0xff]
  %v155 = vld [vmem:[%s7 + $0x60] sm:$0xf]
  %v156 = vld [vmem:[%s8] sm:$0x1]
  %vm157 = vcmask 809984
  %v159 = vsel %vm157, %v80, 0
  %v162 = vsel %vm157, %v81, 0
  %vm164 = vcmask 1042432
  %v166 = vsel %vm164, %v94, 0
  %168 = vmatprep.subr.mxu0 0.0
  %169 = vmatpush1.msra.mxu0 0.0
  %170 = vmatprep.subr.mxu0 0.0
  %171 = vmatpush1.msra.mxu0 0.0
  %172 = vmatprep.subr.mxu0 0.0
  %173 = vmatpush1.msra.mxu0 0.0
  %174 = vmatprep.subr.mxu0 0.0
  %175 = vmatpush1.msra.mxu0 %v166
  %176 = vmatprep.subr.mxu0 0.0
  %177 = vmatpush1.msra.mxu0 %v93
  %178 = vmatprep.subr.mxu0 0.0
  %179 = vmatpush1.msra.mxu0 %v92
  %180 = vmatprep.subr.mxu0 0.0
  %181 = vmatpush1.msra.mxu0 %v91
  %182 = vmatprep.subr.mxu0 0.0
  %183 = vmatpush1.msra.mxu0 %v90
  %184 = vmatprep.subr.mxu0 0.0
  %185 = vmatpush1.msra.mxu0 %v89
  %186 = vmatprep.subr.mxu0 0.0
  %187 = vmatpush1.msra.mxu0 %v88
  %188 = vmatprep.subr.mxu0 0.0
  %189 = vmatpush1.msra.mxu0 %v87
  %190 = vmatprep.subr.mxu0 0.0
  %191 = vmatpush1.msra.mxu0 %v86
  %192 = vmatprep.subr.mxu0 0.0
  %193 = vmatpush1.msra.mxu0 %v85
  %194 = vmatprep.subr.mxu0 0.0
  %195 = vmatpush1.msra.mxu0 %v84
  %196 = vmatprep.subr.mxu0 0.0
  %197 = vmatpush1.msra.mxu0 %v83
  %198 = vmatprep.subr.mxu0 0.0
  %199 = vmatpush1.msra.mxu0 %v82
  %200 = vmatprep.subr.mxu0 0.0
  %201 = vmatpush2.msra.mxu0 0.0
  %202 = vmatprep.subr.mxu0 0.0
  %203 = vmatpush2.msra.mxu0 0.0
  %204 = vmatprep.subr.mxu0 0.0
  %205 = vmatpush2.msra.mxu0 0.0
  %206 = vmatprep.subr.mxu0 0.0
  %207 = vmatpush2.msra.mxu0 0.0
  %208 = vmatprep.subr.mxu0 0.0
  %209 = vmatpush2.msra.mxu0 0.0
  %210 = vmatprep.subr.mxu0 0.0
  %211 = vmatpush2.msra.mxu0 0.0
  %212 = vmatprep.subr.mxu0 0.0
  %213 = vmatpush2.msra.mxu0 0.0
  %214 = vmatprep.subr.mxu0 0.0
  %215 = vmatpush2.msra.mxu0 0.0
  %216 = vmatprep.subr.mxu0 0.0
  %217 = vmatpush2.msra.mxu0 0.0
  %218 = vmatprep.subr.mxu0 0.0
  %219 = vmatpush2.msra.mxu0 0.0
  %220 = vmatprep.subr.mxu0 0.0
  %221 = vmatpush2.msra.mxu0 0.0
  %222 = vmatprep.subr.mxu0 0.0
  %223 = vmatpush2.msra.mxu0 0.0
  %224 = vmatprep.subr.mxu0 0.0
  %225 = vmatpush2.msra.mxu0 0.0
  %226 = vmatprep.subr.mxu0 0.0
  %227 = vmatpush2.msra.mxu0 0.0
  %228 = vmatprep.subr.mxu0 0.0
  %229 = vmatpush2.msra.mxu0 0.0
  %230 = vmatprep.subr.mxu0 0.0
  %231 = vmatpush2.msra.mxu0 0.0
  %232 = vmatprep.mubr.f32.mxu0 0.0
  %233 = vmatmul.mubr.f32.gmra.mxu0 %v159
  %v234 = vpop.f32.mrf.mxu0
  %v235 = vadd.f32 0.0, %v234
  %v236 = vpop.f32.mrf.mxu0
  %237 = vmatprep.mubr.f32.mxu0 0.0
  %238 = vmatmul.mubr.f32.gmra.mxu0 %v162
  %v239 = vpop.f32.mrf.mxu0
  %v240 = vadd.f32 0.0, %v239
  %v241 = vpop.f32.mrf.mxu0
  %242 = vdwg.mxu0
  %v243 = vmul.f32 %v235, %v235
  %v244 = vmul.f32 %v240, %v240
  %247 = vrot.lane.b32.xlu0 %v243, 95
  %v248 = vpop.permute.xlu0 %247
  %249 = vrot.lane.b32.xlu0 %v244, 95
  %v250 = vpop.permute.xlu0 %249
  %v253 = vadd.f32 %v243, %v248
  %v254 = vadd.f32 %v244, %v250
  %255 = vrot.lane.b32.xlu0 %v243, 62
  %v256 = vpop.permute.xlu0 %255
  %257 = vrot.lane.b32.xlu0 %v244, 62
  %v258 = vpop.permute.xlu0 %257
  %v261 = vadd.f32 %v253, %v256
  %v262 = vadd.f32 %v254, %v258
  %v263 = vmax.f32 %v261, 1e-08
  %v264 = vmax.f32 %v262, 1e-08
  %v265 = vrsqrt.pop %v263
  %v266 = vmul.f32 %v263, %v265
  %vm267 = vcmp.eq.f32.partialorder %v263, inf
  %v268 = vsel %vm267, %v263, %v266
  %vm269 = vcmp.eq.f32.partialorder %v263, 0.0
  %v270 = vand.u32 %v263, 2147483648
  %v271 = vsel %vm269, %v270, %v268
  %v272 = vrsqrt.pop %v264
  %v273 = vmul.f32 %v264, %v272
  %vm274 = vcmp.eq.f32.partialorder %v264, inf
  %v275 = vsel %vm274, %v264, %v273
  %vm276 = vcmp.eq.f32.partialorder %v264, 0.0
  %v277 = vand.u32 %v264, 2147483648
  %v278 = vsel %vm276, %v277, %v275
  %vm279 = vcmask 269312
  %v281 = vsel %vm279, %v271, 0
  %v284 = vsel %vm279, %v278, 0
  %vm286 = vcmask 1040384
  %v288 = vsel %vm286, %v128, 0
  %290 = vmatprep.subr.mxu0 0.0
  %291 = vmatpush1.msra.mxu0 0.0
  %292 = vmatprep.subr.mxu0 0.0
  %293 = vmatpush1.msra.mxu0 0.0
  %294 = vmatprep.subr.mxu0 0.0
  %295 = vmatpush1.msra.mxu0 0.0
  %296 = vmatprep.subr.mxu0 0.0
  %297 = vmatpush1.msra.mxu0 0.0
  %298 = vmatprep.subr.mxu0 0.0
  %299 = vmatpush1.msra.mxu0 0.0
  %300 = vmatprep.subr.mxu0 0.0
  %301 = vmatpush1.msra.mxu0 0.0
  %302 = vmatprep.subr.mxu0 0.0
  %303 = vmatpush1.msra.mxu0 0.0
  %304 = vmatprep.subr.mxu0 0.0
  %305 = vmatpush1.msra.mxu0 0.0
  %306 = vmatprep.subr.mxu0 0.0
  %307 = vmatpush1.msra.mxu0 0.0
  %308 = vmatprep.subr.mxu0 0.0
  %309 = vmatpush1.msra.mxu0 0.0
  %310 = vmatprep.subr.mxu0 0.0
  %311 = vmatpush1.msra.mxu0 0.0
  %312 = vmatprep.subr.mxu0 0.0
  %313 = vmatpush1.msra.mxu0 %v288
  %314 = vmatprep.subr.mxu0 0.0
  %315 = vmatpush1.msra.mxu0 %v127
  %316 = vmatprep.subr.mxu0 0.0
  %317 = vmatpush1.msra.mxu0 %v126
  %318 = vmatprep.subr.mxu0 0.0
  %319 = vmatpush1.msra.mxu0 %v125
  %320 = vmatprep.subr.mxu0 0.0
  %321 = vmatpush1.msra.mxu0 %v124
  %322 = vmatprep.subr.mxu0 0.0
  %323 = vmatpush2.msra.mxu0 0.0
  %324 = vmatprep.subr.mxu0 0.0
  %325 = vmatpush2.msra.mxu0 0.0
  %326 = vmatprep.subr.mxu0 0.0
  %327 = vmatpush2.msra.mxu0 0.0
  %328 = vmatprep.subr.mxu0 0.0
  %329 = vmatpush2.msra.mxu0 0.0
  %330 = vmatprep.subr.mxu0 0.0
  %331 = vmatpush2.msra.mxu0 0.0
  %332 = vmatprep.subr.mxu0 0.0
  %333 = vmatpush2.msra.mxu0 0.0
  %334 = vmatprep.subr.mxu0 0.0
  %335 = vmatpush2.msra.mxu0 0.0
  %336 = vmatprep.subr.mxu0 0.0
  %337 = vmatpush2.msra.mxu0 0.0
  %338 = vmatprep.subr.mxu0 0.0
  %339 = vmatpush2.msra.mxu0 0.0
  %340 = vmatprep.subr.mxu0 0.0
  %341 = vmatpush2.msra.mxu0 0.0
  %342 = vmatprep.subr.mxu0 0.0
  %343 = vmatpush2.msra.mxu0 0.0
  %344 = vmatprep.subr.mxu0 0.0
  %345 = vmatpush2.msra.mxu0 0.0
  %346 = vmatprep.subr.mxu0 0.0
  %347 = vmatpush2.msra.mxu0 0.0
  %348 = vmatprep.subr.mxu0 0.0
  %349 = vmatpush2.msra.mxu0 0.0
  %350 = vmatprep.subr.mxu0 0.0
  %351 = vmatpush2.msra.mxu0 0.0
  %352 = vmatprep.subr.mxu0 0.0
  %353 = vmatpush2.msra.mxu0 0.0
  %354 = vmatprep.mubr.f32.mxu0 0.0
  %355 = vmatmul.mubr.f32.gmra.mxu0 %v281
  %v356 = vpop.f32.mrf.mxu0
  %v357 = vadd.f32 0.0, %v356
  %v358 = vpop.f32.mrf.mxu0
  %359 = vmatprep.mubr.f32.mxu0 0.0
  %360 = vmatmul.mubr.f32.gmra.mxu0 %v284
  %v361 = vpop.f32.mrf.mxu0
  %v362 = vadd.f32 0.0, %v361
  %v363 = vpop.f32.mrf.mxu0
  %364 = vdwg.mxu0
  %vm365 = vcmask 850944
  %v367 = vsel %vm365, %v77, 0
  %v370 = vsel %vm365, %v79, 0
  %372 = vmatprep.subr.mxu0 0.0
  %373 = vmatpush1.msra.mxu0 %v110
  %374 = vmatprep.subr.mxu0 0.0
  %375 = vmatpush1.msra.mxu0 %v109
  %376 = vmatprep.subr.mxu0 0.0
  %377 = vmatpush1.msra.mxu0 %v108
  %378 = vmatprep.subr.mxu0 0.0
  %379 = vmatpush1.msra.mxu0 %v107
  %380 = vmatprep.subr.mxu0 0.0
  %381 = vmatpush1.msra.mxu0 %v106
  %382 = vmatprep.subr.mxu0 0.0
  %383 = vmatpush1.msra.mxu0 %v105
  %384 = vmatprep.subr.mxu0 0.0
  %385 = vmatpush1.msra.mxu0 %v104
  %386 = vmatprep.subr.mxu0 0.0
  %387 = vmatpush1.msra.mxu0 %v103
  %388 = vmatprep.subr.mxu0 0.0
  %389 = vmatpush1.msra.mxu0 %v102
  %390 = vmatprep.subr.mxu0 0.0
  %391 = vmatpush1.msra.mxu0 %v101
  %392 = vmatprep.subr.mxu0 0.0
  %393 = vmatpush1.msra.mxu0 %v100
  %394 = vmatprep.subr.mxu0 0.0
  %395 = vmatpush1.msra.mxu0 %v99
  %396 = vmatprep.subr.mxu0 0.0
  %397 = vmatpush1.msra.mxu0 %v98
  %398 = vmatprep.subr.mxu0 0.0
  %399 = vmatpush1.msra.mxu0 %v97
  %400 = vmatprep.subr.mxu0 0.0
  %401 = vmatpush1.msra.mxu0 %v96
  %402 = vmatprep.subr.mxu0 0.0
  %403 = vmatpush1.msra.mxu0 %v95
  %404 = vmatprep.subr.mxu0 0.0
  %405 = vmatpush2.msra.mxu0 0.0
  %406 = vmatprep.subr.mxu0 0.0
  %407 = vmatpush2.msra.mxu0 0.0
  %408 = vmatprep.subr.mxu0 0.0
  %409 = vmatpush2.msra.mxu0 0.0
  %410 = vmatprep.subr.mxu0 0.0
  %411 = vmatpush2.msra.mxu0 %v123
  %412 = vmatprep.subr.mxu0 0.0
  %413 = vmatpush2.msra.mxu0 %v122
  %414 = vmatprep.subr.mxu0 0.0
  %415 = vmatpush2.msra.mxu0 %v121
  %416 = vmatprep.subr.mxu0 0.0
  %417 = vmatpush2.msra.mxu0 %v120
  %418 = vmatprep.subr.mxu0 0.0
  %419 = vmatpush2.msra.mxu0 %v119
  %420 = vmatprep.subr.mxu0 0.0
  %421 = vmatpush2.msra.mxu0 %v118
  %422 = vmatprep.subr.mxu0 0.0
  %423 = vmatpush2.msra.mxu0 %v117
  %424 = vmatprep.subr.mxu0 0.0
  %425 = vmatpush2.msra.mxu0 %v116
  %426 = vmatprep.subr.mxu0 0.0
  %427 = vmatpush2.msra.mxu0 %v115
  %428 = vmatprep.subr.mxu0 0.0
  %429 = vmatpush2.msra.mxu0 %v114
  %430 = vmatprep.subr.mxu0 0.0
  %431 = vmatpush2.msra.mxu0 %v113
  %432 = vmatprep.subr.mxu0 0.0
  %433 = vmatpush2.msra.mxu0 %v112
  %434 = vmatprep.subr.mxu0 0.0
  %435 = vmatpush2.msra.mxu0 %v111
  %436 = vmatprep.mubr.f32.mxu0 %v367
  %437 = vmatmul.mubr.f32.gmra.mxu0 %v76
  %v438 = vpop.f32.mrf.mxu0
  %v439 = vadd.f32 %v357, %v438
  %v440 = vpop.f32.mrf.mxu0
  %441 = vmatprep.mubr.f32.mxu0 %v370
  %442 = vmatmul.mubr.f32.gmra.mxu0 %v78
  %v443 = vpop.f32.mrf.mxu0
  %v444 = vadd.f32 %v362, %v443
  %v445 = vpop.f32.mrf.mxu0
  %446 = vdwg.mxu0
  %v448 = vlaneseq
  %v449 = vshrl.u32 %v448, 7
  %v450 = vsub.s32 0, %v449
  %v451 = vrot.slane %v129, %v450
  %v453 = vadd.f32 %v439, %v451
  %v454 = vadd.f32 %v444, %v451
  %v455 = vmax.f32 %v453, 0.0
  %v456 = vmax.f32 %v454, 0.0
  %v458 = vlaneseq
  %v459 = vshrl.u32 %v458, 7
  %v460 = vsub.s32 0, %v459
  %v461 = vrot.slane %v156, %v460
  %vm463 = vcmask 818176
  %v465 = vsel %vm463, %v453, 0
  %v468 = vsel %vm463, %v454, 0
  %vm470 = vcmask 1043456
  %v472 = vsel %vm470, %v155, 0
  %474 = vmatprep.subr.mxu0 0.0
  %475 = vmatpush1.msra.mxu0 0.0
  %476 = vmatprep.subr.mxu0 0.0
  %477 = vmatpush1.msra.mxu0 0.0
  %478 = vmatprep.subr.mxu0 0.0
  %479 = vmatpush1.msra.mxu0 0.0
  %480 = vmatprep.subr.mxu0 0.0
  %481 = vmatpush1.msra.mxu0 %v472
  %482 = vmatprep.subr.mxu0 0.0
  %483 = vmatpush1.msra.mxu0 %v154
  %484 = vmatprep.subr.mxu0 0.0
  %485 = vmatpush1.msra.mxu0 %v153
  %486 = vmatprep.subr.mxu0 0.0
  %487 = vmatpush1.msra.mxu0 %v152
  %488 = vmatprep.subr.mxu0 0.0
  %489 = vmatpush1.msra.mxu0 %v151
  %490 = vmatprep.subr.mxu0 0.0
  %491 = vmatpush1.msra.mxu0 %v150
  %492 = vmatprep.subr.mxu0 0.0
  %493 = vmatpush1.msra.mxu0 %v149
  %494 = vmatprep.subr.mxu0 0.0
  %495 = vmatpush1.msra.mxu0 %v148
  %496 = vmatprep.subr.mxu0 0.0
  %497 = vmatpush1.msra.mxu0 %v147
  %498 = vmatprep.subr.mxu0 0.0
  %499 = vmatpush1.msra.mxu0 %v146
  %500 = vmatprep.subr.mxu0 0.0
  %501 = vmatpush1.msra.mxu0 %v145
  %502 = vmatprep.subr.mxu0 0.0
  %503 = vmatpush1.msra.mxu0 %v144
  %504 = vmatprep.subr.mxu0 0.0
  %505 = vmatpush1.msra.mxu0 %v143
  %506 = vmatprep.subr.mxu0 0.0
  %507 = vmatpush2.msra.mxu0 0.0
  %508 = vmatprep.subr.mxu0 0.0
  %509 = vmatpush2.msra.mxu0 0.0
  %510 = vmatprep.subr.mxu0 0.0
  %511 = vmatpush2.msra.mxu0 0.0
  %512 = vmatprep.subr.mxu0 0.0
  %513 = vmatpush2.msra.mxu0 0.0
  %514 = vmatprep.subr.mxu0 0.0
  %515 = vmatpush2.msra.mxu0 0.0
  %516 = vmatprep.subr.mxu0 0.0
  %517 = vmatpush2.msra.mxu0 0.0
  %518 = vmatprep.subr.mxu0 0.0
  %519 = vmatpush2.msra.mxu0 0.0
  %520 = vmatprep.subr.mxu0 0.0
  %521 = vmatpush2.msra.mxu0 0.0
  %522 = vmatprep.subr.mxu0 0.0
  %523 = vmatpush2.msra.mxu0 0.0
  %524 = vmatprep.subr.mxu0 0.0
  %525 = vmatpush2.msra.mxu0 0.0
  %526 = vmatprep.subr.mxu0 0.0
  %527 = vmatpush2.msra.mxu0 0.0
  %528 = vmatprep.subr.mxu0 0.0
  %529 = vmatpush2.msra.mxu0 0.0
  %530 = vmatprep.subr.mxu0 0.0
  %531 = vmatpush2.msra.mxu0 0.0
  %532 = vmatprep.subr.mxu0 0.0
  %533 = vmatpush2.msra.mxu0 0.0
  %534 = vmatprep.subr.mxu0 0.0
  %535 = vmatpush2.msra.mxu0 0.0
  %536 = vmatprep.subr.mxu0 0.0
  %537 = vmatpush2.msra.mxu0 0.0
  %538 = vmatprep.mubr.f32.mxu0 0.0
  %539 = vmatmul.mubr.f32.gmra.mxu0 %v465
  %v540 = vpop.f32.mrf.mxu0
  %v541 = vadd.f32 %v461, %v540
  %v542 = vpop.f32.mrf.mxu0
  %543 = vmatprep.mubr.f32.mxu0 0.0
  %544 = vmatmul.mubr.f32.gmra.mxu0 %v468
  %v545 = vpop.f32.mrf.mxu0
  %v546 = vadd.f32 %v461, %v545
  %v547 = vpop.f32.mrf.mxu0
  %548 = vdwg.mxu0
  %v549 = vxor.u32 %v541, 2147483648
  %v550 = vxor.u32 %v546, 2147483648
  %v551 = vmul.f32 %v549, 1.442695
  %v552 = vpow.pop %v551
  %v553 = vmul.f32 %v550, 1.442695
  %v554 = vpow.pop %v553
  %v555 = vadd.f32 %v552, 1.0
  %v556 = vadd.f32 %v554, 1.0
  %v557 = vrcp.pop %v555
  %v558 = vmul.f32 1.0, %v557
  %v559 = vrcp.pop %v556
  %v560 = vmul.f32 1.0, %v559
  %v562 = vsel %vm157, %v235, 0
  %v565 = vsel %vm157, %v240, 0
  %v568 = vsel %vm164, %v142, 0
  %570 = vmatprep.subr.mxu0 0.0
  %571 = vmatpush1.msra.mxu0 0.0
  %572 = vmatprep.subr.mxu0 0.0
  %573 = vmatpush1.msra.mxu0 0.0
  %574 = vmatprep.subr.mxu0 0.0
  %575 = vmatpush1.msra.mxu0 0.0
  %576 = vmatprep.subr.mxu0 0.0
  %577 = vmatpush1.msra.mxu0 %v568
  %578 = vmatprep.subr.mxu0 0.0
  %579 = vmatpush1.msra.mxu0 %v141
  %580 = vmatprep.subr.mxu0 0.0
  %581 = vmatpush1.msra.mxu0 %v140
  %582 = vmatprep.subr.mxu0 0.0
  %583 = vmatpush1.msra.mxu0 %v139
  %584 = vmatprep.subr.mxu0 0.0
  %585 = vmatpush1.msra.mxu0 %v138
  %586 = vmatprep.subr.mxu0 0.0
  %587 = vmatpush1.msra.mxu0 %v137
  %588 = vmatprep.subr.mxu0 0.0
  %589 = vmatpush1.msra.mxu0 %v136
  %590 = vmatprep.subr.mxu0 0.0
  %591 = vmatpush1.msra.mxu0 %v135
  %592 = vmatprep.subr.mxu0 0.0
  %593 = vmatpush1.msra.mxu0 %v134
  %594 = vmatprep.subr.mxu0 0.0
  %595 = vmatpush1.msra.mxu0 %v133
  %596 = vmatprep.subr.mxu0 0.0
  %597 = vmatpush1.msra.mxu0 %v132
  %598 = vmatprep.subr.mxu0 0.0
  %599 = vmatpush1.msra.mxu0 %v131
  %600 = vmatprep.subr.mxu0 0.0
  %601 = vmatpush1.msra.mxu0 %v130
  %602 = vmatprep.subr.mxu0 0.0
  %603 = vmatpush2.msra.mxu0 0.0
  %604 = vmatprep.subr.mxu0 0.0
  %605 = vmatpush2.msra.mxu0 0.0
  %606 = vmatprep.subr.mxu0 0.0
  %607 = vmatpush2.msra.mxu0 0.0
  %608 = vmatprep.subr.mxu0 0.0
  %609 = vmatpush2.msra.mxu0 0.0
  %610 = vmatprep.subr.mxu0 0.0
  %611 = vmatpush2.msra.mxu0 0.0
  %612 = vmatprep.subr.mxu0 0.0
  %613 = vmatpush2.msra.mxu0 0.0
  %614 = vmatprep.subr.mxu0 0.0
  %615 = vmatpush2.msra.mxu0 0.0
  %616 = vmatprep.subr.mxu0 0.0
  %617 = vmatpush2.msra.mxu0 0.0
  %618 = vmatprep.subr.mxu0 0.0
  %619 = vmatpush2.msra.mxu0 0.0
  %620 = vmatprep.subr.mxu0 0.0
  %621 = vmatpush2.msra.mxu0 0.0
  %622 = vmatprep.subr.mxu0 0.0
  %623 = vmatpush2.msra.mxu0 0.0
  %624 = vmatprep.subr.mxu0 0.0
  %625 = vmatpush2.msra.mxu0 0.0
  %626 = vmatprep.subr.mxu0 0.0
  %627 = vmatpush2.msra.mxu0 0.0
  %628 = vmatprep.subr.mxu0 0.0
  %629 = vmatpush2.msra.mxu0 0.0
  %630 = vmatprep.subr.mxu0 0.0
  %631 = vmatpush2.msra.mxu0 0.0
  %632 = vmatprep.subr.mxu0 0.0
  %633 = vmatpush2.msra.mxu0 0.0
  %634 = vmatprep.mubr.f32.mxu0 0.0
  %635 = vmatmul.mubr.f32.gmra.mxu0 %v562
  %v636 = vpop.f32.mrf.mxu0
  %v637 = vadd.f32 0.0, %v636
  %v638 = vpop.f32.mrf.mxu0
  %639 = vmatprep.mubr.f32.mxu0 0.0
  %640 = vmatmul.mubr.f32.gmra.mxu0 %v565
  %v641 = vpop.f32.mrf.mxu0
  %v642 = vadd.f32 0.0, %v641
  %v643 = vpop.f32.mrf.mxu0
  %644 = vdwg.mxu0
  %647 = vrot.lane.b32.xlu0 %v558, 16
  %v648 = vpop.permute.xlu0 %647
  %649 = vrot.lane.b32.xlu0 %v560, 16
  %v650 = vpop.permute.xlu0 %649
  %653 = vrot.lane.b32.xlu0 %v558, 32
  %v654 = vpop.permute.xlu0 %653
  %655 = vrot.lane.b32.xlu0 %v560, 32
  %v656 = vpop.permute.xlu0 %655
  %vm659 = vcmask 130048
  %v660 = vsel %vm659, %v558, %v648
  %v661 = vsel %vm659, %v560, %v650
  %vm662 = vcmask 261120
  %v663 = vsel %vm662, %v660, %v654
  %v664 = vsel %vm662, %v661, %v656
  %v665 = vmul.f32 %v637, %v663
  %v666 = vmul.f32 %v642, %v664
  %v667 = vld [vmem:[%s9] sm:$0xff]
  %v668 = vld [vmem:[%s9 + $0x8] sm:$0xff]
  %v669 = vld [vmem:[%s9 + $0x10] sm:$0xff]
  %v670 = vld [vmem:[%s9 + $0x18] sm:$0xff]
  %v671 = vld [vmem:[%s9 + $0x20] sm:$0xff]
  %v672 = vld [vmem:[%s9 + $0x28] sm:$0xff]
  %v673 = vld [vmem:[%s10] sm:$0xff]
  %v674 = vld [vmem:[%s10 + $0x8] sm:$0xff]
  %v675 = vld [vmem:[%s10 + $0x10] sm:$0xff]
  %v676 = vld [vmem:[%s10 + $0x18] sm:$0xff]
  %v677 = vld [vmem:[%s10 + $0x20] sm:$0xff]
  %v678 = vld [vmem:[%s10 + $0x28] sm:$0xff]
  %v679 = vld [vmem:[%s10 + $0x30] sm:$0xff]
  %v680 = vld [vmem:[%s10 + $0x38] sm:$0xff]
  %v681 = vld [vmem:[%s10 + $0x40] sm:$0xff]
  %v682 = vld [vmem:[%s10 + $0x48] sm:$0xff]
  %v683 = vld [vmem:[%s10 + $0x50] sm:$0xff]
  %v684 = vld [vmem:[%s10 + $0x58] sm:$0xff]
  %v685 = vld [vmem:[%s10 + $0x60] sm:$0xf]
  %v686 = vld [vmem:[%s11] sm:$0xff]
  %v687 = vld [vmem:[%s11 + $0x8] sm:$0xff]
  %v688 = vld [vmem:[%s12] sm:$0x1]
  %v689 = vld [vmem:[%s13] sm:$0xff]
  %v690 = vld [vmem:[%s13 + $0x8] sm:$0xff]
  %v691 = vld [vmem:[%s13 + $0x10] sm:$0xff]
  %v692 = vld [vmem:[%s13 + $0x18] sm:$0xff]
  %v693 = vld [vmem:[%s13 + $0x20] sm:$0xff]
  %v694 = vld [vmem:[%s13 + $0x28] sm:$0xff]
  %v695 = vld [vmem:[%s14] sm:$0xff]
  %v696 = vld [vmem:[%s14 + $0x8] sm:$0xff]
  %v697 = vld [vmem:[%s14 + $0x10] sm:$0xff]
  %v698 = vld [vmem:[%s14 + $0x18] sm:$0xff]
  %v699 = vld [vmem:[%s14 + $0x20] sm:$0xff]
  %v700 = vld [vmem:[%s14 + $0x28] sm:$0xff]
  %v701 = vld [vmem:[%s14 + $0x30] sm:$0xff]
  %v702 = vld [vmem:[%s14 + $0x38] sm:$0xff]
  %v703 = vld [vmem:[%s14 + $0x40] sm:$0xff]
  %v704 = vld [vmem:[%s14 + $0x48] sm:$0xff]
  %v705 = vld [vmem:[%s14 + $0x50] sm:$0xff]
  %v706 = vld [vmem:[%s14 + $0x58] sm:$0xff]
  %v707 = vld [vmem:[%s14 + $0x60] sm:$0xf]
  %v708 = vld [vmem:[%s15] sm:$0x1]
  %vm709 = vcmask 392192
  %v711 = vsel %vm709, %v665, 0
  %v714 = vsel %vm709, %v666, 0
  %716 = vmatprep.subr.mxu0 0.0
  %717 = vmatpush1.msra.mxu0 0.0
  %718 = vmatprep.subr.mxu0 0.0
  %719 = vmatpush1.msra.mxu0 0.0
  %720 = vmatprep.subr.mxu0 0.0
  %721 = vmatpush1.msra.mxu0 0.0
  %722 = vmatprep.subr.mxu0 0.0
  %723 = vmatpush1.msra.mxu0 0.0
  %724 = vmatprep.subr.mxu0 0.0
  %725 = vmatpush1.msra.mxu0 0.0
  %726 = vmatprep.subr.mxu0 0.0
  %727 = vmatpush1.msra.mxu0 0.0
  %728 = vmatprep.subr.mxu0 0.0
  %729 = vmatpush1.msra.mxu0 0.0
  %730 = vmatprep.subr.mxu0 0.0
  %731 = vmatpush1.msra.mxu0 0.0
  %732 = vmatprep.subr.mxu0 0.0
  %733 = vmatpush1.msra.mxu0 0.0
  %734 = vmatprep.subr.mxu0 0.0
  %735 = vmatpush1.msra.mxu0 0.0
  %736 = vmatprep.subr.mxu0 0.0
  %737 = vmatpush1.msra.mxu0 %v672
  %738 = vmatprep.subr.mxu0 0.0
  %739 = vmatpush1.msra.mxu0 %v671
  %740 = vmatprep.subr.mxu0 0.0
  %741 = vmatpush1.msra.mxu0 %v670
  %742 = vmatprep.subr.mxu0 0.0
  %743 = vmatpush1.msra.mxu0 %v669
  %744 = vmatprep.subr.mxu0 0.0
  %745 = vmatpush1.msra.mxu0 %v668
  %746 = vmatprep.subr.mxu0 0.0
  %747 = vmatpush1.msra.mxu0 %v667
  %748 = vmatprep.subr.mxu0 0.0
  %749 = vmatpush2.msra.mxu0 0.0
  %750 = vmatprep.subr.mxu0 0.0
  %751 = vmatpush2.msra.mxu0 0.0
  %752 = vmatprep.subr.mxu0 0.0
  %753 = vmatpush2.msra.mxu0 0.0
  %754 = vmatprep.subr.mxu0 0.0
  %755 = vmatpush2.msra.mxu0 0.0
  %756 = vmatprep.subr.mxu0 0.0
  %757 = vmatpush2.msra.mxu0 0.0
  %758 = vmatprep.subr.mxu0 0.0
  %759 = vmatpush2.msra.mxu0 0.0
  %760 = vmatprep.subr.mxu0 0.0
  %761 = vmatpush2.msra.mxu0 0.0
  %762 = vmatprep.subr.mxu0 0.0
  %763 = vmatpush2.msra.mxu0 0.0
  %764 = vmatprep.subr.mxu0 0.0
  %765 = vmatpush2.msra.mxu0 0.0
  %766 = vmatprep.subr.mxu0 0.0
  %767 = vmatpush2.msra.mxu0 0.0
  %768 = vmatprep.subr.mxu0 0.0
  %769 = vmatpush2.msra.mxu0 0.0
  %770 = vmatprep.subr.mxu0 0.0
  %771 = vmatpush2.msra.mxu0 0.0
  %772 = vmatprep.subr.mxu0 0.0
  %773 = vmatpush2.msra.mxu0 0.0
  %774 = vmatprep.subr.mxu0 0.0
  %775 = vmatpush2.msra.mxu0 0.0
  %776 = vmatprep.subr.mxu0 0.0
  %777 = vmatpush2.msra.mxu0 0.0
  %778 = vmatprep.subr.mxu0 0.0
  %779 = vmatpush2.msra.mxu0 0.0
  %780 = vmatprep.mubr.f32.mxu0 0.0
  %781 = vmatmul.mubr.f32.gmra.mxu0 %v711
  %v782 = vpop.f32.mrf.mxu0
  %v783 = vadd.f32 0.0, %v782
  %v784 = vpop.f32.mrf.mxu0
  %785 = vmatprep.mubr.f32.mxu0 0.0
  %786 = vmatmul.mubr.f32.gmra.mxu0 %v714
  %v787 = vpop.f32.mrf.mxu0
  %v788 = vadd.f32 0.0, %v787
  %v789 = vpop.f32.mrf.mxu0
  %790 = vdwg.mxu0
  %v791 = vmul.f32 %v783, %v783
  %v792 = vmul.f32 %v788, %v788
  %795 = vrot.lane.b32.xlu0 %v791, 112
  %v796 = vpop.permute.xlu0 %795
  %797 = vrot.lane.b32.xlu0 %v792, 112
  %v798 = vpop.permute.xlu0 %797
  %v801 = vadd.f32 %v791, %v796
  %v802 = vadd.f32 %v792, %v798
  %803 = vrot.lane.b32.xlu0 %v791, 96
  %v804 = vpop.permute.xlu0 %803
  %805 = vrot.lane.b32.xlu0 %v792, 96
  %v806 = vpop.permute.xlu0 %805
  %v809 = vadd.f32 %v801, %v804
  %v810 = vadd.f32 %v802, %v806
  %v811 = vmax.f32 %v809, 1e-08
  %v812 = vmax.f32 %v810, 1e-08
  %v813 = vrsqrt.pop %v811
  %v814 = vmul.f32 %v811, %v813
  %vm815 = vcmp.eq.f32.partialorder %v811, inf
  %v816 = vsel %vm815, %v811, %v814
  %vm817 = vcmp.eq.f32.partialorder %v811, 0.0
  %v818 = vand.u32 %v811, 2147483648
  %v819 = vsel %vm817, %v818, %v816
  %v820 = vrsqrt.pop %v812
  %v821 = vmul.f32 %v812, %v820
  %vm822 = vcmp.eq.f32.partialorder %v812, inf
  %v823 = vsel %vm822, %v812, %v821
  %vm824 = vcmp.eq.f32.partialorder %v812, 0.0
  %v825 = vand.u32 %v812, 2147483648
  %v826 = vsel %vm824, %v825, %v823
  %v828 = vsel %vm659, %v819, 0
  %v831 = vsel %vm659, %v826, 0
  %833 = vmatprep.subr.mxu0 0.0
  %834 = vmatpush1.msra.mxu0 0.0
  %835 = vmatprep.subr.mxu0 0.0
  %836 = vmatpush1.msra.mxu0 0.0
  %837 = vmatprep.subr.mxu0 0.0
  %838 = vmatpush1.msra.mxu0 0.0
  %839 = vmatprep.subr.mxu0 0.0
  %840 = vmatpush1.msra.mxu0 0.0
  %841 = vmatprep.subr.mxu0 0.0
  %842 = vmatpush1.msra.mxu0 0.0
  %843 = vmatprep.subr.mxu0 0.0
  %844 = vmatpush1.msra.mxu0 0.0
  %845 = vmatprep.subr.mxu0 0.0
  %846 = vmatpush1.msra.mxu0 0.0
  %847 = vmatprep.subr.mxu0 0.0
  %848 = vmatpush1.msra.mxu0 0.0
  %849 = vmatprep.subr.mxu0 0.0
  %850 = vmatpush1.msra.mxu0 0.0
  %851 = vmatprep.subr.mxu0 0.0
  %852 = vmatpush1.msra.mxu0 0.0
  %853 = vmatprep.subr.mxu0 0.0
  %854 = vmatpush1.msra.mxu0 0.0
  %855 = vmatprep.subr.mxu0 0.0
  %856 = vmatpush1.msra.mxu0 0.0
  %857 = vmatprep.subr.mxu0 0.0
  %858 = vmatpush1.msra.mxu0 0.0
  %859 = vmatprep.subr.mxu0 0.0
  %860 = vmatpush1.msra.mxu0 0.0
  %861 = vmatprep.subr.mxu0 0.0
  %862 = vmatpush1.msra.mxu0 %v687
  %863 = vmatprep.subr.mxu0 0.0
  %864 = vmatpush1.msra.mxu0 %v686
  %865 = vmatprep.subr.mxu0 0.0
  %866 = vmatpush2.msra.mxu0 0.0
  %867 = vmatprep.subr.mxu0 0.0
  %868 = vmatpush2.msra.mxu0 0.0
  %869 = vmatprep.subr.mxu0 0.0
  %870 = vmatpush2.msra.mxu0 0.0
  %871 = vmatprep.subr.mxu0 0.0
  %872 = vmatpush2.msra.mxu0 0.0
  %873 = vmatprep.subr.mxu0 0.0
  %874 = vmatpush2.msra.mxu0 0.0
  %875 = vmatprep.subr.mxu0 0.0
  %876 = vmatpush2.msra.mxu0 0.0
  %877 = vmatprep.subr.mxu0 0.0
  %878 = vmatpush2.msra.mxu0 0.0
  %879 = vmatprep.subr.mxu0 0.0
  %880 = vmatpush2.msra.mxu0 0.0
  %881 = vmatprep.subr.mxu0 0.0
  %882 = vmatpush2.msra.mxu0 0.0
  %883 = vmatprep.subr.mxu0 0.0
  %884 = vmatpush2.msra.mxu0 0.0
  %885 = vmatprep.subr.mxu0 0.0
  %886 = vmatpush2.msra.mxu0 0.0
  %887 = vmatprep.subr.mxu0 0.0
  %888 = vmatpush2.msra.mxu0 0.0
  %889 = vmatprep.subr.mxu0 0.0
  %890 = vmatpush2.msra.mxu0 0.0
  %891 = vmatprep.subr.mxu0 0.0
  %892 = vmatpush2.msra.mxu0 0.0
  %893 = vmatprep.subr.mxu0 0.0
  %894 = vmatpush2.msra.mxu0 0.0
  %895 = vmatprep.subr.mxu0 0.0
  %896 = vmatpush2.msra.mxu0 0.0
  %897 = vmatprep.mubr.f32.mxu0 0.0
  %898 = vmatmul.mubr.f32.gmra.mxu0 %v828
  %v899 = vpop.f32.mrf.mxu0
  %v900 = vadd.f32 0.0, %v899
  %v901 = vpop.f32.mrf.mxu0
  %902 = vmatprep.mubr.f32.mxu0 0.0
  %903 = vmatmul.mubr.f32.gmra.mxu0 %v831
  %v904 = vpop.f32.mrf.mxu0
  %v905 = vadd.f32 0.0, %v904
  %v906 = vpop.f32.mrf.mxu0
  %907 = vdwg.mxu0
  %v909 = vsel %vm463, %v455, 0
  %v912 = vsel %vm463, %v456, 0
  %v915 = vsel %vm470, %v685, 0
  %917 = vmatprep.subr.mxu0 0.0
  %918 = vmatpush1.msra.mxu0 0.0
  %919 = vmatprep.subr.mxu0 0.0
  %920 = vmatpush1.msra.mxu0 0.0
  %921 = vmatprep.subr.mxu0 0.0
  %922 = vmatpush1.msra.mxu0 0.0
  %923 = vmatprep.subr.mxu0 0.0
  %924 = vmatpush1.msra.mxu0 %v915
  %925 = vmatprep.subr.mxu0 0.0
  %926 = vmatpush1.msra.mxu0 %v684
  %927 = vmatprep.subr.mxu0 0.0
  %928 = vmatpush1.msra.mxu0 %v683
  %929 = vmatprep.subr.mxu0 0.0
  %930 = vmatpush1.msra.mxu0 %v682
  %931 = vmatprep.subr.mxu0 0.0
  %932 = vmatpush1.msra.mxu0 %v681
  %933 = vmatprep.subr.mxu0 0.0
  %934 = vmatpush1.msra.mxu0 %v680
  %935 = vmatprep.subr.mxu0 0.0
  %936 = vmatpush1.msra.mxu0 %v679
  %937 = vmatprep.subr.mxu0 0.0
  %938 = vmatpush1.msra.mxu0 %v678
  %939 = vmatprep.subr.mxu0 0.0
  %940 = vmatpush1.msra.mxu0 %v677
  %941 = vmatprep.subr.mxu0 0.0
  %942 = vmatpush1.msra.mxu0 %v676
  %943 = vmatprep.subr.mxu0 0.0
  %944 = vmatpush1.msra.mxu0 %v675
  %945 = vmatprep.subr.mxu0 0.0
  %946 = vmatpush1.msra.mxu0 %v674
  %947 = vmatprep.subr.mxu0 0.0
  %948 = vmatpush1.msra.mxu0 %v673
  %949 = vmatprep.subr.mxu0 0.0
  %950 = vmatpush2.msra.mxu0 0.0
  %951 = vmatprep.subr.mxu0 0.0
  %952 = vmatpush2.msra.mxu0 0.0
  %953 = vmatprep.subr.mxu0 0.0
  %954 = vmatpush2.msra.mxu0 0.0
  %955 = vmatprep.subr.mxu0 0.0
  %956 = vmatpush2.msra.mxu0 0.0
  %957 = vmatprep.subr.mxu0 0.0
  %958 = vmatpush2.msra.mxu0 0.0
  %959 = vmatprep.subr.mxu0 0.0
  %960 = vmatpush2.msra.mxu0 0.0
  %961 = vmatprep.subr.mxu0 0.0
  %962 = vmatpush2.msra.mxu0 0.0
  %963 = vmatprep.subr.mxu0 0.0
  %964 = vmatpush2.msra.mxu0 0.0
  %965 = vmatprep.subr.mxu0 0.0
  %966 = vmatpush2.msra.mxu0 0.0
  %967 = vmatprep.subr.mxu0 0.0
  %968 = vmatpush2.msra.mxu0 0.0
  %969 = vmatprep.subr.mxu0 0.0
  %970 = vmatpush2.msra.mxu0 0.0
  %971 = vmatprep.subr.mxu0 0.0
  %972 = vmatpush2.msra.mxu0 0.0
  %973 = vmatprep.subr.mxu0 0.0
  %974 = vmatpush2.msra.mxu0 0.0
  %975 = vmatprep.subr.mxu0 0.0
  %976 = vmatpush2.msra.mxu0 0.0
  %977 = vmatprep.subr.mxu0 0.0
  %978 = vmatpush2.msra.mxu0 0.0
  %979 = vmatprep.subr.mxu0 0.0
  %980 = vmatpush2.msra.mxu0 0.0
  %981 = vmatprep.mubr.f32.mxu0 0.0
  %982 = vmatmul.mubr.f32.gmra.mxu0 %v909
  %v983 = vpop.f32.mrf.mxu0
  %v984 = vadd.f32 %v900, %v983
  %v985 = vpop.f32.mrf.mxu0
  %986 = vmatprep.mubr.f32.mxu0 0.0
  %987 = vmatmul.mubr.f32.gmra.mxu0 %v912
  %v988 = vpop.f32.mrf.mxu0
  %v989 = vadd.f32 %v905, %v988
  %v990 = vpop.f32.mrf.mxu0
  %991 = vdwg.mxu0
  %v993 = vlaneseq
  %v994 = vshrl.u32 %v993, 7
  %v995 = vsub.s32 0, %v994
  %v996 = vrot.slane %v688, %v995
  %v998 = vadd.f32 %v984, %v996
  %v999 = vadd.f32 %v989, %v996
  %v1000 = vmax.f32 %v998, 0.0
  %v1001 = vmax.f32 %v999, 0.0
  %v1003 = vlaneseq
  %v1004 = vshrl.u32 %v1003, 7
  %v1005 = vsub.s32 0, %v1004
  %v1006 = vrot.slane %v708, %v1005
  %v1009 = vsel %vm463, %v998, 0
  %v1012 = vsel %vm463, %v999, 0
  %v1015 = vsel %vm470, %v707, 0
  %1017 = vmatprep.subr.mxu0 0.0
  %1018 = vmatpush1.msra.mxu0 0.0
  %1019 = vmatprep.subr.mxu0 0.0
  %1020 = vmatpush1.msra.mxu0 0.0
  %1021 = vmatprep.subr.mxu0 0.0
  %1022 = vmatpush1.msra.mxu0 0.0
  %1023 = vmatprep.subr.mxu0 0.0
  %1024 = vmatpush1.msra.mxu0 %v1015
  %1025 = vmatprep.subr.mxu0 0.0
  %1026 = vmatpush1.msra.mxu0 %v706
  %1027 = vmatprep.subr.mxu0 0.0
  %1028 = vmatpush1.msra.mxu0 %v705
  %1029 = vmatprep.subr.mxu0 0.0
  %1030 = vmatpush1.msra.mxu0 %v704
  %1031 = vmatprep.subr.mxu0 0.0
  %1032 = vmatpush1.msra.mxu0 %v703
  %1033 = vmatprep.subr.mxu0 0.0
  %1034 = vmatpush1.msra.mxu0 %v702
  %1035 = vmatprep.subr.mxu0 0.0
  %1036 = vmatpush1.msra.mxu0 %v701
  %1037 = vmatprep.subr.mxu0 0.0
  %1038 = vmatpush1.msra.mxu0 %v700
  %1039 = vmatprep.subr.mxu0 0.0
  %1040 = vmatpush1.msra.mxu0 %v699
  %1041 = vmatprep.subr.mxu0 0.0
  %1042 = vmatpush1.msra.mxu0 %v698
  %1043 = vmatprep.subr.mxu0 0.0
  %1044 = vmatpush1.msra.mxu0 %v697
  %1045 = vmatprep.subr.mxu0 0.0
  %1046 = vmatpush1.msra.mxu0 %v696
  %1047 = vmatprep.subr.mxu0 0.0
  %1048 = vmatpush1.msra.mxu0 %v695
  %1049 = vmatprep.subr.mxu0 0.0
  %1050 = vmatpush2.msra.mxu0 0.0
  %1051 = vmatprep.subr.mxu0 0.0
  %1052 = vmatpush2.msra.mxu0 0.0
  %1053 = vmatprep.subr.mxu0 0.0
  %1054 = vmatpush2.msra.mxu0 0.0
  %1055 = vmatprep.subr.mxu0 0.0
  %1056 = vmatpush2.msra.mxu0 0.0
  %1057 = vmatprep.subr.mxu0 0.0
  %1058 = vmatpush2.msra.mxu0 0.0
  %1059 = vmatprep.subr.mxu0 0.0
  %1060 = vmatpush2.msra.mxu0 0.0
  %1061 = vmatprep.subr.mxu0 0.0
  %1062 = vmatpush2.msra.mxu0 0.0
  %1063 = vmatprep.subr.mxu0 0.0
  %1064 = vmatpush2.msra.mxu0 0.0
  %1065 = vmatprep.subr.mxu0 0.0
  %1066 = vmatpush2.msra.mxu0 0.0
  %1067 = vmatprep.subr.mxu0 0.0
  %1068 = vmatpush2.msra.mxu0 0.0
  %1069 = vmatprep.subr.mxu0 0.0
  %1070 = vmatpush2.msra.mxu0 0.0
  %1071 = vmatprep.subr.mxu0 0.0
  %1072 = vmatpush2.msra.mxu0 0.0
  %1073 = vmatprep.subr.mxu0 0.0
  %1074 = vmatpush2.msra.mxu0 0.0
  %1075 = vmatprep.subr.mxu0 0.0
  %1076 = vmatpush2.msra.mxu0 0.0
  %1077 = vmatprep.subr.mxu0 0.0
  %1078 = vmatpush2.msra.mxu0 0.0
  %1079 = vmatprep.subr.mxu0 0.0
  %1080 = vmatpush2.msra.mxu0 0.0
  %1081 = vmatprep.mubr.f32.mxu0 0.0
  %1082 = vmatmul.mubr.f32.gmra.mxu0 %v1009
  %v1083 = vpop.f32.mrf.mxu0
  %v1084 = vadd.f32 %v1006, %v1083
  %v1085 = vpop.f32.mrf.mxu0
  %1086 = vmatprep.mubr.f32.mxu0 0.0
  %1087 = vmatmul.mubr.f32.gmra.mxu0 %v1012
  %v1088 = vpop.f32.mrf.mxu0
  %v1089 = vadd.f32 %v1006, %v1088
  %v1090 = vpop.f32.mrf.mxu0
  %1091 = vdwg.mxu0
  %v1092 = vxor.u32 %v1084, 2147483648
  %v1093 = vxor.u32 %v1089, 2147483648
  %v1094 = vmul.f32 %v1092, 1.442695
  %v1095 = vpow.pop %v1094
  %v1096 = vmul.f32 %v1093, 1.442695
  %v1097 = vpow.pop %v1096
  %v1098 = vadd.f32 %v1095, 1.0
  %v1099 = vadd.f32 %v1097, 1.0
  %v1100 = vrcp.pop %v1098
  %v1101 = vmul.f32 1.0, %v1100
  %v1102 = vrcp.pop %v1099
  %v1103 = vmul.f32 1.0, %v1102
  %v1105 = vsel %vm709, %v783, 0
  %v1108 = vsel %vm709, %v788, 0
  %1110 = vmatprep.subr.mxu0 0.0
  %1111 = vmatpush1.msra.mxu0 0.0
  %1112 = vmatprep.subr.mxu0 0.0
  %1113 = vmatpush1.msra.mxu0 0.0
  %1114 = vmatprep.subr.mxu0 0.0
  %1115 = vmatpush1.msra.mxu0 0.0
  %1116 = vmatprep.subr.mxu0 0.0
  %1117 = vmatpush1.msra.mxu0 0.0
  %1118 = vmatprep.subr.mxu0 0.0
  %1119 = vmatpush1.msra.mxu0 0.0
  %1120 = vmatprep.subr.mxu0 0.0
  %1121 = vmatpush1.msra.mxu0 0.0
  %1122 = vmatprep.subr.mxu0 0.0
  %1123 = vmatpush1.msra.mxu0 0.0
  %1124 = vmatprep.subr.mxu0 0.0
  %1125 = vmatpush1.msra.mxu0 0.0
  %1126 = vmatprep.subr.mxu0 0.0
  %1127 = vmatpush1.msra.mxu0 0.0
  %1128 = vmatprep.subr.mxu0 0.0
  %1129 = vmatpush1.msra.mxu0 0.0
  %1130 = vmatprep.subr.mxu0 0.0
  %1131 = vmatpush1.msra.mxu0 %v694
  %1132 = vmatprep.subr.mxu0 0.0
  %1133 = vmatpush1.msra.mxu0 %v693
  %1134 = vmatprep.subr.mxu0 0.0
  %1135 = vmatpush1.msra.mxu0 %v692
  %1136 = vmatprep.subr.mxu0 0.0
  %1137 = vmatpush1.msra.mxu0 %v691
  %1138 = vmatprep.subr.mxu0 0.0
  %1139 = vmatpush1.msra.mxu0 %v690
  %1140 = vmatprep.subr.mxu0 0.0
  %1141 = vmatpush1.msra.mxu0 %v689
  %1142 = vmatprep.subr.mxu0 0.0
  %1143 = vmatpush2.msra.mxu0 0.0
  %1144 = vmatprep.subr.mxu0 0.0
  %1145 = vmatpush2.msra.mxu0 0.0
  %1146 = vmatprep.subr.mxu0 0.0
  %1147 = vmatpush2.msra.mxu0 0.0
  %1148 = vmatprep.subr.mxu0 0.0
  %1149 = vmatpush2.msra.mxu0 0.0
  %1150 = vmatprep.subr.mxu0 0.0
  %1151 = vmatpush2.msra.mxu0 0.0
  %1152 = vmatprep.subr.mxu0 0.0
  %1153 = vmatpush2.msra.mxu0 0.0
  %1154 = vmatprep.subr.mxu0 0.0
  %1155 = vmatpush2.msra.mxu0 0.0
  %1156 = vmatprep.subr.mxu0 0.0
  %1157 = vmatpush2.msra.mxu0 0.0
  %1158 = vmatprep.subr.mxu0 0.0
  %1159 = vmatpush2.msra.mxu0 0.0
  %1160 = vmatprep.subr.mxu0 0.0
  %1161 = vmatpush2.msra.mxu0 0.0
  %1162 = vmatprep.subr.mxu0 0.0
  %1163 = vmatpush2.msra.mxu0 0.0
  %1164 = vmatprep.subr.mxu0 0.0
  %1165 = vmatpush2.msra.mxu0 0.0
  %1166 = vmatprep.subr.mxu0 0.0
  %1167 = vmatpush2.msra.mxu0 0.0
  %1168 = vmatprep.subr.mxu0 0.0
  %1169 = vmatpush2.msra.mxu0 0.0
  %1170 = vmatprep.subr.mxu0 0.0
  %1171 = vmatpush2.msra.mxu0 0.0
  %1172 = vmatprep.subr.mxu0 0.0
  %1173 = vmatpush2.msra.mxu0 0.0
  %1174 = vmatprep.mubr.f32.mxu0 0.0
  %1175 = vmatmul.mubr.f32.gmra.mxu0 %v1105
  %v1176 = vpop.f32.mrf.mxu0
  %v1177 = vadd.f32 0.0, %v1176
  %v1178 = vpop.f32.mrf.mxu0
  %1179 = vmatprep.mubr.f32.mxu0 0.0
  %1180 = vmatmul.mubr.f32.gmra.mxu0 %v1108
  %v1181 = vpop.f32.mrf.mxu0
  %v1182 = vadd.f32 0.0, %v1181
  %v1183 = vpop.f32.mrf.mxu0
  %1184 = vdwg.mxu0
  %1187 = vrot.lane.b32.xlu0 %v1101, 16
  %v1188 = vpop.permute.xlu0 %1187
  %1189 = vrot.lane.b32.xlu0 %v1103, 16
  %v1190 = vpop.permute.xlu0 %1189
  %1193 = vrot.lane.b32.xlu0 %v1101, 32
  %v1194 = vpop.permute.xlu0 %1193
  %1195 = vrot.lane.b32.xlu0 %v1103, 32
  %v1196 = vpop.permute.xlu0 %1195
  %v1199 = vsel %vm659, %v1101, %v1188
  %v1200 = vsel %vm659, %v1103, %v1190
  %v1201 = vsel %vm662, %v1199, %v1194
  %v1202 = vsel %vm662, %v1200, %v1196
  %v1203 = vmul.f32 %v1177, %v1201
  %v1204 = vmul.f32 %v1182, %v1202
  %v1205 = vld [vmem:[%s16] sm:$0xff]
  %v1206 = vld [vmem:[%s16 + $0x8] sm:$0xff]
  %v1207 = vld [vmem:[%s16 + $0x10] sm:$0xff]
  %v1208 = vld [vmem:[%s16 + $0x18] sm:$0xff]
  %v1209 = vld [vmem:[%s16 + $0x20] sm:$0xff]
  %v1210 = vld [vmem:[%s16 + $0x28] sm:$0xff]
  %v1211 = vld [vmem:[%s17] sm:$0xff]
  %v1212 = vld [vmem:[%s17 + $0x8] sm:$0xff]
  %v1213 = vld [vmem:[%s17 + $0x10] sm:$0xff]
  %v1214 = vld [vmem:[%s17 + $0x18] sm:$0xff]
  %v1215 = vld [vmem:[%s17 + $0x20] sm:$0xff]
  %v1216 = vld [vmem:[%s17 + $0x28] sm:$0xff]
  %v1217 = vld [vmem:[%s17 + $0x30] sm:$0xff]
  %v1218 = vld [vmem:[%s17 + $0x38] sm:$0xff]
  %v1219 = vld [vmem:[%s17 + $0x40] sm:$0xff]
  %v1220 = vld [vmem:[%s17 + $0x48] sm:$0xff]
  %v1221 = vld [vmem:[%s17 + $0x50] sm:$0xff]
  %v1222 = vld [vmem:[%s17 + $0x58] sm:$0xff]
  %v1223 = vld [vmem:[%s17 + $0x60] sm:$0xf]
  %v1224 = vld [vmem:[%s18] sm:$0xff]
  %v1225 = vld [vmem:[%s18 + $0x8] sm:$0xff]
  %v1226 = vld [vmem:[%s19] sm:$0x1]
  %v1227 = vld [vmem:[%s20] sm:$0xff]
  %v1228 = vld [vmem:[%s20 + $0x8] sm:$0xff]
  %v1229 = vld [vmem:[%s20 + $0x10] sm:$0xff]
  %v1230 = vld [vmem:[%s20 + $0x18] sm:$0xff]
  %v1231 = vld [vmem:[%s20 + $0x20] sm:$0xff]
  %v1232 = vld [vmem:[%s20 + $0x28] sm:$0xff]
  %v1233 = vld [vmem:[%s21] sm:$0xff]
  %v1234 = vld [vmem:[%s21 + $0x8] sm:$0xff]
  %v1235 = vld [vmem:[%s21 + $0x10] sm:$0xff]
  %v1236 = vld [vmem:[%s21 + $0x18] sm:$0xff]
  %v1237 = vld [vmem:[%s21 + $0x20] sm:$0xff]
  %v1238 = vld [vmem:[%s21 + $0x28] sm:$0xff]
  %v1239 = vld [vmem:[%s21 + $0x30] sm:$0xff]
  %v1240 = vld [vmem:[%s21 + $0x38] sm:$0xff]
  %v1241 = vld [vmem:[%s21 + $0x40] sm:$0xff]
  %v1242 = vld [vmem:[%s21 + $0x48] sm:$0xff]
  %v1243 = vld [vmem:[%s21 + $0x50] sm:$0xff]
  %v1244 = vld [vmem:[%s21 + $0x58] sm:$0xff]
  %v1245 = vld [vmem:[%s21 + $0x60] sm:$0xf]
  %v1246 = vld [vmem:[%s22] sm:$0x1]
  %v1248 = vsel %vm709, %v1203, 0
  %v1251 = vsel %vm709, %v1204, 0
  %1253 = vmatprep.subr.mxu0 0.0
  %1254 = vmatpush1.msra.mxu0 0.0
  %1255 = vmatprep.subr.mxu0 0.0
  %1256 = vmatpush1.msra.mxu0 0.0
  %1257 = vmatprep.subr.mxu0 0.0
  %1258 = vmatpush1.msra.mxu0 0.0
  %1259 = vmatprep.subr.mxu0 0.0
  %1260 = vmatpush1.msra.mxu0 0.0
  %1261 = vmatprep.subr.mxu0 0.0
  %1262 = vmatpush1.msra.mxu0 0.0
  %1263 = vmatprep.subr.mxu0 0.0
  %1264 = vmatpush1.msra.mxu0 0.0
  %1265 = vmatprep.subr.mxu0 0.0
  %1266 = vmatpush1.msra.mxu0 0.0
  %1267 = vmatprep.subr.mxu0 0.0
  %1268 = vmatpush1.msra.mxu0 0.0
  %1269 = vmatprep.subr.mxu0 0.0
  %1270 = vmatpush1.msra.mxu0 0.0
  %1271 = vmatprep.subr.mxu0 0.0
  %1272 = vmatpush1.msra.mxu0 0.0
  %1273 = vmatprep.subr.mxu0 0.0
  %1274 = vmatpush1.msra.mxu0 %v1210
  %1275 = vmatprep.subr.mxu0 0.0
  %1276 = vmatpush1.msra.mxu0 %v1209
  %1277 = vmatprep.subr.mxu0 0.0
  %1278 = vmatpush1.msra.mxu0 %v1208
  %1279 = vmatprep.subr.mxu0 0.0
  %1280 = vmatpush1.msra.mxu0 %v1207
  %1281 = vmatprep.subr.mxu0 0.0
  %1282 = vmatpush1.msra.mxu0 %v1206
  %1283 = vmatprep.subr.mxu0 0.0
  %1284 = vmatpush1.msra.mxu0 %v1205
  %1285 = vmatprep.subr.mxu0 0.0
  %1286 = vmatpush2.msra.mxu0 0.0
  %1287 = vmatprep.subr.mxu0 0.0
  %1288 = vmatpush2.msra.mxu0 0.0
  %1289 = vmatprep.subr.mxu0 0.0
  %1290 = vmatpush2.msra.mxu0 0.0
  %1291 = vmatprep.subr.mxu0 0.0
  %1292 = vmatpush2.msra.mxu0 0.0
  %1293 = vmatprep.subr.mxu0 0.0
  %1294 = vmatpush2.msra.mxu0 0.0
  %1295 = vmatprep.subr.mxu0 0.0
  %1296 = vmatpush2.msra.mxu0 0.0
  %1297 = vmatprep.subr.mxu0 0.0
  %1298 = vmatpush2.msra.mxu0 0.0
  %1299 = vmatprep.subr.mxu0 0.0
  %1300 = vmatpush2.msra.mxu0 0.0
  %1301 = vmatprep.subr.mxu0 0.0
  %1302 = vmatpush2.msra.mxu0 0.0
  %1303 = vmatprep.subr.mxu0 0.0
  %1304 = vmatpush2.msra.mxu0 0.0
  %1305 = vmatprep.subr.mxu0 0.0
  %1306 = vmatpush2.msra.mxu0 0.0
  %1307 = vmatprep.subr.mxu0 0.0
  %1308 = vmatpush2.msra.mxu0 0.0
  %1309 = vmatprep.subr.mxu0 0.0
  %1310 = vmatpush2.msra.mxu0 0.0
  %1311 = vmatprep.subr.mxu0 0.0
  %1312 = vmatpush2.msra.mxu0 0.0
  %1313 = vmatprep.subr.mxu0 0.0
  %1314 = vmatpush2.msra.mxu0 0.0
  %1315 = vmatprep.subr.mxu0 0.0
  %1316 = vmatpush2.msra.mxu0 0.0
  %1317 = vmatprep.mubr.f32.mxu0 0.0
  %1318 = vmatmul.mubr.f32.gmra.mxu0 %v1248
  %v1319 = vpop.f32.mrf.mxu0
  %v1320 = vadd.f32 0.0, %v1319
  %v1321 = vpop.f32.mrf.mxu0
  %1322 = vmatprep.mubr.f32.mxu0 0.0
  %1323 = vmatmul.mubr.f32.gmra.mxu0 %v1251
  %v1324 = vpop.f32.mrf.mxu0
  %v1325 = vadd.f32 0.0, %v1324
  %v1326 = vpop.f32.mrf.mxu0
  %1327 = vdwg.mxu0
  %v1328 = vmul.f32 %v1320, %v1320
  %v1329 = vmul.f32 %v1325, %v1325
  %1332 = vrot.lane.b32.xlu0 %v1328, 112
  %v1333 = vpop.permute.xlu0 %1332
  %1334 = vrot.lane.b32.xlu0 %v1329, 112
  %v1335 = vpop.permute.xlu0 %1334
  %v1338 = vadd.f32 %v1328, %v1333
  %v1339 = vadd.f32 %v1329, %v1335
  %1340 = vrot.lane.b32.xlu0 %v1328, 96
  %v1341 = vpop.permute.xlu0 %1340
  %1342 = vrot.lane.b32.xlu0 %v1329, 96
  %v1343 = vpop.permute.xlu0 %1342
  %v1346 = vadd.f32 %v1338, %v1341
  %v1347 = vadd.f32 %v1339, %v1343
  %v1348 = vmax.f32 %v1346, 1e-08
  %v1349 = vmax.f32 %v1347, 1e-08
  %v1350 = vrsqrt.pop %v1348
  %v1351 = vmul.f32 %v1348, %v1350
  %vm1352 = vcmp.eq.f32.partialorder %v1348, inf
  %v1353 = vsel %vm1352, %v1348, %v1351
  %vm1354 = vcmp.eq.f32.partialorder %v1348, 0.0
  %v1355 = vand.u32 %v1348, 2147483648
  %v1356 = vsel %vm1354, %v1355, %v1353
  %v1357 = vrsqrt.pop %v1349
  %v1358 = vmul.f32 %v1349, %v1357
  %vm1359 = vcmp.eq.f32.partialorder %v1349, inf
  %v1360 = vsel %vm1359, %v1349, %v1358
  %vm1361 = vcmp.eq.f32.partialorder %v1349, 0.0
  %v1362 = vand.u32 %v1349, 2147483648
  %v1363 = vsel %vm1361, %v1362, %v1360
  %v1365 = vsel %vm659, %v1356, 0
  %v1368 = vsel %vm659, %v1363, 0
  %1370 = vmatprep.subr.mxu0 0.0
  %1371 = vmatpush1.msra.mxu0 0.0
  %1372 = vmatprep.subr.mxu0 0.0
  %1373 = vmatpush1.msra.mxu0 0.0
  %1374 = vmatprep.subr.mxu0 0.0
  %1375 = vmatpush1.msra.mxu0 0.0
  %1376 = vmatprep.subr.mxu0 0.0
  %1377 = vmatpush1.msra.mxu0 0.0
  %1378 = vmatprep.subr.mxu0 0.0
  %1379 = vmatpush1.msra.mxu0 0.0
  %1380 = vmatprep.subr.mxu0 0.0
  %1381 = vmatpush1.msra.mxu0 0.0
  %1382 = vmatprep.subr.mxu0 0.0
  %1383 = vmatpush1.msra.mxu0 0.0
  %1384 = vmatprep.subr.mxu0 0.0
  %1385 = vmatpush1.msra.mxu0 0.0
  %1386 = vmatprep.subr.mxu0 0.0
  %1387 = vmatpush1.msra.mxu0 0.0
  %1388 = vmatprep.subr.mxu0 0.0
  %1389 = vmatpush1.msra.mxu0 0.0
  %1390 = vmatprep.subr.mxu0 0.0
  %1391 = vmatpush1.msra.mxu0 0.0
  %1392 = vmatprep.subr.mxu0 0.0
  %1393 = vmatpush1.msra.mxu0 0.0
  %1394 = vmatprep.subr.mxu0 0.0
  %1395 = vmatpush1.msra.mxu0 0.0
  %1396 = vmatprep.subr.mxu0 0.0
  %1397 = vmatpush1.msra.mxu0 0.0
  %1398 = vmatprep.subr.mxu0 0.0
  %1399 = vmatpush1.msra.mxu0 %v1225
  %1400 = vmatprep.subr.mxu0 0.0
  %1401 = vmatpush1.msra.mxu0 %v1224
  %1402 = vmatprep.subr.mxu0 0.0
  %1403 = vmatpush2.msra.mxu0 0.0
  %1404 = vmatprep.subr.mxu0 0.0
  %1405 = vmatpush2.msra.mxu0 0.0
  %1406 = vmatprep.subr.mxu0 0.0
  %1407 = vmatpush2.msra.mxu0 0.0
  %1408 = vmatprep.subr.mxu0 0.0
  %1409 = vmatpush2.msra.mxu0 0.0
  %1410 = vmatprep.subr.mxu0 0.0
  %1411 = vmatpush2.msra.mxu0 0.0
  %1412 = vmatprep.subr.mxu0 0.0
  %1413 = vmatpush2.msra.mxu0 0.0
  %1414 = vmatprep.subr.mxu0 0.0
  %1415 = vmatpush2.msra.mxu0 0.0
  %1416 = vmatprep.subr.mxu0 0.0
  %1417 = vmatpush2.msra.mxu0 0.0
  %1418 = vmatprep.subr.mxu0 0.0
  %1419 = vmatpush2.msra.mxu0 0.0
  %1420 = vmatprep.subr.mxu0 0.0
  %1421 = vmatpush2.msra.mxu0 0.0
  %1422 = vmatprep.subr.mxu0 0.0
  %1423 = vmatpush2.msra.mxu0 0.0
  %1424 = vmatprep.subr.mxu0 0.0
  %1425 = vmatpush2.msra.mxu0 0.0
  %1426 = vmatprep.subr.mxu0 0.0
  %1427 = vmatpush2.msra.mxu0 0.0
  %1428 = vmatprep.subr.mxu0 0.0
  %1429 = vmatpush2.msra.mxu0 0.0
  %1430 = vmatprep.subr.mxu0 0.0
  %1431 = vmatpush2.msra.mxu0 0.0
  %1432 = vmatprep.subr.mxu0 0.0
  %1433 = vmatpush2.msra.mxu0 0.0
  %1434 = vmatprep.mubr.f32.mxu0 0.0
  %1435 = vmatmul.mubr.f32.gmra.mxu0 %v1365
  %v1436 = vpop.f32.mrf.mxu0
  %v1437 = vadd.f32 0.0, %v1436
  %v1438 = vpop.f32.mrf.mxu0
  %1439 = vmatprep.mubr.f32.mxu0 0.0
  %1440 = vmatmul.mubr.f32.gmra.mxu0 %v1368
  %v1441 = vpop.f32.mrf.mxu0
  %v1442 = vadd.f32 0.0, %v1441
  %v1443 = vpop.f32.mrf.mxu0
  %1444 = vdwg.mxu0
  %v1446 = vsel %vm463, %v1000, 0
  %v1449 = vsel %vm463, %v1001, 0
  %v1452 = vsel %vm470, %v1223, 0
  %1454 = vmatprep.subr.mxu0 0.0
  %1455 = vmatpush1.msra.mxu0 0.0
  %1456 = vmatprep.subr.mxu0 0.0
  %1457 = vmatpush1.msra.mxu0 0.0
  %1458 = vmatprep.subr.mxu0 0.0
  %1459 = vmatpush1.msra.mxu0 0.0
  %1460 = vmatprep.subr.mxu0 0.0
  %1461 = vmatpush1.msra.mxu0 %v1452
  %1462 = vmatprep.subr.mxu0 0.0
  %1463 = vmatpush1.msra.mxu0 %v1222
  %1464 = vmatprep.subr.mxu0 0.0
  %1465 = vmatpush1.msra.mxu0 %v1221
  %1466 = vmatprep.subr.mxu0 0.0
  %1467 = vmatpush1.msra.mxu0 %v1220
  %1468 = vmatprep.subr.mxu0 0.0
  %1469 = vmatpush1.msra.mxu0 %v1219
  %1470 = vmatprep.subr.mxu0 0.0
  %1471 = vmatpush1.msra.mxu0 %v1218
  %1472 = vmatprep.subr.mxu0 0.0
  %1473 = vmatpush1.msra.mxu0 %v1217
  %1474 = vmatprep.subr.mxu0 0.0
  %1475 = vmatpush1.msra.mxu0 %v1216
  %1476 = vmatprep.subr.mxu0 0.0
  %1477 = vmatpush1.msra.mxu0 %v1215
  %1478 = vmatprep.subr.mxu0 0.0
  %1479 = vmatpush1.msra.mxu0 %v1214
  %1480 = vmatprep.subr.mxu0 0.0
  %1481 = vmatpush1.msra.mxu0 %v1213
  %1482 = vmatprep.subr.mxu0 0.0
  %1483 = vmatpush1.msra.mxu0 %v1212
  %1484 = vmatprep.subr.mxu0 0.0
  %1485 = vmatpush1.msra.mxu0 %v1211
  %1486 = vmatprep.subr.mxu0 0.0
  %1487 = vmatpush2.msra.mxu0 0.0
  %1488 = vmatprep.subr.mxu0 0.0
  %1489 = vmatpush2.msra.mxu0 0.0
  %1490 = vmatprep.subr.mxu0 0.0
  %1491 = vmatpush2.msra.mxu0 0.0
  %1492 = vmatprep.subr.mxu0 0.0
  %1493 = vmatpush2.msra.mxu0 0.0
  %1494 = vmatprep.subr.mxu0 0.0
  %1495 = vmatpush2.msra.mxu0 0.0
  %1496 = vmatprep.subr.mxu0 0.0
  %1497 = vmatpush2.msra.mxu0 0.0
  %1498 = vmatprep.subr.mxu0 0.0
  %1499 = vmatpush2.msra.mxu0 0.0
  %1500 = vmatprep.subr.mxu0 0.0
  %1501 = vmatpush2.msra.mxu0 0.0
  %1502 = vmatprep.subr.mxu0 0.0
  %1503 = vmatpush2.msra.mxu0 0.0
  %1504 = vmatprep.subr.mxu0 0.0
  %1505 = vmatpush2.msra.mxu0 0.0
  %1506 = vmatprep.subr.mxu0 0.0
  %1507 = vmatpush2.msra.mxu0 0.0
  %1508 = vmatprep.subr.mxu0 0.0
  %1509 = vmatpush2.msra.mxu0 0.0
  %1510 = vmatprep.subr.mxu0 0.0
  %1511 = vmatpush2.msra.mxu0 0.0
  %1512 = vmatprep.subr.mxu0 0.0
  %1513 = vmatpush2.msra.mxu0 0.0
  %1514 = vmatprep.subr.mxu0 0.0
  %1515 = vmatpush2.msra.mxu0 0.0
  %1516 = vmatprep.subr.mxu0 0.0
  %1517 = vmatpush2.msra.mxu0 0.0
  %1518 = vmatprep.mubr.f32.mxu0 0.0
  %1519 = vmatmul.mubr.f32.gmra.mxu0 %v1446
  %v1520 = vpop.f32.mrf.mxu0
  %v1521 = vadd.f32 %v1437, %v1520
  %v1522 = vpop.f32.mrf.mxu0
  %1523 = vmatprep.mubr.f32.mxu0 0.0
  %1524 = vmatmul.mubr.f32.gmra.mxu0 %v1449
  %v1525 = vpop.f32.mrf.mxu0
  %v1526 = vadd.f32 %v1442, %v1525
  %v1527 = vpop.f32.mrf.mxu0
  %1528 = vdwg.mxu0
  %v1530 = vlaneseq
  %v1531 = vshrl.u32 %v1530, 7
  %v1532 = vsub.s32 0, %v1531
  %v1533 = vrot.slane %v1226, %v1532
  %v1535 = vadd.f32 %v1521, %v1533
  %v1536 = vadd.f32 %v1526, %v1533
  %v1538 = vlaneseq
  %v1539 = vshrl.u32 %v1538, 7
  %v1540 = vsub.s32 0, %v1539
  %v1541 = vrot.slane %v1246, %v1540
  %v1544 = vsel %vm463, %v1535, 0
  %v1547 = vsel %vm463, %v1536, 0
  %v1550 = vsel %vm470, %v1245, 0
  %1552 = vmatprep.subr.mxu0 0.0
  %1553 = vmatpush1.msra.mxu0 0.0
  %1554 = vmatprep.subr.mxu0 0.0
  %1555 = vmatpush1.msra.mxu0 0.0
  %1556 = vmatprep.subr.mxu0 0.0
  %1557 = vmatpush1.msra.mxu0 0.0
  %1558 = vmatprep.subr.mxu0 0.0
  %1559 = vmatpush1.msra.mxu0 %v1550
  %1560 = vmatprep.subr.mxu0 0.0
  %1561 = vmatpush1.msra.mxu0 %v1244
  %1562 = vmatprep.subr.mxu0 0.0
  %1563 = vmatpush1.msra.mxu0 %v1243
  %1564 = vmatprep.subr.mxu0 0.0
  %1565 = vmatpush1.msra.mxu0 %v1242
  %1566 = vmatprep.subr.mxu0 0.0
  %1567 = vmatpush1.msra.mxu0 %v1241
  %1568 = vmatprep.subr.mxu0 0.0
  %1569 = vmatpush1.msra.mxu0 %v1240
  %1570 = vmatprep.subr.mxu0 0.0
  %1571 = vmatpush1.msra.mxu0 %v1239
  %1572 = vmatprep.subr.mxu0 0.0
  %1573 = vmatpush1.msra.mxu0 %v1238
  %1574 = vmatprep.subr.mxu0 0.0
  %1575 = vmatpush1.msra.mxu0 %v1237
  %1576 = vmatprep.subr.mxu0 0.0
  %1577 = vmatpush1.msra.mxu0 %v1236
  %1578 = vmatprep.subr.mxu0 0.0
  %1579 = vmatpush1.msra.mxu0 %v1235
  %1580 = vmatprep.subr.mxu0 0.0
  %1581 = vmatpush1.msra.mxu0 %v1234
  %1582 = vmatprep.subr.mxu0 0.0
  %1583 = vmatpush1.msra.mxu0 %v1233
  %1584 = vmatprep.subr.mxu0 0.0
  %1585 = vmatpush2.msra.mxu0 0.0
  %1586 = vmatprep.subr.mxu0 0.0
  %1587 = vmatpush2.msra.mxu0 0.0
  %1588 = vmatprep.subr.mxu0 0.0
  %1589 = vmatpush2.msra.mxu0 0.0
  %1590 = vmatprep.subr.mxu0 0.0
  %1591 = vmatpush2.msra.mxu0 0.0
  %1592 = vmatprep.subr.mxu0 0.0
  %1593 = vmatpush2.msra.mxu0 0.0
  %1594 = vmatprep.subr.mxu0 0.0
  %1595 = vmatpush2.msra.mxu0 0.0
  %1596 = vmatprep.subr.mxu0 0.0
  %1597 = vmatpush2.msra.mxu0 0.0
  %1598 = vmatprep.subr.mxu0 0.0
  %1599 = vmatpush2.msra.mxu0 0.0
  %1600 = vmatprep.subr.mxu0 0.0
  %1601 = vmatpush2.msra.mxu0 0.0
  %1602 = vmatprep.subr.mxu0 0.0
  %1603 = vmatpush2.msra.mxu0 0.0
  %1604 = vmatprep.subr.mxu0 0.0
  %1605 = vmatpush2.msra.mxu0 0.0
  %1606 = vmatprep.subr.mxu0 0.0
  %1607 = vmatpush2.msra.mxu0 0.0
  %1608 = vmatprep.subr.mxu0 0.0
  %1609 = vmatpush2.msra.mxu0 0.0
  %1610 = vmatprep.subr.mxu0 0.0
  %1611 = vmatpush2.msra.mxu0 0.0
  %1612 = vmatprep.subr.mxu0 0.0
  %1613 = vmatpush2.msra.mxu0 0.0
  %1614 = vmatprep.subr.mxu0 0.0
  %1615 = vmatpush2.msra.mxu0 0.0
  %1616 = vmatprep.mubr.f32.mxu0 0.0
  %1617 = vmatmul.mubr.f32.gmra.mxu0 %v1544
  %v1618 = vpop.f32.mrf.mxu0
  %v1619 = vadd.f32 %v1541, %v1618
  %v1620 = vpop.f32.mrf.mxu0
  %1621 = vmatprep.mubr.f32.mxu0 0.0
  %1622 = vmatmul.mubr.f32.gmra.mxu0 %v1547
  %v1623 = vpop.f32.mrf.mxu0
  %v1624 = vadd.f32 %v1541, %v1623
  %v1625 = vpop.f32.mrf.mxu0
  %1626 = vdwg.mxu0
  %v1627 = vxor.u32 %v1619, 2147483648
  %v1628 = vxor.u32 %v1624, 2147483648
  %v1629 = vmul.f32 %v1627, 1.442695
  %v1630 = vpow.pop %v1629
  %v1631 = vmul.f32 %v1628, 1.442695
  %v1632 = vpow.pop %v1631
  %v1633 = vadd.f32 %v1630, 1.0
  %v1634 = vadd.f32 %v1632, 1.0
  %v1635 = vrcp.pop %v1633
  %v1636 = vmul.f32 1.0, %v1635
  %v1637 = vrcp.pop %v1634
  %v1638 = vmul.f32 1.0, %v1637
  %v1640 = vsel %vm709, %v1320, 0
  %v1643 = vsel %vm709, %v1325, 0
  %1645 = vmatprep.subr.mxu0 0.0
  %1646 = vmatpush1.msra.mxu0 0.0
  %1647 = vmatprep.subr.mxu0 0.0
  %1648 = vmatpush1.msra.mxu0 0.0
  %1649 = vmatprep.subr.mxu0 0.0
  %1650 = vmatpush1.msra.mxu0 0.0
  %1651 = vmatprep.subr.mxu0 0.0
  %1652 = vmatpush1.msra.mxu0 0.0
  %1653 = vmatprep.subr.mxu0 0.0
  %1654 = vmatpush1.msra.mxu0 0.0
  %1655 = vmatprep.subr.mxu0 0.0
  %1656 = vmatpush1.msra.mxu0 0.0
  %1657 = vmatprep.subr.mxu0 0.0
  %1658 = vmatpush1.msra.mxu0 0.0
  %1659 = vmatprep.subr.mxu0 0.0
  %1660 = vmatpush1.msra.mxu0 0.0
  %1661 = vmatprep.subr.mxu0 0.0
  %1662 = vmatpush1.msra.mxu0 0.0
  %1663 = vmatprep.subr.mxu0 0.0
  %1664 = vmatpush1.msra.mxu0 0.0
  %1665 = vmatprep.subr.mxu0 0.0
  %1666 = vmatpush1.msra.mxu0 %v1232
  %1667 = vmatprep.subr.mxu0 0.0
  %1668 = vmatpush1.msra.mxu0 %v1231
  %1669 = vmatprep.subr.mxu0 0.0
  %1670 = vmatpush1.msra.mxu0 %v1230
  %1671 = vmatprep.subr.mxu0 0.0
  %1672 = vmatpush1.msra.mxu0 %v1229
  %1673 = vmatprep.subr.mxu0 0.0
  %1674 = vmatpush1.msra.mxu0 %v1228
  %1675 = vmatprep.subr.mxu0 0.0
  %1676 = vmatpush1.msra.mxu0 %v1227
  %1677 = vmatprep.subr.mxu0 0.0
  %1678 = vmatpush2.msra.mxu0 0.0
  %1679 = vmatprep.subr.mxu0 0.0
  %1680 = vmatpush2.msra.mxu0 0.0
  %1681 = vmatprep.subr.mxu0 0.0
  %1682 = vmatpush2.msra.mxu0 0.0
  %1683 = vmatprep.subr.mxu0 0.0
  %1684 = vmatpush2.msra.mxu0 0.0
  %1685 = vmatprep.subr.mxu0 0.0
  %1686 = vmatpush2.msra.mxu0 0.0
  %1687 = vmatprep.subr.mxu0 0.0
  %1688 = vmatpush2.msra.mxu0 0.0
  %1689 = vmatprep.subr.mxu0 0.0
  %1690 = vmatpush2.msra.mxu0 0.0
  %1691 = vmatprep.subr.mxu0 0.0
  %1692 = vmatpush2.msra.mxu0 0.0
  %1693 = vmatprep.subr.mxu0 0.0
  %1694 = vmatpush2.msra.mxu0 0.0
  %1695 = vmatprep.subr.mxu0 0.0
  %1696 = vmatpush2.msra.mxu0 0.0
  %1697 = vmatprep.subr.mxu0 0.0
  %1698 = vmatpush2.msra.mxu0 0.0
  %1699 = vmatprep.subr.mxu0 0.0
  %1700 = vmatpush2.msra.mxu0 0.0
  %1701 = vmatprep.subr.mxu0 0.0
  %1702 = vmatpush2.msra.mxu0 0.0
  %1703 = vmatprep.subr.mxu0 0.0
  %1704 = vmatpush2.msra.mxu0 0.0
  %1705 = vmatprep.subr.mxu0 0.0
  %1706 = vmatpush2.msra.mxu0 0.0
  %1707 = vmatprep.subr.mxu0 0.0
  %1708 = vmatpush2.msra.mxu0 0.0
  %1709 = vmatprep.mubr.f32.mxu0 0.0
  %1710 = vmatmul.mubr.f32.gmra.mxu0 %v1640
  %v1711 = vpop.f32.mrf.mxu0
  %v1712 = vadd.f32 0.0, %v1711
  %v1713 = vpop.f32.mrf.mxu0
  %1714 = vmatprep.mubr.f32.mxu0 0.0
  %1715 = vmatmul.mubr.f32.gmra.mxu0 %v1643
  %v1716 = vpop.f32.mrf.mxu0
  %v1717 = vadd.f32 0.0, %v1716
  %v1718 = vpop.f32.mrf.mxu0
  %1719 = vdwg.mxu0
  %1722 = vrot.lane.b32.xlu0 %v1636, 16
  %v1723 = vpop.permute.xlu0 %1722
  %1724 = vrot.lane.b32.xlu0 %v1638, 16
  %v1725 = vpop.permute.xlu0 %1724
  %1728 = vrot.lane.b32.xlu0 %v1636, 32
  %v1729 = vpop.permute.xlu0 %1728
  %1730 = vrot.lane.b32.xlu0 %v1638, 32
  %v1731 = vpop.permute.xlu0 %1730
  %v1734 = vsel %vm659, %v1636, %v1723
  %v1735 = vsel %vm659, %v1638, %v1725
  %v1736 = vsel %vm662, %v1734, %v1729
  %v1737 = vsel %vm662, %v1735, %v1731
  %v1738 = vmul.f32 %v1712, %v1736
  %v1739 = vmul.f32 %v1717, %v1737
  %1740 = vst.msk [vmem:[%s23] sm:$0xff] %vm463, %v1535
  %1741 = vst.msk [vmem:[%s23 + $0x8] sm:$0xff] %vm463, %v1536
  %1742 = vst.msk [vmem:[%s24] sm:$0xff] %vm709, %v1738
  %1743 = vst.msk [vmem:[%s24 + $0x8] sm:$0xff] %vm709, %v1739
  // Predicated region
  $region94: #{base_model_forward.27} parent=0 // pred_check
    _
  $region95: #{base_model_forward.27} parent=0 // pred_check_branch
    %1745 = sbr.rel (0) target = $region97
  $region96: #{base_model_forward.27} parent=0 // pred_region
    _
  $region97: #{base_model_forward.27} parent=0 // pred_fallthru
    _
  // Predicated region
  $region98: #{base_model_forward.27} parent=0 // pred_check
    _
  $region99: #{base_model_forward.27} parent=0 // pred_check_branch
    %1747 = sbr.rel (0) target = $region101
  $region100: #{base_model_forward.27} parent=0 // pred_region
    _
  $region101: #{base_model_forward.27} parent=0 // pred_fallthru
    _
  // Predicated region
  $region102: #{base_model_forward.27} parent=0 // pred_check
    _
  $region103: #{base_model_forward.27} parent=0 // pred_check_branch
    %1749 = sbr.rel (0) target = $region105
  $region104: #{base_model_forward.27} parent=0 // pred_region
    _
  $region105: #{base_model_forward.27} parent=0 // pred_fallthru
    _
  // Predicated region
  $region106: #{base_model_forward.27} parent=0 // pred_check
    _
  $region107: #{base_model_forward.27} parent=0 // pred_check_branch
    %1751 = sbr.rel (0) target = $region109
  $region108: #{base_model_forward.27} parent=0 // pred_region
    _
  $region109: #{base_model_forward.27} parent=0 // pred_fallthru
    _

// kernel: base_model_forward.28
$region0: #{base_model_forward.28}
  #allocation0 [shape = 'u32[]', space=smem, size = 0x4, offset = 0x4, fixed_abs, tag = 'smem constant byte address 0x4 - core index']
  #allocation1 [shape = 'u32[144,128]{1,0:T(1,128)}', space=vmem, size = 0x12000, scoped, tag = 'internal scratch']
  %s0 = inlined_call_operand.vmem [shape: f32[8,100], index: 0, kind: input, shape index: {}]
  %s1 = inlined_call_operand.vmem [shape: f32[8,100], index: 1, kind: input, shape index: {}]
  %s2 = inlined_call_operand.vmem [shape: f32[8,48], index: 2, kind: input, shape index: {}]
  %s3 = inlined_call_operand.vmem [shape: f32[8,48], index: 3, kind: input, shape index: {}]
  %s4 = inlined_call_operand.vmem [shape: f32[1,100], index: 4, kind: input, shape index: {}]
  %s5 = inlined_call_operand.vmem [shape: f32[1,100], index: 5, kind: input, shape index: {}]
  %s6 = inlined_call_operand.vmem [shape: f32[8,100], index: 6, kind: output, shape index: {0}]
  %s7 = inlined_call_operand.vmem [shape: f32[8,48], index: 7, kind: output, shape index: {1}]
  %8 = xla_tuple %s6, %s7
  %s9 = sld [smem:[#allocation0]]
  $region42: #{base_model_forward.28} parent=0
    _
  %s11 = ssub.s32 1, %s9
  %s12 = scalar_select 0, %s11, %s9
  // Predicated region
  $region2: #{base_model_forward.28} parent=0 // pred_check
    _
  $region3: #{base_model_forward.28} parent=0 // pred_check_branch
    %14 = sbr.rel (0) target = $region5
  $region4: #{base_model_forward.28} parent=0 // pred_region
    _
  $region5: #{base_model_forward.28} parent=0 // pred_fallthru
    _
  // Predicated region
  $region6: #{base_model_forward.28} parent=0 // pred_check
    _
  $region7: #{base_model_forward.28} parent=0 // pred_check_branch
    %16 = sbr.rel (0) target = $region9
  $region8: #{base_model_forward.28} parent=0 // pred_region
    _
  $region9: #{base_model_forward.28} parent=0 // pred_fallthru
    _
  // Predicated region
  $region10: #{base_model_forward.28} parent=0 // pred_check
    _
  $region11: #{base_model_forward.28} parent=0 // pred_check_branch
    %18 = sbr.rel (0) target = $region13
  $region12: #{base_model_forward.28} parent=0 // pred_region
    _
  $region13: #{base_model_forward.28} parent=0 // pred_fallthru
    _
  // Predicated region
  $region14: #{base_model_forward.28} parent=0 // pred_check
    _
  $region15: #{base_model_forward.28} parent=0 // pred_check_branch
    %20 = sbr.rel (0) target = $region17
  $region16: #{base_model_forward.28} parent=0 // pred_region
    _
  $region17: #{base_model_forward.28} parent=0 // pred_fallthru
    _
  // Predicated region
  $region18: #{base_model_forward.28} parent=0 // pred_check
    _
  $region19: #{base_model_forward.28} parent=0 // pred_check_branch
    %22 = sbr.rel (0) target = $region21
  $region20: #{base_model_forward.28} parent=0 // pred_region
    _
  $region21: #{base_model_forward.28} parent=0 // pred_fallthru
    _
  // Predicated region
  $region22: #{base_model_forward.28} parent=0 // pred_check
    _
  $region23: #{base_model_forward.28} parent=0 // pred_check_branch
    %24 = sbr.rel (0) target = $region25
  $region24: #{base_model_forward.28} parent=0 // pred_region
    _
  $region25: #{base_model_forward.28} parent=0 // pred_fallthru
    _
  %v25 = vld [vmem:[%s0] sm:$0xff]
  %v26 = vld [vmem:[%s1] sm:$0xff]
  %v27 = vadd.f32 %v25, %v26
  %v28 = vld [vmem:[%s2] sm:$0xff]
  %v29 = vld [vmem:[%s3] sm:$0xff]
  %v30 = vadd.f32 %v28, %v29
  %v31 = vld [vmem:[%s4] sm:$0x1]
  %v32 = vld [vmem:[%s5] sm:$0x1]
  %vm33 = vcmask 818176
  %v34 = vsel %vm33, %v27, 0.0
  %35 = vadd.xlane.f32.xlu0 %v34
  %v36 = vpop.xlane.xlu0 %35
  %v37 = vrcp.pop 100.0
  %v38 = vmul.f32 %v36, %v37
  %v39 = vsub.f32 %v27, %v38
  %v40 = vmul.f32 %v39, %v39
  %v41 = vsel %vm33, %v40, 0.0
  %42 = vadd.xlane.f32.xlu0 %v41
  %v43 = vpop.xlane.xlu0 %42
  %v44 = vmul.f32 %v43, %v37
  %v45 = vadd.f32 %v44, 1e-05
  %v46 = vrsqrt.pop %v45
  %v47 = vmul.f32 %v39, %v46
  %v49 = vlaneseq
  %v50 = vshrl.u32 %v49, 7
  %v51 = vsub.s32 0, %v50
  %v52 = vrot.slane %v31, %v51
  %v54 = vmul.f32 %v47, %v52
  %v56 = vlaneseq
  %v57 = vshrl.u32 %v56, 7
  %v58 = vsub.s32 0, %v57
  %v59 = vrot.slane %v32, %v58
  %v61 = vadd.f32 %v54, %v59
  %62 = vst.msk [vmem:[%s6] sm:$0xff] %vm33, %v61
  %v63 = vmul.f32 %v30, %v30
  %65 = vrot.lane.b32.xlu0 %v63, 112
  %v66 = vpop.permute.xlu0 %65
  %v68 = vadd.f32 %v63, %v66
  %69 = vrot.lane.b32.xlu0 %v63, 96
  %v70 = vpop.permute.xlu0 %69
  %v72 = vadd.f32 %v68, %v70
  %v73 = vmax.f32 %v72, 1e-08
  %vm74 = vcmask 130048
  %v75 = vsel %vm74, %v73, 0.0
  %76 = vadd.xlane.f32.xlu0 %v75
  %v77 = vpop.xlane.xlu0 %76
  %v78 = vrcp.pop 16.0
  %v79 = vmul.f32 %v77, %v78
  %v80 = vrsqrt.pop %v79
  %v81 = vmul.f32 %v79, %v80
  %vm82 = vcmp.eq.f32.partialorder %v79, inf
  %v83 = vsel %vm82, %v79, %v81
  %vm84 = vcmp.eq.f32.partialorder %v79, 0.0
  %v85 = vand.u32 %v79, 2147483648
  %v86 = vsel %vm84, %v85, %v83
  %v87 = vrcp.pop %v86
  %v88 = vmul.f32 %v30, %v87
  %vm89 = vcmask 392192
  %90 = vst.msk [vmem:[%s7] sm:$0xff] %vm89, %v88
  // Predicated region
  $region26: #{base_model_forward.28} parent=0 // pred_check
    _
  $region27: #{base_model_forward.28} parent=0 // pred_check_branch
    %92 = sbr.rel (0) target = $region29
  $region28: #{base_model_forward.28} parent=0 // pred_region
    _
  $region29: #{base_model_forward.28} parent=0 // pred_fallthru
    _
  // Predicated region
  $region30: #{base_model_forward.28} parent=0 // pred_check
    _
  $region31: #{base_model_forward.28} parent=0 // pred_check_branch
    %94 = sbr.rel (0) target = $region33
  $region32: #{base_model_forward.28} parent=0 // pred_region
    _
  $region33: #{base_model_forward.28} parent=0 // pred_fallthru
    _
  // Predicated region
  $region34: #{base_model_forward.28} parent=0 // pred_check
    _
  $region35: #{base_model_forward.28} parent=0 // pred_check_branch
    %96 = sbr.rel (0) target = $region37
  $region36: #{base_model_forward.28} parent=0 // pred_region
    _
  $region37: #{base_model_forward.28} parent=0 // pred_fallthru
    _
  // Predicated region
  $region38: #{base_model_forward.28} parent=0 // pred_check
    _
  $region39: #{base_model_forward.28} parent=0 // pred_check_branch
    %98 = sbr.rel (0) target = $region41
  $region40: #{base_model_forward.28} parent=0 // pred_region
    _
  $region41: #{base_model_forward.28} parent=0 // pred_fallthru
    _

// kernel: base_model_forward.47
$region0: #{base_model_forward.47}
  #allocation0 [shape = 'u32[]', space=smem, size = 0x4, offset = 0x4, fixed_abs, tag = 'smem constant byte address 0x4 - core index']
  #allocation1 [shape = 'u32[144,128]{1,0:T(1,128)}', space=vmem, size = 0x12000, scoped, tag = 'internal scratch']
  %s0 = inlined_call_operand.vmem [shape: f32[8,100], index: 0, kind: input, shape index: {}]
  %s1 = inlined_call_operand.vmem [shape: f32[8,48], index: 1, kind: input, shape index: {}]
  %s2 = inlined_call_operand.vmem [shape: f32[1,100], index: 2, kind: input, shape index: {}]
  %s3 = inlined_call_operand.vmem [shape: f32[1,100], index: 3, kind: input, shape index: {}]
  %s4 = inlined_call_operand.vmem [shape: f32[48,48], index: 4, kind: input, shape index: {}]
  %s5 = inlined_call_operand.vmem [shape: f32[100,100], index: 5, kind: input, shape index: {}]
  %s6 = inlined_call_operand.vmem [shape: f32[16,100], index: 6, kind: input, shape index: {}]
  %s7 = inlined_call_operand.vmem [shape: f32[1,100], index: 7, kind: input, shape index: {}]
  %s8 = inlined_call_operand.vmem [shape: f32[8,100], index: 8, kind: output, shape index: {}]
  %s9 = sld [smem:[#allocation0]]
  $region42: #{base_model_forward.47} parent=0
    _
  %s11 = ssub.s32 1, %s9
  %s12 = scalar_select 0, %s11, %s9
  // Predicated region
  $region2: #{base_model_forward.47} parent=0 // pred_check
    _
  $region3: #{base_model_forward.47} parent=0 // pred_check_branch
    %14 = sbr.rel (0) target = $region5
  $region4: #{base_model_forward.47} parent=0 // pred_region
    _
  $region5: #{base_model_forward.47} parent=0 // pred_fallthru
    _
  // Predicated region
  $region6: #{base_model_forward.47} parent=0 // pred_check
    _
  $region7: #{base_model_forward.47} parent=0 // pred_check_branch
    %16 = sbr.rel (0) target = $region9
  $region8: #{base_model_forward.47} parent=0 // pred_region
    _
  $region9: #{base_model_forward.47} parent=0 // pred_fallthru
    _
  // Predicated region
  $region10: #{base_model_forward.47} parent=0 // pred_check
    _
  $region11: #{base_model_forward.47} parent=0 // pred_check_branch
    %18 = sbr.rel (0) target = $region13
  $region12: #{base_model_forward.47} parent=0 // pred_region
    _
  $region13: #{base_model_forward.47} parent=0 // pred_fallthru
    _
  // Predicated region
  $region14: #{base_model_forward.47} parent=0 // pred_check
    _
  $region15: #{base_model_forward.47} parent=0 // pred_check_branch
    %20 = sbr.rel (0) target = $region17
  $region16: #{base_model_forward.47} parent=0 // pred_region
    _
  $region17: #{base_model_forward.47} parent=0 // pred_fallthru
    _
  // Predicated region
  $region18: #{base_model_forward.47} parent=0 // pred_check
    _
  $region19: #{base_model_forward.47} parent=0 // pred_check_branch
    %22 = sbr.rel (0) target = $region21
  $region20: #{base_model_forward.47} parent=0 // pred_region
    _
  $region21: #{base_model_forward.47} parent=0 // pred_fallthru
    _
  // Predicated region
  $region22: #{base_model_forward.47} parent=0 // pred_check
    _
  $region23: #{base_model_forward.47} parent=0 // pred_check_branch
    %24 = sbr.rel (0) target = $region25
  $region24: #{base_model_forward.47} parent=0 // pred_region
    _
  $region25: #{base_model_forward.47} parent=0 // pred_fallthru
    _
  // Predicated region
  $region26: #{base_model_forward.47} parent=0 // pred_check
    _
  $region27: #{base_model_forward.47} parent=0 // pred_check_branch
    %26 = sbr.rel (0) target = $region29
  $region28: #{base_model_forward.47} parent=0 // pred_region
    _
  $region29: #{base_model_forward.47} parent=0 // pred_fallthru
    _
  // Predicated region
  $region30: #{base_model_forward.47} parent=0 // pred_check
    _
  $region31: #{base_model_forward.47} parent=0 // pred_check_branch
    %28 = sbr.rel (0) target = $region33
  $region32: #{base_model_forward.47} parent=0 // pred_region
    _
  $region33: #{base_model_forward.47} parent=0 // pred_fallthru
    _
  %v29 = vld [vmem:[%s0] sm:$0xff]
  %v30 = vld [vmem:[%s1] sm:$0xff]
  %v31 = vld [vmem:[%s2] sm:$0x1]
  %v32 = vld [vmem:[%s3] sm:$0x1]
  %vm33 = vcmask 818176
  %v34 = vsel %vm33, %v29, 0.0
  %35 = vadd.xlane.f32.xlu0 %v34
  %v36 = vpop.xlane.xlu0 %35
  %v37 = vrcp.pop 100.0
  %v38 = vmul.f32 %v36, %v37
  %v39 = vsub.f32 %v29, %v38
  %v40 = vmul.f32 %v39, %v39
  %v41 = vsel %vm33, %v40, 0.0
  %42 = vadd.xlane.f32.xlu0 %v41
  %v43 = vpop.xlane.xlu0 %42
  %v44 = vmul.f32 %v43, %v37
  %v45 = vadd.f32 %v44, 1e-05
  %v46 = vrsqrt.pop %v45
  %v47 = vmul.f32 %v39, %v46
  %v49 = vlaneseq
  %v50 = vshrl.u32 %v49, 7
  %v51 = vsub.s32 0, %v50
  %v52 = vrot.slane %v31, %v51
  %v54 = vmul.f32 %v47, %v52
  %v56 = vlaneseq
  %v57 = vshrl.u32 %v56, 7
  %v58 = vsub.s32 0, %v57
  %v59 = vrot.slane %v32, %v58
  %v61 = vadd.f32 %v54, %v59
  %v62 = vmul.f32 %v30, %v30
  %64 = vrot.lane.b32.xlu0 %v62, 112
  %v65 = vpop.permute.xlu0 %64
  %v67 = vadd.f32 %v62, %v65
  %68 = vrot.lane.b32.xlu0 %v62, 96
  %v69 = vpop.permute.xlu0 %68
  %v71 = vadd.f32 %v67, %v69
  %v72 = vmax.f32 %v71, 1e-08
  %vm73 = vcmask 130048
  %v74 = vsel %vm73, %v72, 0.0
  %75 = vadd.xlane.f32.xlu0 %v74
  %v76 = vpop.xlane.xlu0 %75
  %v77 = vrcp.pop 16.0
  %v78 = vmul.f32 %v76, %v77
  %v79 = vrsqrt.pop %v78
  %v80 = vmul.f32 %v78, %v79
  %vm81 = vcmp.eq.f32.partialorder %v78, inf
  %v82 = vsel %vm81, %v78, %v80
  %vm83 = vcmp.eq.f32.partialorder %v78, 0.0
  %v84 = vand.u32 %v78, 2147483648
  %v85 = vsel %vm83, %v84, %v82
  %v86 = vrcp.pop %v85
  %v87 = vmul.f32 %v30, %v86
  %v88 = vld [vmem:[%s4] sm:$0xff]
  %v89 = vld [vmem:[%s4 + $0x8] sm:$0xff]
  %v90 = vld [vmem:[%s4 + $0x10] sm:$0xff]
  %v91 = vld [vmem:[%s4 + $0x18] sm:$0xff]
  %v92 = vld [vmem:[%s4 + $0x20] sm:$0xff]
  %v93 = vld [vmem:[%s4 + $0x28] sm:$0xff]
  %v94 = vld [vmem:[%s5] sm:$0xff]
  %v95 = vld [vmem:[%s5 + $0x8] sm:$0xff]
  %v96 = vld [vmem:[%s5 + $0x10] sm:$0xff]
  %v97 = vld [vmem:[%s5 + $0x18] sm:$0xff]
  %v98 = vld [vmem:[%s5 + $0x20] sm:$0xff]
  %v99 = vld [vmem:[%s5 + $0x28] sm:$0xff]
  %v100 = vld [vmem:[%s5 + $0x30] sm:$0xff]
  %v101 = vld [vmem:[%s5 + $0x38] sm:$0xff]
  %v102 = vld [vmem:[%s5 + $0x40] sm:$0xff]
  %v103 = vld [vmem:[%s5 + $0x48] sm:$0xff]
  %v104 = vld [vmem:[%s5 + $0x50] sm:$0xff]
  %v105 = vld [vmem:[%s5 + $0x58] sm:$0xff]
  %v106 = vld [vmem:[%s5 + $0x60] sm:$0xf]
  %v107 = vld [vmem:[%s6] sm:$0xff]
  %v108 = vld [vmem:[%s6 + $0x8] sm:$0xff]
  %v109 = vld [vmem:[%s7] sm:$0x1]
  %vm110 = vcmask 392192
  %v112 = vsel %vm110, %v87, 0
  %114 = vmatprep.subr.mxu0 0.0
  %115 = vmatpush1.msra.mxu0 0.0
  %116 = vmatprep.subr.mxu0 0.0
  %117 = vmatpush1.msra.mxu0 0.0
  %118 = vmatprep.subr.mxu0 0.0
  %119 = vmatpush1.msra.mxu0 0.0
  %120 = vmatprep.subr.mxu0 0.0
  %121 = vmatpush1.msra.mxu0 0.0
  %122 = vmatprep.subr.mxu0 0.0
  %123 = vmatpush1.msra.mxu0 0.0
  %124 = vmatprep.subr.mxu0 0.0
  %125 = vmatpush1.msra.mxu0 0.0
  %126 = vmatprep.subr.mxu0 0.0
  %127 = vmatpush1.msra.mxu0 0.0
  %128 = vmatprep.subr.mxu0 0.0
  %129 = vmatpush1.msra.mxu0 0.0
  %130 = vmatprep.subr.mxu0 0.0
  %131 = vmatpush1.msra.mxu0 0.0
  %132 = vmatprep.subr.mxu0 0.0
  %133 = vmatpush1.msra.mxu0 0.0
  %134 = vmatprep.subr.mxu0 0.0
  %135 = vmatpush1.msra.mxu0 %v93
  %136 = vmatprep.subr.mxu0 0.0
  %137 = vmatpush1.msra.mxu0 %v92
  %138 = vmatprep.subr.mxu0 0.0
  %139 = vmatpush1.msra.mxu0 %v91
  %140 = vmatprep.subr.mxu0 0.0
  %141 = vmatpush1.msra.mxu0 %v90
  %142 = vmatprep.subr.mxu0 0.0
  %143 = vmatpush1.msra.mxu0 %v89
  %144 = vmatprep.subr.mxu0 0.0
  %145 = vmatpush1.msra.mxu0 %v88
  %146 = vmatprep.subr.mxu0 0.0
  %147 = vmatpush2.msra.mxu0 0.0
  %148 = vmatprep.subr.mxu0 0.0
  %149 = vmatpush2.msra.mxu0 0.0
  %150 = vmatprep.subr.mxu0 0.0
  %151 = vmatpush2.msra.mxu0 0.0
  %152 = vmatprep.subr.mxu0 0.0
  %153 = vmatpush2.msra.mxu0 0.0
  %154 = vmatprep.subr.mxu0 0.0
  %155 = vmatpush2.msra.mxu0 0.0
  %156 = vmatprep.subr.mxu0 0.0
  %157 = vmatpush2.msra.mxu0 0.0
  %158 = vmatprep.subr.mxu0 0.0
  %159 = vmatpush2.msra.mxu0 0.0
  %160 = vmatprep.subr.mxu0 0.0
  %161 = vmatpush2.msra.mxu0 0.0
  %162 = vmatprep.subr.mxu0 0.0
  %163 = vmatpush2.msra.mxu0 0.0
  %164 = vmatprep.subr.mxu0 0.0
  %165 = vmatpush2.msra.mxu0 0.0
  %166 = vmatprep.subr.mxu0 0.0
  %167 = vmatpush2.msra.mxu0 0.0
  %168 = vmatprep.subr.mxu0 0.0
  %169 = vmatpush2.msra.mxu0 0.0
  %170 = vmatprep.subr.mxu0 0.0
  %171 = vmatpush2.msra.mxu0 0.0
  %172 = vmatprep.subr.mxu0 0.0
  %173 = vmatpush2.msra.mxu0 0.0
  %174 = vmatprep.subr.mxu0 0.0
  %175 = vmatpush2.msra.mxu0 0.0
  %176 = vmatprep.subr.mxu0 0.0
  %177 = vmatpush2.msra.mxu0 0.0
  %178 = vmatprep.mubr.f32.mxu0 0.0
  %179 = vmatmul.mubr.f32.gmra.mxu0 %v112
  %v180 = vpop.f32.mrf.mxu0
  %v181 = vadd.f32 0.0, %v180
  %v182 = vpop.f32.mrf.mxu0
  %183 = vdwg.mxu0
  %v184 = vmul.f32 %v181, %v181
  %186 = vrot.lane.b32.xlu0 %v184, 112
  %v187 = vpop.permute.xlu0 %186
  %v189 = vadd.f32 %v184, %v187
  %190 = vrot.lane.b32.xlu0 %v184, 96
  %v191 = vpop.permute.xlu0 %190
  %v193 = vadd.f32 %v189, %v191
  %v194 = vmax.f32 %v193, 1e-08
  %v195 = vrsqrt.pop %v194
  %v196 = vmul.f32 %v194, %v195
  %vm197 = vcmp.eq.f32.partialorder %v194, inf
  %v198 = vsel %vm197, %v194, %v196
  %vm199 = vcmp.eq.f32.partialorder %v194, 0.0
  %v200 = vand.u32 %v194, 2147483648
  %v201 = vsel %vm199, %v200, %v198
  %v203 = vsel %vm73, %v201, 0
  %205 = vmatprep.subr.mxu0 0.0
  %206 = vmatpush1.msra.mxu0 0.0
  %207 = vmatprep.subr.mxu0 0.0
  %208 = vmatpush1.msra.mxu0 0.0
  %209 = vmatprep.subr.mxu0 0.0
  %210 = vmatpush1.msra.mxu0 0.0
  %211 = vmatprep.subr.mxu0 0.0
  %212 = vmatpush1.msra.mxu0 0.0
  %213 = vmatprep.subr.mxu0 0.0
  %214 = vmatpush1.msra.mxu0 0.0
  %215 = vmatprep.subr.mxu0 0.0
  %216 = vmatpush1.msra.mxu0 0.0
  %217 = vmatprep.subr.mxu0 0.0
  %218 = vmatpush1.msra.mxu0 0.0
  %219 = vmatprep.subr.mxu0 0.0
  %220 = vmatpush1.msra.mxu0 0.0
  %221 = vmatprep.subr.mxu0 0.0
  %222 = vmatpush1.msra.mxu0 0.0
  %223 = vmatprep.subr.mxu0 0.0
  %224 = vmatpush1.msra.mxu0 0.0
  %225 = vmatprep.subr.mxu0 0.0
  %226 = vmatpush1.msra.mxu0 0.0
  %227 = vmatprep.subr.mxu0 0.0
  %228 = vmatpush1.msra.mxu0 0.0
  %229 = vmatprep.subr.mxu0 0.0
  %230 = vmatpush1.msra.mxu0 0.0
  %231 = vmatprep.subr.mxu0 0.0
  %232 = vmatpush1.msra.mxu0 0.0
  %233 = vmatprep.subr.mxu0 0.0
  %234 = vmatpush1.msra.mxu0 %v108
  %235 = vmatprep.subr.mxu0 0.0
  %236 = vmatpush1.msra.mxu0 %v107
  %237 = vmatprep.subr.mxu0 0.0
  %238 = vmatpush2.msra.mxu0 0.0
  %239 = vmatprep.subr.mxu0 0.0
  %240 = vmatpush2.msra.mxu0 0.0
  %241 = vmatprep.subr.mxu0 0.0
  %242 = vmatpush2.msra.mxu0 0.0
  %243 = vmatprep.subr.mxu0 0.0
  %244 = vmatpush2.msra.mxu0 0.0
  %245 = vmatprep.subr.mxu0 0.0
  %246 = vmatpush2.msra.mxu0 0.0
  %247 = vmatprep.subr.mxu0 0.0
  %248 = vmatpush2.msra.mxu0 0.0
  %249 = vmatprep.subr.mxu0 0.0
  %250 = vmatpush2.msra.mxu0 0.0
  %251 = vmatprep.subr.mxu0 0.0
  %252 = vmatpush2.msra.mxu0 0.0
  %253 = vmatprep.subr.mxu0 0.0
  %254 = vmatpush2.msra.mxu0 0.0
  %255 = vmatprep.subr.mxu0 0.0
  %256 = vmatpush2.msra.mxu0 0.0
  %257 = vmatprep.subr.mxu0 0.0
  %258 = vmatpush2.msra.mxu0 0.0
  %259 = vmatprep.subr.mxu0 0.0
  %260 = vmatpush2.msra.mxu0 0.0
  %261 = vmatprep.subr.mxu0 0.0
  %262 = vmatpush2.msra.mxu0 0.0
  %263 = vmatprep.subr.mxu0 0.0
  %264 = vmatpush2.msra.mxu0 0.0
  %265 = vmatprep.subr.mxu0 0.0
  %266 = vmatpush2.msra.mxu0 0.0
  %267 = vmatprep.subr.mxu0 0.0
  %268 = vmatpush2.msra.mxu0 0.0
  %269 = vmatprep.mubr.f32.mxu0 0.0
  %270 = vmatmul.mubr.f32.gmra.mxu0 %v203
  %v271 = vpop.f32.mrf.mxu0
  %v272 = vadd.f32 0.0, %v271
  %v273 = vpop.f32.mrf.mxu0
  %274 = vdwg.mxu0
  %v276 = vsel %vm33, %v61, 0
  %vm278 = vcmask 1043456
  %v280 = vsel %vm278, %v106, 0
  %282 = vmatprep.subr.mxu0 0.0
  %283 = vmatpush1.msra.mxu0 0.0
  %284 = vmatprep.subr.mxu0 0.0
  %285 = vmatpush1.msra.mxu0 0.0
  %286 = vmatprep.subr.mxu0 0.0
  %287 = vmatpush1.msra.mxu0 0.0
  %288 = vmatprep.subr.mxu0 0.0
  %289 = vmatpush1.msra.mxu0 %v280
  %290 = vmatprep.subr.mxu0 0.0
  %291 = vmatpush1.msra.mxu0 %v105
  %292 = vmatprep.subr.mxu0 0.0
  %293 = vmatpush1.msra.mxu0 %v104
  %294 = vmatprep.subr.mxu0 0.0
  %295 = vmatpush1.msra.mxu0 %v103
  %296 = vmatprep.subr.mxu0 0.0
  %297 = vmatpush1.msra.mxu0 %v102
  %298 = vmatprep.subr.mxu0 0.0
  %299 = vmatpush1.msra.mxu0 %v101
  %300 = vmatprep.subr.mxu0 0.0
  %301 = vmatpush1.msra.mxu0 %v100
  %302 = vmatprep.subr.mxu0 0.0
  %303 = vmatpush1.msra.mxu0 %v99
  %304 = vmatprep.subr.mxu0 0.0
  %305 = vmatpush1.msra.mxu0 %v98
  %306 = vmatprep.subr.mxu0 0.0
  %307 = vmatpush1.msra.mxu0 %v97
  %308 = vmatprep.subr.mxu0 0.0
  %309 = vmatpush1.msra.mxu0 %v96
  %310 = vmatprep.subr.mxu0 0.0
  %311 = vmatpush1.msra.mxu0 %v95
  %312 = vmatprep.subr.mxu0 0.0
  %313 = vmatpush1.msra.mxu0 %v94
  %314 = vmatprep.subr.mxu0 0.0
  %315 = vmatpush2.msra.mxu0 0.0
  %316 = vmatprep.subr.mxu0 0.0
  %317 = vmatpush2.msra.mxu0 0.0
  %318 = vmatprep.subr.mxu0 0.0
  %319 = vmatpush2.msra.mxu0 0.0
  %320 = vmatprep.subr.mxu0 0.0
  %321 = vmatpush2.msra.mxu0 0.0
  %322 = vmatprep.subr.mxu0 0.0
  %323 = vmatpush2.msra.mxu0 0.0
  %324 = vmatprep.subr.mxu0 0.0
  %325 = vmatpush2.msra.mxu0 0.0
  %326 = vmatprep.subr.mxu0 0.0
  %327 = vmatpush2.msra.mxu0 0.0
  %328 = vmatprep.subr.mxu0 0.0
  %329 = vmatpush2.msra.mxu0 0.0
  %330 = vmatprep.subr.mxu0 0.0
  %331 = vmatpush2.msra.mxu0 0.0
  %332 = vmatprep.subr.mxu0 0.0
  %333 = vmatpush2.msra.mxu0 0.0
  %334 = vmatprep.subr.mxu0 0.0
  %335 = vmatpush2.msra.mxu0 0.0
  %336 = vmatprep.subr.mxu0 0.0
  %337 = vmatpush2.msra.mxu0 0.0
  %338 = vmatprep.subr.mxu0 0.0
  %339 = vmatpush2.msra.mxu0 0.0
  %340 = vmatprep.subr.mxu0 0.0
  %341 = vmatpush2.msra.mxu0 0.0
  %342 = vmatprep.subr.mxu0 0.0
  %343 = vmatpush2.msra.mxu0 0.0
  %344 = vmatprep.subr.mxu0 0.0
  %345 = vmatpush2.msra.mxu0 0.0
  %346 = vmatprep.mubr.f32.mxu0 0.0
  %347 = vmatmul.mubr.f32.gmra.mxu0 %v276
  %v348 = vpop.f32.mrf.mxu0
  %v349 = vadd.f32 %v272, %v348
  %v350 = vpop.f32.mrf.mxu0
  %351 = vdwg.mxu0
  %v353 = vlaneseq
  %v354 = vshrl.u32 %v353, 7
  %v355 = vsub.s32 0, %v354
  %v356 = vrot.slane %v109, %v355
  %v358 = vadd.f32 %v349, %v356
  %v359 = vmax.f32 %v358, 0.0
  %360 = vst.msk [vmem:[%s8] sm:$0xff] %vm33, %v359
  // Predicated region
  $region34: #{base_model_forward.47} parent=0 // pred_check
    _
  $region35: #{base_model_forward.47} parent=0 // pred_check_branch
    %362 = sbr.rel (0) target = $region37
  $region36: #{base_model_forward.47} parent=0 // pred_region
    _
  $region37: #{base_model_forward.47} parent=0 // pred_fallthru
    _
  // Predicated region
  $region38: #{base_model_forward.47} parent=0 // pred_check
    _
  $region39: #{base_model_forward.47} parent=0 // pred_check_branch
    %364 = sbr.rel (0) target = $region41
  $region40: #{base_model_forward.47} parent=0 // pred_region
    _
  $region41: #{base_model_forward.47} parent=0 // pred_fallthru
    _

// kernel: base_model_forward.49
$region0: #{base_model_forward.49}
  #allocation0 [shape = 'u32[]', space=smem, size = 0x4, offset = 0x4, fixed_abs, tag = 'smem constant byte address 0x4 - core index']
  #allocation1 [shape = 'u32[144,128]{1,0:T(1,128)}', space=vmem, size = 0x12000, scoped, tag = 'internal scratch']
  #allocation2 [shape = 'f32[1,1]{1,0:T(1,128)S(1)}', space=vmem, size = 0x200, scoped, tag = 'scoped memory for base_model_forward.49']
  %s0 = inlined_call_operand.vmem [shape: f32[8,200], index: 0, kind: input, shape index: {}]
  %s1 = inlined_call_operand.vmem [shape: f32[200,1], index: 1, kind: input, shape index: {}]
  %s2 = inlined_call_operand.<no memory space> [shape: f32[1,1], index: 2, kind: input, shape index: {}]
  %s3 = inlined_call_operand.vmem [shape: f32[8,1], index: 3, kind: output, shape index: {}]
  %s4 = sld [smem:[#allocation0]]
  $region22: #{base_model_forward.49} parent=0
    _
  %s6 = ssub.s32 1, %s4
  %s7 = scalar_select 0, %s6, %s4
  %v8 = vstv %s2
  %9 = vst [vmem:[#allocation2] sm:$0x1] %v8
  // Predicated region
  $region2: #{base_model_forward.49} parent=0 // pred_check
    _
  $region3: #{base_model_forward.49} parent=0 // pred_check_branch
    %11 = sbr.rel (0) target = $region5
  $region4: #{base_model_forward.49} parent=0 // pred_region
    _
  $region5: #{base_model_forward.49} parent=0 // pred_fallthru
    _
  // Predicated region
  $region6: #{base_model_forward.49} parent=0 // pred_check
    _
  $region7: #{base_model_forward.49} parent=0 // pred_check_branch
    %13 = sbr.rel (0) target = $region9
  $region8: #{base_model_forward.49} parent=0 // pred_region
    _
  $region9: #{base_model_forward.49} parent=0 // pred_fallthru
    _
  // Predicated region
  $region10: #{base_model_forward.49} parent=0 // pred_check
    _
  $region11: #{base_model_forward.49} parent=0 // pred_check_branch
    %15 = sbr.rel (0) target = $region13
  $region12: #{base_model_forward.49} parent=0 // pred_region
    _
  $region13: #{base_model_forward.49} parent=0 // pred_fallthru
    _
  %v16 = vld [vmem:[%s0] sm:$0xff]
  %v17 = vld [vmem:[%s0 + $0x8] sm:$0xff]
  %v18 = vld [vmem:[%s1] sm:$0xff]
  %v19 = vld [vmem:[%s1 + $0x8] sm:$0xff]
  %v20 = vld [vmem:[%s1 + $0x10] sm:$0xff]
  %v21 = vld [vmem:[%s1 + $0x18] sm:$0xff]
  %v22 = vld [vmem:[%s1 + $0x20] sm:$0xff]
  %v23 = vld [vmem:[%s1 + $0x28] sm:$0xff]
  %v24 = vld [vmem:[%s1 + $0x30] sm:$0xff]
  %v25 = vld [vmem:[%s1 + $0x38] sm:$0xff]
  %v26 = vld [vmem:[%s1 + $0x40] sm:$0xff]
  %v27 = vld [vmem:[%s1 + $0x48] sm:$0xff]
  %v28 = vld [vmem:[%s1 + $0x50] sm:$0xff]
  %v29 = vld [vmem:[%s1 + $0x58] sm:$0xff]
  %v30 = vld [vmem:[%s1 + $0x60] sm:$0xff]
  %v31 = vld [vmem:[%s1 + $0x68] sm:$0xff]
  %v32 = vld [vmem:[%s1 + $0x70] sm:$0xff]
  %v33 = vld [vmem:[%s1 + $0x78] sm:$0xff]
  %v34 = vld [vmem:[%s1 + $0x80] sm:$0xff]
  %v35 = vld [vmem:[%s1 + $0x88] sm:$0xff]
  %v36 = vld [vmem:[%s1 + $0x90] sm:$0xff]
  %v37 = vld [vmem:[%s1 + $0x98] sm:$0xff]
  %v38 = vld [vmem:[%s1 + $0xa0] sm:$0xff]
  %v39 = vld [vmem:[%s1 + $0xa8] sm:$0xff]
  %v40 = vld [vmem:[%s1 + $0xb0] sm:$0xff]
  %v41 = vld [vmem:[%s1 + $0xb8] sm:$0xff]
  %v42 = vld [vmem:[%s1 + $0xc0] sm:$0xff]
  %v43 = vld [vmem:[#allocation2] sm:$0x1]
  %v45 = vlaneseq
  %v46 = vshrl.u32 %v45, 7
  %v47 = vsub.s32 0, %v46
  %v48 = vrot.slane %v43, %v47
  %vm50 = vcmask 588800
  %v52 = vsel %vm50, %v17, 0
  %54 = vmatprep.subr.mxu0 0.0
  %55 = vmatpush1.msra.mxu0 %v33
  %56 = vmatprep.subr.mxu0 0.0
  %57 = vmatpush1.msra.mxu0 %v32
  %58 = vmatprep.subr.mxu0 0.0
  %59 = vmatpush1.msra.mxu0 %v31
  %60 = vmatprep.subr.mxu0 0.0
  %61 = vmatpush1.msra.mxu0 %v30
  %62 = vmatprep.subr.mxu0 0.0
  %63 = vmatpush1.msra.mxu0 %v29
  %64 = vmatprep.subr.mxu0 0.0
  %65 = vmatpush1.msra.mxu0 %v28
  %66 = vmatprep.subr.mxu0 0.0
  %67 = vmatpush1.msra.mxu0 %v27
  %68 = vmatprep.subr.mxu0 0.0
  %69 = vmatpush1.msra.mxu0 %v26
  %70 = vmatprep.subr.mxu0 0.0
  %71 = vmatpush1.msra.mxu0 %v25
  %72 = vmatprep.subr.mxu0 0.0
  %73 = vmatpush1.msra.mxu0 %v24
  %74 = vmatprep.subr.mxu0 0.0
  %75 = vmatpush1.msra.mxu0 %v23
  %76 = vmatprep.subr.mxu0 0.0
  %77 = vmatpush1.msra.mxu0 %v22
  %78 = vmatprep.subr.mxu0 0.0
  %79 = vmatpush1.msra.mxu0 %v21
  %80 = vmatprep.subr.mxu0 0.0
  %81 = vmatpush1.msra.mxu0 %v20
  %82 = vmatprep.subr.mxu0 0.0
  %83 = vmatpush1.msra.mxu0 %v19
  %84 = vmatprep.subr.mxu0 0.0
  %85 = vmatpush1.msra.mxu0 %v18
  %86 = vmatprep.subr.mxu0 0.0
  %87 = vmatpush2.msra.mxu0 0.0
  %88 = vmatprep.subr.mxu0 0.0
  %89 = vmatpush2.msra.mxu0 0.0
  %90 = vmatprep.subr.mxu0 0.0
  %91 = vmatpush2.msra.mxu0 0.0
  %92 = vmatprep.subr.mxu0 0.0
  %93 = vmatpush2.msra.mxu0 0.0
  %94 = vmatprep.subr.mxu0 0.0
  %95 = vmatpush2.msra.mxu0 0.0
  %96 = vmatprep.subr.mxu0 0.0
  %97 = vmatpush2.msra.mxu0 0.0
  %98 = vmatprep.subr.mxu0 0.0
  %99 = vmatpush2.msra.mxu0 0.0
  %100 = vmatprep.subr.mxu0 0.0
  %101 = vmatpush2.msra.mxu0 %v42
  %102 = vmatprep.subr.mxu0 0.0
  %103 = vmatpush2.msra.mxu0 %v41
  %104 = vmatprep.subr.mxu0 0.0
  %105 = vmatpush2.msra.mxu0 %v40
  %106 = vmatprep.subr.mxu0 0.0
  %107 = vmatpush2.msra.mxu0 %v39
  %108 = vmatprep.subr.mxu0 0.0
  %109 = vmatpush2.msra.mxu0 %v38
  %110 = vmatprep.subr.mxu0 0.0
  %111 = vmatpush2.msra.mxu0 %v37
  %112 = vmatprep.subr.mxu0 0.0
  %113 = vmatpush2.msra.mxu0 %v36
  %114 = vmatprep.subr.mxu0 0.0
  %115 = vmatpush2.msra.mxu0 %v35
  %116 = vmatprep.subr.mxu0 0.0
  %117 = vmatpush2.msra.mxu0 %v34
  %118 = vmatprep.mubr.f32.mxu0 %v52
  %119 = vmatmul.mubr.f32.gmra.mxu0 %v16
  %v120 = vpop.f32.mrf.mxu0
  %v121 = vadd.f32 %v48, %v120
  %v122 = vpop.f32.mrf.mxu0
  %123 = vdwg.mxu0
  %vm124 = vcmask 7168
  %125 = vst.msk [vmem:[%s3] sm:$0xff] %vm124, %v121
  // Predicated region
  $region14: #{base_model_forward.49} parent=0 // pred_check
    _
  $region15: #{base_model_forward.49} parent=0 // pred_check_branch
    %127 = sbr.rel (0) target = $region17
  $region16: #{base_model_forward.49} parent=0 // pred_region
    _
  $region17: #{base_model_forward.49} parent=0 // pred_fallthru
    _
  // Predicated region
  $region18: #{base_model_forward.49} parent=0 // pred_check
    _
  $region19: #{base_model_forward.49} parent=0 // pred_check_branch
    %129 = sbr.rel (0) target = $region21
  $region20: #{base_model_forward.49} parent=0 // pred_region
    _
  $region21: #{base_model_forward.49} parent=0 // pred_fallthru
    _

// kernel: base_model_forward.29
$region0: #{base_model_forward.29}
  #allocation0 [shape = 'u32[]', space=smem, size = 0x4, offset = 0x4, fixed_abs, tag = 'smem constant byte address 0x4 - core index']
  #allocation1 [shape = 'u32[144,128]{1,0:T(1,128)}', space=vmem, size = 0x12000, scoped, tag = 'internal scratch']
  %s0 = inlined_call_operand.vmem [shape: f32[8,100], index: 0, kind: input, shape index: {}]
  %s1 = inlined_call_operand.vmem [shape: f32[8,48], index: 1, kind: input, shape index: {}]
  %s2 = inlined_call_operand.vmem [shape: f32[48,96], index: 2, kind: input, shape index: {}]
  %s3 = inlined_call_operand.vmem [shape: f32[100,400], index: 3, kind: input, shape index: {}]
  %s4 = inlined_call_operand.vmem [shape: f32[32,400], index: 4, kind: input, shape index: {}]
  %s5 = inlined_call_operand.vmem [shape: f32[1,400], index: 5, kind: input, shape index: {}]
  %s6 = inlined_call_operand.vmem [shape: f32[96,96], index: 6, kind: input, shape index: {}]
  %s7 = inlined_call_operand.vmem [shape: f32[400,32], index: 7, kind: input, shape index: {}]
  %s8 = inlined_call_operand.vmem [shape: f32[1,32], index: 8, kind: input, shape index: {}]
  %s9 = inlined_call_operand.vmem [shape: f32[96,96], index: 9, kind: input, shape index: {}]
  %s10 = inlined_call_operand.vmem [shape: f32[400,100], index: 10, kind: input, shape index: {}]
  %s11 = inlined_call_operand.vmem [shape: f32[32,100], index: 11, kind: input, shape index: {}]
  %s12 = inlined_call_operand.vmem [shape: f32[1,100], index: 12, kind: input, shape index: {}]
  %s13 = inlined_call_operand.vmem [shape: f32[96,48], index: 13, kind: input, shape index: {}]
  %s14 = inlined_call_operand.vmem [shape: f32[100,16], index: 14, kind: input, shape index: {}]
  %s15 = inlined_call_operand.vmem [shape: f32[1,16], index: 15, kind: input, shape index: {}]
  %s16 = inlined_call_operand.vmem [shape: f32[8,100], index: 16, kind: output, shape index: {0}]
  %s17 = inlined_call_operand.vmem [shape: f32[8,48], index: 17, kind: output, shape index: {1}]
  %18 = xla_tuple %s16, %s17
  %s19 = sld [smem:[#allocation0]]
  $region82: #{base_model_forward.29} parent=0
    _
  %s21 = ssub.s32 1, %s19
  %s22 = scalar_select 0, %s21, %s19
  // Predicated region
  $region2: #{base_model_forward.29} parent=0 // pred_check
    _
  $region3: #{base_model_forward.29} parent=0 // pred_check_branch
    %24 = sbr.rel (0) target = $region5
  $region4: #{base_model_forward.29} parent=0 // pred_region
    _
  $region5: #{base_model_forward.29} parent=0 // pred_fallthru
    _
  // Predicated region
  $region6: #{base_model_forward.29} parent=0 // pred_check
    _
  $region7: #{base_model_forward.29} parent=0 // pred_check_branch
    %26 = sbr.rel (0) target = $region9
  $region8: #{base_model_forward.29} parent=0 // pred_region
    _
  $region9: #{base_model_forward.29} parent=0 // pred_fallthru
    _
  // Predicated region
  $region10: #{base_model_forward.29} parent=0 // pred_check
    _
  $region11: #{base_model_forward.29} parent=0 // pred_check_branch
    %28 = sbr.rel (0) target = $region13
  $region12: #{base_model_forward.29} parent=0 // pred_region
    _
  $region13: #{base_model_forward.29} parent=0 // pred_fallthru
    _
  // Predicated region
  $region14: #{base_model_forward.29} parent=0 // pred_check
    _
  $region15: #{base_model_forward.29} parent=0 // pred_check_branch
    %30 = sbr.rel (0) target = $region17
  $region16: #{base_model_forward.29} parent=0 // pred_region
    _
  $region17: #{base_model_forward.29} parent=0 // pred_fallthru
    _
  // Predicated region
  $region18: #{base_model_forward.29} parent=0 // pred_check
    _
  $region19: #{base_model_forward.29} parent=0 // pred_check_branch
    %32 = sbr.rel (0) target = $region21
  $region20: #{base_model_forward.29} parent=0 // pred_region
    _
  $region21: #{base_model_forward.29} parent=0 // pred_fallthru
    _
  // Predicated region
  $region22: #{base_model_forward.29} parent=0 // pred_check
    _
  $region23: #{base_model_forward.29} parent=0 // pred_check_branch
    %34 = sbr.rel (0) target = $region25
  $region24: #{base_model_forward.29} parent=0 // pred_region
    _
  $region25: #{base_model_forward.29} parent=0 // pred_fallthru
    _
  // Predicated region
  $region26: #{base_model_forward.29} parent=0 // pred_check
    _
  $region27: #{base_model_forward.29} parent=0 // pred_check_branch
    %36 = sbr.rel (0) target = $region29
  $region28: #{base_model_forward.29} parent=0 // pred_region
    _
  $region29: #{base_model_forward.29} parent=0 // pred_fallthru
    _
  // Predicated region
  $region30: #{base_model_forward.29} parent=0 // pred_check
    _
  $region31: #{base_model_forward.29} parent=0 // pred_check_branch
    %38 = sbr.rel (0) target = $region33
  $region32: #{base_model_forward.29} parent=0 // pred_region
    _
  $region33: #{base_model_forward.29} parent=0 // pred_fallthru
    _
  // Predicated region
  $region34: #{base_model_forward.29} parent=0 // pred_check
    _
  $region35: #{base_model_forward.29} parent=0 // pred_check_branch
    %40 = sbr.rel (0) target = $region37
  $region36: #{base_model_forward.29} parent=0 // pred_region
    _
  $region37: #{base_model_forward.29} parent=0 // pred_fallthru
    _
  // Predicated region
  $region38: #{base_model_forward.29} parent=0 // pred_check
    _
  $region39: #{base_model_forward.29} parent=0 // pred_check_branch
    %42 = sbr.rel (0) target = $region41
  $region40: #{base_model_forward.29} parent=0 // pred_region
    _
  $region41: #{base_model_forward.29} parent=0 // pred_fallthru
    _
  // Predicated region
  $region42: #{base_model_forward.29} parent=0 // pred_check
    _
  $region43: #{base_model_forward.29} parent=0 // pred_check_branch
    %44 = sbr.rel (0) target = $region45
  $region44: #{base_model_forward.29} parent=0 // pred_region
    _
  $region45: #{base_model_forward.29} parent=0 // pred_fallthru
    _
  // Predicated region
  $region46: #{base_model_forward.29} parent=0 // pred_check
    _
  $region47: #{base_model_forward.29} parent=0 // pred_check_branch
    %46 = sbr.rel (0) target = $region49
  $region48: #{base_model_forward.29} parent=0 // pred_region
    _
  $region49: #{base_model_forward.29} parent=0 // pred_fallthru
    _
  // Predicated region
  $region50: #{base_model_forward.29} parent=0 // pred_check
    _
  $region51: #{base_model_forward.29} parent=0 // pred_check_branch
    %48 = sbr.rel (0) target = $region53
  $region52: #{base_model_forward.29} parent=0 // pred_region
    _
  $region53: #{base_model_forward.29} parent=0 // pred_fallthru
    _
  // Predicated region
  $region54: #{base_model_forward.29} parent=0 // pred_check
    _
  $region55: #{base_model_forward.29} parent=0 // pred_check_branch
    %50 = sbr.rel (0) target = $region57
  $region56: #{base_model_forward.29} parent=0 // pred_region
    _
  $region57: #{base_model_forward.29} parent=0 // pred_fallthru
    _
  // Predicated region
  $region58: #{base_model_forward.29} parent=0 // pred_check
    _
  $region59: #{base_model_forward.29} parent=0 // pred_check_branch
    %52 = sbr.rel (0) target = $region61
  $region60: #{base_model_forward.29} parent=0 // pred_region
    _
  $region61: #{base_model_forward.29} parent=0 // pred_fallthru
    _
  // Predicated region
  $region62: #{base_model_forward.29} parent=0 // pred_check
    _
  $region63: #{base_model_forward.29} parent=0 // pred_check_branch
    %54 = sbr.rel (0) target = $region65
  $region64: #{base_model_forward.29} parent=0 // pred_region
    _
  $region65: #{base_model_forward.29} parent=0 // pred_fallthru
    _
  %v55 = vld [vmem:[%s0] sm:$0xff]
  %v56 = vld [vmem:[%s1] sm:$0xff]
  %v57 = vld [vmem:[%s2] sm:$0xff]
  %v58 = vld [vmem:[%s2 + $0x8] sm:$0xff]
  %v59 = vld [vmem:[%s2 + $0x10] sm:$0xff]
  %v60 = vld [vmem:[%s2 + $0x18] sm:$0xff]
  %v61 = vld [vmem:[%s2 + $0x20] sm:$0xff]
  %v62 = vld [vmem:[%s2 + $0x28] sm:$0xff]
  %v63 = vld [vmem:[%s3] sm:$0xff]
  %v64 = vld [vmem:[%s3 + $0x8] sm:$0xff]
  %v65 = vld [vmem:[%s3 + $0x10] sm:$0xff]
  %v66 = vld [vmem:[%s3 + $0x18] sm:$0xff]
  %v67 = vld [vmem:[%s3 + $0x20] sm:$0xff]
  %v68 = vld [vmem:[%s3 + $0x28] sm:$0xff]
  %v69 = vld [vmem:[%s3 + $0x30] sm:$0xff]
  %v70 = vld [vmem:[%s3 + $0x38] sm:$0xff]
  %v71 = vld [vmem:[%s3 + $0x40] sm:$0xff]
  %v72 = vld [vmem:[%s3 + $0x48] sm:$0xff]
  %v73 = vld [vmem:[%s3 + $0x50] sm:$0xff]
  %v74 = vld [vmem:[%s3 + $0x58] sm:$0xff]
  %v75 = vld [vmem:[%s3 + $0x60] sm:$0xff]
  %v76 = vld [vmem:[%s3 + $0x68] sm:$0xff]
  %v77 = vld [vmem:[%s3 + $0x70] sm:$0xff]
  %v78 = vld [vmem:[%s3 + $0x78] sm:$0xff]
  %v79 = vld [vmem:[%s3 + $0x80] sm:$0xff]
  %v80 = vld [vmem:[%s3 + $0x88] sm:$0xff]
  %v81 = vld [vmem:[%s3 + $0x90] sm:$0xff]
  %v82 = vld [vmem:[%s3 + $0x98] sm:$0xff]
  %v83 = vld [vmem:[%s3 + $0xa0] sm:$0xff]
  %v84 = vld [vmem:[%s3 + $0xa8] sm:$0xff]
  %v85 = vld [vmem:[%s3 + $0xb0] sm:$0xff]
  %v86 = vld [vmem:[%s3 + $0xb8] sm:$0xff]
  %v87 = vld [vmem:[%s3 + $0xc0] sm:$0xff]
  %v88 = vld [vmem:[%s3 + $0xc8] sm:$0xff]
  %v89 = vld [vmem:[%s3 + $0xd0] sm:$0xff]
  %v90 = vld [vmem:[%s3 + $0xd8] sm:$0xff]
  %v91 = vld [vmem:[%s3 + $0xe0] sm:$0xff]
  %v92 = vld [vmem:[%s3 + $0xe8] sm:$0xff]
  %v93 = vld [vmem:[%s3 + $0xf0] sm:$0xff]
  %v94 = vld [vmem:[%s3 + $0xf8] sm:$0xff]
  %v95 = vld [vmem:[%s3 + $0x100] sm:$0xff]
  %v96 = vld [vmem:[%s3 + $0x108] sm:$0xff]
  %v97 = vld [vmem:[%s3 + $0x110] sm:$0xff]
  %v98 = vld [vmem:[%s3 + $0x118] sm:$0xff]
  %v99 = vld [vmem:[%s3 + $0x120] sm:$0xff]
  %v100 = vld [vmem:[%s3 + $0x128] sm:$0xff]
  %v101 = vld [vmem:[%s3 + $0x130] sm:$0xff]
  %v102 = vld [vmem:[%s3 + $0x138] sm:$0xff]
  %v103 = vld [vmem:[%s3 + $0x140] sm:$0xff]
  %v104 = vld [vmem:[%s3 + $0x148] sm:$0xff]
  %v105 = vld [vmem:[%s3 + $0x150] sm:$0xff]
  %v106 = vld [vmem:[%s3 + $0x158] sm:$0xff]
  %v107 = vld [vmem:[%s3 + $0x160] sm:$0xff]
  %v108 = vld [vmem:[%s3 + $0x168] sm:$0xff]
  %v109 = vld [vmem:[%s3 + $0x170] sm:$0xff]
  %v110 = vld [vmem:[%s3 + $0x178] sm:$0xff]
  %v111 = vld [vmem:[%s3 + $0x180] sm:$0xf]
  %v112 = vld [vmem:[%s3 + $0x188] sm:$0xf]
  %v113 = vld [vmem:[%s3 + $0x190] sm:$0xf]
  %v114 = vld [vmem:[%s3 + $0x198] sm:$0xf]
  %v115 = vld [vmem:[%s4] sm:$0xff]
  %v116 = vld [vmem:[%s4 + $0x8] sm:$0xff]
  %v117 = vld [vmem:[%s4 + $0x10] sm:$0xff]
  %v118 = vld [vmem:[%s4 + $0x18] sm:$0xff]
  %v119 = vld [vmem:[%s4 + $0x20] sm:$0xff]
  %v120 = vld [vmem:[%s4 + $0x28] sm:$0xff]
  %v121 = vld [vmem:[%s4 + $0x30] sm:$0xff]
  %v122 = vld [vmem:[%s4 + $0x38] sm:$0xff]
  %v123 = vld [vmem:[%s4 + $0x40] sm:$0xff]
  %v124 = vld [vmem:[%s4 + $0x48] sm:$0xff]
  %v125 = vld [vmem:[%s4 + $0x50] sm:$0xff]
  %v126 = vld [vmem:[%s4 + $0x58] sm:$0xff]
  %v127 = vld [vmem:[%s4 + $0x60] sm:$0xff]
  %v128 = vld [vmem:[%s4 + $0x68] sm:$0xff]
  %v129 = vld [vmem:[%s4 + $0x70] sm:$0xff]
  %v130 = vld [vmem:[%s4 + $0x78] sm:$0xff]
  %v131 = vld [vmem:[%s5] sm:$0xf]
  %v132 = vld [vmem:[%s6] sm:$0xff]
  %v133 = vld [vmem:[%s6 + $0x8] sm:$0xff]
  %v134 = vld [vmem:[%s6 + $0x10] sm:$0xff]
  %v135 = vld [vmem:[%s6 + $0x18] sm:$0xff]
  %v136 = vld [vmem:[%s6 + $0x20] sm:$0xff]
  %v137 = vld [vmem:[%s6 + $0x28] sm:$0xff]
  %v138 = vld [vmem:[%s6 + $0x30] sm:$0xff]
  %v139 = vld [vmem:[%s6 + $0x38] sm:$0xff]
  %v140 = vld [vmem:[%s6 + $0x40] sm:$0xff]
  %v141 = vld [vmem:[%s6 + $0x48] sm:$0xff]
  %v142 = vld [vmem:[%s6 + $0x50] sm:$0xff]
  %v143 = vld [vmem:[%s6 + $0x58] sm:$0xff]
  %v144 = vld [vmem:[%s7] sm:$0xff]
  %v145 = vld [vmem:[%s7 + $0x8] sm:$0xff]
  %v146 = vld [vmem:[%s7 + $0x10] sm:$0xff]
  %v147 = vld [vmem:[%s7 + $0x18] sm:$0xff]
  %v148 = vld [vmem:[%s7 + $0x20] sm:$0xff]
  %v149 = vld [vmem:[%s7 + $0x28] sm:$0xff]
  %v150 = vld [vmem:[%s7 + $0x30] sm:$0xff]
  %v151 = vld [vmem:[%s7 + $0x38] sm:$0xff]
  %v152 = vld [vmem:[%s7 + $0x40] sm:$0xff]
  %v153 = vld [vmem:[%s7 + $0x48] sm:$0xff]
  %v154 = vld [vmem:[%s7 + $0x50] sm:$0xff]
  %v155 = vld [vmem:[%s7 + $0x58] sm:$0xff]
  %v156 = vld [vmem:[%s7 + $0x60] sm:$0xff]
  %v157 = vld [vmem:[%s7 + $0x68] sm:$0xff]
  %v158 = vld [vmem:[%s7 + $0x70] sm:$0xff]
  %v159 = vld [vmem:[%s7 + $0x78] sm:$0xff]
  %v160 = vld [vmem:[%s7 + $0x80] sm:$0xff]
  %v161 = vld [vmem:[%s7 + $0x88] sm:$0xff]
  %v162 = vld [vmem:[%s7 + $0x90] sm:$0xff]
  %v163 = vld [vmem:[%s7 + $0x98] sm:$0xff]
  %v164 = vld [vmem:[%s7 + $0xa0] sm:$0xff]
  %v165 = vld [vmem:[%s7 + $0xa8] sm:$0xff]
  %v166 = vld [vmem:[%s7 + $0xb0] sm:$0xff]
  %v167 = vld [vmem:[%s7 + $0xb8] sm:$0xff]
  %v168 = vld [vmem:[%s7 + $0xc0] sm:$0xff]
  %v169 = vld [vmem:[%s7 + $0xc8] sm:$0xff]
  %v170 = vld [vmem:[%s7 + $0xd0] sm:$0xff]
  %v171 = vld [vmem:[%s7 + $0xd8] sm:$0xff]
  %v172 = vld [vmem:[%s7 + $0xe0] sm:$0xff]
  %v173 = vld [vmem:[%s7 + $0xe8] sm:$0xff]
  %v174 = vld [vmem:[%s7 + $0xf0] sm:$0xff]
  %v175 = vld [vmem:[%s7 + $0xf8] sm:$0xff]
  %v176 = vld [vmem:[%s7 + $0x100] sm:$0xff]
  %v177 = vld [vmem:[%s7 + $0x108] sm:$0xff]
  %v178 = vld [vmem:[%s7 + $0x110] sm:$0xff]
  %v179 = vld [vmem:[%s7 + $0x118] sm:$0xff]
  %v180 = vld [vmem:[%s7 + $0x120] sm:$0xff]
  %v181 = vld [vmem:[%s7 + $0x128] sm:$0xff]
  %v182 = vld [vmem:[%s7 + $0x130] sm:$0xff]
  %v183 = vld [vmem:[%s7 + $0x138] sm:$0xff]
  %v184 = vld [vmem:[%s7 + $0x140] sm:$0xff]
  %v185 = vld [vmem:[%s7 + $0x148] sm:$0xff]
  %v186 = vld [vmem:[%s7 + $0x150] sm:$0xff]
  %v187 = vld [vmem:[%s7 + $0x158] sm:$0xff]
  %v188 = vld [vmem:[%s7 + $0x160] sm:$0xff]
  %v189 = vld [vmem:[%s7 + $0x168] sm:$0xff]
  %v190 = vld [vmem:[%s7 + $0x170] sm:$0xff]
  %v191 = vld [vmem:[%s7 + $0x178] sm:$0xff]
  %v192 = vld [vmem:[%s7 + $0x180] sm:$0xff]
  %v193 = vld [vmem:[%s7 + $0x188] sm:$0xff]
  %v194 = vld [vmem:[%s8] sm:$0x1]
  %vm195 = vcmask 392192
  %v197 = vsel %vm195, %v56, 0
  %199 = vmatprep.subr.mxu0 0.0
  %200 = vmatpush1.msra.mxu0 0.0
  %201 = vmatprep.subr.mxu0 0.0
  %202 = vmatpush1.msra.mxu0 0.0
  %203 = vmatprep.subr.mxu0 0.0
  %204 = vmatpush1.msra.mxu0 0.0
  %205 = vmatprep.subr.mxu0 0.0
  %206 = vmatpush1.msra.mxu0 0.0
  %207 = vmatprep.subr.mxu0 0.0
  %208 = vmatpush1.msra.mxu0 0.0
  %209 = vmatprep.subr.mxu0 0.0
  %210 = vmatpush1.msra.mxu0 0.0
  %211 = vmatprep.subr.mxu0 0.0
  %212 = vmatpush1.msra.mxu0 0.0
  %213 = vmatprep.subr.mxu0 0.0
  %214 = vmatpush1.msra.mxu0 0.0
  %215 = vmatprep.subr.mxu0 0.0
  %216 = vmatpush1.msra.mxu0 0.0
  %217 = vmatprep.subr.mxu0 0.0
  %218 = vmatpush1.msra.mxu0 0.0
  %219 = vmatprep.subr.mxu0 0.0
  %220 = vmatpush1.msra.mxu0 %v62
  %221 = vmatprep.subr.mxu0 0.0
  %222 = vmatpush1.msra.mxu0 %v61
  %223 = vmatprep.subr.mxu0 0.0
  %224 = vmatpush1.msra.mxu0 %v60
  %225 = vmatprep.subr.mxu0 0.0
  %226 = vmatpush1.msra.mxu0 %v59
  %227 = vmatprep.subr.mxu0 0.0
  %228 = vmatpush1.msra.mxu0 %v58
  %229 = vmatprep.subr.mxu0 0.0
  %230 = vmatpush1.msra.mxu0 %v57
  %231 = vmatprep.subr.mxu0 0.0
  %232 = vmatpush2.msra.mxu0 0.0
  %233 = vmatprep.subr.mxu0 0.0
  %234 = vmatpush2.msra.mxu0 0.0
  %235 = vmatprep.subr.mxu0 0.0
  %236 = vmatpush2.msra.mxu0 0.0
  %237 = vmatprep.subr.mxu0 0.0
  %238 = vmatpush2.msra.mxu0 0.0
  %239 = vmatprep.subr.mxu0 0.0
  %240 = vmatpush2.msra.mxu0 0.0
  %241 = vmatprep.subr.mxu0 0.0
  %242 = vmatpush2.msra.mxu0 0.0
  %243 = vmatprep.subr.mxu0 0.0
  %244 = vmatpush2.msra.mxu0 0.0
  %245 = vmatprep.subr.mxu0 0.0
  %246 = vmatpush2.msra.mxu0 0.0
  %247 = vmatprep.subr.mxu0 0.0
  %248 = vmatpush2.msra.mxu0 0.0
  %249 = vmatprep.subr.mxu0 0.0
  %250 = vmatpush2.msra.mxu0 0.0
  %251 = vmatprep.subr.mxu0 0.0
  %252 = vmatpush2.msra.mxu0 0.0
  %253 = vmatprep.subr.mxu0 0.0
  %254 = vmatpush2.msra.mxu0 0.0
  %255 = vmatprep.subr.mxu0 0.0
  %256 = vmatpush2.msra.mxu0 0.0
  %257 = vmatprep.subr.mxu0 0.0
  %258 = vmatpush2.msra.mxu0 0.0
  %259 = vmatprep.subr.mxu0 0.0
  %260 = vmatpush2.msra.mxu0 0.0
  %261 = vmatprep.subr.mxu0 0.0
  %262 = vmatpush2.msra.mxu0 0.0
  %263 = vmatprep.mubr.f32.mxu0 0.0
  %264 = vmatmul.mubr.f32.gmra.mxu0 %v197
  %v265 = vpop.f32.mrf.mxu0
  %v266 = vadd.f32 0.0, %v265
  %v267 = vpop.f32.mrf.mxu0
  %268 = vdwg.mxu0
  %v269 = vmul.f32 %v266, %v266
  %271 = vrot.lane.b32.xlu0 %v269, 96
  %v272 = vpop.permute.xlu0 %271
  %v274 = vadd.f32 %v269, %v272
  %275 = vrot.lane.b32.xlu0 %v269, 64
  %v276 = vpop.permute.xlu0 %275
  %v278 = vadd.f32 %v274, %v276
  %v279 = vmax.f32 %v278, 1e-08
  %v280 = vrsqrt.pop %v279
  %v281 = vmul.f32 %v279, %v280
  %vm282 = vcmp.eq.f32.partialorder %v279, inf
  %v283 = vsel %vm282, %v279, %v281
  %vm284 = vcmp.eq.f32.partialorder %v279, 0.0
  %v285 = vand.u32 %v279, 2147483648
  %v286 = vsel %vm284, %v285, %v283
  %vm287 = vcmask 261120
  %v289 = vsel %vm287, %v286, 0
  %291 = vmatprep.subr.mxu0 0.0
  %292 = vmatpush1.msra.mxu0 0.0
  %293 = vmatprep.subr.mxu0 0.0
  %294 = vmatpush1.msra.mxu0 0.0
  %295 = vmatprep.subr.mxu0 0.0
  %296 = vmatpush1.msra.mxu0 0.0
  %297 = vmatprep.subr.mxu0 0.0
  %298 = vmatpush1.msra.mxu0 0.0
  %299 = vmatprep.subr.mxu0 0.0
  %300 = vmatpush1.msra.mxu0 0.0
  %301 = vmatprep.subr.mxu0 0.0
  %302 = vmatpush1.msra.mxu0 0.0
  %303 = vmatprep.subr.mxu0 0.0
  %304 = vmatpush1.msra.mxu0 0.0
  %305 = vmatprep.subr.mxu0 0.0
  %306 = vmatpush1.msra.mxu0 0.0
  %307 = vmatprep.subr.mxu0 0.0
  %308 = vmatpush1.msra.mxu0 0.0
  %309 = vmatprep.subr.mxu0 0.0
  %310 = vmatpush1.msra.mxu0 0.0
  %311 = vmatprep.subr.mxu0 0.0
  %312 = vmatpush1.msra.mxu0 0.0
  %313 = vmatprep.subr.mxu0 0.0
  %314 = vmatpush1.msra.mxu0 0.0
  %315 = vmatprep.subr.mxu0 %v128
  %316 = vmatpush1.msra.mxu0 %v127
  %317 = vmatprep.subr.mxu0 %v124
  %318 = vmatpush1.msra.mxu0 %v123
  %319 = vmatprep.subr.mxu0 %v120
  %320 = vmatpush1.msra.mxu0 %v119
  %321 = vmatprep.subr.mxu0 %v116
  %322 = vmatpush1.msra.mxu0 %v115
  %323 = vmatprep.subr.mxu0 0.0
  %324 = vmatpush2.msra.mxu0 0.0
  %325 = vmatprep.subr.mxu0 0.0
  %326 = vmatpush2.msra.mxu0 0.0
  %327 = vmatprep.subr.mxu0 0.0
  %328 = vmatpush2.msra.mxu0 0.0
  %329 = vmatprep.subr.mxu0 0.0
  %330 = vmatpush2.msra.mxu0 0.0
  %331 = vmatprep.subr.mxu0 0.0
  %332 = vmatpush2.msra.mxu0 0.0
  %333 = vmatprep.subr.mxu0 0.0
  %334 = vmatpush2.msra.mxu0 0.0
  %335 = vmatprep.subr.mxu0 0.0
  %336 = vmatpush2.msra.mxu0 0.0
  %337 = vmatprep.subr.mxu0 0.0
  %338 = vmatpush2.msra.mxu0 0.0
  %339 = vmatprep.subr.mxu0 0.0
  %340 = vmatpush2.msra.mxu0 0.0
  %341 = vmatprep.subr.mxu0 0.0
  %342 = vmatpush2.msra.mxu0 0.0
  %343 = vmatprep.subr.mxu0 0.0
  %344 = vmatpush2.msra.mxu0 0.0
  %345 = vmatprep.subr.mxu0 0.0
  %346 = vmatpush2.msra.mxu0 0.0
  %347 = vmatprep.subr.mxu0 0.0
  %348 = vmatpush2.msra.mxu0 0.0
  %349 = vmatprep.subr.mxu0 0.0
  %350 = vmatpush2.msra.mxu0 0.0
  %351 = vmatprep.subr.mxu0 0.0
  %352 = vmatpush2.msra.mxu0 0.0
  %353 = vmatprep.subr.mxu0 0.0
  %354 = vmatpush2.msra.mxu0 0.0
  %355 = vmatprep.mubr.f32.mxu0 0.0
  %356 = vmatmul.mubr.f32.gmra.mxu0 %v289
  %v357 = vpop.f32.mrf.mxu0
  %v358 = vadd.f32 0.0, %v357
  %v359 = vpop.f32.mrf.mxu0
  %v360 = vadd.f32 0.0, %v359
  %361 = vdwg.mxu0
  %362 = vmatprep.subr.mxu0 0.0
  %363 = vmatpush1.msra.mxu0 0.0
  %364 = vmatprep.subr.mxu0 0.0
  %365 = vmatpush1.msra.mxu0 0.0
  %366 = vmatprep.subr.mxu0 0.0
  %367 = vmatpush1.msra.mxu0 0.0
  %368 = vmatprep.subr.mxu0 0.0
  %369 = vmatpush1.msra.mxu0 0.0
  %370 = vmatprep.subr.mxu0 0.0
  %371 = vmatpush1.msra.mxu0 0.0
  %372 = vmatprep.subr.mxu0 0.0
  %373 = vmatpush1.msra.mxu0 0.0
  %374 = vmatprep.subr.mxu0 0.0
  %375 = vmatpush1.msra.mxu0 0.0
  %376 = vmatprep.subr.mxu0 0.0
  %377 = vmatpush1.msra.mxu0 0.0
  %378 = vmatprep.subr.mxu0 0.0
  %379 = vmatpush1.msra.mxu0 0.0
  %380 = vmatprep.subr.mxu0 0.0
  %381 = vmatpush1.msra.mxu0 0.0
  %382 = vmatprep.subr.mxu0 0.0
  %383 = vmatpush1.msra.mxu0 0.0
  %384 = vmatprep.subr.mxu0 0.0
  %385 = vmatpush1.msra.mxu0 0.0
  %386 = vmatprep.subr.mxu0 %v130
  %387 = vmatpush1.msra.mxu0 %v129
  %388 = vmatprep.subr.mxu0 %v126
  %389 = vmatpush1.msra.mxu0 %v125
  %390 = vmatprep.subr.mxu0 %v122
  %391 = vmatpush1.msra.mxu0 %v121
  %392 = vmatprep.subr.mxu0 %v118
  %393 = vmatpush1.msra.mxu0 %v117
  %394 = vmatprep.subr.mxu0 0.0
  %395 = vmatpush2.msra.mxu0 0.0
  %396 = vmatprep.subr.mxu0 0.0
  %397 = vmatpush2.msra.mxu0 0.0
  %398 = vmatprep.subr.mxu0 0.0
  %399 = vmatpush2.msra.mxu0 0.0
  %400 = vmatprep.subr.mxu0 0.0
  %401 = vmatpush2.msra.mxu0 0.0
  %402 = vmatprep.subr.mxu0 0.0
  %403 = vmatpush2.msra.mxu0 0.0
  %404 = vmatprep.subr.mxu0 0.0
  %405 = vmatpush2.msra.mxu0 0.0
  %406 = vmatprep.subr.mxu0 0.0
  %407 = vmatpush2.msra.mxu0 0.0
  %408 = vmatprep.subr.mxu0 0.0
  %409 = vmatpush2.msra.mxu0 0.0
  %410 = vmatprep.subr.mxu0 0.0
  %411 = vmatpush2.msra.mxu0 0.0
  %412 = vmatprep.subr.mxu0 0.0
  %413 = vmatpush2.msra.mxu0 0.0
  %414 = vmatprep.subr.mxu0 0.0
  %415 = vmatpush2.msra.mxu0 0.0
  %416 = vmatprep.subr.mxu0 0.0
  %417 = vmatpush2.msra.mxu0 0.0
  %418 = vmatprep.subr.mxu0 0.0
  %419 = vmatpush2.msra.mxu0 0.0
  %420 = vmatprep.subr.mxu0 0.0
  %421 = vmatpush2.msra.mxu0 0.0
  %422 = vmatprep.subr.mxu0 0.0
  %423 = vmatpush2.msra.mxu0 0.0
  %424 = vmatprep.subr.mxu0 0.0
  %425 = vmatpush2.msra.mxu0 0.0
  %426 = vmatprep.mubr.f32.mxu0 0.0
  %427 = vmatmul.mubr.f32.gmra.mxu0 %v289
  %v428 = vpop.f32.mrf.mxu0
  %v429 = vadd.f32 0.0, %v428
  %v430 = vpop.f32.mrf.mxu0
  %v431 = vadd.f32 0.0, %v430
  %432 = vdwg.mxu0
  %vm433 = vcmask 818176
  %v435 = vsel %vm433, %v55, 0
  %vm437 = vcmask 1043456
  %v439 = vsel %vm437, %v111, 0
  %v442 = vsel %vm437, %v112, 0
  %v445 = vsel %vm437, %v113, 0
  %v448 = vsel %vm437, %v114, 0
  %450 = vmatprep.subr.mxu0 0.0
  %451 = vmatpush1.msra.mxu0 0.0
  %452 = vmatprep.subr.mxu0 0.0
  %453 = vmatpush1.msra.mxu0 0.0
  %454 = vmatprep.subr.mxu0 0.0
  %455 = vmatpush1.msra.mxu0 0.0
  %456 = vmatprep.subr.mxu0 %v442
  %457 = vmatpush1.msra.mxu0 %v439
  %458 = vmatprep.subr.mxu0 %v108
  %459 = vmatpush1.msra.mxu0 %v107
  %460 = vmatprep.subr.mxu0 %v104
  %461 = vmatpush1.msra.mxu0 %v103
  %462 = vmatprep.subr.mxu0 %v100
  %463 = vmatpush1.msra.mxu0 %v99
  %464 = vmatprep.subr.mxu0 %v96
  %465 = vmatpush1.msra.mxu0 %v95
  %466 = vmatprep.subr.mxu0 %v92
  %467 = vmatpush1.msra.mxu0 %v91
  %468 = vmatprep.subr.mxu0 %v88
  %469 = vmatpush1.msra.mxu0 %v87
  %470 = vmatprep.subr.mxu0 %v84
  %471 = vmatpush1.msra.mxu0 %v83
  %472 = vmatprep.subr.mxu0 %v80
  %473 = vmatpush1.msra.mxu0 %v79
  %474 = vmatprep.subr.mxu0 %v76
  %475 = vmatpush1.msra.mxu0 %v75
  %476 = vmatprep.subr.mxu0 %v72
  %477 = vmatpush1.msra.mxu0 %v71
  %478 = vmatprep.subr.mxu0 %v68
  %479 = vmatpush1.msra.mxu0 %v67
  %480 = vmatprep.subr.mxu0 %v64
  %481 = vmatpush1.msra.mxu0 %v63
  %482 = vmatprep.subr.mxu0 0.0
  %483 = vmatpush2.msra.mxu0 0.0
  %484 = vmatprep.subr.mxu0 0.0
  %485 = vmatpush2.msra.mxu0 0.0
  %486 = vmatprep.subr.mxu0 0.0
  %487 = vmatpush2.msra.mxu0 0.0
  %488 = vmatprep.subr.mxu0 0.0
  %489 = vmatpush2.msra.mxu0 0.0
  %490 = vmatprep.subr.mxu0 0.0
  %491 = vmatpush2.msra.mxu0 0.0
  %492 = vmatprep.subr.mxu0 0.0
  %493 = vmatpush2.msra.mxu0 0.0
  %494 = vmatprep.subr.mxu0 0.0
  %495 = vmatpush2.msra.mxu0 0.0
  %496 = vmatprep.subr.mxu0 0.0
  %497 = vmatpush2.msra.mxu0 0.0
  %498 = vmatprep.subr.mxu0 0.0
  %499 = vmatpush2.msra.mxu0 0.0
  %500 = vmatprep.subr.mxu0 0.0
  %501 = vmatpush2.msra.mxu0 0.0
  %502 = vmatprep.subr.mxu0 0.0
  %503 = vmatpush2.msra.mxu0 0.0
  %504 = vmatprep.subr.mxu0 0.0
  %505 = vmatpush2.msra.mxu0 0.0
  %506 = vmatprep.subr.mxu0 0.0
  %507 = vmatpush2.msra.mxu0 0.0
  %508 = vmatprep.subr.mxu0 0.0
  %509 = vmatpush2.msra.mxu0 0.0
  %510 = vmatprep.subr.mxu0 0.0
  %511 = vmatpush2.msra.mxu0 0.0
  %512 = vmatprep.subr.mxu0 0.0
  %513 = vmatpush2.msra.mxu0 0.0
  %514 = vmatprep.mubr.f32.mxu0 0.0
  %515 = vmatmul.mubr.f32.gmra.mxu0 %v435
  %v516 = vpop.f32.mrf.mxu0
  %v517 = vadd.f32 %v358, %v516
  %v518 = vpop.f32.mrf.mxu0
  %v519 = vadd.f32 %v360, %v518
  %520 = vdwg.mxu0
  %521 = vmatprep.subr.mxu0 0.0
  %522 = vmatpush1.msra.mxu0 0.0
  %523 = vmatprep.subr.mxu0 0.0
  %524 = vmatpush1.msra.mxu0 0.0
  %525 = vmatprep.subr.mxu0 0.0
  %526 = vmatpush1.msra.mxu0 0.0
  %527 = vmatprep.subr.mxu0 %v448
  %528 = vmatpush1.msra.mxu0 %v445
  %529 = vmatprep.subr.mxu0 %v110
  %530 = vmatpush1.msra.mxu0 %v109
  %531 = vmatprep.subr.mxu0 %v106
  %532 = vmatpush1.msra.mxu0 %v105
  %533 = vmatprep.subr.mxu0 %v102
  %534 = vmatpush1.msra.mxu0 %v101
  %535 = vmatprep.subr.mxu0 %v98
  %536 = vmatpush1.msra.mxu0 %v97
  %537 = vmatprep.subr.mxu0 %v94
  %538 = vmatpush1.msra.mxu0 %v93
  %539 = vmatprep.subr.mxu0 %v90
  %540 = vmatpush1.msra.mxu0 %v89
  %541 = vmatprep.subr.mxu0 %v86
  %542 = vmatpush1.msra.mxu0 %v85
  %543 = vmatprep.subr.mxu0 %v82
  %544 = vmatpush1.msra.mxu0 %v81
  %545 = vmatprep.subr.mxu0 %v78
  %546 = vmatpush1.msra.mxu0 %v77
  %547 = vmatprep.subr.mxu0 %v74
  %548 = vmatpush1.msra.mxu0 %v73
  %549 = vmatprep.subr.mxu0 %v70
  %550 = vmatpush1.msra.mxu0 %v69
  %551 = vmatprep.subr.mxu0 %v66
  %552 = vmatpush1.msra.mxu0 %v65
  %553 = vmatprep.subr.mxu0 0.0
  %554 = vmatpush2.msra.mxu0 0.0
  %555 = vmatprep.subr.mxu0 0.0
  %556 = vmatpush2.msra.mxu0 0.0
  %557 = vmatprep.subr.mxu0 0.0
  %558 = vmatpush2.msra.mxu0 0.0
  %559 = vmatprep.subr.mxu0 0.0
  %560 = vmatpush2.msra.mxu0 0.0
  %561 = vmatprep.subr.mxu0 0.0
  %562 = vmatpush2.msra.mxu0 0.0
  %563 = vmatprep.subr.mxu0 0.0
  %564 = vmatpush2.msra.mxu0 0.0
  %565 = vmatprep.subr.mxu0 0.0
  %566 = vmatpush2.msra.mxu0 0.0
  %567 = vmatprep.subr.mxu0 0.0
  %568 = vmatpush2.msra.mxu0 0.0
  %569 = vmatprep.subr.mxu0 0.0
  %570 = vmatpush2.msra.mxu0 0.0
  %571 = vmatprep.subr.mxu0 0.0
  %572 = vmatpush2.msra.mxu0 0.0
  %573 = vmatprep.subr.mxu0 0.0
  %574 = vmatpush2.msra.mxu0 0.0
  %575 = vmatprep.subr.mxu0 0.0
  %576 = vmatpush2.msra.mxu0 0.0
  %577 = vmatprep.subr.mxu0 0.0
  %578 = vmatpush2.msra.mxu0 0.0
  %579 = vmatprep.subr.mxu0 0.0
  %580 = vmatpush2.msra.mxu0 0.0
  %581 = vmatprep.subr.mxu0 0.0
  %582 = vmatpush2.msra.mxu0 0.0
  %583 = vmatprep.subr.mxu0 0.0
  %584 = vmatpush2.msra.mxu0 0.0
  %585 = vmatprep.mubr.f32.mxu0 0.0
  %586 = vmatmul.mubr.f32.gmra.mxu0 %v435
  %v587 = vpop.f32.mrf.mxu0
  %v588 = vadd.f32 %v429, %v587
  %v589 = vpop.f32.mrf.mxu0
  %v590 = vadd.f32 %v431, %v589
  %591 = vdwg.mxu0
  %v593 = vlaneseq
  %v594 = vshrl.u32 %v593, 7
  %v595 = vsub.s32 0, %v594
  %v596 = vrot.slane %v131, %v595
  %v597 = vlaneseq
  %v598 = vshrl.u32 %v597, 7
  %v599 = vsub.s32 1, %v598
  %v600 = vrot.slane %v131, %v599
  %v601 = vlaneseq
  %v602 = vshrl.u32 %v601, 7
  %v603 = vsub.s32 2, %v602
  %v604 = vrot.slane %v131, %v603
  %v605 = vlaneseq
  %v606 = vshrl.u32 %v605, 7
  %v607 = vsub.s32 3, %v606
  %v608 = vrot.slane %v131, %v607
  %v613 = vadd.f32 %v517, %v596
  %v614 = vadd.f32 %v519, %v600
  %v615 = vadd.f32 %v588, %v604
  %v616 = vadd.f32 %v590, %v608
  %v617 = vmax.f32 %v613, 0.0
  %v618 = vmax.f32 %v614, 0.0
  %v619 = vmax.f32 %v615, 0.0
  %v620 = vmax.f32 %v616, 0.0
  %v622 = vlaneseq
  %v623 = vshrl.u32 %v622, 7
  %v624 = vsub.s32 0, %v623
  %v625 = vrot.slane %v194, %v624
  %vm627 = vcmask 130048
  %v629 = vsel %vm627, %v616, 0
  %631 = vmatprep.subr.mxu0 0.0
  %632 = vmatpush1.msra.mxu0 %v159
  %633 = vmatprep.subr.mxu0 0.0
  %634 = vmatpush1.msra.mxu0 %v158
  %635 = vmatprep.subr.mxu0 0.0
  %636 = vmatpush1.msra.mxu0 %v157
  %637 = vmatprep.subr.mxu0 0.0
  %638 = vmatpush1.msra.mxu0 %v156
  %639 = vmatprep.subr.mxu0 0.0
  %640 = vmatpush1.msra.mxu0 %v155
  %641 = vmatprep.subr.mxu0 0.0
  %642 = vmatpush1.msra.mxu0 %v154
  %643 = vmatprep.subr.mxu0 0.0
  %644 = vmatpush1.msra.mxu0 %v153
  %645 = vmatprep.subr.mxu0 0.0
  %646 = vmatpush1.msra.mxu0 %v152
  %647 = vmatprep.subr.mxu0 0.0
  %648 = vmatpush1.msra.mxu0 %v151
  %649 = vmatprep.subr.mxu0 0.0
  %650 = vmatpush1.msra.mxu0 %v150
  %651 = vmatprep.subr.mxu0 0.0
  %652 = vmatpush1.msra.mxu0 %v149
  %653 = vmatprep.subr.mxu0 0.0
  %654 = vmatpush1.msra.mxu0 %v148
  %655 = vmatprep.subr.mxu0 0.0
  %656 = vmatpush1.msra.mxu0 %v147
  %657 = vmatprep.subr.mxu0 0.0
  %658 = vmatpush1.msra.mxu0 %v146
  %659 = vmatprep.subr.mxu0 0.0
  %660 = vmatpush1.msra.mxu0 %v145
  %661 = vmatprep.subr.mxu0 0.0
  %662 = vmatpush1.msra.mxu0 %v144
  %663 = vmatprep.subr.mxu0 0.0
  %664 = vmatpush2.msra.mxu0 %v175
  %665 = vmatprep.subr.mxu0 0.0
  %666 = vmatpush2.msra.mxu0 %v174
  %667 = vmatprep.subr.mxu0 0.0
  %668 = vmatpush2.msra.mxu0 %v173
  %669 = vmatprep.subr.mxu0 0.0
  %670 = vmatpush2.msra.mxu0 %v172
  %671 = vmatprep.subr.mxu0 0.0
  %672 = vmatpush2.msra.mxu0 %v171
  %673 = vmatprep.subr.mxu0 0.0
  %674 = vmatpush2.msra.mxu0 %v170
  %675 = vmatprep.subr.mxu0 0.0
  %676 = vmatpush2.msra.mxu0 %v169
  %677 = vmatprep.subr.mxu0 0.0
  %678 = vmatpush2.msra.mxu0 %v168
  %679 = vmatprep.subr.mxu0 0.0
  %680 = vmatpush2.msra.mxu0 %v167
  %681 = vmatprep.subr.mxu0 0.0
  %682 = vmatpush2.msra.mxu0 %v166
  %683 = vmatprep.subr.mxu0 0.0
  %684 = vmatpush2.msra.mxu0 %v165
  %685 = vmatprep.subr.mxu0 0.0
  %686 = vmatpush2.msra.mxu0 %v164
  %687 = vmatprep.subr.mxu0 0.0
  %688 = vmatpush2.msra.mxu0 %v163
  %689 = vmatprep.subr.mxu0 0.0
  %690 = vmatpush2.msra.mxu0 %v162
  %691 = vmatprep.subr.mxu0 0.0
  %692 = vmatpush2.msra.mxu0 %v161
  %693 = vmatprep.subr.mxu0 0.0
  %694 = vmatpush2.msra.mxu0 %v160
  %695 = vmatprep.mubr.f32.mxu0 %v614
  %696 = vmatmul.mubr.f32.gmra.mxu0 %v613
  %v697 = vpop.f32.mrf.mxu0
  %v698 = vadd.f32 %v625, %v697
  %v699 = vpop.f32.mrf.mxu0
  %700 = vdwg.mxu0
  %701 = vmatprep.subr.mxu0 0.0
  %702 = vmatpush1.msra.mxu0 %v191
  %703 = vmatprep.subr.mxu0 0.0
  %704 = vmatpush1.msra.mxu0 %v190
  %705 = vmatprep.subr.mxu0 0.0
  %706 = vmatpush1.msra.mxu0 %v189
  %707 = vmatprep.subr.mxu0 0.0
  %708 = vmatpush1.msra.mxu0 %v188
  %709 = vmatprep.subr.mxu0 0.0
  %710 = vmatpush1.msra.mxu0 %v187
  %711 = vmatprep.subr.mxu0 0.0
  %712 = vmatpush1.msra.mxu0 %v186
  %713 = vmatprep.subr.mxu0 0.0
  %714 = vmatpush1.msra.mxu0 %v185
  %715 = vmatprep.subr.mxu0 0.0
  %716 = vmatpush1.msra.mxu0 %v184
  %717 = vmatprep.subr.mxu0 0.0
  %718 = vmatpush1.msra.mxu0 %v183
  %719 = vmatprep.subr.mxu0 0.0
  %720 = vmatpush1.msra.mxu0 %v182
  %721 = vmatprep.subr.mxu0 0.0
  %722 = vmatpush1.msra.mxu0 %v181
  %723 = vmatprep.subr.mxu0 0.0
  %724 = vmatpush1.msra.mxu0 %v180
  %725 = vmatprep.subr.mxu0 0.0
  %726 = vmatpush1.msra.mxu0 %v179
  %727 = vmatprep.subr.mxu0 0.0
  %728 = vmatpush1.msra.mxu0 %v178
  %729 = vmatprep.subr.mxu0 0.0
  %730 = vmatpush1.msra.mxu0 %v177
  %731 = vmatprep.subr.mxu0 0.0
  %732 = vmatpush1.msra.mxu0 %v176
  %733 = vmatprep.subr.mxu0 0.0
  %734 = vmatpush2.msra.mxu0 0.0
  %735 = vmatprep.subr.mxu0 0.0
  %736 = vmatpush2.msra.mxu0 0.0
  %737 = vmatprep.subr.mxu0 0.0
  %738 = vmatpush2.msra.mxu0 0.0
  %739 = vmatprep.subr.mxu0 0.0
  %740 = vmatpush2.msra.mxu0 0.0
  %741 = vmatprep.subr.mxu0 0.0
  %742 = vmatpush2.msra.mxu0 0.0
  %743 = vmatprep.subr.mxu0 0.0
  %744 = vmatpush2.msra.mxu0 0.0
  %745 = vmatprep.subr.mxu0 0.0
  %746 = vmatpush2.msra.mxu0 0.0
  %747 = vmatprep.subr.mxu0 0.0
  %748 = vmatpush2.msra.mxu0 0.0
  %749 = vmatprep.subr.mxu0 0.0
  %750 = vmatpush2.msra.mxu0 0.0
  %751 = vmatprep.subr.mxu0 0.0
  %752 = vmatpush2.msra.mxu0 0.0
  %753 = vmatprep.subr.mxu0 0.0
  %754 = vmatpush2.msra.mxu0 0.0
  %755 = vmatprep.subr.mxu0 0.0
  %756 = vmatpush2.msra.mxu0 0.0
  %757 = vmatprep.subr.mxu0 0.0
  %758 = vmatpush2.msra.mxu0 0.0
  %759 = vmatprep.subr.mxu0 0.0
  %760 = vmatpush2.msra.mxu0 0.0
  %761 = vmatprep.subr.mxu0 0.0
  %762 = vmatpush2.msra.mxu0 %v193
  %763 = vmatprep.subr.mxu0 0.0
  %764 = vmatpush2.msra.mxu0 %v192
  %765 = vmatprep.mubr.f32.mxu0 %v629
  %766 = vmatmul.mubr.f32.gmra.mxu0 %v615
  %v767 = vpop.f32.mrf.mxu0
  %v768 = vadd.f32 %v698, %v767
  %v769 = vpop.f32.mrf.mxu0
  %770 = vdwg.mxu0
  %v771 = vxor.u32 %v768, 2147483648
  %v772 = vmul.f32 %v771, 1.442695
  %v773 = vpow.pop %v772
  %v774 = vadd.f32 %v773, 1.0
  %v775 = vrcp.pop %v774
  %v776 = vmul.f32 1.0, %v775
  %vm777 = vcmask 785408
  %v779 = vsel %vm777, %v266, 0
  %781 = vmatprep.subr.mxu0 0.0
  %782 = vmatpush1.msra.mxu0 0.0
  %783 = vmatprep.subr.mxu0 0.0
  %784 = vmatpush1.msra.mxu0 0.0
  %785 = vmatprep.subr.mxu0 0.0
  %786 = vmatpush1.msra.mxu0 0.0
  %787 = vmatprep.subr.mxu0 0.0
  %788 = vmatpush1.msra.mxu0 0.0
  %789 = vmatprep.subr.mxu0 0.0
  %790 = vmatpush1.msra.mxu0 %v143
  %791 = vmatprep.subr.mxu0 0.0
  %792 = vmatpush1.msra.mxu0 %v142
  %793 = vmatprep.subr.mxu0 0.0
  %794 = vmatpush1.msra.mxu0 %v141
  %795 = vmatprep.subr.mxu0 0.0
  %796 = vmatpush1.msra.mxu0 %v140
  %797 = vmatprep.subr.mxu0 0.0
  %798 = vmatpush1.msra.mxu0 %v139
  %799 = vmatprep.subr.mxu0 0.0
  %800 = vmatpush1.msra.mxu0 %v138
  %801 = vmatprep.subr.mxu0 0.0
  %802 = vmatpush1.msra.mxu0 %v137
  %803 = vmatprep.subr.mxu0 0.0
  %804 = vmatpush1.msra.mxu0 %v136
  %805 = vmatprep.subr.mxu0 0.0
  %806 = vmatpush1.msra.mxu0 %v135
  %807 = vmatprep.subr.mxu0 0.0
  %808 = vmatpush1.msra.mxu0 %v134
  %809 = vmatprep.subr.mxu0 0.0
  %810 = vmatpush1.msra.mxu0 %v133
  %811 = vmatprep.subr.mxu0 0.0
  %812 = vmatpush1.msra.mxu0 %v132
  %813 = vmatprep.subr.mxu0 0.0
  %814 = vmatpush2.msra.mxu0 0.0
  %815 = vmatprep.subr.mxu0 0.0
  %816 = vmatpush2.msra.mxu0 0.0
  %817 = vmatprep.subr.mxu0 0.0
  %818 = vmatpush2.msra.mxu0 0.0
  %819 = vmatprep.subr.mxu0 0.0
  %820 = vmatpush2.msra.mxu0 0.0
  %821 = vmatprep.subr.mxu0 0.0
  %822 = vmatpush2.msra.mxu0 0.0
  %823 = vmatprep.subr.mxu0 0.0
  %824 = vmatpush2.msra.mxu0 0.0
  %825 = vmatprep.subr.mxu0 0.0
  %826 = vmatpush2.msra.mxu0 0.0
  %827 = vmatprep.subr.mxu0 0.0
  %828 = vmatpush2.msra.mxu0 0.0
  %829 = vmatprep.subr.mxu0 0.0
  %830 = vmatpush2.msra.mxu0 0.0
  %831 = vmatprep.subr.mxu0 0.0
  %832 = vmatpush2.msra.mxu0 0.0
  %833 = vmatprep.subr.mxu0 0.0
  %834 = vmatpush2.msra.mxu0 0.0
  %835 = vmatprep.subr.mxu0 0.0
  %836 = vmatpush2.msra.mxu0 0.0
  %837 = vmatprep.subr.mxu0 0.0
  %838 = vmatpush2.msra.mxu0 0.0
  %839 = vmatprep.subr.mxu0 0.0
  %840 = vmatpush2.msra.mxu0 0.0
  %841 = vmatprep.subr.mxu0 0.0
  %842 = vmatpush2.msra.mxu0 0.0
  %843 = vmatprep.subr.mxu0 0.0
  %844 = vmatpush2.msra.mxu0 0.0
  %845 = vmatprep.mubr.f32.mxu0 0.0
  %846 = vmatmul.mubr.f32.gmra.mxu0 %v779
  %v847 = vpop.f32.mrf.mxu0
  %v848 = vadd.f32 0.0, %v847
  %v849 = vpop.f32.mrf.mxu0
  %850 = vdwg.mxu0
  %852 = vrot.lane.b32.xlu0 %v776, 32
  %v853 = vpop.permute.xlu0 %852
  %855 = vrot.lane.b32.xlu0 %v776, 64
  %v856 = vpop.permute.xlu0 %855
  %v858 = vsel %vm287, %v776, %v853
  %vm859 = vcmask 523264
  %v860 = vsel %vm859, %v858, %v856
  %v861 = vmul.f32 %v848, %v860
  %v862 = vld [vmem:[%s9] sm:$0xff]
  %v863 = vld [vmem:[%s9 + $0x8] sm:$0xff]
  %v864 = vld [vmem:[%s9 + $0x10] sm:$0xff]
  %v865 = vld [vmem:[%s9 + $0x18] sm:$0xff]
  %v866 = vld [vmem:[%s9 + $0x20] sm:$0xff]
  %v867 = vld [vmem:[%s9 + $0x28] sm:$0xff]
  %v868 = vld [vmem:[%s9 + $0x30] sm:$0xff]
  %v869 = vld [vmem:[%s9 + $0x38] sm:$0xff]
  %v870 = vld [vmem:[%s9 + $0x40] sm:$0xff]
  %v871 = vld [vmem:[%s9 + $0x48] sm:$0xff]
  %v872 = vld [vmem:[%s9 + $0x50] sm:$0xff]
  %v873 = vld [vmem:[%s9 + $0x58] sm:$0xff]
  %v874 = vld [vmem:[%s10] sm:$0xff]
  %v875 = vld [vmem:[%s10 + $0x8] sm:$0xff]
  %v876 = vld [vmem:[%s10 + $0x10] sm:$0xff]
  %v877 = vld [vmem:[%s10 + $0x18] sm:$0xff]
  %v878 = vld [vmem:[%s10 + $0x20] sm:$0xff]
  %v879 = vld [vmem:[%s10 + $0x28] sm:$0xff]
  %v880 = vld [vmem:[%s10 + $0x30] sm:$0xff]
  %v881 = vld [vmem:[%s10 + $0x38] sm:$0xff]
  %v882 = vld [vmem:[%s10 + $0x40] sm:$0xff]
  %v883 = vld [vmem:[%s10 + $0x48] sm:$0xff]
  %v884 = vld [vmem:[%s10 + $0x50] sm:$0xff]
  %v885 = vld [vmem:[%s10 + $0x58] sm:$0xff]
  %v886 = vld [vmem:[%s10 + $0x60] sm:$0xff]
  %v887 = vld [vmem:[%s10 + $0x68] sm:$0xff]
  %v888 = vld [vmem:[%s10 + $0x70] sm:$0xff]
  %v889 = vld [vmem:[%s10 + $0x78] sm:$0xff]
  %v890 = vld [vmem:[%s10 + $0x80] sm:$0xff]
  %v891 = vld [vmem:[%s10 + $0x88] sm:$0xff]
  %v892 = vld [vmem:[%s10 + $0x90] sm:$0xff]
  %v893 = vld [vmem:[%s10 + $0x98] sm:$0xff]
  %v894 = vld [vmem:[%s10 + $0xa0] sm:$0xff]
  %v895 = vld [vmem:[%s10 + $0xa8] sm:$0xff]
  %v896 = vld [vmem:[%s10 + $0xb0] sm:$0xff]
  %v897 = vld [vmem:[%s10 + $0xb8] sm:$0xff]
  %v898 = vld [vmem:[%s10 + $0xc0] sm:$0xff]
  %v899 = vld [vmem:[%s10 + $0xc8] sm:$0xff]
  %v900 = vld [vmem:[%s10 + $0xd0] sm:$0xff]
  %v901 = vld [vmem:[%s10 + $0xd8] sm:$0xff]
  %v902 = vld [vmem:[%s10 + $0xe0] sm:$0xff]
  %v903 = vld [vmem:[%s10 + $0xe8] sm:$0xff]
  %v904 = vld [vmem:[%s10 + $0xf0] sm:$0xff]
  %v905 = vld [vmem:[%s10 + $0xf8] sm:$0xff]
  %v906 = vld [vmem:[%s10 + $0x100] sm:$0xff]
  %v907 = vld [vmem:[%s10 + $0x108] sm:$0xff]
  %v908 = vld [vmem:[%s10 + $0x110] sm:$0xff]
  %v909 = vld [vmem:[%s10 + $0x118] sm:$0xff]
  %v910 = vld [vmem:[%s10 + $0x120] sm:$0xff]
  %v911 = vld [vmem:[%s10 + $0x128] sm:$0xff]
  %v912 = vld [vmem:[%s10 + $0x130] sm:$0xff]
  %v913 = vld [vmem:[%s10 + $0x138] sm:$0xff]
  %v914 = vld [vmem:[%s10 + $0x140] sm:$0xff]
  %v915 = vld [vmem:[%s10 + $0x148] sm:$0xff]
  %v916 = vld [vmem:[%s10 + $0x150] sm:$0xff]
  %v917 = vld [vmem:[%s10 + $0x158] sm:$0xff]
  %v918 = vld [vmem:[%s10 + $0x160] sm:$0xff]
  %v919 = vld [vmem:[%s10 + $0x168] sm:$0xff]
  %v920 = vld [vmem:[%s10 + $0x170] sm:$0xff]
  %v921 = vld [vmem:[%s10 + $0x178] sm:$0xff]
  %v922 = vld [vmem:[%s10 + $0x180] sm:$0xff]
  %v923 = vld [vmem:[%s10 + $0x188] sm:$0xff]
  %v924 = vld [vmem:[%s11] sm:$0xff]
  %v925 = vld [vmem:[%s11 + $0x8] sm:$0xff]
  %v926 = vld [vmem:[%s11 + $0x10] sm:$0xff]
  %v927 = vld [vmem:[%s11 + $0x18] sm:$0xff]
  %v928 = vld [vmem:[%s12] sm:$0x1]
  %v929 = vld [vmem:[%s13] sm:$0xff]
  %v930 = vld [vmem:[%s13 + $0x8] sm:$0xff]
  %v931 = vld [vmem:[%s13 + $0x10] sm:$0xff]
  %v932 = vld [vmem:[%s13 + $0x18] sm:$0xff]
  %v933 = vld [vmem:[%s13 + $0x20] sm:$0xff]
  %v934 = vld [vmem:[%s13 + $0x28] sm:$0xff]
  %v935 = vld [vmem:[%s13 + $0x30] sm:$0xff]
  %v936 = vld [vmem:[%s13 + $0x38] sm:$0xff]
  %v937 = vld [vmem:[%s13 + $0x40] sm:$0xff]
  %v938 = vld [vmem:[%s13 + $0x48] sm:$0xff]
  %v939 = vld [vmem:[%s13 + $0x50] sm:$0xff]
  %v940 = vld [vmem:[%s13 + $0x58] sm:$0xff]
  %v941 = vld [vmem:[%s14] sm:$0xff]
  %v942 = vld [vmem:[%s14 + $0x8] sm:$0xff]
  %v943 = vld [vmem:[%s14 + $0x10] sm:$0xff]
  %v944 = vld [vmem:[%s14 + $0x18] sm:$0xff]
  %v945 = vld [vmem:[%s14 + $0x20] sm:$0xff]
  %v946 = vld [vmem:[%s14 + $0x28] sm:$0xff]
  %v947 = vld [vmem:[%s14 + $0x30] sm:$0xff]
  %v948 = vld [vmem:[%s14 + $0x38] sm:$0xff]
  %v949 = vld [vmem:[%s14 + $0x40] sm:$0xff]
  %v950 = vld [vmem:[%s14 + $0x48] sm:$0xff]
  %v951 = vld [vmem:[%s14 + $0x50] sm:$0xff]
  %v952 = vld [vmem:[%s14 + $0x58] sm:$0xff]
  %v953 = vld [vmem:[%s14 + $0x60] sm:$0xf]
  %v954 = vld [vmem:[%s15] sm:$0x1]
  %v956 = vsel %vm777, %v861, 0
  %958 = vmatprep.subr.mxu0 0.0
  %959 = vmatpush1.msra.mxu0 0.0
  %960 = vmatprep.subr.mxu0 0.0
  %961 = vmatpush1.msra.mxu0 0.0
  %962 = vmatprep.subr.mxu0 0.0
  %963 = vmatpush1.msra.mxu0 0.0
  %964 = vmatprep.subr.mxu0 0.0
  %965 = vmatpush1.msra.mxu0 0.0
  %966 = vmatprep.subr.mxu0 0.0
  %967 = vmatpush1.msra.mxu0 %v873
  %968 = vmatprep.subr.mxu0 0.0
  %969 = vmatpush1.msra.mxu0 %v872
  %970 = vmatprep.subr.mxu0 0.0
  %971 = vmatpush1.msra.mxu0 %v871
  %972 = vmatprep.subr.mxu0 0.0
  %973 = vmatpush1.msra.mxu0 %v870
  %974 = vmatprep.subr.mxu0 0.0
  %975 = vmatpush1.msra.mxu0 %v869
  %976 = vmatprep.subr.mxu0 0.0
  %977 = vmatpush1.msra.mxu0 %v868
  %978 = vmatprep.subr.mxu0 0.0
  %979 = vmatpush1.msra.mxu0 %v867
  %980 = vmatprep.subr.mxu0 0.0
  %981 = vmatpush1.msra.mxu0 %v866
  %982 = vmatprep.subr.mxu0 0.0
  %983 = vmatpush1.msra.mxu0 %v865
  %984 = vmatprep.subr.mxu0 0.0
  %985 = vmatpush1.msra.mxu0 %v864
  %986 = vmatprep.subr.mxu0 0.0
  %987 = vmatpush1.msra.mxu0 %v863
  %988 = vmatprep.subr.mxu0 0.0
  %989 = vmatpush1.msra.mxu0 %v862
  %990 = vmatprep.subr.mxu0 0.0
  %991 = vmatpush2.msra.mxu0 0.0
  %992 = vmatprep.subr.mxu0 0.0
  %993 = vmatpush2.msra.mxu0 0.0
  %994 = vmatprep.subr.mxu0 0.0
  %995 = vmatpush2.msra.mxu0 0.0
  %996 = vmatprep.subr.mxu0 0.0
  %997 = vmatpush2.msra.mxu0 0.0
  %998 = vmatprep.subr.mxu0 0.0
  %999 = vmatpush2.msra.mxu0 0.0
  %1000 = vmatprep.subr.mxu0 0.0
  %1001 = vmatpush2.msra.mxu0 0.0
  %1002 = vmatprep.subr.mxu0 0.0
  %1003 = vmatpush2.msra.mxu0 0.0
  %1004 = vmatprep.subr.mxu0 0.0
  %1005 = vmatpush2.msra.mxu0 0.0
  %1006 = vmatprep.subr.mxu0 0.0
  %1007 = vmatpush2.msra.mxu0 0.0
  %1008 = vmatprep.subr.mxu0 0.0
  %1009 = vmatpush2.msra.mxu0 0.0
  %1010 = vmatprep.subr.mxu0 0.0
  %1011 = vmatpush2.msra.mxu0 0.0
  %1012 = vmatprep.subr.mxu0 0.0
  %1013 = vmatpush2.msra.mxu0 0.0
  %1014 = vmatprep.subr.mxu0 0.0
  %1015 = vmatpush2.msra.mxu0 0.0
  %1016 = vmatprep.subr.mxu0 0.0
  %1017 = vmatpush2.msra.mxu0 0.0
  %1018 = vmatprep.subr.mxu0 0.0
  %1019 = vmatpush2.msra.mxu0 0.0
  %1020 = vmatprep.subr.mxu0 0.0
  %1021 = vmatpush2.msra.mxu0 0.0
  %1022 = vmatprep.mubr.f32.mxu0 0.0
  %1023 = vmatmul.mubr.f32.gmra.mxu0 %v956
  %v1024 = vpop.f32.mrf.mxu0
  %v1025 = vadd.f32 0.0, %v1024
  %v1026 = vpop.f32.mrf.mxu0
  %1027 = vdwg.mxu0
  %v1028 = vmul.f32 %v1025, %v1025
  %1030 = vrot.lane.b32.xlu0 %v1028, 96
  %v1031 = vpop.permute.xlu0 %1030
  %v1033 = vadd.f32 %v1028, %v1031
  %1034 = vrot.lane.b32.xlu0 %v1028, 64
  %v1035 = vpop.permute.xlu0 %1034
  %v1037 = vadd.f32 %v1033, %v1035
  %v1038 = vmax.f32 %v1037, 1e-08
  %v1039 = vrsqrt.pop %v1038
  %v1040 = vmul.f32 %v1038, %v1039
  %vm1041 = vcmp.eq.f32.partialorder %v1038, inf
  %v1042 = vsel %vm1041, %v1038, %v1040
  %vm1043 = vcmp.eq.f32.partialorder %v1038, 0.0
  %v1044 = vand.u32 %v1038, 2147483648
  %v1045 = vsel %vm1043, %v1044, %v1042
  %v1047 = vsel %vm287, %v1045, 0
  %1049 = vmatprep.subr.mxu0 0.0
  %1050 = vmatpush1.msra.mxu0 0.0
  %1051 = vmatprep.subr.mxu0 0.0
  %1052 = vmatpush1.msra.mxu0 0.0
  %1053 = vmatprep.subr.mxu0 0.0
  %1054 = vmatpush1.msra.mxu0 0.0
  %1055 = vmatprep.subr.mxu0 0.0
  %1056 = vmatpush1.msra.mxu0 0.0
  %1057 = vmatprep.subr.mxu0 0.0
  %1058 = vmatpush1.msra.mxu0 0.0
  %1059 = vmatprep.subr.mxu0 0.0
  %1060 = vmatpush1.msra.mxu0 0.0
  %1061 = vmatprep.subr.mxu0 0.0
  %1062 = vmatpush1.msra.mxu0 0.0
  %1063 = vmatprep.subr.mxu0 0.0
  %1064 = vmatpush1.msra.mxu0 0.0
  %1065 = vmatprep.subr.mxu0 0.0
  %1066 = vmatpush1.msra.mxu0 0.0
  %1067 = vmatprep.subr.mxu0 0.0
  %1068 = vmatpush1.msra.mxu0 0.0
  %1069 = vmatprep.subr.mxu0 0.0
  %1070 = vmatpush1.msra.mxu0 0.0
  %1071 = vmatprep.subr.mxu0 0.0
  %1072 = vmatpush1.msra.mxu0 0.0
  %1073 = vmatprep.subr.mxu0 0.0
  %1074 = vmatpush1.msra.mxu0 %v927
  %1075 = vmatprep.subr.mxu0 0.0
  %1076 = vmatpush1.msra.mxu0 %v926
  %1077 = vmatprep.subr.mxu0 0.0
  %1078 = vmatpush1.msra.mxu0 %v925
  %1079 = vmatprep.subr.mxu0 0.0
  %1080 = vmatpush1.msra.mxu0 %v924
  %1081 = vmatprep.subr.mxu0 0.0
  %1082 = vmatpush2.msra.mxu0 0.0
  %1083 = vmatprep.subr.mxu0 0.0
  %1084 = vmatpush2.msra.mxu0 0.0
  %1085 = vmatprep.subr.mxu0 0.0
  %1086 = vmatpush2.msra.mxu0 0.0
  %1087 = vmatprep.subr.mxu0 0.0
  %1088 = vmatpush2.msra.mxu0 0.0
  %1089 = vmatprep.subr.mxu0 0.0
  %1090 = vmatpush2.msra.mxu0 0.0
  %1091 = vmatprep.subr.mxu0 0.0
  %1092 = vmatpush2.msra.mxu0 0.0
  %1093 = vmatprep.subr.mxu0 0.0
  %1094 = vmatpush2.msra.mxu0 0.0
  %1095 = vmatprep.subr.mxu0 0.0
  %1096 = vmatpush2.msra.mxu0 0.0
  %1097 = vmatprep.subr.mxu0 0.0
  %1098 = vmatpush2.msra.mxu0 0.0
  %1099 = vmatprep.subr.mxu0 0.0
  %1100 = vmatpush2.msra.mxu0 0.0
  %1101 = vmatprep.subr.mxu0 0.0
  %1102 = vmatpush2.msra.mxu0 0.0
  %1103 = vmatprep.subr.mxu0 0.0
  %1104 = vmatpush2.msra.mxu0 0.0
  %1105 = vmatprep.subr.mxu0 0.0
  %1106 = vmatpush2.msra.mxu0 0.0
  %1107 = vmatprep.subr.mxu0 0.0
  %1108 = vmatpush2.msra.mxu0 0.0
  %1109 = vmatprep.subr.mxu0 0.0
  %1110 = vmatpush2.msra.mxu0 0.0
  %1111 = vmatprep.subr.mxu0 0.0
  %1112 = vmatpush2.msra.mxu0 0.0
  %1113 = vmatprep.mubr.f32.mxu0 0.0
  %1114 = vmatmul.mubr.f32.gmra.mxu0 %v1047
  %v1115 = vpop.f32.mrf.mxu0
  %v1116 = vadd.f32 0.0, %v1115
  %v1117 = vpop.f32.mrf.mxu0
  %1118 = vdwg.mxu0
  %v1120 = vsel %vm627, %v620, 0
  %1122 = vmatprep.subr.mxu0 0.0
  %1123 = vmatpush1.msra.mxu0 %v889
  %1124 = vmatprep.subr.mxu0 0.0
  %1125 = vmatpush1.msra.mxu0 %v888
  %1126 = vmatprep.subr.mxu0 0.0
  %1127 = vmatpush1.msra.mxu0 %v887
  %1128 = vmatprep.subr.mxu0 0.0
  %1129 = vmatpush1.msra.mxu0 %v886
  %1130 = vmatprep.subr.mxu0 0.0
  %1131 = vmatpush1.msra.mxu0 %v885
  %1132 = vmatprep.subr.mxu0 0.0
  %1133 = vmatpush1.msra.mxu0 %v884
  %1134 = vmatprep.subr.mxu0 0.0
  %1135 = vmatpush1.msra.mxu0 %v883
  %1136 = vmatprep.subr.mxu0 0.0
  %1137 = vmatpush1.msra.mxu0 %v882
  %1138 = vmatprep.subr.mxu0 0.0
  %1139 = vmatpush1.msra.mxu0 %v881
  %1140 = vmatprep.subr.mxu0 0.0
  %1141 = vmatpush1.msra.mxu0 %v880
  %1142 = vmatprep.subr.mxu0 0.0
  %1143 = vmatpush1.msra.mxu0 %v879
  %1144 = vmatprep.subr.mxu0 0.0
  %1145 = vmatpush1.msra.mxu0 %v878
  %1146 = vmatprep.subr.mxu0 0.0
  %1147 = vmatpush1.msra.mxu0 %v877
  %1148 = vmatprep.subr.mxu0 0.0
  %1149 = vmatpush1.msra.mxu0 %v876
  %1150 = vmatprep.subr.mxu0 0.0
  %1151 = vmatpush1.msra.mxu0 %v875
  %1152 = vmatprep.subr.mxu0 0.0
  %1153 = vmatpush1.msra.mxu0 %v874
  %1154 = vmatprep.subr.mxu0 0.0
  %1155 = vmatpush2.msra.mxu0 %v905
  %1156 = vmatprep.subr.mxu0 0.0
  %1157 = vmatpush2.msra.mxu0 %v904
  %1158 = vmatprep.subr.mxu0 0.0
  %1159 = vmatpush2.msra.mxu0 %v903
  %1160 = vmatprep.subr.mxu0 0.0
  %1161 = vmatpush2.msra.mxu0 %v902
  %1162 = vmatprep.subr.mxu0 0.0
  %1163 = vmatpush2.msra.mxu0 %v901
  %1164 = vmatprep.subr.mxu0 0.0
  %1165 = vmatpush2.msra.mxu0 %v900
  %1166 = vmatprep.subr.mxu0 0.0
  %1167 = vmatpush2.msra.mxu0 %v899
  %1168 = vmatprep.subr.mxu0 0.0
  %1169 = vmatpush2.msra.mxu0 %v898
  %1170 = vmatprep.subr.mxu0 0.0
  %1171 = vmatpush2.msra.mxu0 %v897
  %1172 = vmatprep.subr.mxu0 0.0
  %1173 = vmatpush2.msra.mxu0 %v896
  %1174 = vmatprep.subr.mxu0 0.0
  %1175 = vmatpush2.msra.mxu0 %v895
  %1176 = vmatprep.subr.mxu0 0.0
  %1177 = vmatpush2.msra.mxu0 %v894
  %1178 = vmatprep.subr.mxu0 0.0
  %1179 = vmatpush2.msra.mxu0 %v893
  %1180 = vmatprep.subr.mxu0 0.0
  %1181 = vmatpush2.msra.mxu0 %v892
  %1182 = vmatprep.subr.mxu0 0.0
  %1183 = vmatpush2.msra.mxu0 %v891
  %1184 = vmatprep.subr.mxu0 0.0
  %1185 = vmatpush2.msra.mxu0 %v890
  %1186 = vmatprep.mubr.f32.mxu0 %v618
  %1187 = vmatmul.mubr.f32.gmra.mxu0 %v617
  %v1188 = vpop.f32.mrf.mxu0
  %v1189 = vadd.f32 %v1116, %v1188
  %v1190 = vpop.f32.mrf.mxu0
  %1191 = vdwg.mxu0
  %1192 = vmatprep.subr.mxu0 0.0
  %1193 = vmatpush1.msra.mxu0 %v921
  %1194 = vmatprep.subr.mxu0 0.0
  %1195 = vmatpush1.msra.mxu0 %v920
  %1196 = vmatprep.subr.mxu0 0.0
  %1197 = vmatpush1.msra.mxu0 %v919
  %1198 = vmatprep.subr.mxu0 0.0
  %1199 = vmatpush1.msra.mxu0 %v918
  %1200 = vmatprep.subr.mxu0 0.0
  %1201 = vmatpush1.msra.mxu0 %v917
  %1202 = vmatprep.subr.mxu0 0.0
  %1203 = vmatpush1.msra.mxu0 %v916
  %1204 = vmatprep.subr.mxu0 0.0
  %1205 = vmatpush1.msra.mxu0 %v915
  %1206 = vmatprep.subr.mxu0 0.0
  %1207 = vmatpush1.msra.mxu0 %v914
  %1208 = vmatprep.subr.mxu0 0.0
  %1209 = vmatpush1.msra.mxu0 %v913
  %1210 = vmatprep.subr.mxu0 0.0
  %1211 = vmatpush1.msra.mxu0 %v912
  %1212 = vmatprep.subr.mxu0 0.0
  %1213 = vmatpush1.msra.mxu0 %v911
  %1214 = vmatprep.subr.mxu0 0.0
  %1215 = vmatpush1.msra.mxu0 %v910
  %1216 = vmatprep.subr.mxu0 0.0
  %1217 = vmatpush1.msra.mxu0 %v909
  %1218 = vmatprep.subr.mxu0 0.0
  %1219 = vmatpush1.msra.mxu0 %v908
  %1220 = vmatprep.subr.mxu0 0.0
  %1221 = vmatpush1.msra.mxu0 %v907
  %1222 = vmatprep.subr.mxu0 0.0
  %1223 = vmatpush1.msra.mxu0 %v906
  %1224 = vmatprep.subr.mxu0 0.0
  %1225 = vmatpush2.msra.mxu0 0.0
  %1226 = vmatprep.subr.mxu0 0.0
  %1227 = vmatpush2.msra.mxu0 0.0
  %1228 = vmatprep.subr.mxu0 0.0
  %1229 = vmatpush2.msra.mxu0 0.0
  %1230 = vmatprep.subr.mxu0 0.0
  %1231 = vmatpush2.msra.mxu0 0.0
  %1232 = vmatprep.subr.mxu0 0.0
  %1233 = vmatpush2.msra.mxu0 0.0
  %1234 = vmatprep.subr.mxu0 0.0
  %1235 = vmatpush2.msra.mxu0 0.0
  %1236 = vmatprep.subr.mxu0 0.0
  %1237 = vmatpush2.msra.mxu0 0.0
  %1238 = vmatprep.subr.mxu0 0.0
  %1239 = vmatpush2.msra.mxu0 0.0
  %1240 = vmatprep.subr.mxu0 0.0
  %1241 = vmatpush2.msra.mxu0 0.0
  %1242 = vmatprep.subr.mxu0 0.0
  %1243 = vmatpush2.msra.mxu0 0.0
  %1244 = vmatprep.subr.mxu0 0.0
  %1245 = vmatpush2.msra.mxu0 0.0
  %1246 = vmatprep.subr.mxu0 0.0
  %1247 = vmatpush2.msra.mxu0 0.0
  %1248 = vmatprep.subr.mxu0 0.0
  %1249 = vmatpush2.msra.mxu0 0.0
  %1250 = vmatprep.subr.mxu0 0.0
  %1251 = vmatpush2.msra.mxu0 0.0
  %1252 = vmatprep.subr.mxu0 0.0
  %1253 = vmatpush2.msra.mxu0 %v923
  %1254 = vmatprep.subr.mxu0 0.0
  %1255 = vmatpush2.msra.mxu0 %v922
  %1256 = vmatprep.mubr.f32.mxu0 %v1120
  %1257 = vmatmul.mubr.f32.gmra.mxu0 %v619
  %v1258 = vpop.f32.mrf.mxu0
  %v1259 = vadd.f32 %v1189, %v1258
  %v1260 = vpop.f32.mrf.mxu0
  %1261 = vdwg.mxu0
  %v1263 = vlaneseq
  %v1264 = vshrl.u32 %v1263, 7
  %v1265 = vsub.s32 0, %v1264
  %v1266 = vrot.slane %v928, %v1265
  %v1268 = vadd.f32 %v1259, %v1266
  %v1270 = vlaneseq
  %v1271 = vshrl.u32 %v1270, 7
  %v1272 = vsub.s32 0, %v1271
  %v1273 = vrot.slane %v954, %v1272
  %v1276 = vsel %vm433, %v1268, 0
  %v1279 = vsel %vm437, %v953, 0
  %1281 = vmatprep.subr.mxu0 0.0
  %1282 = vmatpush1.msra.mxu0 0.0
  %1283 = vmatprep.subr.mxu0 0.0
  %1284 = vmatpush1.msra.mxu0 0.0
  %1285 = vmatprep.subr.mxu0 0.0
  %1286 = vmatpush1.msra.mxu0 0.0
  %1287 = vmatprep.subr.mxu0 0.0
  %1288 = vmatpush1.msra.mxu0 %v1279
  %1289 = vmatprep.subr.mxu0 0.0
  %1290 = vmatpush1.msra.mxu0 %v952
  %1291 = vmatprep.subr.mxu0 0.0
  %1292 = vmatpush1.msra.mxu0 %v951
  %1293 = vmatprep.subr.mxu0 0.0
  %1294 = vmatpush1.msra.mxu0 %v950
  %1295 = vmatprep.subr.mxu0 0.0
  %1296 = vmatpush1.msra.mxu0 %v949
  %1297 = vmatprep.subr.mxu0 0.0
  %1298 = vmatpush1.msra.mxu0 %v948
  %1299 = vmatprep.subr.mxu0 0.0
  %1300 = vmatpush1.msra.mxu0 %v947
  %1301 = vmatprep.subr.mxu0 0.0
  %1302 = vmatpush1.msra.mxu0 %v946
  %1303 = vmatprep.subr.mxu0 0.0
  %1304 = vmatpush1.msra.mxu0 %v945
  %1305 = vmatprep.subr.mxu0 0.0
  %1306 = vmatpush1.msra.mxu0 %v944
  %1307 = vmatprep.subr.mxu0 0.0
  %1308 = vmatpush1.msra.mxu0 %v943
  %1309 = vmatprep.subr.mxu0 0.0
  %1310 = vmatpush1.msra.mxu0 %v942
  %1311 = vmatprep.subr.mxu0 0.0
  %1312 = vmatpush1.msra.mxu0 %v941
  %1313 = vmatprep.subr.mxu0 0.0
  %1314 = vmatpush2.msra.mxu0 0.0
  %1315 = vmatprep.subr.mxu0 0.0
  %1316 = vmatpush2.msra.mxu0 0.0
  %1317 = vmatprep.subr.mxu0 0.0
  %1318 = vmatpush2.msra.mxu0 0.0
  %1319 = vmatprep.subr.mxu0 0.0
  %1320 = vmatpush2.msra.mxu0 0.0
  %1321 = vmatprep.subr.mxu0 0.0
  %1322 = vmatpush2.msra.mxu0 0.0
  %1323 = vmatprep.subr.mxu0 0.0
  %1324 = vmatpush2.msra.mxu0 0.0
  %1325 = vmatprep.subr.mxu0 0.0
  %1326 = vmatpush2.msra.mxu0 0.0
  %1327 = vmatprep.subr.mxu0 0.0
  %1328 = vmatpush2.msra.mxu0 0.0
  %1329 = vmatprep.subr.mxu0 0.0
  %1330 = vmatpush2.msra.mxu0 0.0
  %1331 = vmatprep.subr.mxu0 0.0
  %1332 = vmatpush2.msra.mxu0 0.0
  %1333 = vmatprep.subr.mxu0 0.0
  %1334 = vmatpush2.msra.mxu0 0.0
  %1335 = vmatprep.subr.mxu0 0.0
  %1336 = vmatpush2.msra.mxu0 0.0
  %1337 = vmatprep.subr.mxu0 0.0
  %1338 = vmatpush2.msra.mxu0 0.0
  %1339 = vmatprep.subr.mxu0 0.0
  %1340 = vmatpush2.msra.mxu0 0.0
  %1341 = vmatprep.subr.mxu0 0.0
  %1342 = vmatpush2.msra.mxu0 0.0
  %1343 = vmatprep.subr.mxu0 0.0
  %1344 = vmatpush2.msra.mxu0 0.0
  %1345 = vmatprep.mubr.f32.mxu0 0.0
  %1346 = vmatmul.mubr.f32.gmra.mxu0 %v1276
  %v1347 = vpop.f32.mrf.mxu0
  %v1348 = vadd.f32 %v1273, %v1347
  %v1349 = vpop.f32.mrf.mxu0
  %1350 = vdwg.mxu0
  %v1351 = vxor.u32 %v1348, 2147483648
  %v1352 = vmul.f32 %v1351, 1.442695
  %v1353 = vpow.pop %v1352
  %v1354 = vadd.f32 %v1353, 1.0
  %v1355 = vrcp.pop %v1354
  %v1356 = vmul.f32 1.0, %v1355
  %v1358 = vsel %vm777, %v1025, 0
  %1360 = vmatprep.subr.mxu0 0.0
  %1361 = vmatpush1.msra.mxu0 0.0
  %1362 = vmatprep.subr.mxu0 0.0
  %1363 = vmatpush1.msra.mxu0 0.0
  %1364 = vmatprep.subr.mxu0 0.0
  %1365 = vmatpush1.msra.mxu0 0.0
  %1366 = vmatprep.subr.mxu0 0.0
  %1367 = vmatpush1.msra.mxu0 0.0
  %1368 = vmatprep.subr.mxu0 0.0
  %1369 = vmatpush1.msra.mxu0 %v940
  %1370 = vmatprep.subr.mxu0 0.0
  %1371 = vmatpush1.msra.mxu0 %v939
  %1372 = vmatprep.subr.mxu0 0.0
  %1373 = vmatpush1.msra.mxu0 %v938
  %1374 = vmatprep.subr.mxu0 0.0
  %1375 = vmatpush1.msra.mxu0 %v937
  %1376 = vmatprep.subr.mxu0 0.0
  %1377 = vmatpush1.msra.mxu0 %v936
  %1378 = vmatprep.subr.mxu0 0.0
  %1379 = vmatpush1.msra.mxu0 %v935
  %1380 = vmatprep.subr.mxu0 0.0
  %1381 = vmatpush1.msra.mxu0 %v934
  %1382 = vmatprep.subr.mxu0 0.0
  %1383 = vmatpush1.msra.mxu0 %v933
  %1384 = vmatprep.subr.mxu0 0.0
  %1385 = vmatpush1.msra.mxu0 %v932
  %1386 = vmatprep.subr.mxu0 0.0
  %1387 = vmatpush1.msra.mxu0 %v931
  %1388 = vmatprep.subr.mxu0 0.0
  %1389 = vmatpush1.msra.mxu0 %v930
  %1390 = vmatprep.subr.mxu0 0.0
  %1391 = vmatpush1.msra.mxu0 %v929
  %1392 = vmatprep.subr.mxu0 0.0
  %1393 = vmatpush2.msra.mxu0 0.0
  %1394 = vmatprep.subr.mxu0 0.0
  %1395 = vmatpush2.msra.mxu0 0.0
  %1396 = vmatprep.subr.mxu0 0.0
  %1397 = vmatpush2.msra.mxu0 0.0
  %1398 = vmatprep.subr.mxu0 0.0
  %1399 = vmatpush2.msra.mxu0 0.0
  %1400 = vmatprep.subr.mxu0 0.0
  %1401 = vmatpush2.msra.mxu0 0.0
  %1402 = vmatprep.subr.mxu0 0.0
  %1403 = vmatpush2.msra.mxu0 0.0
  %1404 = vmatprep.subr.mxu0 0.0
  %1405 = vmatpush2.msra.mxu0 0.0
  %1406 = vmatprep.subr.mxu0 0.0
  %1407 = vmatpush2.msra.mxu0 0.0
  %1408 = vmatprep.subr.mxu0 0.0
  %1409 = vmatpush2.msra.mxu0 0.0
  %1410 = vmatprep.subr.mxu0 0.0
  %1411 = vmatpush2.msra.mxu0 0.0
  %1412 = vmatprep.subr.mxu0 0.0
  %1413 = vmatpush2.msra.mxu0 0.0
  %1414 = vmatprep.subr.mxu0 0.0
  %1415 = vmatpush2.msra.mxu0 0.0
  %1416 = vmatprep.subr.mxu0 0.0
  %1417 = vmatpush2.msra.mxu0 0.0
  %1418 = vmatprep.subr.mxu0 0.0
  %1419 = vmatpush2.msra.mxu0 0.0
  %1420 = vmatprep.subr.mxu0 0.0
  %1421 = vmatpush2.msra.mxu0 0.0
  %1422 = vmatprep.subr.mxu0 0.0
  %1423 = vmatpush2.msra.mxu0 0.0
  %1424 = vmatprep.mubr.f32.mxu0 0.0
  %1425 = vmatmul.mubr.f32.gmra.mxu0 %v1358
  %v1426 = vpop.f32.mrf.mxu0
  %v1427 = vadd.f32 0.0, %v1426
  %v1428 = vpop.f32.mrf.mxu0
  %1429 = vdwg.mxu0
  %1431 = vrot.lane.b32.xlu0 %v1356, 16
  %v1432 = vpop.permute.xlu0 %1431
  %1434 = vrot.lane.b32.xlu0 %v1356, 32
  %v1435 = vpop.permute.xlu0 %1434
  %v1437 = vsel %vm627, %v1356, %v1432
  %v1438 = vsel %vm287, %v1437, %v1435
  %v1439 = vmul.f32 %v1427, %v1438
  %1440 = vst.msk [vmem:[%s16] sm:$0xff] %vm433, %v1268
  %1441 = vst.msk [vmem:[%s17] sm:$0xff] %vm195, %v1439
  // Predicated region
  $region66: #{base_model_forward.29} parent=0 // pred_check
    _
  $region67: #{base_model_forward.29} parent=0 // pred_check_branch
    %1443 = sbr.rel (0) target = $region69
  $region68: #{base_model_forward.29} parent=0 // pred_region
    _
  $region69: #{base_model_forward.29} parent=0 // pred_fallthru
    _
  // Predicated region
  $region70: #{base_model_forward.29} parent=0 // pred_check
    _
  $region71: #{base_model_forward.29} parent=0 // pred_check_branch
    %1445 = sbr.rel (0) target = $region73
  $region72: #{base_model_forward.29} parent=0 // pred_region
    _
  $region73: #{base_model_forward.29} parent=0 // pred_fallthru
    _
  // Predicated region
  $region74: #{base_model_forward.29} parent=0 // pred_check
    _
  $region75: #{base_model_forward.29} parent=0 // pred_check_branch
    %1447 = sbr.rel (0) target = $region77
  $region76: #{base_model_forward.29} parent=0 // pred_region
    _
  $region77: #{base_model_forward.29} parent=0 // pred_fallthru
    _
  // Predicated region
  $region78: #{base_model_forward.29} parent=0 // pred_check
    _
  $region79: #{base_model_forward.29} parent=0 // pred_check_branch
    %1449 = sbr.rel (0) target = $region81
  $region80: #{base_model_forward.29} parent=0 // pred_region
    _
  $region81: #{base_model_forward.29} parent=0 // pred_fallthru
    _

// kernel: base_model_forward.48
$region0: #{base_model_forward.48}
  #allocation0 [shape = 'u32[]', space=smem, size = 0x4, offset = 0x4, fixed_abs, tag = 'smem constant byte address 0x4 - core index']
  #allocation1 [shape = 'u32[144,128]{1,0:T(1,128)}', space=vmem, size = 0x12000, scoped, tag = 'internal scratch']
  %s0 = inlined_call_operand.vmem [shape: f32[8,100], index: 0, kind: input, shape index: {}]
  %s1 = inlined_call_operand.vmem [shape: f32[100,200], index: 1, kind: input, shape index: {}]
  %s2 = inlined_call_operand.vmem [shape: f32[1,200], index: 2, kind: input, shape index: {}]
  %s3 = inlined_call_operand.vmem [shape: f32[8,200], index: 3, kind: output, shape index: {}]
  %s4 = sld [smem:[#allocation0]]
  $region22: #{base_model_forward.48} parent=0
    _
  %s6 = ssub.s32 1, %s4
  %s7 = scalar_select 0, %s6, %s4
  // Predicated region
  $region2: #{base_model_forward.48} parent=0 // pred_check
    _
  $region3: #{base_model_forward.48} parent=0 // pred_check_branch
    %9 = sbr.rel (0) target = $region5
  $region4: #{base_model_forward.48} parent=0 // pred_region
    _
  $region5: #{base_model_forward.48} parent=0 // pred_fallthru
    _
  // Predicated region
  $region6: #{base_model_forward.48} parent=0 // pred_check
    _
  $region7: #{base_model_forward.48} parent=0 // pred_check_branch
    %11 = sbr.rel (0) target = $region9
  $region8: #{base_model_forward.48} parent=0 // pred_region
    _
  $region9: #{base_model_forward.48} parent=0 // pred_fallthru
    _
  // Predicated region
  $region10: #{base_model_forward.48} parent=0 // pred_check
    _
  $region11: #{base_model_forward.48} parent=0 // pred_check_branch
    %13 = sbr.rel (0) target = $region13
  $region12: #{base_model_forward.48} parent=0 // pred_region
    _
  $region13: #{base_model_forward.48} parent=0 // pred_fallthru
    _
  %v14 = vld [vmem:[%s0] sm:$0xff]
  %v15 = vld [vmem:[%s1] sm:$0xff]
  %v16 = vld [vmem:[%s1 + $0x8] sm:$0xff]
  %v17 = vld [vmem:[%s1 + $0x10] sm:$0xff]
  %v18 = vld [vmem:[%s1 + $0x18] sm:$0xff]
  %v19 = vld [vmem:[%s1 + $0x20] sm:$0xff]
  %v20 = vld [vmem:[%s1 + $0x28] sm:$0xff]
  %v21 = vld [vmem:[%s1 + $0x30] sm:$0xff]
  %v22 = vld [vmem:[%s1 + $0x38] sm:$0xff]
  %v23 = vld [vmem:[%s1 + $0x40] sm:$0xff]
  %v24 = vld [vmem:[%s1 + $0x48] sm:$0xff]
  %v25 = vld [vmem:[%s1 + $0x50] sm:$0xff]
  %v26 = vld [vmem:[%s1 + $0x58] sm:$0xff]
  %v27 = vld [vmem:[%s1 + $0x60] sm:$0xff]
  %v28 = vld [vmem:[%s1 + $0x68] sm:$0xff]
  %v29 = vld [vmem:[%s1 + $0x70] sm:$0xff]
  %v30 = vld [vmem:[%s1 + $0x78] sm:$0xff]
  %v31 = vld [vmem:[%s1 + $0x80] sm:$0xff]
  %v32 = vld [vmem:[%s1 + $0x88] sm:$0xff]
  %v33 = vld [vmem:[%s1 + $0x90] sm:$0xff]
  %v34 = vld [vmem:[%s1 + $0x98] sm:$0xff]
  %v35 = vld [vmem:[%s1 + $0xa0] sm:$0xff]
  %v36 = vld [vmem:[%s1 + $0xa8] sm:$0xff]
  %v37 = vld [vmem:[%s1 + $0xb0] sm:$0xff]
  %v38 = vld [vmem:[%s1 + $0xb8] sm:$0xff]
  %v39 = vld [vmem:[%s1 + $0xc0] sm:$0xf]
  %v40 = vld [vmem:[%s1 + $0xc8] sm:$0xf]
  %v41 = vld [vmem:[%s2] sm:$0x3]
  %v43 = vlaneseq
  %v44 = vshrl.u32 %v43, 7
  %v45 = vsub.s32 0, %v44
  %v46 = vrot.slane %v41, %v45
  %v47 = vlaneseq
  %v48 = vshrl.u32 %v47, 7
  %v49 = vsub.s32 1, %v48
  %v50 = vrot.slane %v41, %v49
  %vm53 = vcmask 818176
  %v55 = vsel %vm53, %v14, 0
  %vm57 = vcmask 1043456
  %v59 = vsel %vm57, %v39, 0
  %v62 = vsel %vm57, %v40, 0
  %64 = vmatprep.subr.mxu0 0.0
  %65 = vmatpush1.msra.mxu0 0.0
  %66 = vmatprep.subr.mxu0 0.0
  %67 = vmatpush1.msra.mxu0 0.0
  %68 = vmatprep.subr.mxu0 0.0
  %69 = vmatpush1.msra.mxu0 0.0
  %70 = vmatprep.subr.mxu0 %v62
  %71 = vmatpush1.msra.mxu0 %v59
  %72 = vmatprep.subr.mxu0 %v38
  %73 = vmatpush1.msra.mxu0 %v37
  %74 = vmatprep.subr.mxu0 %v36
  %75 = vmatpush1.msra.mxu0 %v35
  %76 = vmatprep.subr.mxu0 %v34
  %77 = vmatpush1.msra.mxu0 %v33
  %78 = vmatprep.subr.mxu0 %v32
  %79 = vmatpush1.msra.mxu0 %v31
  %80 = vmatprep.subr.mxu0 %v30
  %81 = vmatpush1.msra.mxu0 %v29
  %82 = vmatprep.subr.mxu0 %v28
  %83 = vmatpush1.msra.mxu0 %v27
  %84 = vmatprep.subr.mxu0 %v26
  %85 = vmatpush1.msra.mxu0 %v25
  %86 = vmatprep.subr.mxu0 %v24
  %87 = vmatpush1.msra.mxu0 %v23
  %88 = vmatprep.subr.mxu0 %v22
  %89 = vmatpush1.msra.mxu0 %v21
  %90 = vmatprep.subr.mxu0 %v20
  %91 = vmatpush1.msra.mxu0 %v19
  %92 = vmatprep.subr.mxu0 %v18
  %93 = vmatpush1.msra.mxu0 %v17
  %94 = vmatprep.subr.mxu0 %v16
  %95 = vmatpush1.msra.mxu0 %v15
  %96 = vmatprep.subr.mxu0 0.0
  %97 = vmatpush2.msra.mxu0 0.0
  %98 = vmatprep.subr.mxu0 0.0
  %99 = vmatpush2.msra.mxu0 0.0
  %100 = vmatprep.subr.mxu0 0.0
  %101 = vmatpush2.msra.mxu0 0.0
  %102 = vmatprep.subr.mxu0 0.0
  %103 = vmatpush2.msra.mxu0 0.0
  %104 = vmatprep.subr.mxu0 0.0
  %105 = vmatpush2.msra.mxu0 0.0
  %106 = vmatprep.subr.mxu0 0.0
  %107 = vmatpush2.msra.mxu0 0.0
  %108 = vmatprep.subr.mxu0 0.0
  %109 = vmatpush2.msra.mxu0 0.0
  %110 = vmatprep.subr.mxu0 0.0
  %111 = vmatpush2.msra.mxu0 0.0
  %112 = vmatprep.subr.mxu0 0.0
  %113 = vmatpush2.msra.mxu0 0.0
  %114 = vmatprep.subr.mxu0 0.0
  %115 = vmatpush2.msra.mxu0 0.0
  %116 = vmatprep.subr.mxu0 0.0
  %117 = vmatpush2.msra.mxu0 0.0
  %118 = vmatprep.subr.mxu0 0.0
  %119 = vmatpush2.msra.mxu0 0.0
  %120 = vmatprep.subr.mxu0 0.0
  %121 = vmatpush2.msra.mxu0 0.0
  %122 = vmatprep.subr.mxu0 0.0
  %123 = vmatpush2.msra.mxu0 0.0
  %124 = vmatprep.subr.mxu0 0.0
  %125 = vmatpush2.msra.mxu0 0.0
  %126 = vmatprep.subr.mxu0 0.0
  %127 = vmatpush2.msra.mxu0 0.0
  %128 = vmatprep.mubr.f32.mxu0 0.0
  %129 = vmatmul.mubr.f32.gmra.mxu0 %v55
  %v130 = vpop.f32.mrf.mxu0
  %v131 = vadd.f32 %v46, %v130
  %v132 = vpop.f32.mrf.mxu0
  %v133 = vadd.f32 %v50, %v132
  %134 = vdwg.mxu0
  %v135 = vmax.f32 %v131, 0.0
  %v136 = vmax.f32 %v133, 0.0
  %137 = vst [vmem:[%s3] sm:$0xff] %v135
  %vm138 = vcmask 588800
  %139 = vst.msk [vmem:[%s3 + $0x8] sm:$0xff] %vm138, %v136
  // Predicated region
  $region14: #{base_model_forward.48} parent=0 // pred_check
    _
  $region15: #{base_model_forward.48} parent=0 // pred_check_branch
    %141 = sbr.rel (0) target = $region17
  $region16: #{base_model_forward.48} parent=0 // pred_region
    _
  $region17: #{base_model_forward.48} parent=0 // pred_fallthru
    _
  // Predicated region
  $region18: #{base_model_forward.48} parent=0 // pred_check
    _
  $region19: #{base_model_forward.48} parent=0 // pred_check_branch
    %143 = sbr.rel (0) target = $region21
  $region20: #{base_model_forward.48} parent=0 // pred_region
    _
  $region21: #{base_model_forward.48} parent=0 // pred_fallthru
    _

</llo_original>
